<compile_context>
chip_gen: v7x
topology: tpu7x:2x2x1
jax: 0.10.0
libtpu: 0.0.40
codegen_flags: <defaults>
</compile_context>

<pallas_src>
import functools

import jax
import jax.numpy as jnp
import numpy as np
from jax.experimental import pallas as pl
from jax.experimental.pallas import tpu as pltpu


# ---------------------------------------------------------------------------
# Fused kernel
# ---------------------------------------------------------------------------
def _fused_kernel(x_ref, w_ref, b_ref,
                  bn_g_ref, bn_b_ref, bn_m_ref, bn_v_ref,
                  fc_w_ref, fc_b_ref,
                  dc1_w_ref, dc1_b_ref,
                  dc2_w_ref, dc2_b_ref,
                  feat_ref, gfeat_ref, lfeat_ref, logits_ref, vlogits_ref,
                  gsum_ref,
                  *, hw_total):
    s = pl.program_id(1)
    n_s = pl.num_programs(1)

    @pl.when(s == 0)
    def _init():
        gsum_ref[...] = jnp.zeros_like(gsum_ref)

    x = x_ref[0]                      # [TR, Cin] f32, channels-last rows
    cin = x.shape[1]

    # TODO(synk): pretrained resnet50 backbone has no clean Pallas equivalent;
    # this is a deterministic stand-in pointwise (1x1) conv + ReLU producing
    # the 2048-channel feature map.  For tiny Cin the K-contraction is a
    # degenerate MXU shape, so it is done as Cin VPU broadcast-FMAs instead.
    if cin <= 16:
        y = x[:, 0:1] * w_ref[0:1, :]
        for c in range(1, cin):       # static, fully unrolled (cin is tiny)
            y = y + x[:, c:c + 1] * w_ref[c:c + 1, :]
    else:
        y = jnp.dot(x, w_ref[...], preferred_element_type=jnp.float32)
    y = y + b_ref[...]
    y = jnp.maximum(y, 0.0)           # [TR, Cout] f32

    # Stream the feature tile to HBM (bf16 by default halves the dominant
    # writeback).  Math stays f32; only the store is cast.
    feat_ref[0] = y.astype(feat_ref.dtype)

    # Partial spatial sum for the global average pool (f32 accumulator).
    gsum_ref[...] += jnp.sum(y, axis=0, keepdims=True)

    # On the last spatial tile of this sample: finish the head.
    @pl.when(s == n_s - 1)
    def _finalize():
        g = gsum_ref[...] * (1.0 / float(hw_total))          # [1, Cout]
        gfeat_ref[0] = g.astype(gfeat_ref.dtype)

        # BatchNorm1d(planes), inference semantics, eps = 1e-5.
        eps = 1e-5
        lf = (g - bn_m_ref[...]) * jax.lax.rsqrt(bn_v_ref[...] + eps)
        lf = lf * bn_g_ref[...] + bn_b_ref[...]
        lfeat_ref[0] = lf.astype(lfeat_ref.dtype)

        # fc logits (columns zero-padded to 128 in the wrapper, sliced there).
        logits_ref[0] = (jnp.dot(lf, fc_w_ref[...],
                                 preferred_element_type=jnp.float32)
                         + fc_b_ref[...]).astype(logits_ref.dtype)

        # domain_classifier: grad_reverse = identity (forward),
        # Dropout2d(0.5) = identity (inference), leaky_relu slope 0.01,
        # final sigmoid as in the PyTorch module.
        h1 = (jnp.dot(lf, dc1_w_ref[...], preferred_element_type=jnp.float32)
              + dc1_b_ref[...])
        h1 = jnp.where(h1 >= 0, h1, 0.01 * h1)
        v = (jnp.dot(h1, dc2_w_ref[...], preferred_element_type=jnp.float32)
             + dc2_b_ref[...])
        vlogits_ref[0] = jax.nn.sigmoid(v).astype(vlogits_ref.dtype)


# ---------------------------------------------------------------------------
# Wrapper
# ---------------------------------------------------------------------------
def _pad_cols(a, mult=128):
    pad = (-a.shape[-1]) % mult
    if pad == 0:
        return a
    return jnp.pad(a, [(0, 0)] * (a.ndim - 1) + [(0, pad)])


def _pick_spatial_tile(hw, requested=None):
    if requested is not None:
        if hw % requested != 0:
            raise ValueError("spatial_tile must divide H*W")
        return requested
    cap = min(hw, 512)
    for t in range(cap - cap % 8, 7, -8):   # largest mult-of-8 divisor <= 512
        if hw % t == 0:
            return t
    return hw                                # fallback: one full-extent tile


def model_forward(x_nchw, params, *, spatial_tile=None,
                  feat_dtype=jnp.bfloat16, return_nchw_feat=False):
    """Fused forward pass.

    Returns (feat, global_feat, local_feat, logits, view_logits).

    NOTE: `feat` is returned channels-last ([N, H, W, C], NHWC) by default so
    the kernel can stream it straight to HBM without an extra full-tensor
    transpose (same values as PyTorch's NCHW, different layout).  Pass
    return_nchw_feat=True for the PyTorch layout (costs one extra HBM pass).
    """
    N, Cin, H, W = x_nchw.shape
    HW = H * W
    w = params["base_w"]
    b = params["base_b"]
    Cout = w.shape[1]
    num_classes = params["fc_w"].shape[1]
    cam_classes = params["dc2_w"].shape[1]

    TR = _pick_spatial_tile(HW, spatial_tile)
    S = HW // TR

    # channels-last rows for the kernel; tiny vs. feat traffic (Cin << Cout).
    x_rows = jnp.transpose(x_nchw, (0, 2, 3, 1)).reshape(N, HW, Cin)
    x_rows = x_rows.astype(jnp.float32)

    # pad classifier columns to lane-dense multiples of 128 (sliced below).
    fc_w = _pad_cols(params["fc_w"])
    fc_b = _pad_cols(params["fc_b"])
    dc2_w = _pad_cols(params["dc2_w"])
    dc2_b = _pad_cols(params["dc2_b"])
    ncp = fc_w.shape[1]
    ccp = dc2_w.shape[1]

    in_arrays = (x_rows, w, b,
                 params["bn_gamma"], params["bn_beta"],
                 params["bn_mean"], params["bn_var"],
                 fc_w, fc_b,
                 params["dc1_w"], params["dc1_b"],
                 dc2_w, dc2_b)

    def full(arr):
        return pl.BlockSpec(arr.shape, lambda n, s: (0,) * arr.ndim)

    in_specs = [pl.BlockSpec((1, TR, Cin), lambda n, s: (n, s, 0))]
    in_specs += [full(a) for a in in_arrays[1:]]

    out_shapes = (jax.ShapeDtypeStruct((N, HW, Cout), feat_dtype),
                  jax.ShapeDtypeStruct((N, 1, Cout), jnp.float32),
                  jax.ShapeDtypeStruct((N, 1, Cout), jnp.float32),
                  jax.ShapeDtypeStruct((N, 1, ncp), jnp.float32),
                  jax.ShapeDtypeStruct((N, 1, ccp), jnp.float32))
    out_specs = (pl.BlockSpec((1, TR, Cout), lambda n, s: (n, s, 0)),
                 pl.BlockSpec((1, 1, Cout), lambda n, s: (n, 0, 0)),
                 pl.BlockSpec((1, 1, Cout), lambda n, s: (n, 0, 0)),
                 pl.BlockSpec((1, 1, ncp), lambda n, s: (n, 0, 0)),
                 pl.BlockSpec((1, 1, ccp), lambda n, s: (n, 0, 0)))

    kernel = functools.partial(_fused_kernel, hw_total=HW)

    feat_flat, gfeat, lfeat, logits_p, vlogits_p = pl.pallas_call(
        kernel,
        out_shape=out_shapes,
        grid=(N, S),
        in_specs=in_specs,
        out_specs=out_specs,
        scratch_shapes=[pltpu.VMEM((1, Cout), jnp.float32)],
        compiler_params=pltpu.CompilerParams(
            dimension_semantics=("parallel", "arbitrary"),
            vmem_limit_bytes=48 * 1024 * 1024),
    )(*in_arrays)

    feat = feat_flat.reshape(N, H, W, Cout)           # NHWC (channels-last)
    if return_nchw_feat:
        feat = jnp.transpose(feat, (0, 3, 1, 2))      # optional extra HBM pass
    global_feat = gfeat[:, 0, :]
    local_feat = lfeat[:, 0, :]
    logits = logits_p[:, 0, :num_classes]
    view_logits = vlogits_p[:, 0, :cam_classes]
    return feat, global_feat, local_feat, logits, view_logits


# ---------------------------------------------------------------------------
# Deterministic parameter initialization
# ---------------------------------------------------------------------------
def init_params(key, cin=3, planes=2048, num_classes=16, cam_classes=8,
                hidden=512):
    k = jax.random.split(key, 6)
    f32 = jnp.float32
    return {
        # stand-in backbone (1x1 conv, Cin -> planes)
        "base_w": 0.05 * jax.random.normal(k[0], (cin, planes), f32),
        "base_b": jnp.zeros((1, planes), f32),
        # nn.BatchNorm1d(planes)  (running stats, affine)
        "bn_gamma": jnp.ones((1, planes), f32),
        "bn_beta": jnp.zeros((1, planes), f32),
        "bn_mean": 0.01 * (jnp.arange(planes, dtype=f32) / planes).reshape(1, planes),
        "bn_var": 1.0 + 0.001 * (jnp.arange(planes, dtype=f32) / planes).reshape(1, planes),
        # self.fc = nn.Linear(planes, num_classes); init.normal_(std=0.001), bias 0
        # (weights stored pre-transposed as [in, out])
        "fc_w": 0.001 * jax.random.normal(k[1], (planes, num_classes), f32),
        "fc_b": jnp.zeros((1, num_classes), f32),
        # domain_classifier.fc1 = nn.Linear(planes, 512)
        "dc1_w": jax.random.normal(k[2], (planes, hidden), f32) / jnp.sqrt(f32(planes)),
        "dc1_b": 0.01 * jax.random.normal(k[3], (1, hidden), f32),
        # domain_classifier.fc2 = nn.Linear(512, cam_classes)
        "dc2_w": jax.random.normal(k[4], (hidden, cam_classes), f32) / jnp.sqrt(f32(hidden)),
        "dc2_b": 0.01 * jax.random.normal(k[5], (1, cam_classes), f32),
    }


# ---------------------------------------------------------------------------
# Pure-JAX reference (for a numeric sanity check)
# ---------------------------------------------------------------------------
def _reference_forward(x_nchw, params):
    hp = jax.lax.Precision.HIGHEST
    N, Cin, H, W = x_nchw.shape
    x_rows = jnp.transpose(x_nchw, (0, 2, 3, 1)).reshape(N, H * W, Cin)
    feat = jnp.maximum(
        jnp.einsum("nsc,cd->nsd", x_rows, params["base_w"], precision=hp)
        + params["base_b"], 0.0)
    g = jnp.mean(feat, axis=1)
    lf = (g - params["bn_mean"]) * jax.lax.rsqrt(params["bn_var"] + 1e-5)
    lf = lf * params["bn_gamma"] + params["bn_beta"]
    logits = jnp.dot(lf, params["fc_w"], precision=hp) + params["fc_b"]
    h1 = jnp.dot(lf, params["dc1_w"], precision=hp) + params["dc1_b"]
    h1 = jnp.where(h1 >= 0, h1, 0.01 * h1)
    v = jnp.dot(h1, params["dc2_w"], precision=hp) + params["dc2_b"]
    vlogits = jax.nn.sigmoid(v)
    return feat.reshape(N, H, W, -1), g, lf, logits, vlogits


# ---------------------------------------------------------------------------
if __name__ == "__main__":
    key = jax.random.PRNGKey(0)
    pkey, xkey = jax.random.split(key)

    params = init_params(pkey, cin=3, planes=2048, num_classes=16, cam_classes=8)

    # Small NCHW input consistent with the module's conv backbone.
    x = jax.random.normal(xkey, (2, 3, 16, 16), jnp.float32)

    outs = model_forward(x, params, spatial_tile=128)   # 2 spatial tiles/sample
    jax.block_until_ready(outs)
    feat, global_feat, local_feat, logits, view_logits = outs

    assert feat.shape == (2, 16, 16, 2048)      # NHWC (channels-last), bf16
    assert global_feat.shape == (2, 2048)
    assert local_feat.shape == (2, 2048)
    assert logits.shape == (2, 16)
    assert view_logits.shape == (2, 8)

    # Numeric sanity check against a pure-JAX reference.
    rf, rg, rl, rlog, rv = _reference_forward(x, params)
    np.testing.assert_allclose(np.asarray(feat, dtype=np.float32),
                               np.asarray(rf), rtol=2e-2, atol=2e-2)   # bf16 feat
    np.testing.assert_allclose(np.asarray(global_feat), np.asarray(rg),
                               rtol=1e-3, atol=1e-4)
    np.testing.assert_allclose(np.asarray(local_feat), np.asarray(rl),
                               rtol=1e-3, atol=1e-4)
    np.testing.assert_allclose(np.asarray(logits), np.asarray(rlog),
                               rtol=2e-2, atol=2e-3)
    np.testing.assert_allclose(np.asarray(view_logits), np.asarray(rv),
                               rtol=2e-2, atol=2e-3)

    print("KERNEL_OK")
</pallas_src>

<mosaic_0001>
module attributes {stable_mosaic.version = 11 : i64} {
  func.func @_fused_kernel(%arg0: i32, %arg1: i32, %arg2: memref<1x128x3xf32, #tpu.memory_space<vmem>>, %arg3: memref<3x2048xf32, #tpu.memory_space<vmem>>, %arg4: memref<1x2048xf32, #tpu.memory_space<vmem>>, %arg5: memref<1x2048xf32, #tpu.memory_space<vmem>>, %arg6: memref<1x2048xf32, #tpu.memory_space<vmem>>, %arg7: memref<1x2048xf32, #tpu.memory_space<vmem>>, %arg8: memref<1x2048xf32, #tpu.memory_space<vmem>>, %arg9: memref<2048x128xf32, #tpu.memory_space<vmem>>, %arg10: memref<1x128xf32, #tpu.memory_space<vmem>>, %arg11: memref<2048x512xf32, #tpu.memory_space<vmem>>, %arg12: memref<1x512xf32, #tpu.memory_space<vmem>>, %arg13: memref<512x128xf32, #tpu.memory_space<vmem>>, %arg14: memref<1x128xf32, #tpu.memory_space<vmem>>, %arg15: memref<1x128x2048xbf16, #tpu.memory_space<vmem>>, %arg16: memref<1x1x2048xf32, #tpu.memory_space<vmem>>, %arg17: memref<1x1x2048xf32, #tpu.memory_space<vmem>>, %arg18: memref<1x1x128xf32, #tpu.memory_space<vmem>>, %arg19: memref<1x1x128xf32, #tpu.memory_space<vmem>>, %arg20: memref<1x2048xf32, #tpu.memory_space<vmem>>) attributes {dimension_semantics = [#tpu.dimension_semantics<parallel>, #tpu.dimension_semantics<arbitrary>], iteration_bounds = array<i64: 2, 2>, scalar_prefetch = 0 : i64, scratch_operands = 1 : i64, tpu.core_type = #tpu.core_type<tc>, window_params = [{transform_indices = @transform_0, window_bounds = array<i64: 1, 128, 3>}, {pipeline_mode = #tpu.pipeline_mode<synchronous>, transform_indices = @transform_1, window_bounds = array<i64: 3, 2048>}, {pipeline_mode = #tpu.pipeline_mode<synchronous>, transform_indices = @transform_2, window_bounds = array<i64: 1, 2048>}, {pipeline_mode = #tpu.pipeline_mode<synchronous>, transform_indices = @transform_3, window_bounds = array<i64: 1, 2048>}, {pipeline_mode = #tpu.pipeline_mode<synchronous>, transform_indices = @transform_4, window_bounds = array<i64: 1, 2048>}, {pipeline_mode = #tpu.pipeline_mode<synchronous>, transform_indices = @transform_5, window_bounds = array<i64: 1, 2048>}, {pipeline_mode = #tpu.pipeline_mode<synchronous>, transform_indices = @transform_6, window_bounds = array<i64: 1, 2048>}, {pipeline_mode = #tpu.pipeline_mode<synchronous>, transform_indices = @transform_7, window_bounds = array<i64: 2048, 128>}, {pipeline_mode = #tpu.pipeline_mode<synchronous>, transform_indices = @transform_8, window_bounds = array<i64: 1, 128>}, {pipeline_mode = #tpu.pipeline_mode<synchronous>, transform_indices = @transform_9, window_bounds = array<i64: 2048, 512>}, {pipeline_mode = #tpu.pipeline_mode<synchronous>, transform_indices = @transform_10, window_bounds = array<i64: 1, 512>}, {pipeline_mode = #tpu.pipeline_mode<synchronous>, transform_indices = @transform_11, window_bounds = array<i64: 512, 128>}, {pipeline_mode = #tpu.pipeline_mode<synchronous>, transform_indices = @transform_12, window_bounds = array<i64: 1, 128>}, {transform_indices = @transform_13, window_bounds = array<i64: 1, 128, 2048>}, {transform_indices = @transform_14, window_bounds = array<i64: 1, 1, 2048>}, {transform_indices = @transform_15, window_bounds = array<i64: 1, 1, 2048>}, {transform_indices = @transform_16, window_bounds = array<i64: 1, 1, 128>}, {transform_indices = @transform_17, window_bounds = array<i64: 1, 1, 128>}]} {
    %c0_i32 = arith.constant 0 : i32
    %0 = arith.cmpi eq, %arg1, %c0_i32 : i32
    %1 = arith.extui %0 : i1 to i32
    %c0_i32_0 = arith.constant 0 : i32
    %2 = arith.cmpi ne, %1, %c0_i32_0 : i32
    scf.if %2 {
      %cst_18 = arith.constant 0.000000e+00 : f32
      %39 = vector.broadcast %cst_18 : f32 to vector<1x2048xf32>
      %c0_19 = arith.constant 0 : index
      %c0_20 = arith.constant 0 : index
      %40 = vector.load %arg20[%c0_19, %c0_20] : memref<1x2048xf32, #tpu.memory_space<vmem>>, vector<1x2048xf32>
      tpu.vector_store %arg20[%c0_19, %c0_20], %39 {strides = array<i32>} : memref<1x2048xf32, #tpu.memory_space<vmem>>, vector<1x2048xf32>,
    } else {
    }
    %c0 = arith.constant 0 : index
    %c0_1 = arith.constant 0 : index
    %c0_2 = arith.constant 0 : index
    %3 = vector.load %arg2[%c0, %c0_1, %c0_2] : memref<1x128x3xf32, #tpu.memory_space<vmem>>, vector<1x128x3xf32>
    %4 = vector.shape_cast %3 : vector<1x128x3xf32> to vector<128x3xf32>
    %5 = vector.extract_strided_slice %4 {offsets = [0, 0], sizes = [128, 1], strides = [1, 1]} : vector<128x3xf32> to vector<128x1xf32>
    %c0_3 = arith.constant 0 : index
    %c0_4 = arith.constant 0 : index
    %6 = vector.load %arg3[%c0_3, %c0_4] : memref<3x2048xf32, #tpu.memory_space<vmem>>, vector<1x2048xf32>
    %7 = vector.broadcast %5 : vector<128x1xf32> to vector<128x2048xf32>
    %8 = vector.broadcast %6 : vector<1x2048xf32> to vector<128x2048xf32>
    %9 = arith.mulf %7, %8 : vector<128x2048xf32>
    %10 = vector.extract_strided_slice %4 {offsets = [0, 1], sizes = [128, 1], strides = [1, 1]} : vector<128x3xf32> to vector<128x1xf32>
    %c1 = arith.constant 1 : index
    %c0_5 = arith.constant 0 : index
    %11 = vector.load %arg3[%c1, %c0_5] : memref<3x2048xf32, #tpu.memory_space<vmem>>, vector<1x2048xf32>
    %12 = vector.broadcast %10 : vector<128x1xf32> to vector<128x2048xf32>
    %13 = vector.broadcast %11 : vector<1x2048xf32> to vector<128x2048xf32>
    %14 = arith.mulf %12, %13 : vector<128x2048xf32>
    %15 = arith.addf %9, %14 : vector<128x2048xf32>
    %16 = vector.extract_strided_slice %4 {offsets = [0, 2], sizes = [128, 1], strides = [1, 1]} : vector<128x3xf32> to vector<128x1xf32>
    %c2 = arith.constant 2 : index
    %c0_6 = arith.constant 0 : index
    %17 = vector.load %arg3[%c2, %c0_6] : memref<3x2048xf32, #tpu.memory_space<vmem>>, vector<1x2048xf32>
    %18 = vector.broadcast %16 : vector<128x1xf32> to vector<128x2048xf32>
    %19 = vector.broadcast %17 : vector<1x2048xf32> to vector<128x2048xf32>
    %20 = arith.mulf %18, %19 : vector<128x2048xf32>
    %21 = arith.addf %15, %20 : vector<128x2048xf32>
    %c0_7 = arith.constant 0 : index
    %c0_8 = arith.constant 0 : index
    %22 = vector.load %arg4[%c0_7, %c0_8] : memref<1x2048xf32, #tpu.memory_space<vmem>>, vector<1x2048xf32>
    %23 = vector.broadcast %22 : vector<1x2048xf32> to vector<128x2048xf32>
    %24 = arith.addf %21, %23 : vector<128x2048xf32>
    %cst = arith.constant 0.000000e+00 : f32
    %25 = vector.broadcast %cst : f32 to vector<128x2048xf32>
    %26 = arith.maximumf %24, %25 : vector<128x2048xf32>
    %27 = arith.truncf %26 : vector<128x2048xf32> to vector<128x2048xbf16>
    %c0_9 = arith.constant 0 : index
    %c0_10 = arith.constant 0 : index
    %c0_11 = arith.constant 0 : index
    %28 = vector.load %arg15[%c0_9, %c0_10, %c0_11] : memref<1x128x2048xbf16, #tpu.memory_space<vmem>>, vector<1x128x2048xbf16>
    %29 = vector.shape_cast %28 : vector<1x128x2048xbf16> to vector<128x2048xbf16>
    %30 = vector.shape_cast %27 : vector<128x2048xbf16> to vector<1x128x2048xbf16>
    tpu.vector_store %arg15[%c0_9, %c0_10, %c0_11], %30 {strides = array<i32>} : memref<1x128x2048xbf16, #tpu.memory_space<vmem>>, vector<1x128x2048xbf16>,
    %c0_12 = arith.constant 0 : index
    %c0_13 = arith.constant 0 : index
    %31 = vector.load %arg20[%c0_12, %c0_13] : memref<1x2048xf32, #tpu.memory_space<vmem>>, vector<1x2048xf32>
    %cst_14 = arith.constant dense<0.000000e+00> : vector<2048xf32>
    %32 = vector.multi_reduction <add>, %26, %cst_14 [0] : vector<128x2048xf32> to vector<2048xf32>
    %33 = vector.shape_cast %32 : vector<2048xf32> to vector<1x2048xf32>
    %34 = arith.addf %31, %33 : vector<1x2048xf32>
    %c0_15 = arith.constant 0 : index
    %c0_16 = arith.constant 0 : index
    %35 = vector.load %arg20[%c0_15, %c0_16] : memref<1x2048xf32, #tpu.memory_space<vmem>>, vector<1x2048xf32>
    tpu.vector_store %arg20[%c0_15, %c0_16], %34 {strides = array<i32>} : memref<1x2048xf32, #tpu.memory_space<vmem>>, vector<1x2048xf32>,
    %c1_i32 = arith.constant 1 : i32
    %36 = arith.cmpi eq, %arg1, %c1_i32 : i32
    %37 = arith.extui %36 : i1 to i32
    %c0_i32_17 = arith.constant 0 : i32
    %38 = arith.cmpi ne, %37, %c0_i32_17 : i32
    scf.if %38 {
      %c0_18 = arith.constant 0 : index
      %c0_19 = arith.constant 0 : index
      %39 = vector.load %arg20[%c0_18, %c0_19] : memref<1x2048xf32, #tpu.memory_space<vmem>>, vector<1x2048xf32>
      %cst_20 = arith.constant 3.906250e-03 : f32
      %40 = vector.broadcast %cst_20 : f32 to vector<1x2048xf32>
      %41 = arith.mulf %39, %40 : vector<1x2048xf32>
      %c0_21 = arith.constant 0 : index
      %c0_22 = arith.constant 0 : index
      %c0_23 = arith.constant 0 : index
      %42 = vector.load %arg16[%c0_21, %c0_22, %c0_23] : memref<1x1x2048xf32, #tpu.memory_space<vmem>>, vector<1x1x2048xf32>
      %43 = vector.shape_cast %42 : vector<1x1x2048xf32> to vector<1x2048xf32>
      %44 = vector.shape_cast %41 : vector<1x2048xf32> to vector<1x1x2048xf32>
      tpu.vector_store %arg16[%c0_21, %c0_22, %c0_23], %44 {strides = array<i32>} : memref<1x1x2048xf32, #tpu.memory_space<vmem>>, vector<1x1x2048xf32>,
      %c0_24 = arith.constant 0 : index
      %c0_25 = arith.constant 0 : index
      %45 = vector.load %arg7[%c0_24, %c0_25] : memref<1x2048xf32, #tpu.memory_space<vmem>>, vector<1x2048xf32>
      %46 = arith.subf %41, %45 : vector<1x2048xf32>
      %c0_26 = arith.constant 0 : index
      %c0_27 = arith.constant 0 : index
      %47 = vector.load %arg8[%c0_26, %c0_27] : memref<1x2048xf32, #tpu.memory_space<vmem>>, vector<1x2048xf32>
      %cst_28 = arith.constant 9.99999974E-6 : f32
      %48 = vector.broadcast %cst_28 : f32 to vector<1x2048xf32>
      %49 = arith.addf %47, %48 : vector<1x2048xf32>
      %50 = math.rsqrt %49 : vector<1x2048xf32>
      %51 = arith.mulf %46, %50 : vector<1x2048xf32>
      %c0_29 = arith.constant 0 : index
      %c0_30 = arith.constant 0 : index
      %52 = vector.load %arg5[%c0_29, %c0_30] : memref<1x2048xf32, #tpu.memory_space<vmem>>, vector<1x2048xf32>
      %53 = arith.mulf %51, %52 : vector<1x2048xf32>
      %c0_31 = arith.constant 0 : index
      %c0_32 = arith.constant 0 : index
      %54 = vector.load %arg6[%c0_31, %c0_32] : memref<1x2048xf32, #tpu.memory_space<vmem>>, vector<1x2048xf32>
      %55 = arith.addf %53, %54 : vector<1x2048xf32>
      %c0_33 = arith.constant 0 : index
      %c0_34 = arith.constant 0 : index
      %c0_35 = arith.constant 0 : index
      %56 = vector.load %arg17[%c0_33, %c0_34, %c0_35] : memref<1x1x2048xf32, #tpu.memory_space<vmem>>, vector<1x1x2048xf32>
      %57 = vector.shape_cast %56 : vector<1x1x2048xf32> to vector<1x2048xf32>
      %58 = vector.shape_cast %55 : vector<1x2048xf32> to vector<1x1x2048xf32>
      tpu.vector_store %arg17[%c0_33, %c0_34, %c0_35], %58 {strides = array<i32>} : memref<1x1x2048xf32, #tpu.memory_space<vmem>>, vector<1x1x2048xf32>,
      %c0_36 = arith.constant 0 : index
      %c0_37 = arith.constant 0 : index
      %59 = vector.load %arg9[%c0_36, %c0_37] : memref<2048x128xf32, #tpu.memory_space<vmem>>, vector<2048x128xf32>
      %cst_38 = arith.constant dense<0.000000e+00> : vector<1x128xf32>
      %60 = tpu.matmul %55, %59, %cst_38 {dimension_numbers = #tpu.dot_dimension_numbers<[1], [0], [0], [1], [0, 0, 1, 1], [], []>} : vector<1x2048xf32>, vector<2048x128xf32>, vector<1x128xf32> -> vector<1x128xf32>
      %c0_39 = arith.constant 0 : index
      %c0_40 = arith.constant 0 : index
      %61 = vector.load %arg10[%c0_39, %c0_40] : memref<1x128xf32, #tpu.memory_space<vmem>>, vector<1x128xf32>
      %62 = arith.addf %60, %61 : vector<1x128xf32>
      %c0_41 = arith.constant 0 : index
      %c0_42 = arith.constant 0 : index
      %c0_43 = arith.constant 0 : index
      %63 = vector.load %arg18[%c0_41, %c0_42, %c0_43] : memref<1x1x128xf32, #tpu.memory_space<vmem>>, vector<1x1x128xf32>
      %64 = vector.shape_cast %63 : vector<1x1x128xf32> to vector<1x128xf32>
      %65 = vector.shape_cast %62 : vector<1x128xf32> to vector<1x1x128xf32>
      tpu.vector_store %arg18[%c0_41, %c0_42, %c0_43], %65 {strides = array<i32>} : memref<1x1x128xf32, #tpu.memory_space<vmem>>, vector<1x1x128xf32>,
      %c0_44 = arith.constant 0 : index
      %c0_45 = arith.constant 0 : index
      %66 = vector.load %arg11[%c0_44, %c0_45] : memref<2048x512xf32, #tpu.memory_space<vmem>>, vector<2048x512xf32>
      %cst_46 = arith.constant dense<0.000000e+00> : vector<1x512xf32>
      %67 = tpu.matmul %55, %66, %cst_46 {dimension_numbers = #tpu.dot_dimension_numbers<[1], [0], [0], [1], [0, 0, 1, 1], [], []>} : vector<1x2048xf32>, vector<2048x512xf32>, vector<1x512xf32> -> vector<1x512xf32>
      %c0_47 = arith.constant 0 : index
      %c0_48 = arith.constant 0 : index
      %68 = vector.load %arg12[%c0_47, %c0_48] : memref<1x512xf32, #tpu.memory_space<vmem>>, vector<1x512xf32>
      %69 = arith.addf %67, %68 : vector<1x512xf32>
      %cst_49 = arith.constant 0.000000e+00 : f32
      %70 = vector.broadcast %cst_49 : f32 to vector<1x512xf32>
      %71 = arith.cmpf oge, %69, %70 : vector<1x512xf32>
      %cst_50 = arith.constant 0.00999999977 : f32
      %72 = vector.broadcast %cst_50 : f32 to vector<1x512xf32>
      %73 = arith.mulf %72, %69 : vector<1x512xf32>
      %74 = arith.select %71, %69, %73 : vector<1x512xi1>, vector<1x512xf32>
      %c0_51 = arith.constant 0 : index
      %c0_52 = arith.constant 0 : index
      %75 = vector.load %arg13[%c0_51, %c0_52] : memref<512x128xf32, #tpu.memory_space<vmem>>, vector<512x128xf32>
      %cst_53 = arith.constant dense<0.000000e+00> : vector<1x128xf32>
      %76 = tpu.matmul %74, %75, %cst_53 {dimension_numbers = #tpu.dot_dimension_numbers<[1], [0], [0], [1], [0, 0, 1, 1], [], []>} : vector<1x512xf32>, vector<512x128xf32>, vector<1x128xf32> -> vector<1x128xf32>
      %c0_54 = arith.constant 0 : index
      %c0_55 = arith.constant 0 : index
      %77 = vector.load %arg14[%c0_54, %c0_55] : memref<1x128xf32, #tpu.memory_space<vmem>>, vector<1x128xf32>
      %78 = arith.addf %76, %77 : vector<1x128xf32>
      %79 = arith.negf %78 : vector<1x128xf32>
      %80 = math.exp %79 : vector<1x128xf32>
      %cst_56 = arith.constant 1.000000e+00 : f32
      %81 = vector.broadcast %cst_56 : f32 to vector<1x128xf32>
      %82 = arith.addf %81, %80 : vector<1x128xf32>
      %83 = arith.divf %81, %82 : vector<1x128xf32>
      %c0_57 = arith.constant 0 : index
      %c0_58 = arith.constant 0 : index
      %c0_59 = arith.constant 0 : index
      %84 = vector.load %arg19[%c0_57, %c0_58, %c0_59] : memref<1x1x128xf32, #tpu.memory_space<vmem>>, vector<1x1x128xf32>
      %85 = vector.shape_cast %84 : vector<1x1x128xf32> to vector<1x128xf32>
      %86 = vector.shape_cast %83 : vector<1x128xf32> to vector<1x1x128xf32>
      tpu.vector_store %arg19[%c0_57, %c0_58, %c0_59], %86 {strides = array<i32>} : memref<1x1x128xf32, #tpu.memory_space<vmem>>, vector<1x1x128xf32>,
    } else {
    }
    return
  }
  func.func @transform_0(%arg0: i32, %arg1: i32) -> (i32, i32, i32) {
    %c0_i32 = arith.constant 0 : i32
    %c0_i32_0 = arith.constant 0 : i32
    return %arg0, %arg1, %c0_i32 : i32, i32, i32
  }
  func.func @transform_1(%arg0: i32, %arg1: i32) -> (i32, i32) {
    %c0_i32 = arith.constant 0 : i32
    %c0_i32_0 = arith.constant 0 : i32
    %c0_i32_1 = arith.constant 0 : i32
    return %c0_i32, %c0_i32_0 : i32, i32
  }
  func.func @transform_2(%arg0: i32, %arg1: i32) -> (i32, i32) {
    %c0_i32 = arith.constant 0 : i32
    %c0_i32_0 = arith.constant 0 : i32
    %c0_i32_1 = arith.constant 0 : i32
    return %c0_i32, %c0_i32_0 : i32, i32
  }
  func.func @transform_3(%arg0: i32, %arg1: i32) -> (i32, i32) {
    %c0_i32 = arith.constant 0 : i32
    %c0_i32_0 = arith.constant 0 : i32
    %c0_i32_1 = arith.constant 0 : i32
    return %c0_i32, %c0_i32_0 : i32, i32
  }
  func.func @transform_4(%arg0: i32, %arg1: i32) -> (i32, i32) {
    %c0_i32 = arith.constant 0 : i32
    %c0_i32_0 = arith.constant 0 : i32
    %c0_i32_1 = arith.constant 0 : i32
    return %c0_i32, %c0_i32_0 : i32, i32
  }
  func.func @transform_5(%arg0: i32, %arg1: i32) -> (i32, i32) {
    %c0_i32 = arith.constant 0 : i32
    %c0_i32_0 = arith.constant 0 : i32
    %c0_i32_1 = arith.constant 0 : i32
    return %c0_i32, %c0_i32_0 : i32, i32
  }
  func.func @transform_6(%arg0: i32, %arg1: i32) -> (i32, i32) {
    %c0_i32 = arith.constant 0 : i32
    %c0_i32_0 = arith.constant 0 : i32
    %c0_i32_1 = arith.constant 0 : i32
    return %c0_i32, %c0_i32_0 : i32, i32
  }
  func.func @transform_7(%arg0: i32, %arg1: i32) -> (i32, i32) {
    %c0_i32 = arith.constant 0 : i32
    %c0_i32_0 = arith.constant 0 : i32
    %c0_i32_1 = arith.constant 0 : i32
    return %c0_i32, %c0_i32_0 : i32, i32
  }
  func.func @transform_8(%arg0: i32, %arg1: i32) -> (i32, i32) {
    %c0_i32 = arith.constant 0 : i32
    %c0_i32_0 = arith.constant 0 : i32
    %c0_i32_1 = arith.constant 0 : i32
    return %c0_i32, %c0_i32_0 : i32, i32
  }
  func.func @transform_9(%arg0: i32, %arg1: i32) -> (i32, i32) {
    %c0_i32 = arith.constant 0 : i32
    %c0_i32_0 = arith.constant 0 : i32
    %c0_i32_1 = arith.constant 0 : i32
    return %c0_i32, %c0_i32_0 : i32, i32
  }
  func.func @transform_10(%arg0: i32, %arg1: i32) -> (i32, i32) {
    %c0_i32 = arith.constant 0 : i32
    %c0_i32_0 = arith.constant 0 : i32
    %c0_i32_1 = arith.constant 0 : i32
    return %c0_i32, %c0_i32_0 : i32, i32
  }
  func.func @transform_11(%arg0: i32, %arg1: i32) -> (i32, i32) {
    %c0_i32 = arith.constant 0 : i32
    %c0_i32_0 = arith.constant 0 : i32
    %c0_i32_1 = arith.constant 0 : i32
    return %c0_i32, %c0_i32_0 : i32, i32
  }
  func.func @transform_12(%arg0: i32, %arg1: i32) -> (i32, i32) {
    %c0_i32 = arith.constant 0 : i32
    %c0_i32_0 = arith.constant 0 : i32
    %c0_i32_1 = arith.constant 0 : i32
    return %c0_i32, %c0_i32_0 : i32, i32
  }
  func.func @transform_13(%arg0: i32, %arg1: i32) -> (i32, i32, i32) {
    %c0_i32 = arith.constant 0 : i32
    %c0_i32_0 = arith.constant 0 : i32
    return %arg0, %arg1, %c0_i32 : i32, i32, i32
  }
  func.func @transform_14(%arg0: i32, %arg1: i32) -> (i32, i32, i32) {
    %c0_i32 = arith.constant 0 : i32
    %c0_i32_0 = arith.constant 0 : i32
    %c0_i32_1 = arith.constant 0 : i32
    return %arg0, %c0_i32, %c0_i32_0 : i32, i32, i32
  }
  func.func @transform_15(%arg0: i32, %arg1: i32) -> (i32, i32, i32) {
    %c0_i32 = arith.constant 0 : i32
    %c0_i32_0 = arith.constant 0 : i32
    %c0_i32_1 = arith.constant 0 : i32
    return %arg0, %c0_i32, %c0_i32_0 : i32, i32, i32
  }
  func.func @transform_16(%arg0: i32, %arg1: i32) -> (i32, i32, i32) {
    %c0_i32 = arith.constant 0 : i32
    %c0_i32_0 = arith.constant 0 : i32
    %c0_i32_1 = arith.constant 0 : i32
    return %arg0, %c0_i32, %c0_i32_0 : i32, i32, i32
  }
  func.func @transform_17(%arg0: i32, %arg1: i32) -> (i32, i32, i32) {
    %c0_i32 = arith.constant 0 : i32
    %c0_i32_0 = arith.constant 0 : i32
    %c0_i32_1 = arith.constant 0 : i32
    return %arg0, %c0_i32, %c0_i32_0 : i32, i32, i32
  }
}

</mosaic_0001>

<llo_original>
// kernel: tpu_custom_call.1
$region0: #{tpu_custom_call.1}
  #allocation0 [shape = 'u32[]', space=smem, size = 0x4, offset = 0x4, fixed_abs, tag = 'smem constant byte address 0x4 - core index']
  #allocation1 [shape = 'u32[144,128]{1,0:T(1,128)}', space=vmem, size = 0x12000, scoped, tag = 'internal scratch']
  #allocation2 [shape = 'f32[1,2048]{1,0:T(1,128)}', space=vmem, size = 0x2000, scoped, tag = 'scratch operand']
  %s0 = inlined_call_operand.vmem [shape: f32[2,256,3], index: 0, kind: input, shape index: {}]
  %s1 = inlined_call_operand.hbm [shape: f32[3,2048], index: 1, kind: input, shape index: {}]
  %s2 = inlined_call_operand.hbm [shape: f32[1,2048], index: 2, kind: input, shape index: {}]
  %s3 = inlined_call_operand.hbm [shape: f32[1,2048], index: 3, kind: input, shape index: {}]
  %s4 = inlined_call_operand.hbm [shape: f32[1,2048], index: 4, kind: input, shape index: {}]
  %s5 = inlined_call_operand.hbm [shape: f32[1,2048], index: 5, kind: input, shape index: {}]
  %s6 = inlined_call_operand.hbm [shape: f32[1,2048], index: 6, kind: input, shape index: {}]
  %s7 = inlined_call_operand.hbm [shape: f32[2048,128], index: 7, kind: input, shape index: {}]
  %s8 = inlined_call_operand.hbm [shape: f32[1,128], index: 8, kind: input, shape index: {}]
  %s9 = inlined_call_operand.hbm [shape: f32[2048,512], index: 9, kind: input, shape index: {}]
  %s10 = inlined_call_operand.hbm [shape: f32[1,512], index: 10, kind: input, shape index: {}]
  %s11 = inlined_call_operand.hbm [shape: f32[512,128], index: 11, kind: input, shape index: {}]
  %s12 = inlined_call_operand.hbm [shape: f32[1,128], index: 12, kind: input, shape index: {}]
  %s13 = inlined_call_operand.hbm [shape: bf16[2,256,2048], index: 13, kind: output, shape index: {0}]
  %s14 = inlined_call_operand.hbm [shape: f32[2,1,2048], index: 14, kind: output, shape index: {1}]
  %s15 = inlined_call_operand.hbm [shape: f32[2,1,2048], index: 15, kind: output, shape index: {2}]
  %s16 = inlined_call_operand.hbm [shape: f32[2,1,128], index: 16, kind: output, shape index: {3}]
  %s17 = inlined_call_operand.hbm [shape: f32[2,1,128], index: 17, kind: output, shape index: {4}]
  %18 = xla_tuple %s13, %s14, %s15, %s16, %s17
  %s19 = sld [smem:[#allocation0]]
  $region173: #{tpu_custom_call.1} parent=0
    _
  %s21 = ssub.s32 1, %s19
  %s22 = scalar_select 0, %s21, %s19
  $region1: #{tpu_custom_call.1} parent=0
    #allocation3 [shape = 'u8[32768]{0}', space=vmem, size = 0x8000, scoped, tag = 'input window, operand 1, single buffered']
    #allocation4 [shape = 's32[2]{0}', space=sflag, size = 0x8, scoped, tag = 'scoped memory for tpu_custom_call.1']
    #allocation5 [shape = 's32[2]{0}', space=sflag, size = 0x8, scoped, tag = 'scoped memory for tpu_custom_call.1']
    #allocation6 [shape = 'u8[8192]{0}', space=vmem, size = 0x2000, scoped, tag = 'input window, operand 2, single buffered']
    #allocation7 [shape = 's32[1]{0}', space=sflag, size = 0x4, scoped, tag = 'scoped memory for tpu_custom_call.1']
    #allocation8 [shape = 'u8[8192]{0}', space=vmem, size = 0x2000, scoped, tag = 'input window, operand 3, single buffered']
    #allocation9 [shape = 'u8[8192]{0}', space=vmem, size = 0x2000, scoped, tag = 'input window, operand 4, single buffered']
    #allocation10 [shape = 's32[1]{0}', space=sflag, size = 0x4, scoped, tag = 'scoped memory for tpu_custom_call.1']
    #allocation11 [shape = 'u8[8192]{0}', space=vmem, size = 0x2000, scoped, tag = 'input window, operand 5, single buffered']
    #allocation12 [shape = 'u8[8192]{0}', space=vmem, size = 0x2000, scoped, tag = 'input window, operand 6, single buffered']
    #allocation13 [shape = 's32[1]{0}', space=sflag, size = 0x4, scoped, tag = 'scoped memory for tpu_custom_call.1']
    #allocation14 [shape = 'u8[1048576]{0}', space=vmem, size = 0x100000, scoped, tag = 'input window, operand 7, single buffered']
    #allocation15 [shape = 'u8[512]{0}', space=vmem, size = 0x400, scoped, tag = 'input window, operand 8, single buffered']
    #allocation16 [shape = 's32[1]{0}', space=sflag, size = 0x4, scoped, tag = 'scoped memory for tpu_custom_call.1']
    #allocation17 [shape = 'u8[4194304]{0}', space=vmem, size = 0x400000, scoped, tag = 'input window, operand 9, single buffered']
    #allocation18 [shape = 'u8[2048]{0}', space=vmem, size = 0x800, scoped, tag = 'input window, operand 10, single buffered']
    #allocation19 [shape = 's32[1]{0}', space=sflag, size = 0x4, scoped, tag = 'scoped memory for tpu_custom_call.1']
    #allocation20 [shape = 'u8[262144]{0}', space=vmem, size = 0x40000, scoped, tag = 'input window, operand 11, single buffered']
    #allocation21 [shape = 'u8[512]{0}', space=vmem, size = 0x400, scoped, tag = 'input window, operand 12, single buffered']
    #allocation22 [shape = 's32[1]{0}', space=sflag, size = 0x4, scoped, tag = 'scoped memory for tpu_custom_call.1']
    #allocation23 [shape = 'u8[1048576]{0}', space=vmem, size = 0x100000, scoped, tag = 'output window, operand 0']
    #allocation24 [shape = 'u8[16384]{0}', space=vmem, size = 0x4000, scoped, tag = 'output window, operand 1']
    #allocation25 [shape = 's32[2]{0}', space=sflag, size = 0x8, scoped, tag = 'scoped memory for tpu_custom_call.1']
    #allocation26 [shape = 'u8[16384]{0}', space=vmem, size = 0x4000, scoped, tag = 'output window, operand 2']
    #allocation27 [shape = 'u8[1024]{0}', space=vmem, size = 0x400, scoped, tag = 'output window, operand 3']
    #allocation28 [shape = 's32[2]{0}', space=sflag, size = 0x8, scoped, tag = 'scoped memory for tpu_custom_call.1']
    #allocation29 [shape = 'u8[1024]{0}', space=vmem, size = 0x400, scoped, tag = 'output window, operand 4']
    %23 = vsyncpa [#allocation4], 0
    %24 = vsyncpa [#allocation7], 0
    %25 = vsyncpa [#allocation10], 0
    %26 = vsyncpa [#allocation13], 0
    %27 = vsyncpa [#allocation16], 0
    %28 = vsyncpa [#allocation19], 0
    %29 = vsyncpa [#allocation22], 0
    %30 = vsyncpa [#allocation5], 0
    %s31 = scalar_lea.sflag [#allocation5], 1
    %32 = vsyncpa %s31, 0
    %33 = vsyncpa [#allocation25], 0
    %s34 = scalar_lea.sflag [#allocation25], 1
    %35 = vsyncpa %s34, 0
    %36 = vsyncpa [#allocation28], 0
    %s37 = scalar_lea.sflag [#allocation28], 1
    %38 = vsyncpa %s37, 0
    loop: start=0, step=1, limit=6
    $region2: #{tpu_custom_call.1} parent=1 // loop_pre_header
      _
    $region3: #{tpu_custom_call.1} parent=1 // loop_header
      %s40 = sphi 0, %s44
      %p41 = scmp.ge.s32.totalorder %s40, 6
      %s47 = sphi 0, %s59
      %s48 = sphi 0, %s55
      %s49 = sphi 0, %s47
      %s50 = sphi 0, %s48
      %s51 = sphi 0, %s49
      %s52 = sphi 0, %s50
      %s64 = sphi 0, %s66
      %s67 = sphi 0, %s64
      %s68 = sphi 0, %s67
      %s84 = sphi 0, %s68
      %s88 = sphi 0, %s88
      %s90 = sphi 0, %s88
      %s91 = sphi 0, %s90
      %s105 = sphi 0, %s91
      %s109 = sphi 0, %s109
      %s111 = sphi 0, %s109
      %s112 = sphi 0, %s111
      %s126 = sphi 0, %s112
      %s130 = sphi 0, %s130
      %s132 = sphi 0, %s130
      %s133 = sphi 0, %s132
      %s147 = sphi 0, %s133
      %s151 = sphi 0, %s151
      %s153 = sphi 0, %s151
      %s154 = sphi 0, %s153
      %s168 = sphi 0, %s154
      %s172 = sphi 0, %s172
      %s174 = sphi 0, %s172
      %s175 = sphi 0, %s174
      %s189 = sphi 0, %s175
      %s193 = sphi 0, %s193
      %s195 = sphi 0, %s193
      %s196 = sphi 0, %s195
      %s210 = sphi 0, %s196
      %s214 = sphi 0, %s214
      %s216 = sphi 0, %s214
      %s217 = sphi 0, %s216
      %s231 = sphi 0, %s217
      %s235 = sphi 0, %s235
      %s237 = sphi 0, %s235
      %s238 = sphi 0, %s237
      %s252 = sphi 0, %s238
      %s256 = sphi 0, %s256
      %s258 = sphi 0, %s256
      %s259 = sphi 0, %s258
      %s273 = sphi 0, %s259
      %s277 = sphi 0, %s277
      %s279 = sphi 0, %s277
      %s280 = sphi 0, %s279
      %s294 = sphi 0, %s280
      %s298 = sphi 0, %s298
      %s300 = sphi 0, %s298
      %s301 = sphi 0, %s300
      %s315 = sphi 0, %s301
      %s319 = sphi 0, %s319
      %s321 = sphi 0, %s319
      %s322 = sphi 0, %s321
      %s336 = sphi 0, %s322
      %s344 = sphi 0, %s346
      %s347 = sphi 0, %s344
      %s348 = sphi 0, %s347
      %s364 = sphi 0, %s348
      %s370 = sphi 0, %s372
      %s373 = sphi 0, %s370
      %s374 = sphi 0, %s373
      %s390 = sphi 0, %s374
      %s396 = sphi 0, %s398
      %s399 = sphi 0, %s396
      %s400 = sphi 0, %s399
      %s416 = sphi 0, %s400
      %s422 = sphi 0, %s424
      %s425 = sphi 0, %s422
      %s426 = sphi 0, %s425
      %s442 = sphi 0, %s426
      %s448 = sphi 0, %s450
      %s451 = sphi 0, %s448
      %s452 = sphi 0, %s451
      %s468 = sphi 0, %s452
    $region4: #{tpu_custom_call.1} parent=1 // loop_header_branch
      %43 = sbr.rel (%p41) target = $region8
    $region5: #{tpu_custom_call.1} parent=1 // loop_body
      %s45 = ssub.s32 %s40, 1
      %s46 = ssub.s32 %s40, 2
      %s53 = sadd.s32 1, %s48
      %p54 = scmp.ge.s32.totalorder %s53, 2
      %s55 = scalar_select %p54, 0, %s53
      %s56 = sadd.s32 1, %s47
      %s57 = scalar_select %p54, %s56, %s47
      %p58 = scmp.ge.s32.totalorder %s57, 2
      %s59 = scalar_select %p58, 0, %s57
      %s60 = ssub.s32 %s47, %s59
      %s61 = ssub.s32 %s48, %s55
      %s62 = sor.u32 %s60, %s61
      %p63 = scmp.eq.s32.totalorder %s62, 0
      %s65 = sadd.s32 %s64, 1
      %s66 = scalar_select %p63, %s64, %s65
      %p69 = pneg %p63
      %p70 = scmp.eq.s32.totalorder %s40, 3
      %p71 = por %p69, %p70
      %p72 = scmp.ne.s32.totalorder %s64, %s67
      %p73 = scmp.eq.s32.totalorder %s40, 0
      %p74 = por %p72, %p73
      %p75 = scmp.ne.s32.totalorder %s64, %s67
      %p76 = scmp.eq.s32.totalorder %s45, 3
      %p77 = por %p75, %p76
      %p78 = scmp.ne.s32.totalorder %s67, %s68
      %p79 = scmp.eq.s32.totalorder %s45, 0
      %p80 = por %p78, %p79
      %p81 = scmp.ne.s32.totalorder %s67, %s68
      %p82 = scmp.eq.s32.totalorder %s46, 3
      %p83 = por %p81, %p82
      %p85 = scmp.ne.s32.totalorder %s68, %s84
      %p86 = scmp.eq.s32.totalorder %s46, 0
      %p87 = por %p85, %p86
      %s89 = sadd.s32 %s88, 1
      %p92 = scmp.eq.s32.totalorder %s40, 3
      %p93 = scmp.ne.s32.totalorder %s88, %s90
      %p94 = scmp.eq.s32.totalorder %s40, 0
      %p95 = por %p93, %p94
      %p96 = scmp.ne.s32.totalorder %s88, %s90
      %p97 = scmp.eq.s32.totalorder %s45, 3
      %p98 = por %p96, %p97
      %p99 = scmp.ne.s32.totalorder %s90, %s91
      %p100 = scmp.eq.s32.totalorder %s45, 0
      %p101 = por %p99, %p100
      %p102 = scmp.ne.s32.totalorder %s90, %s91
      %p103 = scmp.eq.s32.totalorder %s46, 3
      %p104 = por %p102, %p103
      %p106 = scmp.ne.s32.totalorder %s91, %s105
      %p107 = scmp.eq.s32.totalorder %s46, 0
      %p108 = por %p106, %p107
      %s110 = sadd.s32 %s109, 1
      %p113 = scmp.eq.s32.totalorder %s40, 3
      %p114 = scmp.ne.s32.totalorder %s109, %s111
      %p115 = scmp.eq.s32.totalorder %s40, 0
      %p116 = por %p114, %p115
      %p117 = scmp.ne.s32.totalorder %s109, %s111
      %p118 = scmp.eq.s32.totalorder %s45, 3
      %p119 = por %p117, %p118
      %p120 = scmp.ne.s32.totalorder %s111, %s112
      %p121 = scmp.eq.s32.totalorder %s45, 0
      %p122 = por %p120, %p121
      %p123 = scmp.ne.s32.totalorder %s111, %s112
      %p124 = scmp.eq.s32.totalorder %s46, 3
      %p125 = por %p123, %p124
      %p127 = scmp.ne.s32.totalorder %s112, %s126
      %p128 = scmp.eq.s32.totalorder %s46, 0
      %p129 = por %p127, %p128
      %s131 = sadd.s32 %s130, 1
      %p134 = scmp.eq.s32.totalorder %s40, 3
      %p135 = scmp.ne.s32.totalorder %s130, %s132
      %p136 = scmp.eq.s32.totalorder %s40, 0
      %p137 = por %p135, %p136
      %p138 = scmp.ne.s32.totalorder %s130, %s132
      %p139 = scmp.eq.s32.totalorder %s45, 3
      %p140 = por %p138, %p139
      %p141 = scmp.ne.s32.totalorder %s132, %s133
      %p142 = scmp.eq.s32.totalorder %s45, 0
      %p143 = por %p141, %p142
      %p144 = scmp.ne.s32.totalorder %s132, %s133
      %p145 = scmp.eq.s32.totalorder %s46, 3
      %p146 = por %p144, %p145
      %p148 = scmp.ne.s32.totalorder %s133, %s147
      %p149 = scmp.eq.s32.totalorder %s46, 0
      %p150 = por %p148, %p149
      %s152 = sadd.s32 %s151, 1
      %p155 = scmp.eq.s32.totalorder %s40, 3
      %p156 = scmp.ne.s32.totalorder %s151, %s153
      %p157 = scmp.eq.s32.totalorder %s40, 0
      %p158 = por %p156, %p157
      %p159 = scmp.ne.s32.totalorder %s151, %s153
      %p160 = scmp.eq.s32.totalorder %s45, 3
      %p161 = por %p159, %p160
      %p162 = scmp.ne.s32.totalorder %s153, %s154
      %p163 = scmp.eq.s32.totalorder %s45, 0
      %p164 = por %p162, %p163
      %p165 = scmp.ne.s32.totalorder %s153, %s154
      %p166 = scmp.eq.s32.totalorder %s46, 3
      %p167 = por %p165, %p166
      %p169 = scmp.ne.s32.totalorder %s154, %s168
      %p170 = scmp.eq.s32.totalorder %s46, 0
      %p171 = por %p169, %p170
      %s173 = sadd.s32 %s172, 1
      %p176 = scmp.eq.s32.totalorder %s40, 3
      %p177 = scmp.ne.s32.totalorder %s172, %s174
      %p178 = scmp.eq.s32.totalorder %s40, 0
      %p179 = por %p177, %p178
      %p180 = scmp.ne.s32.totalorder %s172, %s174
      %p181 = scmp.eq.s32.totalorder %s45, 3
      %p182 = por %p180, %p181
      %p183 = scmp.ne.s32.totalorder %s174, %s175
      %p184 = scmp.eq.s32.totalorder %s45, 0
      %p185 = por %p183, %p184
      %p186 = scmp.ne.s32.totalorder %s174, %s175
      %p187 = scmp.eq.s32.totalorder %s46, 3
      %p188 = por %p186, %p187
      %p190 = scmp.ne.s32.totalorder %s175, %s189
      %p191 = scmp.eq.s32.totalorder %s46, 0
      %p192 = por %p190, %p191
      %s194 = sadd.s32 %s193, 1
      %p197 = scmp.eq.s32.totalorder %s40, 3
      %p198 = scmp.ne.s32.totalorder %s193, %s195
      %p199 = scmp.eq.s32.totalorder %s40, 0
      %p200 = por %p198, %p199
      %p201 = scmp.ne.s32.totalorder %s193, %s195
      %p202 = scmp.eq.s32.totalorder %s45, 3
      %p203 = por %p201, %p202
      %p204 = scmp.ne.s32.totalorder %s195, %s196
      %p205 = scmp.eq.s32.totalorder %s45, 0
      %p206 = por %p204, %p205
      %p207 = scmp.ne.s32.totalorder %s195, %s196
      %p208 = scmp.eq.s32.totalorder %s46, 3
      %p209 = por %p207, %p208
      %p211 = scmp.ne.s32.totalorder %s196, %s210
      %p212 = scmp.eq.s32.totalorder %s46, 0
      %p213 = por %p211, %p212
      %s215 = sadd.s32 %s214, 1
      %p218 = scmp.eq.s32.totalorder %s40, 3
      %p219 = scmp.ne.s32.totalorder %s214, %s216
      %p220 = scmp.eq.s32.totalorder %s40, 0
      %p221 = por %p219, %p220
      %p222 = scmp.ne.s32.totalorder %s214, %s216
      %p223 = scmp.eq.s32.totalorder %s45, 3
      %p224 = por %p222, %p223
      %p225 = scmp.ne.s32.totalorder %s216, %s217
      %p226 = scmp.eq.s32.totalorder %s45, 0
      %p227 = por %p225, %p226
      %p228 = scmp.ne.s32.totalorder %s216, %s217
      %p229 = scmp.eq.s32.totalorder %s46, 3
      %p230 = por %p228, %p229
      %p232 = scmp.ne.s32.totalorder %s217, %s231
      %p233 = scmp.eq.s32.totalorder %s46, 0
      %p234 = por %p232, %p233
      %s236 = sadd.s32 %s235, 1
      %p239 = scmp.eq.s32.totalorder %s40, 3
      %p240 = scmp.ne.s32.totalorder %s235, %s237
      %p241 = scmp.eq.s32.totalorder %s40, 0
      %p242 = por %p240, %p241
      %p243 = scmp.ne.s32.totalorder %s235, %s237
      %p244 = scmp.eq.s32.totalorder %s45, 3
      %p245 = por %p243, %p244
      %p246 = scmp.ne.s32.totalorder %s237, %s238
      %p247 = scmp.eq.s32.totalorder %s45, 0
      %p248 = por %p246, %p247
      %p249 = scmp.ne.s32.totalorder %s237, %s238
      %p250 = scmp.eq.s32.totalorder %s46, 3
      %p251 = por %p249, %p250
      %p253 = scmp.ne.s32.totalorder %s238, %s252
      %p254 = scmp.eq.s32.totalorder %s46, 0
      %p255 = por %p253, %p254
      %s257 = sadd.s32 %s256, 1
      %p260 = scmp.eq.s32.totalorder %s40, 3
      %p261 = scmp.ne.s32.totalorder %s256, %s258
      %p262 = scmp.eq.s32.totalorder %s40, 0
      %p263 = por %p261, %p262
      %p264 = scmp.ne.s32.totalorder %s256, %s258
      %p265 = scmp.eq.s32.totalorder %s45, 3
      %p266 = por %p264, %p265
      %p267 = scmp.ne.s32.totalorder %s258, %s259
      %p268 = scmp.eq.s32.totalorder %s45, 0
      %p269 = por %p267, %p268
      %p270 = scmp.ne.s32.totalorder %s258, %s259
      %p271 = scmp.eq.s32.totalorder %s46, 3
      %p272 = por %p270, %p271
      %p274 = scmp.ne.s32.totalorder %s259, %s273
      %p275 = scmp.eq.s32.totalorder %s46, 0
      %p276 = por %p274, %p275
      %s278 = sadd.s32 %s277, 1
      %p281 = scmp.eq.s32.totalorder %s40, 3
      %p282 = scmp.ne.s32.totalorder %s277, %s279
      %p283 = scmp.eq.s32.totalorder %s40, 0
      %p284 = por %p282, %p283
      %p285 = scmp.ne.s32.totalorder %s277, %s279
      %p286 = scmp.eq.s32.totalorder %s45, 3
      %p287 = por %p285, %p286
      %p288 = scmp.ne.s32.totalorder %s279, %s280
      %p289 = scmp.eq.s32.totalorder %s45, 0
      %p290 = por %p288, %p289
      %p291 = scmp.ne.s32.totalorder %s279, %s280
      %p292 = scmp.eq.s32.totalorder %s46, 3
      %p293 = por %p291, %p292
      %p295 = scmp.ne.s32.totalorder %s280, %s294
      %p296 = scmp.eq.s32.totalorder %s46, 0
      %p297 = por %p295, %p296
      %s299 = sadd.s32 %s298, 1
      %p302 = scmp.eq.s32.totalorder %s40, 3
      %p303 = scmp.ne.s32.totalorder %s298, %s300
      %p304 = scmp.eq.s32.totalorder %s40, 0
      %p305 = por %p303, %p304
      %p306 = scmp.ne.s32.totalorder %s298, %s300
      %p307 = scmp.eq.s32.totalorder %s45, 3
      %p308 = por %p306, %p307
      %p309 = scmp.ne.s32.totalorder %s300, %s301
      %p310 = scmp.eq.s32.totalorder %s45, 0
      %p311 = por %p309, %p310
      %p312 = scmp.ne.s32.totalorder %s300, %s301
      %p313 = scmp.eq.s32.totalorder %s46, 3
      %p314 = por %p312, %p313
      %p316 = scmp.ne.s32.totalorder %s301, %s315
      %p317 = scmp.eq.s32.totalorder %s46, 0
      %p318 = por %p316, %p317
      %s320 = sadd.s32 %s319, 1
      %p323 = scmp.eq.s32.totalorder %s40, 3
      %p324 = scmp.ne.s32.totalorder %s319, %s321
      %p325 = scmp.eq.s32.totalorder %s40, 0
      %p326 = por %p324, %p325
      %p327 = scmp.ne.s32.totalorder %s319, %s321
      %p328 = scmp.eq.s32.totalorder %s45, 3
      %p329 = por %p327, %p328
      %p330 = scmp.ne.s32.totalorder %s321, %s322
      %p331 = scmp.eq.s32.totalorder %s45, 0
      %p332 = por %p330, %p331
      %p333 = scmp.ne.s32.totalorder %s321, %s322
      %p334 = scmp.eq.s32.totalorder %s46, 3
      %p335 = por %p333, %p334
      %p337 = scmp.ne.s32.totalorder %s322, %s336
      %p338 = scmp.eq.s32.totalorder %s46, 0
      %p339 = por %p337, %p338
      %s340 = ssub.s32 %s47, %s59
      %s341 = ssub.s32 %s48, %s55
      %s342 = sor.u32 %s340, %s341
      %p343 = scmp.eq.s32.totalorder %s342, 0
      %s345 = sadd.s32 %s344, 1
      %s346 = scalar_select %p343, %s344, %s345
      %p349 = pneg %p343
      %p350 = scmp.eq.s32.totalorder %s40, 3
      %p351 = por %p349, %p350
      %p352 = scmp.ne.s32.totalorder %s344, %s347
      %p353 = scmp.eq.s32.totalorder %s40, 0
      %p354 = por %p352, %p353
      %p355 = scmp.ne.s32.totalorder %s344, %s347
      %p356 = scmp.eq.s32.totalorder %s45, 3
      %p357 = por %p355, %p356
      %p358 = scmp.ne.s32.totalorder %s347, %s348
      %p359 = scmp.eq.s32.totalorder %s45, 0
      %p360 = por %p358, %p359
      %p361 = scmp.ne.s32.totalorder %s347, %s348
      %p362 = scmp.eq.s32.totalorder %s46, 3
      %p363 = por %p361, %p362
      %p365 = scmp.ne.s32.totalorder %s348, %s364
      %p366 = scmp.eq.s32.totalorder %s46, 0
      %p367 = por %p365, %p366
      %s368 = ssub.s32 %s47, %s59
      %p369 = scmp.eq.s32.totalorder %s368, 0
      %s371 = sadd.s32 %s370, 1
      %s372 = scalar_select %p369, %s370, %s371
      %p375 = pneg %p369
      %p376 = scmp.eq.s32.totalorder %s40, 3
      %p377 = por %p375, %p376
      %p378 = scmp.ne.s32.totalorder %s370, %s373
      %p379 = scmp.eq.s32.totalorder %s40, 0
      %p380 = por %p378, %p379
      %p381 = scmp.ne.s32.totalorder %s370, %s373
      %p382 = scmp.eq.s32.totalorder %s45, 3
      %p383 = por %p381, %p382
      %p384 = scmp.ne.s32.totalorder %s373, %s374
      %p385 = scmp.eq.s32.totalorder %s45, 0
      %p386 = por %p384, %p385
      %p387 = scmp.ne.s32.totalorder %s373, %s374
      %p388 = scmp.eq.s32.totalorder %s46, 3
      %p389 = por %p387, %p388
      %p391 = scmp.ne.s32.totalorder %s374, %s390
      %p392 = scmp.eq.s32.totalorder %s46, 0
      %p393 = por %p391, %p392
      %s394 = ssub.s32 %s47, %s59
      %p395 = scmp.eq.s32.totalorder %s394, 0
      %s397 = sadd.s32 %s396, 1
      %s398 = scalar_select %p395, %s396, %s397
      %p401 = pneg %p395
      %p402 = scmp.eq.s32.totalorder %s40, 3
      %p403 = por %p401, %p402
      %p404 = scmp.ne.s32.totalorder %s396, %s399
      %p405 = scmp.eq.s32.totalorder %s40, 0
      %p406 = por %p404, %p405
      %p407 = scmp.ne.s32.totalorder %s396, %s399
      %p408 = scmp.eq.s32.totalorder %s45, 3
      %p409 = por %p407, %p408
      %p410 = scmp.ne.s32.totalorder %s399, %s400
      %p411 = scmp.eq.s32.totalorder %s45, 0
      %p412 = por %p410, %p411
      %p413 = scmp.ne.s32.totalorder %s399, %s400
      %p414 = scmp.eq.s32.totalorder %s46, 3
      %p415 = por %p413, %p414
      %p417 = scmp.ne.s32.totalorder %s400, %s416
      %p418 = scmp.eq.s32.totalorder %s46, 0
      %p419 = por %p417, %p418
      %s420 = ssub.s32 %s47, %s59
      %p421 = scmp.eq.s32.totalorder %s420, 0
      %s423 = sadd.s32 %s422, 1
      %s424 = scalar_select %p421, %s422, %s423
      %p427 = pneg %p421
      %p428 = scmp.eq.s32.totalorder %s40, 3
      %p429 = por %p427, %p428
      %p430 = scmp.ne.s32.totalorder %s422, %s425
      %p431 = scmp.eq.s32.totalorder %s40, 0
      %p432 = por %p430, %p431
      %p433 = scmp.ne.s32.totalorder %s422, %s425
      %p434 = scmp.eq.s32.totalorder %s45, 3
      %p435 = por %p433, %p434
      %p436 = scmp.ne.s32.totalorder %s425, %s426
      %p437 = scmp.eq.s32.totalorder %s45, 0
      %p438 = por %p436, %p437
      %p439 = scmp.ne.s32.totalorder %s425, %s426
      %p440 = scmp.eq.s32.totalorder %s46, 3
      %p441 = por %p439, %p440
      %p443 = scmp.ne.s32.totalorder %s426, %s442
      %p444 = scmp.eq.s32.totalorder %s46, 0
      %p445 = por %p443, %p444
      %s446 = ssub.s32 %s47, %s59
      %p447 = scmp.eq.s32.totalorder %s446, 0
      %s449 = sadd.s32 %s448, 1
      %s450 = scalar_select %p447, %s448, %s449
      %p453 = pneg %p447
      %p454 = scmp.eq.s32.totalorder %s40, 3
      %p455 = por %p453, %p454
      %p456 = scmp.ne.s32.totalorder %s448, %s451
      %p457 = scmp.eq.s32.totalorder %s40, 0
      %p458 = por %p456, %p457
      %p459 = scmp.ne.s32.totalorder %s448, %s451
      %p460 = scmp.eq.s32.totalorder %s45, 3
      %p461 = por %p459, %p460
      %p462 = scmp.ne.s32.totalorder %s451, %s452
      %p463 = scmp.eq.s32.totalorder %s45, 0
      %p464 = por %p462, %p463
      %p465 = scmp.ne.s32.totalorder %s451, %s452
      %p466 = scmp.eq.s32.totalorder %s46, 3
      %p467 = por %p465, %p466
      %p469 = scmp.ne.s32.totalorder %s452, %s468
      %p470 = scmp.eq.s32.totalorder %s46, 0
      %p471 = por %p469, %p470
      %p472 = scmp.le.s32.totalorder 1, %s40
      %p473 = scmp.lt.s32.totalorder %s40, 5
      %p474 = pnand %p472, %p473
      %p475 = pneg %p474
      // Predicated region
      $region9: #{tpu_custom_call.1} parent=5 // pred_check
        _
      $region10: #{tpu_custom_call.1} parent=5 // pred_check_branch
        %477 = sbr.rel (%p474) target = $region12
      $region11: #{tpu_custom_call.1} parent=5 // pred_region
        %s478 = ssub.s32 %s40, 1
        // Predicated region
        $region13: #{tpu_custom_call.1} parent=11 // pred_check
          %p479 = pneg %p101
        $region14: #{tpu_custom_call.1} parent=11 // pred_check_branch
          %481 = sbr.rel (%p479) target = $region16
        $region15: #{tpu_custom_call.1} parent=11 // pred_region
          %s483 = ssub.s32 1024, 1024
          %484 = vsyncadd [#allocation4], %s483
          %s486 = sshll.u32 [#allocation3], 4
          %s487 = int_to_ptr.vmem [resolvable:$true] %s486
          %489 = dma.hbm_to_vmem [thread:$0]  %s1, 1024, %s487, [#allocation4]
        $region16: #{tpu_custom_call.1} parent=11 // pred_fallthru
          _
        // Predicated region
        $region17: #{tpu_custom_call.1} parent=11 // pred_check
          %p490 = pneg %p122
        $region18: #{tpu_custom_call.1} parent=11 // pred_check_branch
          %492 = sbr.rel (%p490) target = $region20
        $region19: #{tpu_custom_call.1} parent=11 // pred_region
          %s494 = ssub.s32 256, 256
          %495 = vsyncadd [#allocation7], %s494
          %s497 = sshll.u32 [#allocation6], 4
          %s498 = int_to_ptr.vmem [resolvable:$true] %s497
          %500 = dma.hbm_to_vmem [thread:$0]  %s2, 256, %s498, [#allocation7]
        $region20: #{tpu_custom_call.1} parent=11 // pred_fallthru
          _
        // Predicated region
        $region21: #{tpu_custom_call.1} parent=11 // pred_check
          %p501 = pneg %p143
        $region22: #{tpu_custom_call.1} parent=11 // pred_check_branch
          %503 = sbr.rel (%p501) target = $region24
        $region23: #{tpu_custom_call.1} parent=11 // pred_region
          %s505 = ssub.s32 256, 256
          %506 = vsyncadd [#allocation7], %s505
          %s508 = sshll.u32 [#allocation8], 4
          %s509 = int_to_ptr.vmem [resolvable:$true] %s508
          %511 = dma.hbm_to_vmem [thread:$0]  %s3, 256, %s509, [#allocation7]
        $region24: #{tpu_custom_call.1} parent=11 // pred_fallthru
          _
        // Predicated region
        $region25: #{tpu_custom_call.1} parent=11 // pred_check
          %p512 = pneg %p164
        $region26: #{tpu_custom_call.1} parent=11 // pred_check_branch
          %514 = sbr.rel (%p512) target = $region28
        $region27: #{tpu_custom_call.1} parent=11 // pred_region
          %s516 = ssub.s32 256, 256
          %517 = vsyncadd [#allocation10], %s516
          %s519 = sshll.u32 [#allocation9], 4
          %s520 = int_to_ptr.vmem [resolvable:$true] %s519
          %522 = dma.hbm_to_vmem [thread:$0]  %s4, 256, %s520, [#allocation10]
        $region28: #{tpu_custom_call.1} parent=11 // pred_fallthru
          _
        // Predicated region
        $region29: #{tpu_custom_call.1} parent=11 // pred_check
          %p523 = pneg %p185
        $region30: #{tpu_custom_call.1} parent=11 // pred_check_branch
          %525 = sbr.rel (%p523) target = $region32
        $region31: #{tpu_custom_call.1} parent=11 // pred_region
          %s527 = ssub.s32 256, 256
          %528 = vsyncadd [#allocation10], %s527
          %s530 = sshll.u32 [#allocation11], 4
          %s531 = int_to_ptr.vmem [resolvable:$true] %s530
          %533 = dma.hbm_to_vmem [thread:$0]  %s5, 256, %s531, [#allocation10]
        $region32: #{tpu_custom_call.1} parent=11 // pred_fallthru
          _
        // Predicated region
        $region33: #{tpu_custom_call.1} parent=11 // pred_check
          %p534 = pneg %p206
        $region34: #{tpu_custom_call.1} parent=11 // pred_check_branch
          %536 = sbr.rel (%p534) target = $region36
        $region35: #{tpu_custom_call.1} parent=11 // pred_region
          %s538 = ssub.s32 256, 256
          %539 = vsyncadd [#allocation13], %s538
          %s541 = sshll.u32 [#allocation12], 4
          %s542 = int_to_ptr.vmem [resolvable:$true] %s541
          %544 = dma.hbm_to_vmem [thread:$0]  %s6, 256, %s542, [#allocation13]
        $region36: #{tpu_custom_call.1} parent=11 // pred_fallthru
          _
        // Predicated region
        $region37: #{tpu_custom_call.1} parent=11 // pred_check
          %p545 = pneg %p227
        $region38: #{tpu_custom_call.1} parent=11 // pred_check_branch
          %547 = sbr.rel (%p545) target = $region40
        $region39: #{tpu_custom_call.1} parent=11 // pred_region
          %s549 = ssub.s32 32768, 32768
          %550 = vsyncadd [#allocation13], %s549
          %s551 = sshll.u32 [#allocation14], 4
          %s552 = int_to_ptr.vmem [resolvable:$true] %s551
          %557 = dma.hbm_to_vmem [thread:$0]  %s7, 32768, %s552, [#allocation13], 128, 128, 8
        $region40: #{tpu_custom_call.1} parent=11 // pred_fallthru
          _
        // Predicated region
        $region41: #{tpu_custom_call.1} parent=11 // pred_check
          %p558 = pneg %p248
        $region42: #{tpu_custom_call.1} parent=11 // pred_check_branch
          %560 = sbr.rel (%p558) target = $region44
        $region43: #{tpu_custom_call.1} parent=11 // pred_region
          %s562 = ssub.s32 16, 16
          %563 = vsyncadd [#allocation16], %s562
          %s565 = sshll.u32 [#allocation15], 4
          %s566 = int_to_ptr.vmem [resolvable:$true] %s565
          %568 = dma.hbm_to_vmem [thread:$0]  %s8, 16, %s566, [#allocation16]
        $region44: #{tpu_custom_call.1} parent=11 // pred_fallthru
          _
        // Predicated region
        $region45: #{tpu_custom_call.1} parent=11 // pred_check
          %p569 = pneg %p269
        $region46: #{tpu_custom_call.1} parent=11 // pred_check_branch
          %571 = sbr.rel (%p569) target = $region48
        $region47: #{tpu_custom_call.1} parent=11 // pred_region
          %s573 = ssub.s32 131072, 131072
          %574 = vsyncadd [#allocation16], %s573
          %s575 = sshll.u32 [#allocation17], 4
          %s576 = int_to_ptr.vmem [resolvable:$true] %s575
          %581 = dma.hbm_to_vmem [thread:$0]  %s9, 131072, %s576, [#allocation16], 512, 512, 32
        $region48: #{tpu_custom_call.1} parent=11 // pred_fallthru
          _
        // Predicated region
        $region49: #{tpu_custom_call.1} parent=11 // pred_check
          %p582 = pneg %p290
        $region50: #{tpu_custom_call.1} parent=11 // pred_check_branch
          %584 = sbr.rel (%p582) target = $region52
        $region51: #{tpu_custom_call.1} parent=11 // pred_region
          %s586 = ssub.s32 64, 64
          %587 = vsyncadd [#allocation19], %s586
          %s589 = sshll.u32 [#allocation18], 4
          %s590 = int_to_ptr.vmem [resolvable:$true] %s589
          %592 = dma.hbm_to_vmem [thread:$0]  %s10, 64, %s590, [#allocation19]
        $region52: #{tpu_custom_call.1} parent=11 // pred_fallthru
          _
        // Predicated region
        $region53: #{tpu_custom_call.1} parent=11 // pred_check
          %p593 = pneg %p311
        $region54: #{tpu_custom_call.1} parent=11 // pred_check_branch
          %595 = sbr.rel (%p593) target = $region56
        $region55: #{tpu_custom_call.1} parent=11 // pred_region
          %s597 = ssub.s32 8192, 8192
          %598 = vsyncadd [#allocation19], %s597
          %s599 = sshll.u32 [#allocation20], 4
          %s600 = int_to_ptr.vmem [resolvable:$true] %s599
          %605 = dma.hbm_to_vmem [thread:$0]  %s11, 8192, %s600, [#allocation19], 128, 128, 8
        $region56: #{tpu_custom_call.1} parent=11 // pred_fallthru
          _
        // Predicated region
        $region57: #{tpu_custom_call.1} parent=11 // pred_check
          %p606 = pneg %p332
        $region58: #{tpu_custom_call.1} parent=11 // pred_check_branch
          %608 = sbr.rel (%p606) target = $region60
        $region59: #{tpu_custom_call.1} parent=11 // pred_region
          %s610 = ssub.s32 16, 16
          %611 = vsyncadd [#allocation22], %s610
          %s613 = sshll.u32 [#allocation21], 4
          %s614 = int_to_ptr.vmem [resolvable:$true] %s613
          %616 = dma.hbm_to_vmem [thread:$0]  %s12, 16, %s614, [#allocation22]
        $region60: #{tpu_custom_call.1} parent=11 // pred_fallthru
          _
      $region12: #{tpu_custom_call.1} parent=5 // pred_fallthru
        _
      %p617 = scmp.lt.s32.totalorder %s40, 4
      // Predicated region
      $region61: #{tpu_custom_call.1} parent=5 // pred_check
        %p618 = pneg %p617
      $region62: #{tpu_custom_call.1} parent=5 // pred_check_branch
        %620 = sbr.rel (%p618) target = $region64
      $region63: #{tpu_custom_call.1} parent=5 // pred_region
        // Predicated region
        $region65: #{tpu_custom_call.1} parent=63 // pred_check
          %p621 = pneg %p74
        $region66: #{tpu_custom_call.1} parent=63 // pred_check_branch
          %623 = sbr.rel (%p621) target = $region68
        $region67: #{tpu_custom_call.1} parent=63 // pred_region
          %s624 = smul.u32 16, %s48
          %p625 = scmp.lt.s32.totalorder %s47, 1
          %s626 = scalar_select %p625, %s47, 1
          %p627 = scmp.lt.s32.totalorder %s624, 31
          %s628 = scalar_select %p627, %s624, 31
          %s629 = smul.addr %s626, 32
          %s630 = sadd.s32 %s628, %s629
          %s631 = smul.addr %s630, 8
          %s632 = scalar_lea.vmem %s0, %s631
          %s633 = smul.u32 16, %s48
        $region68: #{tpu_custom_call.1} parent=63 // pred_fallthru
          _
      $region64: #{tpu_custom_call.1} parent=5 // pred_fallthru
        _
      %p634 = scmp.le.s32.totalorder 1, %s40
      %p635 = scmp.lt.s32.totalorder %s40, 5
      %p636 = pnand %p634, %p635
      %p637 = pneg %p636
      // Predicated region
      $region69: #{tpu_custom_call.1} parent=5 // pred_check
        _
      $region70: #{tpu_custom_call.1} parent=5 // pred_check_branch
        %639 = sbr.rel (%p636) target = $region72
      $region71: #{tpu_custom_call.1} parent=5 // pred_region
        %s640 = ssub.s32 %s40, 1
        // Predicated region
        $region73: #{tpu_custom_call.1} parent=71 // pred_check
          %p641 = pneg %p101
        $region74: #{tpu_custom_call.1} parent=71 // pred_check_branch
          %643 = sbr.rel (%p641) target = $region76
        $region75: #{tpu_custom_call.1} parent=71 // pred_region
          %644 = dma.done [#allocation4], 1024
        $region76: #{tpu_custom_call.1} parent=71 // pred_fallthru
          _
        // Predicated region
        $region77: #{tpu_custom_call.1} parent=71 // pred_check
          %p645 = pneg %p122
        $region78: #{tpu_custom_call.1} parent=71 // pred_check_branch
          %647 = sbr.rel (%p645) target = $region80
        $region79: #{tpu_custom_call.1} parent=71 // pred_region
          %648 = dma.done [#allocation7], 256
        $region80: #{tpu_custom_call.1} parent=71 // pred_fallthru
          _
        // Predicated region
        $region81: #{tpu_custom_call.1} parent=71 // pred_check
          %p649 = pneg %p143
        $region82: #{tpu_custom_call.1} parent=71 // pred_check_branch
          %651 = sbr.rel (%p649) target = $region84
        $region83: #{tpu_custom_call.1} parent=71 // pred_region
          %652 = dma.done [#allocation7], 256
        $region84: #{tpu_custom_call.1} parent=71 // pred_fallthru
          _
        // Predicated region
        $region85: #{tpu_custom_call.1} parent=71 // pred_check
          %p653 = pneg %p164
        $region86: #{tpu_custom_call.1} parent=71 // pred_check_branch
          %655 = sbr.rel (%p653) target = $region88
        $region87: #{tpu_custom_call.1} parent=71 // pred_region
          %656 = dma.done [#allocation10], 256
        $region88: #{tpu_custom_call.1} parent=71 // pred_fallthru
          _
        // Predicated region
        $region89: #{tpu_custom_call.1} parent=71 // pred_check
          %p657 = pneg %p185
        $region90: #{tpu_custom_call.1} parent=71 // pred_check_branch
          %659 = sbr.rel (%p657) target = $region92
        $region91: #{tpu_custom_call.1} parent=71 // pred_region
          %660 = dma.done [#allocation10], 256
        $region92: #{tpu_custom_call.1} parent=71 // pred_fallthru
          _
        // Predicated region
        $region93: #{tpu_custom_call.1} parent=71 // pred_check
          %p661 = pneg %p206
        $region94: #{tpu_custom_call.1} parent=71 // pred_check_branch
          %663 = sbr.rel (%p661) target = $region96
        $region95: #{tpu_custom_call.1} parent=71 // pred_region
          %664 = dma.done [#allocation13], 256
        $region96: #{tpu_custom_call.1} parent=71 // pred_fallthru
          _
        // Predicated region
        $region97: #{tpu_custom_call.1} parent=71 // pred_check
          %p665 = pneg %p227
        $region98: #{tpu_custom_call.1} parent=71 // pred_check_branch
          %667 = sbr.rel (%p665) target = $region100
        $region99: #{tpu_custom_call.1} parent=71 // pred_region
          %668 = dma.done [#allocation13], 32768
        $region100: #{tpu_custom_call.1} parent=71 // pred_fallthru
          _
        // Predicated region
        $region101: #{tpu_custom_call.1} parent=71 // pred_check
          %p669 = pneg %p248
        $region102: #{tpu_custom_call.1} parent=71 // pred_check_branch
          %671 = sbr.rel (%p669) target = $region104
        $region103: #{tpu_custom_call.1} parent=71 // pred_region
          %672 = dma.done [#allocation16], 16
        $region104: #{tpu_custom_call.1} parent=71 // pred_fallthru
          _
        // Predicated region
        $region105: #{tpu_custom_call.1} parent=71 // pred_check
          %p673 = pneg %p269
        $region106: #{tpu_custom_call.1} parent=71 // pred_check_branch
          %675 = sbr.rel (%p673) target = $region108
        $region107: #{tpu_custom_call.1} parent=71 // pred_region
          %676 = dma.done [#allocation16], 131072
        $region108: #{tpu_custom_call.1} parent=71 // pred_fallthru
          _
        // Predicated region
        $region109: #{tpu_custom_call.1} parent=71 // pred_check
          %p677 = pneg %p290
        $region110: #{tpu_custom_call.1} parent=71 // pred_check_branch
          %679 = sbr.rel (%p677) target = $region112
        $region111: #{tpu_custom_call.1} parent=71 // pred_region
          %680 = dma.done [#allocation19], 64
        $region112: #{tpu_custom_call.1} parent=71 // pred_fallthru
          _
        // Predicated region
        $region113: #{tpu_custom_call.1} parent=71 // pred_check
          %p681 = pneg %p311
        $region114: #{tpu_custom_call.1} parent=71 // pred_check_branch
          %683 = sbr.rel (%p681) target = $region116
        $region115: #{tpu_custom_call.1} parent=71 // pred_region
          %684 = dma.done [#allocation19], 8192
        $region116: #{tpu_custom_call.1} parent=71 // pred_fallthru
          _
        // Predicated region
        $region117: #{tpu_custom_call.1} parent=71 // pred_check
          %p685 = pneg %p332
        $region118: #{tpu_custom_call.1} parent=71 // pred_check_branch
          %687 = sbr.rel (%p685) target = $region120
        $region119: #{tpu_custom_call.1} parent=71 // pred_region
          %688 = dma.done [#allocation22], 16
        $region120: #{tpu_custom_call.1} parent=71 // pred_fallthru
          _
        %s689 = smul.u32 16, %s50
        %p690 = scmp.lt.s32.totalorder %s49, 1
        %s691 = scalar_select %p690, %s49, 1
        %p692 = scmp.lt.s32.totalorder %s689, 31
        %s693 = scalar_select %p692, %s689, 31
        %s694 = smul.addr %s691, 32
        %s695 = sadd.s32 %s693, %s694
        %s696 = smul.addr %s695, 8
        %s697 = scalar_lea.vmem %s0, %s696
        %p698 = pneg %p80
        %p699 = pneg %p77
        %p700 = pneg %p101
        %p701 = pneg %p98
        %p702 = pneg %p122
        %p703 = pneg %p119
        %p704 = pneg %p143
        %p705 = pneg %p140
        %p706 = pneg %p164
        %p707 = pneg %p161
        %p708 = pneg %p185
        %p709 = pneg %p182
        %p710 = pneg %p206
        %p711 = pneg %p203
        %p712 = pneg %p227
        %p713 = pneg %p224
        %p714 = pneg %p248
        %p715 = pneg %p245
        %p716 = pneg %p269
        %p717 = pneg %p266
        %p718 = pneg %p290
        %p719 = pneg %p287
        %p720 = pneg %p311
        %p721 = pneg %p308
        %p722 = pneg %p332
        %p723 = pneg %p329
        %p724 = pneg %p360
        %p725 = pneg %p357
        %s726 = sand.u32 %s347, 1
        %s727 = scalar_lea.sflag [#allocation5], %s726
        %s728 = sand.u32 %s347, 1
        %s729 = smul.addr %s728, 1024
        %s730 = scalar_lea.vmem [#allocation23], %s729
        %p731 = pneg %p386
        %p732 = pneg %p383
        %s733 = sand.u32 %s45, 1
        %s734 = scalar_lea.sflag [#allocation25], %s733
        %s735 = sand.u32 %s373, 1
        %s736 = smul.addr %s735, 16
        %s737 = scalar_lea.vmem [#allocation24], %s736
        %p738 = pneg %p412
        %p739 = pneg %p409
        %s740 = sand.u32 %s45, 1
        %s741 = scalar_lea.sflag [#allocation25], %s740
        %s742 = sand.u32 %s399, 1
        %s743 = smul.addr %s742, 16
        %s744 = scalar_lea.vmem [#allocation26], %s743
        %p745 = pneg %p438
        %p746 = pneg %p435
        %s747 = sand.u32 %s45, 1
        %s748 = scalar_lea.sflag [#allocation28], %s747
        %s749 = sand.u32 %s425, 1
        %s750 = scalar_lea.vmem [#allocation27], %s749
        %p751 = pneg %p464
        %p752 = pneg %p461
        %s753 = sand.u32 %s45, 1
        %s754 = scalar_lea.sflag [#allocation28], %s753
        %s755 = sand.u32 %s451, 1
        %s756 = scalar_lea.vmem [#allocation29], %s755
        %s757 = smul.u32 16, %s50
        %p758 = scmp.lt.s32.totalorder %s49, 1
        %s759 = scalar_select %p758, %s49, 1
        %p760 = scmp.lt.s32.totalorder %s757, 31
        %s761 = scalar_select %p760, %s757, 31
        %s762 = smul.addr %s759, 32
        %s763 = sadd.s32 %s761, %s762
        %s764 = smul.addr %s763, 8
        %s765 = scalar_lea.vmem %s0, %s764
        %s766 = smul.u32 16, %s50
        %s767 = smul.u32 16, %s50
        %p768 = scmp.eq.s32.totalorder %s50, 0
        // Predicated region
        $region121: #{tpu_custom_call.1} parent=71 // pred_check
          %p769 = pneg %p768
        $region122: #{tpu_custom_call.1} parent=71 // pred_check_branch
          %771 = sbr.rel (%p769) target = $region124
        $region123: #{tpu_custom_call.1} parent=71 // pred_region
          %772 = vst [vmem:[#allocation2] sm:$0xff] 0.0
          %773 = vst [vmem:[#allocation2 + $0x8] sm:$0xff] 0.0
        $region124: #{tpu_custom_call.1} parent=71 // pred_fallthru
          _
        %v774 = vld [vmem:[%s765] sm:$0xff]
        %v775 = vld [vmem:[%s765 + $0x8] sm:$0xff]
        %v776 = vld [vmem:[%s765 + $0x10] sm:$0xff]
        %v777 = vld [vmem:[%s765 + $0x18] sm:$0xff]
        %v778 = vld [vmem:[%s765 + $0x20] sm:$0xff]
        %v779 = vld [vmem:[%s765 + $0x28] sm:$0xff]
        %v780 = vld [vmem:[%s765 + $0x30] sm:$0xff]
        %v781 = vld [vmem:[%s765 + $0x38] sm:$0xff]
        %v782 = vld [vmem:[%s765 + $0x40] sm:$0xff]
        %v783 = vld [vmem:[%s765 + $0x48] sm:$0xff]
        %v784 = vld [vmem:[%s765 + $0x50] sm:$0xff]
        %v785 = vld [vmem:[%s765 + $0x58] sm:$0xff]
        %v786 = vld [vmem:[%s765 + $0x60] sm:$0xff]
        %v787 = vld [vmem:[%s765 + $0x68] sm:$0xff]
        %v788 = vld [vmem:[%s765 + $0x70] sm:$0xff]
        %v789 = vld [vmem:[%s765 + $0x78] sm:$0xff]
        %v790 = vld [vmem:[#allocation3] ss:$4 sm:$0xff]
        %s791 = scalar_lea.vmem [#allocation3], 32
        %v792 = vld [vmem:[%s791] ss:$4 sm:$0xff]
        %794 = vset.pattern.permute.xlu0 0
        %795 = vperm.xlu0 %794, %v774
        %v796 = vpop.permute.xlu0 %795
        %799 = vset.pattern.permute.xlu0 0
        %800 = vperm.xlu0 %799, %v775
        %v801 = vpop.permute.xlu0 %800
        %804 = vset.pattern.permute.xlu0 0
        %805 = vperm.xlu0 %804, %v776
        %v806 = vpop.permute.xlu0 %805
        %809 = vset.pattern.permute.xlu0 0
        %810 = vperm.xlu0 %809, %v777
        %v811 = vpop.permute.xlu0 %810
        %814 = vset.pattern.permute.xlu0 0
        %815 = vperm.xlu0 %814, %v778
        %v816 = vpop.permute.xlu0 %815
        %819 = vset.pattern.permute.xlu0 0
        %820 = vperm.xlu0 %819, %v779
        %v821 = vpop.permute.xlu0 %820
        %824 = vset.pattern.permute.xlu0 0
        %825 = vperm.xlu0 %824, %v780
        %v826 = vpop.permute.xlu0 %825
        %829 = vset.pattern.permute.xlu0 0
        %830 = vperm.xlu0 %829, %v781
        %v831 = vpop.permute.xlu0 %830
        %834 = vset.pattern.permute.xlu0 0
        %835 = vperm.xlu0 %834, %v782
        %v836 = vpop.permute.xlu0 %835
        %839 = vset.pattern.permute.xlu0 0
        %840 = vperm.xlu0 %839, %v783
        %v841 = vpop.permute.xlu0 %840
        %844 = vset.pattern.permute.xlu0 0
        %845 = vperm.xlu0 %844, %v784
        %v846 = vpop.permute.xlu0 %845
        %849 = vset.pattern.permute.xlu0 0
        %850 = vperm.xlu0 %849, %v785
        %v851 = vpop.permute.xlu0 %850
        %854 = vset.pattern.permute.xlu0 0
        %855 = vperm.xlu0 %854, %v786
        %v856 = vpop.permute.xlu0 %855
        %859 = vset.pattern.permute.xlu0 0
        %860 = vperm.xlu0 %859, %v787
        %v861 = vpop.permute.xlu0 %860
        %864 = vset.pattern.permute.xlu0 0
        %865 = vperm.xlu0 %864, %v788
        %v866 = vpop.permute.xlu0 %865
        %869 = vset.pattern.permute.xlu0 0
        %870 = vperm.xlu0 %869, %v789
        %v871 = vpop.permute.xlu0 %870
        %v875 = vlaneseq
        %v876 = vshrl.u32 %v875, 7
        %v877 = vsub.s32 0, %v876
        %v878 = vrot.slane %v790, %v877
        %v879 = vlaneseq
        %v880 = vshrl.u32 %v879, 7
        %v881 = vsub.s32 1, %v880
        %v882 = vrot.slane %v790, %v881
        %v883 = vlaneseq
        %v884 = vshrl.u32 %v883, 7
        %v885 = vsub.s32 2, %v884
        %v886 = vrot.slane %v790, %v885
        %v887 = vlaneseq
        %v888 = vshrl.u32 %v887, 7
        %v889 = vsub.s32 3, %v888
        %v890 = vrot.slane %v790, %v889
        %v891 = vlaneseq
        %v892 = vshrl.u32 %v891, 7
        %v893 = vsub.s32 4, %v892
        %v894 = vrot.slane %v790, %v893
        %v895 = vlaneseq
        %v896 = vshrl.u32 %v895, 7
        %v897 = vsub.s32 5, %v896
        %v898 = vrot.slane %v790, %v897
        %v899 = vlaneseq
        %v900 = vshrl.u32 %v899, 7
        %v901 = vsub.s32 6, %v900
        %v902 = vrot.slane %v790, %v901
        %v903 = vlaneseq
        %v904 = vshrl.u32 %v903, 7
        %v905 = vsub.s32 7, %v904
        %v906 = vrot.slane %v790, %v905
        %v907 = vlaneseq
        %v908 = vshrl.u32 %v907, 7
        %v909 = vsub.s32 0, %v908
        %v910 = vrot.slane %v792, %v909
        %v911 = vlaneseq
        %v912 = vshrl.u32 %v911, 7
        %v913 = vsub.s32 1, %v912
        %v914 = vrot.slane %v792, %v913
        %v915 = vlaneseq
        %v916 = vshrl.u32 %v915, 7
        %v917 = vsub.s32 2, %v916
        %v918 = vrot.slane %v792, %v917
        %v919 = vlaneseq
        %v920 = vshrl.u32 %v919, 7
        %v921 = vsub.s32 3, %v920
        %v922 = vrot.slane %v792, %v921
        %v923 = vlaneseq
        %v924 = vshrl.u32 %v923, 7
        %v925 = vsub.s32 4, %v924
        %v926 = vrot.slane %v792, %v925
        %v927 = vlaneseq
        %v928 = vshrl.u32 %v927, 7
        %v929 = vsub.s32 5, %v928
        %v930 = vrot.slane %v792, %v929
        %v931 = vlaneseq
        %v932 = vshrl.u32 %v931, 7
        %v933 = vsub.s32 6, %v932
        %v934 = vrot.slane %v792, %v933
        %v935 = vlaneseq
        %v936 = vshrl.u32 %v935, 7
        %v937 = vsub.s32 7, %v936
        %v938 = vrot.slane %v792, %v937
        %v955 = vmul.f32 %v796, %v878
        %v956 = vmul.f32 %v796, %v882
        %v957 = vmul.f32 %v796, %v886
        %v958 = vmul.f32 %v796, %v890
        %v959 = vmul.f32 %v796, %v894
        %v960 = vmul.f32 %v796, %v898
        %v961 = vmul.f32 %v796, %v902
        %v962 = vmul.f32 %v796, %v906
        %v963 = vmul.f32 %v796, %v910
        %v964 = vmul.f32 %v796, %v914
        %v965 = vmul.f32 %v796, %v918
        %v966 = vmul.f32 %v796, %v922
        %v967 = vmul.f32 %v796, %v926
        %v968 = vmul.f32 %v796, %v930
        %v969 = vmul.f32 %v796, %v934
        %v970 = vmul.f32 %v796, %v938
        %v971 = vmul.f32 %v801, %v878
        %v972 = vmul.f32 %v801, %v882
        %v973 = vmul.f32 %v801, %v886
        %v974 = vmul.f32 %v801, %v890
        %v975 = vmul.f32 %v801, %v894
        %v976 = vmul.f32 %v801, %v898
        %v977 = vmul.f32 %v801, %v902
        %v978 = vmul.f32 %v801, %v906
        %v979 = vmul.f32 %v801, %v910
        %v980 = vmul.f32 %v801, %v914
        %v981 = vmul.f32 %v801, %v918
        %v982 = vmul.f32 %v801, %v922
        %v983 = vmul.f32 %v801, %v926
        %v984 = vmul.f32 %v801, %v930
        %v985 = vmul.f32 %v801, %v934
        %v986 = vmul.f32 %v801, %v938
        %v987 = vmul.f32 %v806, %v878
        %v988 = vmul.f32 %v806, %v882
        %v989 = vmul.f32 %v806, %v886
        %v990 = vmul.f32 %v806, %v890
        %v991 = vmul.f32 %v806, %v894
        %v992 = vmul.f32 %v806, %v898
        %v993 = vmul.f32 %v806, %v902
        %v994 = vmul.f32 %v806, %v906
        %v995 = vmul.f32 %v806, %v910
        %v996 = vmul.f32 %v806, %v914
        %v997 = vmul.f32 %v806, %v918
        %v998 = vmul.f32 %v806, %v922
        %v999 = vmul.f32 %v806, %v926
        %v1000 = vmul.f32 %v806, %v930
        %v1001 = vmul.f32 %v806, %v934
        %v1002 = vmul.f32 %v806, %v938
        %v1003 = vmul.f32 %v811, %v878
        %v1004 = vmul.f32 %v811, %v882
        %v1005 = vmul.f32 %v811, %v886
        %v1006 = vmul.f32 %v811, %v890
        %v1007 = vmul.f32 %v811, %v894
        %v1008 = vmul.f32 %v811, %v898
        %v1009 = vmul.f32 %v811, %v902
        %v1010 = vmul.f32 %v811, %v906
        %v1011 = vmul.f32 %v811, %v910
        %v1012 = vmul.f32 %v811, %v914
        %v1013 = vmul.f32 %v811, %v918
        %v1014 = vmul.f32 %v811, %v922
        %v1015 = vmul.f32 %v811, %v926
        %v1016 = vmul.f32 %v811, %v930
        %v1017 = vmul.f32 %v811, %v934
        %v1018 = vmul.f32 %v811, %v938
        %v1019 = vmul.f32 %v816, %v878
        %v1020 = vmul.f32 %v816, %v882
        %v1021 = vmul.f32 %v816, %v886
        %v1022 = vmul.f32 %v816, %v890
        %v1023 = vmul.f32 %v816, %v894
        %v1024 = vmul.f32 %v816, %v898
        %v1025 = vmul.f32 %v816, %v902
        %v1026 = vmul.f32 %v816, %v906
        %v1027 = vmul.f32 %v816, %v910
        %v1028 = vmul.f32 %v816, %v914
        %v1029 = vmul.f32 %v816, %v918
        %v1030 = vmul.f32 %v816, %v922
        %v1031 = vmul.f32 %v816, %v926
        %v1032 = vmul.f32 %v816, %v930
        %v1033 = vmul.f32 %v816, %v934
        %v1034 = vmul.f32 %v816, %v938
        %v1035 = vmul.f32 %v821, %v878
        %v1036 = vmul.f32 %v821, %v882
        %v1037 = vmul.f32 %v821, %v886
        %v1038 = vmul.f32 %v821, %v890
        %v1039 = vmul.f32 %v821, %v894
        %v1040 = vmul.f32 %v821, %v898
        %v1041 = vmul.f32 %v821, %v902
        %v1042 = vmul.f32 %v821, %v906
        %v1043 = vmul.f32 %v821, %v910
        %v1044 = vmul.f32 %v821, %v914
        %v1045 = vmul.f32 %v821, %v918
        %v1046 = vmul.f32 %v821, %v922
        %v1047 = vmul.f32 %v821, %v926
        %v1048 = vmul.f32 %v821, %v930
        %v1049 = vmul.f32 %v821, %v934
        %v1050 = vmul.f32 %v821, %v938
        %v1051 = vmul.f32 %v826, %v878
        %v1052 = vmul.f32 %v826, %v882
        %v1053 = vmul.f32 %v826, %v886
        %v1054 = vmul.f32 %v826, %v890
        %v1055 = vmul.f32 %v826, %v894
        %v1056 = vmul.f32 %v826, %v898
        %v1057 = vmul.f32 %v826, %v902
        %v1058 = vmul.f32 %v826, %v906
        %v1059 = vmul.f32 %v826, %v910
        %v1060 = vmul.f32 %v826, %v914
        %v1061 = vmul.f32 %v826, %v918
        %v1062 = vmul.f32 %v826, %v922
        %v1063 = vmul.f32 %v826, %v926
        %v1064 = vmul.f32 %v826, %v930
        %v1065 = vmul.f32 %v826, %v934
        %v1066 = vmul.f32 %v826, %v938
        %v1067 = vmul.f32 %v831, %v878
        %v1068 = vmul.f32 %v831, %v882
        %v1069 = vmul.f32 %v831, %v886
        %v1070 = vmul.f32 %v831, %v890
        %v1071 = vmul.f32 %v831, %v894
        %v1072 = vmul.f32 %v831, %v898
        %v1073 = vmul.f32 %v831, %v902
        %v1074 = vmul.f32 %v831, %v906
        %v1075 = vmul.f32 %v831, %v910
        %v1076 = vmul.f32 %v831, %v914
        %v1077 = vmul.f32 %v831, %v918
        %v1078 = vmul.f32 %v831, %v922
        %v1079 = vmul.f32 %v831, %v926
        %v1080 = vmul.f32 %v831, %v930
        %v1081 = vmul.f32 %v831, %v934
        %v1082 = vmul.f32 %v831, %v938
        %v1083 = vmul.f32 %v836, %v878
        %v1084 = vmul.f32 %v836, %v882
        %v1085 = vmul.f32 %v836, %v886
        %v1086 = vmul.f32 %v836, %v890
        %v1087 = vmul.f32 %v836, %v894
        %v1088 = vmul.f32 %v836, %v898
        %v1089 = vmul.f32 %v836, %v902
        %v1090 = vmul.f32 %v836, %v906
        %v1091 = vmul.f32 %v836, %v910
        %v1092 = vmul.f32 %v836, %v914
        %v1093 = vmul.f32 %v836, %v918
        %v1094 = vmul.f32 %v836, %v922
        %v1095 = vmul.f32 %v836, %v926
        %v1096 = vmul.f32 %v836, %v930
        %v1097 = vmul.f32 %v836, %v934
        %v1098 = vmul.f32 %v836, %v938
        %v1099 = vmul.f32 %v841, %v878
        %v1100 = vmul.f32 %v841, %v882
        %v1101 = vmul.f32 %v841, %v886
        %v1102 = vmul.f32 %v841, %v890
        %v1103 = vmul.f32 %v841, %v894
        %v1104 = vmul.f32 %v841, %v898
        %v1105 = vmul.f32 %v841, %v902
        %v1106 = vmul.f32 %v841, %v906
        %v1107 = vmul.f32 %v841, %v910
        %v1108 = vmul.f32 %v841, %v914
        %v1109 = vmul.f32 %v841, %v918
        %v1110 = vmul.f32 %v841, %v922
        %v1111 = vmul.f32 %v841, %v926
        %v1112 = vmul.f32 %v841, %v930
        %v1113 = vmul.f32 %v841, %v934
        %v1114 = vmul.f32 %v841, %v938
        %v1115 = vmul.f32 %v846, %v878
        %v1116 = vmul.f32 %v846, %v882
        %v1117 = vmul.f32 %v846, %v886
        %v1118 = vmul.f32 %v846, %v890
        %v1119 = vmul.f32 %v846, %v894
        %v1120 = vmul.f32 %v846, %v898
        %v1121 = vmul.f32 %v846, %v902
        %v1122 = vmul.f32 %v846, %v906
        %v1123 = vmul.f32 %v846, %v910
        %v1124 = vmul.f32 %v846, %v914
        %v1125 = vmul.f32 %v846, %v918
        %v1126 = vmul.f32 %v846, %v922
        %v1127 = vmul.f32 %v846, %v926
        %v1128 = vmul.f32 %v846, %v930
        %v1129 = vmul.f32 %v846, %v934
        %v1130 = vmul.f32 %v846, %v938
        %v1131 = vmul.f32 %v851, %v878
        %v1132 = vmul.f32 %v851, %v882
        %v1133 = vmul.f32 %v851, %v886
        %v1134 = vmul.f32 %v851, %v890
        %v1135 = vmul.f32 %v851, %v894
        %v1136 = vmul.f32 %v851, %v898
        %v1137 = vmul.f32 %v851, %v902
        %v1138 = vmul.f32 %v851, %v906
        %v1139 = vmul.f32 %v851, %v910
        %v1140 = vmul.f32 %v851, %v914
        %v1141 = vmul.f32 %v851, %v918
        %v1142 = vmul.f32 %v851, %v922
        %v1143 = vmul.f32 %v851, %v926
        %v1144 = vmul.f32 %v851, %v930
        %v1145 = vmul.f32 %v851, %v934
        %v1146 = vmul.f32 %v851, %v938
        %v1147 = vmul.f32 %v856, %v878
        %v1148 = vmul.f32 %v856, %v882
        %v1149 = vmul.f32 %v856, %v886
        %v1150 = vmul.f32 %v856, %v890
        %v1151 = vmul.f32 %v856, %v894
        %v1152 = vmul.f32 %v856, %v898
        %v1153 = vmul.f32 %v856, %v902
        %v1154 = vmul.f32 %v856, %v906
        %v1155 = vmul.f32 %v856, %v910
        %v1156 = vmul.f32 %v856, %v914
        %v1157 = vmul.f32 %v856, %v918
        %v1158 = vmul.f32 %v856, %v922
        %v1159 = vmul.f32 %v856, %v926
        %v1160 = vmul.f32 %v856, %v930
        %v1161 = vmul.f32 %v856, %v934
        %v1162 = vmul.f32 %v856, %v938
        %v1163 = vmul.f32 %v861, %v878
        %v1164 = vmul.f32 %v861, %v882
        %v1165 = vmul.f32 %v861, %v886
        %v1166 = vmul.f32 %v861, %v890
        %v1167 = vmul.f32 %v861, %v894
        %v1168 = vmul.f32 %v861, %v898
        %v1169 = vmul.f32 %v861, %v902
        %v1170 = vmul.f32 %v861, %v906
        %v1171 = vmul.f32 %v861, %v910
        %v1172 = vmul.f32 %v861, %v914
        %v1173 = vmul.f32 %v861, %v918
        %v1174 = vmul.f32 %v861, %v922
        %v1175 = vmul.f32 %v861, %v926
        %v1176 = vmul.f32 %v861, %v930
        %v1177 = vmul.f32 %v861, %v934
        %v1178 = vmul.f32 %v861, %v938
        %v1179 = vmul.f32 %v866, %v878
        %v1180 = vmul.f32 %v866, %v882
        %v1181 = vmul.f32 %v866, %v886
        %v1182 = vmul.f32 %v866, %v890
        %v1183 = vmul.f32 %v866, %v894
        %v1184 = vmul.f32 %v866, %v898
        %v1185 = vmul.f32 %v866, %v902
        %v1186 = vmul.f32 %v866, %v906
        %v1187 = vmul.f32 %v866, %v910
        %v1188 = vmul.f32 %v866, %v914
        %v1189 = vmul.f32 %v866, %v918
        %v1190 = vmul.f32 %v866, %v922
        %v1191 = vmul.f32 %v866, %v926
        %v1192 = vmul.f32 %v866, %v930
        %v1193 = vmul.f32 %v866, %v934
        %v1194 = vmul.f32 %v866, %v938
        %v1195 = vmul.f32 %v871, %v878
        %v1196 = vmul.f32 %v871, %v882
        %v1197 = vmul.f32 %v871, %v886
        %v1198 = vmul.f32 %v871, %v890
        %v1199 = vmul.f32 %v871, %v894
        %v1200 = vmul.f32 %v871, %v898
        %v1201 = vmul.f32 %v871, %v902
        %v1202 = vmul.f32 %v871, %v906
        %v1203 = vmul.f32 %v871, %v910
        %v1204 = vmul.f32 %v871, %v914
        %v1205 = vmul.f32 %v871, %v918
        %v1206 = vmul.f32 %v871, %v922
        %v1207 = vmul.f32 %v871, %v926
        %v1208 = vmul.f32 %v871, %v930
        %v1209 = vmul.f32 %v871, %v934
        %v1210 = vmul.f32 %v871, %v938
        %s1211 = scalar_lea.vmem [#allocation3], 1
        %v1212 = vld [vmem:[%s1211] ss:$4 sm:$0xff]
        %s1213 = scalar_lea.vmem [#allocation3], 33
        %v1214 = vld [vmem:[%s1213] ss:$4 sm:$0xff]
        %1215 = vset.pattern.permute.xlu0 1
        %1216 = vperm.xlu0 %1215, %v774
        %v1217 = vpop.permute.xlu0 %1216
        %1219 = vset.pattern.permute.xlu0 1
        %1220 = vperm.xlu0 %1219, %v775
        %v1221 = vpop.permute.xlu0 %1220
        %1223 = vset.pattern.permute.xlu0 1
        %1224 = vperm.xlu0 %1223, %v776
        %v1225 = vpop.permute.xlu0 %1224
        %1227 = vset.pattern.permute.xlu0 1
        %1228 = vperm.xlu0 %1227, %v777
        %v1229 = vpop.permute.xlu0 %1228
        %1231 = vset.pattern.permute.xlu0 1
        %1232 = vperm.xlu0 %1231, %v778
        %v1233 = vpop.permute.xlu0 %1232
        %1235 = vset.pattern.permute.xlu0 1
        %1236 = vperm.xlu0 %1235, %v779
        %v1237 = vpop.permute.xlu0 %1236
        %1239 = vset.pattern.permute.xlu0 1
        %1240 = vperm.xlu0 %1239, %v780
        %v1241 = vpop.permute.xlu0 %1240
        %1243 = vset.pattern.permute.xlu0 1
        %1244 = vperm.xlu0 %1243, %v781
        %v1245 = vpop.permute.xlu0 %1244
        %1247 = vset.pattern.permute.xlu0 1
        %1248 = vperm.xlu0 %1247, %v782
        %v1249 = vpop.permute.xlu0 %1248
        %1251 = vset.pattern.permute.xlu0 1
        %1252 = vperm.xlu0 %1251, %v783
        %v1253 = vpop.permute.xlu0 %1252
        %1255 = vset.pattern.permute.xlu0 1
        %1256 = vperm.xlu0 %1255, %v784
        %v1257 = vpop.permute.xlu0 %1256
        %1259 = vset.pattern.permute.xlu0 1
        %1260 = vperm.xlu0 %1259, %v785
        %v1261 = vpop.permute.xlu0 %1260
        %1263 = vset.pattern.permute.xlu0 1
        %1264 = vperm.xlu0 %1263, %v786
        %v1265 = vpop.permute.xlu0 %1264
        %1267 = vset.pattern.permute.xlu0 1
        %1268 = vperm.xlu0 %1267, %v787
        %v1269 = vpop.permute.xlu0 %1268
        %1271 = vset.pattern.permute.xlu0 1
        %1272 = vperm.xlu0 %1271, %v788
        %v1273 = vpop.permute.xlu0 %1272
        %1275 = vset.pattern.permute.xlu0 1
        %1276 = vperm.xlu0 %1275, %v789
        %v1277 = vpop.permute.xlu0 %1276
        %v1281 = vlaneseq
        %v1282 = vshrl.u32 %v1281, 7
        %v1283 = vsub.s32 0, %v1282
        %v1284 = vrot.slane %v1212, %v1283
        %v1285 = vlaneseq
        %v1286 = vshrl.u32 %v1285, 7
        %v1287 = vsub.s32 1, %v1286
        %v1288 = vrot.slane %v1212, %v1287
        %v1289 = vlaneseq
        %v1290 = vshrl.u32 %v1289, 7
        %v1291 = vsub.s32 2, %v1290
        %v1292 = vrot.slane %v1212, %v1291
        %v1293 = vlaneseq
        %v1294 = vshrl.u32 %v1293, 7
        %v1295 = vsub.s32 3, %v1294
        %v1296 = vrot.slane %v1212, %v1295
        %v1297 = vlaneseq
        %v1298 = vshrl.u32 %v1297, 7
        %v1299 = vsub.s32 4, %v1298
        %v1300 = vrot.slane %v1212, %v1299
        %v1301 = vlaneseq
        %v1302 = vshrl.u32 %v1301, 7
        %v1303 = vsub.s32 5, %v1302
        %v1304 = vrot.slane %v1212, %v1303
        %v1305 = vlaneseq
        %v1306 = vshrl.u32 %v1305, 7
        %v1307 = vsub.s32 6, %v1306
        %v1308 = vrot.slane %v1212, %v1307
        %v1309 = vlaneseq
        %v1310 = vshrl.u32 %v1309, 7
        %v1311 = vsub.s32 7, %v1310
        %v1312 = vrot.slane %v1212, %v1311
        %v1313 = vlaneseq
        %v1314 = vshrl.u32 %v1313, 7
        %v1315 = vsub.s32 0, %v1314
        %v1316 = vrot.slane %v1214, %v1315
        %v1317 = vlaneseq
        %v1318 = vshrl.u32 %v1317, 7
        %v1319 = vsub.s32 1, %v1318
        %v1320 = vrot.slane %v1214, %v1319
        %v1321 = vlaneseq
        %v1322 = vshrl.u32 %v1321, 7
        %v1323 = vsub.s32 2, %v1322
        %v1324 = vrot.slane %v1214, %v1323
        %v1325 = vlaneseq
        %v1326 = vshrl.u32 %v1325, 7
        %v1327 = vsub.s32 3, %v1326
        %v1328 = vrot.slane %v1214, %v1327
        %v1329 = vlaneseq
        %v1330 = vshrl.u32 %v1329, 7
        %v1331 = vsub.s32 4, %v1330
        %v1332 = vrot.slane %v1214, %v1331
        %v1333 = vlaneseq
        %v1334 = vshrl.u32 %v1333, 7
        %v1335 = vsub.s32 5, %v1334
        %v1336 = vrot.slane %v1214, %v1335
        %v1337 = vlaneseq
        %v1338 = vshrl.u32 %v1337, 7
        %v1339 = vsub.s32 6, %v1338
        %v1340 = vrot.slane %v1214, %v1339
        %v1341 = vlaneseq
        %v1342 = vshrl.u32 %v1341, 7
        %v1343 = vsub.s32 7, %v1342
        %v1344 = vrot.slane %v1214, %v1343
        %v1361 = vmul.f32 %v1217, %v1284
        %v1362 = vmul.f32 %v1217, %v1288
        %v1363 = vmul.f32 %v1217, %v1292
        %v1364 = vmul.f32 %v1217, %v1296
        %v1365 = vmul.f32 %v1217, %v1300
        %v1366 = vmul.f32 %v1217, %v1304
        %v1367 = vmul.f32 %v1217, %v1308
        %v1368 = vmul.f32 %v1217, %v1312
        %v1369 = vmul.f32 %v1217, %v1316
        %v1370 = vmul.f32 %v1217, %v1320
        %v1371 = vmul.f32 %v1217, %v1324
        %v1372 = vmul.f32 %v1217, %v1328
        %v1373 = vmul.f32 %v1217, %v1332
        %v1374 = vmul.f32 %v1217, %v1336
        %v1375 = vmul.f32 %v1217, %v1340
        %v1376 = vmul.f32 %v1217, %v1344
        %v1377 = vmul.f32 %v1221, %v1284
        %v1378 = vmul.f32 %v1221, %v1288
        %v1379 = vmul.f32 %v1221, %v1292
        %v1380 = vmul.f32 %v1221, %v1296
        %v1381 = vmul.f32 %v1221, %v1300
        %v1382 = vmul.f32 %v1221, %v1304
        %v1383 = vmul.f32 %v1221, %v1308
        %v1384 = vmul.f32 %v1221, %v1312
        %v1385 = vmul.f32 %v1221, %v1316
        %v1386 = vmul.f32 %v1221, %v1320
        %v1387 = vmul.f32 %v1221, %v1324
        %v1388 = vmul.f32 %v1221, %v1328
        %v1389 = vmul.f32 %v1221, %v1332
        %v1390 = vmul.f32 %v1221, %v1336
        %v1391 = vmul.f32 %v1221, %v1340
        %v1392 = vmul.f32 %v1221, %v1344
        %v1393 = vmul.f32 %v1225, %v1284
        %v1394 = vmul.f32 %v1225, %v1288
        %v1395 = vmul.f32 %v1225, %v1292
        %v1396 = vmul.f32 %v1225, %v1296
        %v1397 = vmul.f32 %v1225, %v1300
        %v1398 = vmul.f32 %v1225, %v1304
        %v1399 = vmul.f32 %v1225, %v1308
        %v1400 = vmul.f32 %v1225, %v1312
        %v1401 = vmul.f32 %v1225, %v1316
        %v1402 = vmul.f32 %v1225, %v1320
        %v1403 = vmul.f32 %v1225, %v1324
        %v1404 = vmul.f32 %v1225, %v1328
        %v1405 = vmul.f32 %v1225, %v1332
        %v1406 = vmul.f32 %v1225, %v1336
        %v1407 = vmul.f32 %v1225, %v1340
        %v1408 = vmul.f32 %v1225, %v1344
        %v1409 = vmul.f32 %v1229, %v1284
        %v1410 = vmul.f32 %v1229, %v1288
        %v1411 = vmul.f32 %v1229, %v1292
        %v1412 = vmul.f32 %v1229, %v1296
        %v1413 = vmul.f32 %v1229, %v1300
        %v1414 = vmul.f32 %v1229, %v1304
        %v1415 = vmul.f32 %v1229, %v1308
        %v1416 = vmul.f32 %v1229, %v1312
        %v1417 = vmul.f32 %v1229, %v1316
        %v1418 = vmul.f32 %v1229, %v1320
        %v1419 = vmul.f32 %v1229, %v1324
        %v1420 = vmul.f32 %v1229, %v1328
        %v1421 = vmul.f32 %v1229, %v1332
        %v1422 = vmul.f32 %v1229, %v1336
        %v1423 = vmul.f32 %v1229, %v1340
        %v1424 = vmul.f32 %v1229, %v1344
        %v1425 = vmul.f32 %v1233, %v1284
        %v1426 = vmul.f32 %v1233, %v1288
        %v1427 = vmul.f32 %v1233, %v1292
        %v1428 = vmul.f32 %v1233, %v1296
        %v1429 = vmul.f32 %v1233, %v1300
        %v1430 = vmul.f32 %v1233, %v1304
        %v1431 = vmul.f32 %v1233, %v1308
        %v1432 = vmul.f32 %v1233, %v1312
        %v1433 = vmul.f32 %v1233, %v1316
        %v1434 = vmul.f32 %v1233, %v1320
        %v1435 = vmul.f32 %v1233, %v1324
        %v1436 = vmul.f32 %v1233, %v1328
        %v1437 = vmul.f32 %v1233, %v1332
        %v1438 = vmul.f32 %v1233, %v1336
        %v1439 = vmul.f32 %v1233, %v1340
        %v1440 = vmul.f32 %v1233, %v1344
        %v1441 = vmul.f32 %v1237, %v1284
        %v1442 = vmul.f32 %v1237, %v1288
        %v1443 = vmul.f32 %v1237, %v1292
        %v1444 = vmul.f32 %v1237, %v1296
        %v1445 = vmul.f32 %v1237, %v1300
        %v1446 = vmul.f32 %v1237, %v1304
        %v1447 = vmul.f32 %v1237, %v1308
        %v1448 = vmul.f32 %v1237, %v1312
        %v1449 = vmul.f32 %v1237, %v1316
        %v1450 = vmul.f32 %v1237, %v1320
        %v1451 = vmul.f32 %v1237, %v1324
        %v1452 = vmul.f32 %v1237, %v1328
        %v1453 = vmul.f32 %v1237, %v1332
        %v1454 = vmul.f32 %v1237, %v1336
        %v1455 = vmul.f32 %v1237, %v1340
        %v1456 = vmul.f32 %v1237, %v1344
        %v1457 = vmul.f32 %v1241, %v1284
        %v1458 = vmul.f32 %v1241, %v1288
        %v1459 = vmul.f32 %v1241, %v1292
        %v1460 = vmul.f32 %v1241, %v1296
        %v1461 = vmul.f32 %v1241, %v1300
        %v1462 = vmul.f32 %v1241, %v1304
        %v1463 = vmul.f32 %v1241, %v1308
        %v1464 = vmul.f32 %v1241, %v1312
        %v1465 = vmul.f32 %v1241, %v1316
        %v1466 = vmul.f32 %v1241, %v1320
        %v1467 = vmul.f32 %v1241, %v1324
        %v1468 = vmul.f32 %v1241, %v1328
        %v1469 = vmul.f32 %v1241, %v1332
        %v1470 = vmul.f32 %v1241, %v1336
        %v1471 = vmul.f32 %v1241, %v1340
        %v1472 = vmul.f32 %v1241, %v1344
        %v1473 = vmul.f32 %v1245, %v1284
        %v1474 = vmul.f32 %v1245, %v1288
        %v1475 = vmul.f32 %v1245, %v1292
        %v1476 = vmul.f32 %v1245, %v1296
        %v1477 = vmul.f32 %v1245, %v1300
        %v1478 = vmul.f32 %v1245, %v1304
        %v1479 = vmul.f32 %v1245, %v1308
        %v1480 = vmul.f32 %v1245, %v1312
        %v1481 = vmul.f32 %v1245, %v1316
        %v1482 = vmul.f32 %v1245, %v1320
        %v1483 = vmul.f32 %v1245, %v1324
        %v1484 = vmul.f32 %v1245, %v1328
        %v1485 = vmul.f32 %v1245, %v1332
        %v1486 = vmul.f32 %v1245, %v1336
        %v1487 = vmul.f32 %v1245, %v1340
        %v1488 = vmul.f32 %v1245, %v1344
        %v1489 = vmul.f32 %v1249, %v1284
        %v1490 = vmul.f32 %v1249, %v1288
        %v1491 = vmul.f32 %v1249, %v1292
        %v1492 = vmul.f32 %v1249, %v1296
        %v1493 = vmul.f32 %v1249, %v1300
        %v1494 = vmul.f32 %v1249, %v1304
        %v1495 = vmul.f32 %v1249, %v1308
        %v1496 = vmul.f32 %v1249, %v1312
        %v1497 = vmul.f32 %v1249, %v1316
        %v1498 = vmul.f32 %v1249, %v1320
        %v1499 = vmul.f32 %v1249, %v1324
        %v1500 = vmul.f32 %v1249, %v1328
        %v1501 = vmul.f32 %v1249, %v1332
        %v1502 = vmul.f32 %v1249, %v1336
        %v1503 = vmul.f32 %v1249, %v1340
        %v1504 = vmul.f32 %v1249, %v1344
        %v1505 = vmul.f32 %v1253, %v1284
        %v1506 = vmul.f32 %v1253, %v1288
        %v1507 = vmul.f32 %v1253, %v1292
        %v1508 = vmul.f32 %v1253, %v1296
        %v1509 = vmul.f32 %v1253, %v1300
        %v1510 = vmul.f32 %v1253, %v1304
        %v1511 = vmul.f32 %v1253, %v1308
        %v1512 = vmul.f32 %v1253, %v1312
        %v1513 = vmul.f32 %v1253, %v1316
        %v1514 = vmul.f32 %v1253, %v1320
        %v1515 = vmul.f32 %v1253, %v1324
        %v1516 = vmul.f32 %v1253, %v1328
        %v1517 = vmul.f32 %v1253, %v1332
        %v1518 = vmul.f32 %v1253, %v1336
        %v1519 = vmul.f32 %v1253, %v1340
        %v1520 = vmul.f32 %v1253, %v1344
        %v1521 = vmul.f32 %v1257, %v1284
        %v1522 = vmul.f32 %v1257, %v1288
        %v1523 = vmul.f32 %v1257, %v1292
        %v1524 = vmul.f32 %v1257, %v1296
        %v1525 = vmul.f32 %v1257, %v1300
        %v1526 = vmul.f32 %v1257, %v1304
        %v1527 = vmul.f32 %v1257, %v1308
        %v1528 = vmul.f32 %v1257, %v1312
        %v1529 = vmul.f32 %v1257, %v1316
        %v1530 = vmul.f32 %v1257, %v1320
        %v1531 = vmul.f32 %v1257, %v1324
        %v1532 = vmul.f32 %v1257, %v1328
        %v1533 = vmul.f32 %v1257, %v1332
        %v1534 = vmul.f32 %v1257, %v1336
        %v1535 = vmul.f32 %v1257, %v1340
        %v1536 = vmul.f32 %v1257, %v1344
        %v1537 = vmul.f32 %v1261, %v1284
        %v1538 = vmul.f32 %v1261, %v1288
        %v1539 = vmul.f32 %v1261, %v1292
        %v1540 = vmul.f32 %v1261, %v1296
        %v1541 = vmul.f32 %v1261, %v1300
        %v1542 = vmul.f32 %v1261, %v1304
        %v1543 = vmul.f32 %v1261, %v1308
        %v1544 = vmul.f32 %v1261, %v1312
        %v1545 = vmul.f32 %v1261, %v1316
        %v1546 = vmul.f32 %v1261, %v1320
        %v1547 = vmul.f32 %v1261, %v1324
        %v1548 = vmul.f32 %v1261, %v1328
        %v1549 = vmul.f32 %v1261, %v1332
        %v1550 = vmul.f32 %v1261, %v1336
        %v1551 = vmul.f32 %v1261, %v1340
        %v1552 = vmul.f32 %v1261, %v1344
        %v1553 = vmul.f32 %v1265, %v1284
        %v1554 = vmul.f32 %v1265, %v1288
        %v1555 = vmul.f32 %v1265, %v1292
        %v1556 = vmul.f32 %v1265, %v1296
        %v1557 = vmul.f32 %v1265, %v1300
        %v1558 = vmul.f32 %v1265, %v1304
        %v1559 = vmul.f32 %v1265, %v1308
        %v1560 = vmul.f32 %v1265, %v1312
        %v1561 = vmul.f32 %v1265, %v1316
        %v1562 = vmul.f32 %v1265, %v1320
        %v1563 = vmul.f32 %v1265, %v1324
        %v1564 = vmul.f32 %v1265, %v1328
        %v1565 = vmul.f32 %v1265, %v1332
        %v1566 = vmul.f32 %v1265, %v1336
        %v1567 = vmul.f32 %v1265, %v1340
        %v1568 = vmul.f32 %v1265, %v1344
        %v1569 = vmul.f32 %v1269, %v1284
        %v1570 = vmul.f32 %v1269, %v1288
        %v1571 = vmul.f32 %v1269, %v1292
        %v1572 = vmul.f32 %v1269, %v1296
        %v1573 = vmul.f32 %v1269, %v1300
        %v1574 = vmul.f32 %v1269, %v1304
        %v1575 = vmul.f32 %v1269, %v1308
        %v1576 = vmul.f32 %v1269, %v1312
        %v1577 = vmul.f32 %v1269, %v1316
        %v1578 = vmul.f32 %v1269, %v1320
        %v1579 = vmul.f32 %v1269, %v1324
        %v1580 = vmul.f32 %v1269, %v1328
        %v1581 = vmul.f32 %v1269, %v1332
        %v1582 = vmul.f32 %v1269, %v1336
        %v1583 = vmul.f32 %v1269, %v1340
        %v1584 = vmul.f32 %v1269, %v1344
        %v1585 = vmul.f32 %v1273, %v1284
        %v1586 = vmul.f32 %v1273, %v1288
        %v1587 = vmul.f32 %v1273, %v1292
        %v1588 = vmul.f32 %v1273, %v1296
        %v1589 = vmul.f32 %v1273, %v1300
        %v1590 = vmul.f32 %v1273, %v1304
        %v1591 = vmul.f32 %v1273, %v1308
        %v1592 = vmul.f32 %v1273, %v1312
        %v1593 = vmul.f32 %v1273, %v1316
        %v1594 = vmul.f32 %v1273, %v1320
        %v1595 = vmul.f32 %v1273, %v1324
        %v1596 = vmul.f32 %v1273, %v1328
        %v1597 = vmul.f32 %v1273, %v1332
        %v1598 = vmul.f32 %v1273, %v1336
        %v1599 = vmul.f32 %v1273, %v1340
        %v1600 = vmul.f32 %v1273, %v1344
        %v1601 = vmul.f32 %v1277, %v1284
        %v1602 = vmul.f32 %v1277, %v1288
        %v1603 = vmul.f32 %v1277, %v1292
        %v1604 = vmul.f32 %v1277, %v1296
        %v1605 = vmul.f32 %v1277, %v1300
        %v1606 = vmul.f32 %v1277, %v1304
        %v1607 = vmul.f32 %v1277, %v1308
        %v1608 = vmul.f32 %v1277, %v1312
        %v1609 = vmul.f32 %v1277, %v1316
        %v1610 = vmul.f32 %v1277, %v1320
        %v1611 = vmul.f32 %v1277, %v1324
        %v1612 = vmul.f32 %v1277, %v1328
        %v1613 = vmul.f32 %v1277, %v1332
        %v1614 = vmul.f32 %v1277, %v1336
        %v1615 = vmul.f32 %v1277, %v1340
        %v1616 = vmul.f32 %v1277, %v1344
        %v1617 = vadd.f32 %v955, %v1361
        %v1618 = vadd.f32 %v956, %v1362
        %v1619 = vadd.f32 %v957, %v1363
        %v1620 = vadd.f32 %v958, %v1364
        %v1621 = vadd.f32 %v959, %v1365
        %v1622 = vadd.f32 %v960, %v1366
        %v1623 = vadd.f32 %v961, %v1367
        %v1624 = vadd.f32 %v962, %v1368
        %v1625 = vadd.f32 %v963, %v1369
        %v1626 = vadd.f32 %v964, %v1370
        %v1627 = vadd.f32 %v965, %v1371
        %v1628 = vadd.f32 %v966, %v1372
        %v1629 = vadd.f32 %v967, %v1373
        %v1630 = vadd.f32 %v968, %v1374
        %v1631 = vadd.f32 %v969, %v1375
        %v1632 = vadd.f32 %v970, %v1376
        %v1633 = vadd.f32 %v971, %v1377
        %v1634 = vadd.f32 %v972, %v1378
        %v1635 = vadd.f32 %v973, %v1379
        %v1636 = vadd.f32 %v974, %v1380
        %v1637 = vadd.f32 %v975, %v1381
        %v1638 = vadd.f32 %v976, %v1382
        %v1639 = vadd.f32 %v977, %v1383
        %v1640 = vadd.f32 %v978, %v1384
        %v1641 = vadd.f32 %v979, %v1385
        %v1642 = vadd.f32 %v980, %v1386
        %v1643 = vadd.f32 %v981, %v1387
        %v1644 = vadd.f32 %v982, %v1388
        %v1645 = vadd.f32 %v983, %v1389
        %v1646 = vadd.f32 %v984, %v1390
        %v1647 = vadd.f32 %v985, %v1391
        %v1648 = vadd.f32 %v986, %v1392
        %v1649 = vadd.f32 %v987, %v1393
        %v1650 = vadd.f32 %v988, %v1394
        %v1651 = vadd.f32 %v989, %v1395
        %v1652 = vadd.f32 %v990, %v1396
        %v1653 = vadd.f32 %v991, %v1397
        %v1654 = vadd.f32 %v992, %v1398
        %v1655 = vadd.f32 %v993, %v1399
        %v1656 = vadd.f32 %v994, %v1400
        %v1657 = vadd.f32 %v995, %v1401
        %v1658 = vadd.f32 %v996, %v1402
        %v1659 = vadd.f32 %v997, %v1403
        %v1660 = vadd.f32 %v998, %v1404
        %v1661 = vadd.f32 %v999, %v1405
        %v1662 = vadd.f32 %v1000, %v1406
        %v1663 = vadd.f32 %v1001, %v1407
        %v1664 = vadd.f32 %v1002, %v1408
        %v1665 = vadd.f32 %v1003, %v1409
        %v1666 = vadd.f32 %v1004, %v1410
        %v1667 = vadd.f32 %v1005, %v1411
        %v1668 = vadd.f32 %v1006, %v1412
        %v1669 = vadd.f32 %v1007, %v1413
        %v1670 = vadd.f32 %v1008, %v1414
        %v1671 = vadd.f32 %v1009, %v1415
        %v1672 = vadd.f32 %v1010, %v1416
        %v1673 = vadd.f32 %v1011, %v1417
        %v1674 = vadd.f32 %v1012, %v1418
        %v1675 = vadd.f32 %v1013, %v1419
        %v1676 = vadd.f32 %v1014, %v1420
        %v1677 = vadd.f32 %v1015, %v1421
        %v1678 = vadd.f32 %v1016, %v1422
        %v1679 = vadd.f32 %v1017, %v1423
        %v1680 = vadd.f32 %v1018, %v1424
        %v1681 = vadd.f32 %v1019, %v1425
        %v1682 = vadd.f32 %v1020, %v1426
        %v1683 = vadd.f32 %v1021, %v1427
        %v1684 = vadd.f32 %v1022, %v1428
        %v1685 = vadd.f32 %v1023, %v1429
        %v1686 = vadd.f32 %v1024, %v1430
        %v1687 = vadd.f32 %v1025, %v1431
        %v1688 = vadd.f32 %v1026, %v1432
        %v1689 = vadd.f32 %v1027, %v1433
        %v1690 = vadd.f32 %v1028, %v1434
        %v1691 = vadd.f32 %v1029, %v1435
        %v1692 = vadd.f32 %v1030, %v1436
        %v1693 = vadd.f32 %v1031, %v1437
        %v1694 = vadd.f32 %v1032, %v1438
        %v1695 = vadd.f32 %v1033, %v1439
        %v1696 = vadd.f32 %v1034, %v1440
        %v1697 = vadd.f32 %v1035, %v1441
        %v1698 = vadd.f32 %v1036, %v1442
        %v1699 = vadd.f32 %v1037, %v1443
        %v1700 = vadd.f32 %v1038, %v1444
        %v1701 = vadd.f32 %v1039, %v1445
        %v1702 = vadd.f32 %v1040, %v1446
        %v1703 = vadd.f32 %v1041, %v1447
        %v1704 = vadd.f32 %v1042, %v1448
        %v1705 = vadd.f32 %v1043, %v1449
        %v1706 = vadd.f32 %v1044, %v1450
        %v1707 = vadd.f32 %v1045, %v1451
        %v1708 = vadd.f32 %v1046, %v1452
        %v1709 = vadd.f32 %v1047, %v1453
        %v1710 = vadd.f32 %v1048, %v1454
        %v1711 = vadd.f32 %v1049, %v1455
        %v1712 = vadd.f32 %v1050, %v1456
        %v1713 = vadd.f32 %v1051, %v1457
        %v1714 = vadd.f32 %v1052, %v1458
        %v1715 = vadd.f32 %v1053, %v1459
        %v1716 = vadd.f32 %v1054, %v1460
        %v1717 = vadd.f32 %v1055, %v1461
        %v1718 = vadd.f32 %v1056, %v1462
        %v1719 = vadd.f32 %v1057, %v1463
        %v1720 = vadd.f32 %v1058, %v1464
        %v1721 = vadd.f32 %v1059, %v1465
        %v1722 = vadd.f32 %v1060, %v1466
        %v1723 = vadd.f32 %v1061, %v1467
        %v1724 = vadd.f32 %v1062, %v1468
        %v1725 = vadd.f32 %v1063, %v1469
        %v1726 = vadd.f32 %v1064, %v1470
        %v1727 = vadd.f32 %v1065, %v1471
        %v1728 = vadd.f32 %v1066, %v1472
        %v1729 = vadd.f32 %v1067, %v1473
        %v1730 = vadd.f32 %v1068, %v1474
        %v1731 = vadd.f32 %v1069, %v1475
        %v1732 = vadd.f32 %v1070, %v1476
        %v1733 = vadd.f32 %v1071, %v1477
        %v1734 = vadd.f32 %v1072, %v1478
        %v1735 = vadd.f32 %v1073, %v1479
        %v1736 = vadd.f32 %v1074, %v1480
        %v1737 = vadd.f32 %v1075, %v1481
        %v1738 = vadd.f32 %v1076, %v1482
        %v1739 = vadd.f32 %v1077, %v1483
        %v1740 = vadd.f32 %v1078, %v1484
        %v1741 = vadd.f32 %v1079, %v1485
        %v1742 = vadd.f32 %v1080, %v1486
        %v1743 = vadd.f32 %v1081, %v1487
        %v1744 = vadd.f32 %v1082, %v1488
        %v1745 = vadd.f32 %v1083, %v1489
        %v1746 = vadd.f32 %v1084, %v1490
        %v1747 = vadd.f32 %v1085, %v1491
        %v1748 = vadd.f32 %v1086, %v1492
        %v1749 = vadd.f32 %v1087, %v1493
        %v1750 = vadd.f32 %v1088, %v1494
        %v1751 = vadd.f32 %v1089, %v1495
        %v1752 = vadd.f32 %v1090, %v1496
        %v1753 = vadd.f32 %v1091, %v1497
        %v1754 = vadd.f32 %v1092, %v1498
        %v1755 = vadd.f32 %v1093, %v1499
        %v1756 = vadd.f32 %v1094, %v1500
        %v1757 = vadd.f32 %v1095, %v1501
        %v1758 = vadd.f32 %v1096, %v1502
        %v1759 = vadd.f32 %v1097, %v1503
        %v1760 = vadd.f32 %v1098, %v1504
        %v1761 = vadd.f32 %v1099, %v1505
        %v1762 = vadd.f32 %v1100, %v1506
        %v1763 = vadd.f32 %v1101, %v1507
        %v1764 = vadd.f32 %v1102, %v1508
        %v1765 = vadd.f32 %v1103, %v1509
        %v1766 = vadd.f32 %v1104, %v1510
        %v1767 = vadd.f32 %v1105, %v1511
        %v1768 = vadd.f32 %v1106, %v1512
        %v1769 = vadd.f32 %v1107, %v1513
        %v1770 = vadd.f32 %v1108, %v1514
        %v1771 = vadd.f32 %v1109, %v1515
        %v1772 = vadd.f32 %v1110, %v1516
        %v1773 = vadd.f32 %v1111, %v1517
        %v1774 = vadd.f32 %v1112, %v1518
        %v1775 = vadd.f32 %v1113, %v1519
        %v1776 = vadd.f32 %v1114, %v1520
        %v1777 = vadd.f32 %v1115, %v1521
        %v1778 = vadd.f32 %v1116, %v1522
        %v1779 = vadd.f32 %v1117, %v1523
        %v1780 = vadd.f32 %v1118, %v1524
        %v1781 = vadd.f32 %v1119, %v1525
        %v1782 = vadd.f32 %v1120, %v1526
        %v1783 = vadd.f32 %v1121, %v1527
        %v1784 = vadd.f32 %v1122, %v1528
        %v1785 = vadd.f32 %v1123, %v1529
        %v1786 = vadd.f32 %v1124, %v1530
        %v1787 = vadd.f32 %v1125, %v1531
        %v1788 = vadd.f32 %v1126, %v1532
        %v1789 = vadd.f32 %v1127, %v1533
        %v1790 = vadd.f32 %v1128, %v1534
        %v1791 = vadd.f32 %v1129, %v1535
        %v1792 = vadd.f32 %v1130, %v1536
        %v1793 = vadd.f32 %v1131, %v1537
        %v1794 = vadd.f32 %v1132, %v1538
        %v1795 = vadd.f32 %v1133, %v1539
        %v1796 = vadd.f32 %v1134, %v1540
        %v1797 = vadd.f32 %v1135, %v1541
        %v1798 = vadd.f32 %v1136, %v1542
        %v1799 = vadd.f32 %v1137, %v1543
        %v1800 = vadd.f32 %v1138, %v1544
        %v1801 = vadd.f32 %v1139, %v1545
        %v1802 = vadd.f32 %v1140, %v1546
        %v1803 = vadd.f32 %v1141, %v1547
        %v1804 = vadd.f32 %v1142, %v1548
        %v1805 = vadd.f32 %v1143, %v1549
        %v1806 = vadd.f32 %v1144, %v1550
        %v1807 = vadd.f32 %v1145, %v1551
        %v1808 = vadd.f32 %v1146, %v1552
        %v1809 = vadd.f32 %v1147, %v1553
        %v1810 = vadd.f32 %v1148, %v1554
        %v1811 = vadd.f32 %v1149, %v1555
        %v1812 = vadd.f32 %v1150, %v1556
        %v1813 = vadd.f32 %v1151, %v1557
        %v1814 = vadd.f32 %v1152, %v1558
        %v1815 = vadd.f32 %v1153, %v1559
        %v1816 = vadd.f32 %v1154, %v1560
        %v1817 = vadd.f32 %v1155, %v1561
        %v1818 = vadd.f32 %v1156, %v1562
        %v1819 = vadd.f32 %v1157, %v1563
        %v1820 = vadd.f32 %v1158, %v1564
        %v1821 = vadd.f32 %v1159, %v1565
        %v1822 = vadd.f32 %v1160, %v1566
        %v1823 = vadd.f32 %v1161, %v1567
        %v1824 = vadd.f32 %v1162, %v1568
        %v1825 = vadd.f32 %v1163, %v1569
        %v1826 = vadd.f32 %v1164, %v1570
        %v1827 = vadd.f32 %v1165, %v1571
        %v1828 = vadd.f32 %v1166, %v1572
        %v1829 = vadd.f32 %v1167, %v1573
        %v1830 = vadd.f32 %v1168, %v1574
        %v1831 = vadd.f32 %v1169, %v1575
        %v1832 = vadd.f32 %v1170, %v1576
        %v1833 = vadd.f32 %v1171, %v1577
        %v1834 = vadd.f32 %v1172, %v1578
        %v1835 = vadd.f32 %v1173, %v1579
        %v1836 = vadd.f32 %v1174, %v1580
        %v1837 = vadd.f32 %v1175, %v1581
        %v1838 = vadd.f32 %v1176, %v1582
        %v1839 = vadd.f32 %v1177, %v1583
        %v1840 = vadd.f32 %v1178, %v1584
        %v1841 = vadd.f32 %v1179, %v1585
        %v1842 = vadd.f32 %v1180, %v1586
        %v1843 = vadd.f32 %v1181, %v1587
        %v1844 = vadd.f32 %v1182, %v1588
        %v1845 = vadd.f32 %v1183, %v1589
        %v1846 = vadd.f32 %v1184, %v1590
        %v1847 = vadd.f32 %v1185, %v1591
        %v1848 = vadd.f32 %v1186, %v1592
        %v1849 = vadd.f32 %v1187, %v1593
        %v1850 = vadd.f32 %v1188, %v1594
        %v1851 = vadd.f32 %v1189, %v1595
        %v1852 = vadd.f32 %v1190, %v1596
        %v1853 = vadd.f32 %v1191, %v1597
        %v1854 = vadd.f32 %v1192, %v1598
        %v1855 = vadd.f32 %v1193, %v1599
        %v1856 = vadd.f32 %v1194, %v1600
        %v1857 = vadd.f32 %v1195, %v1601
        %v1858 = vadd.f32 %v1196, %v1602
        %v1859 = vadd.f32 %v1197, %v1603
        %v1860 = vadd.f32 %v1198, %v1604
        %v1861 = vadd.f32 %v1199, %v1605
        %v1862 = vadd.f32 %v1200, %v1606
        %v1863 = vadd.f32 %v1201, %v1607
        %v1864 = vadd.f32 %v1202, %v1608
        %v1865 = vadd.f32 %v1203, %v1609
        %v1866 = vadd.f32 %v1204, %v1610
        %v1867 = vadd.f32 %v1205, %v1611
        %v1868 = vadd.f32 %v1206, %v1612
        %v1869 = vadd.f32 %v1207, %v1613
        %v1870 = vadd.f32 %v1208, %v1614
        %v1871 = vadd.f32 %v1209, %v1615
        %v1872 = vadd.f32 %v1210, %v1616
        %s1873 = scalar_lea.vmem [#allocation3], 2
        %v1874 = vld [vmem:[%s1873] ss:$4 sm:$0xff]
        %s1875 = scalar_lea.vmem [#allocation3], 34
        %v1876 = vld [vmem:[%s1875] ss:$4 sm:$0xff]
        %1877 = vset.pattern.permute.xlu0 2
        %1878 = vperm.xlu0 %1877, %v774
        %v1879 = vpop.permute.xlu0 %1878
        %1881 = vset.pattern.permute.xlu0 2
        %1882 = vperm.xlu0 %1881, %v775
        %v1883 = vpop.permute.xlu0 %1882
        %1885 = vset.pattern.permute.xlu0 2
        %1886 = vperm.xlu0 %1885, %v776
        %v1887 = vpop.permute.xlu0 %1886
        %1889 = vset.pattern.permute.xlu0 2
        %1890 = vperm.xlu0 %1889, %v777
        %v1891 = vpop.permute.xlu0 %1890
        %1893 = vset.pattern.permute.xlu0 2
        %1894 = vperm.xlu0 %1893, %v778
        %v1895 = vpop.permute.xlu0 %1894
        %1897 = vset.pattern.permute.xlu0 2
        %1898 = vperm.xlu0 %1897, %v779
        %v1899 = vpop.permute.xlu0 %1898
        %1901 = vset.pattern.permute.xlu0 2
        %1902 = vperm.xlu0 %1901, %v780
        %v1903 = vpop.permute.xlu0 %1902
        %1905 = vset.pattern.permute.xlu0 2
        %1906 = vperm.xlu0 %1905, %v781
        %v1907 = vpop.permute.xlu0 %1906
        %1909 = vset.pattern.permute.xlu0 2
        %1910 = vperm.xlu0 %1909, %v782
        %v1911 = vpop.permute.xlu0 %1910
        %1913 = vset.pattern.permute.xlu0 2
        %1914 = vperm.xlu0 %1913, %v783
        %v1915 = vpop.permute.xlu0 %1914
        %1917 = vset.pattern.permute.xlu0 2
        %1918 = vperm.xlu0 %1917, %v784
        %v1919 = vpop.permute.xlu0 %1918
        %1921 = vset.pattern.permute.xlu0 2
        %1922 = vperm.xlu0 %1921, %v785
        %v1923 = vpop.permute.xlu0 %1922
        %1925 = vset.pattern.permute.xlu0 2
        %1926 = vperm.xlu0 %1925, %v786
        %v1927 = vpop.permute.xlu0 %1926
        %1929 = vset.pattern.permute.xlu0 2
        %1930 = vperm.xlu0 %1929, %v787
        %v1931 = vpop.permute.xlu0 %1930
        %1933 = vset.pattern.permute.xlu0 2
        %1934 = vperm.xlu0 %1933, %v788
        %v1935 = vpop.permute.xlu0 %1934
        %1937 = vset.pattern.permute.xlu0 2
        %1938 = vperm.xlu0 %1937, %v789
        %v1939 = vpop.permute.xlu0 %1938
        %v1943 = vlaneseq
        %v1944 = vshrl.u32 %v1943, 7
        %v1945 = vsub.s32 0, %v1944
        %v1946 = vrot.slane %v1874, %v1945
        %v1947 = vlaneseq
        %v1948 = vshrl.u32 %v1947, 7
        %v1949 = vsub.s32 1, %v1948
        %v1950 = vrot.slane %v1874, %v1949
        %v1951 = vlaneseq
        %v1952 = vshrl.u32 %v1951, 7
        %v1953 = vsub.s32 2, %v1952
        %v1954 = vrot.slane %v1874, %v1953
        %v1955 = vlaneseq
        %v1956 = vshrl.u32 %v1955, 7
        %v1957 = vsub.s32 3, %v1956
        %v1958 = vrot.slane %v1874, %v1957
        %v1959 = vlaneseq
        %v1960 = vshrl.u32 %v1959, 7
        %v1961 = vsub.s32 4, %v1960
        %v1962 = vrot.slane %v1874, %v1961
        %v1963 = vlaneseq
        %v1964 = vshrl.u32 %v1963, 7
        %v1965 = vsub.s32 5, %v1964
        %v1966 = vrot.slane %v1874, %v1965
        %v1967 = vlaneseq
        %v1968 = vshrl.u32 %v1967, 7
        %v1969 = vsub.s32 6, %v1968
        %v1970 = vrot.slane %v1874, %v1969
        %v1971 = vlaneseq
        %v1972 = vshrl.u32 %v1971, 7
        %v1973 = vsub.s32 7, %v1972
        %v1974 = vrot.slane %v1874, %v1973
        %v1975 = vlaneseq
        %v1976 = vshrl.u32 %v1975, 7
        %v1977 = vsub.s32 0, %v1976
        %v1978 = vrot.slane %v1876, %v1977
        %v1979 = vlaneseq
        %v1980 = vshrl.u32 %v1979, 7
        %v1981 = vsub.s32 1, %v1980
        %v1982 = vrot.slane %v1876, %v1981
        %v1983 = vlaneseq
        %v1984 = vshrl.u32 %v1983, 7
        %v1985 = vsub.s32 2, %v1984
        %v1986 = vrot.slane %v1876, %v1985
        %v1987 = vlaneseq
        %v1988 = vshrl.u32 %v1987, 7
        %v1989 = vsub.s32 3, %v1988
        %v1990 = vrot.slane %v1876, %v1989
        %v1991 = vlaneseq
        %v1992 = vshrl.u32 %v1991, 7
        %v1993 = vsub.s32 4, %v1992
        %v1994 = vrot.slane %v1876, %v1993
        %v1995 = vlaneseq
        %v1996 = vshrl.u32 %v1995, 7
        %v1997 = vsub.s32 5, %v1996
        %v1998 = vrot.slane %v1876, %v1997
        %v1999 = vlaneseq
        %v2000 = vshrl.u32 %v1999, 7
        %v2001 = vsub.s32 6, %v2000
        %v2002 = vrot.slane %v1876, %v2001
        %v2003 = vlaneseq
        %v2004 = vshrl.u32 %v2003, 7
        %v2005 = vsub.s32 7, %v2004
        %v2006 = vrot.slane %v1876, %v2005
        %v2023 = vmul.f32 %v1879, %v1946
        %v2024 = vmul.f32 %v1879, %v1950
        %v2025 = vmul.f32 %v1879, %v1954
        %v2026 = vmul.f32 %v1879, %v1958
        %v2027 = vmul.f32 %v1879, %v1962
        %v2028 = vmul.f32 %v1879, %v1966
        %v2029 = vmul.f32 %v1879, %v1970
        %v2030 = vmul.f32 %v1879, %v1974
        %v2031 = vmul.f32 %v1879, %v1978
        %v2032 = vmul.f32 %v1879, %v1982
        %v2033 = vmul.f32 %v1879, %v1986
        %v2034 = vmul.f32 %v1879, %v1990
        %v2035 = vmul.f32 %v1879, %v1994
        %v2036 = vmul.f32 %v1879, %v1998
        %v2037 = vmul.f32 %v1879, %v2002
        %v2038 = vmul.f32 %v1879, %v2006
        %v2039 = vmul.f32 %v1883, %v1946
        %v2040 = vmul.f32 %v1883, %v1950
        %v2041 = vmul.f32 %v1883, %v1954
        %v2042 = vmul.f32 %v1883, %v1958
        %v2043 = vmul.f32 %v1883, %v1962
        %v2044 = vmul.f32 %v1883, %v1966
        %v2045 = vmul.f32 %v1883, %v1970
        %v2046 = vmul.f32 %v1883, %v1974
        %v2047 = vmul.f32 %v1883, %v1978
        %v2048 = vmul.f32 %v1883, %v1982
        %v2049 = vmul.f32 %v1883, %v1986
        %v2050 = vmul.f32 %v1883, %v1990
        %v2051 = vmul.f32 %v1883, %v1994
        %v2052 = vmul.f32 %v1883, %v1998
        %v2053 = vmul.f32 %v1883, %v2002
        %v2054 = vmul.f32 %v1883, %v2006
        %v2055 = vmul.f32 %v1887, %v1946
        %v2056 = vmul.f32 %v1887, %v1950
        %v2057 = vmul.f32 %v1887, %v1954
        %v2058 = vmul.f32 %v1887, %v1958
        %v2059 = vmul.f32 %v1887, %v1962
        %v2060 = vmul.f32 %v1887, %v1966
        %v2061 = vmul.f32 %v1887, %v1970
        %v2062 = vmul.f32 %v1887, %v1974
        %v2063 = vmul.f32 %v1887, %v1978
        %v2064 = vmul.f32 %v1887, %v1982
        %v2065 = vmul.f32 %v1887, %v1986
        %v2066 = vmul.f32 %v1887, %v1990
        %v2067 = vmul.f32 %v1887, %v1994
        %v2068 = vmul.f32 %v1887, %v1998
        %v2069 = vmul.f32 %v1887, %v2002
        %v2070 = vmul.f32 %v1887, %v2006
        %v2071 = vmul.f32 %v1891, %v1946
        %v2072 = vmul.f32 %v1891, %v1950
        %v2073 = vmul.f32 %v1891, %v1954
        %v2074 = vmul.f32 %v1891, %v1958
        %v2075 = vmul.f32 %v1891, %v1962
        %v2076 = vmul.f32 %v1891, %v1966
        %v2077 = vmul.f32 %v1891, %v1970
        %v2078 = vmul.f32 %v1891, %v1974
        %v2079 = vmul.f32 %v1891, %v1978
        %v2080 = vmul.f32 %v1891, %v1982
        %v2081 = vmul.f32 %v1891, %v1986
        %v2082 = vmul.f32 %v1891, %v1990
        %v2083 = vmul.f32 %v1891, %v1994
        %v2084 = vmul.f32 %v1891, %v1998
        %v2085 = vmul.f32 %v1891, %v2002
        %v2086 = vmul.f32 %v1891, %v2006
        %v2087 = vmul.f32 %v1895, %v1946
        %v2088 = vmul.f32 %v1895, %v1950
        %v2089 = vmul.f32 %v1895, %v1954
        %v2090 = vmul.f32 %v1895, %v1958
        %v2091 = vmul.f32 %v1895, %v1962
        %v2092 = vmul.f32 %v1895, %v1966
        %v2093 = vmul.f32 %v1895, %v1970
        %v2094 = vmul.f32 %v1895, %v1974
        %v2095 = vmul.f32 %v1895, %v1978
        %v2096 = vmul.f32 %v1895, %v1982
        %v2097 = vmul.f32 %v1895, %v1986
        %v2098 = vmul.f32 %v1895, %v1990
        %v2099 = vmul.f32 %v1895, %v1994
        %v2100 = vmul.f32 %v1895, %v1998
        %v2101 = vmul.f32 %v1895, %v2002
        %v2102 = vmul.f32 %v1895, %v2006
        %v2103 = vmul.f32 %v1899, %v1946
        %v2104 = vmul.f32 %v1899, %v1950
        %v2105 = vmul.f32 %v1899, %v1954
        %v2106 = vmul.f32 %v1899, %v1958
        %v2107 = vmul.f32 %v1899, %v1962
        %v2108 = vmul.f32 %v1899, %v1966
        %v2109 = vmul.f32 %v1899, %v1970
        %v2110 = vmul.f32 %v1899, %v1974
        %v2111 = vmul.f32 %v1899, %v1978
        %v2112 = vmul.f32 %v1899, %v1982
        %v2113 = vmul.f32 %v1899, %v1986
        %v2114 = vmul.f32 %v1899, %v1990
        %v2115 = vmul.f32 %v1899, %v1994
        %v2116 = vmul.f32 %v1899, %v1998
        %v2117 = vmul.f32 %v1899, %v2002
        %v2118 = vmul.f32 %v1899, %v2006
        %v2119 = vmul.f32 %v1903, %v1946
        %v2120 = vmul.f32 %v1903, %v1950
        %v2121 = vmul.f32 %v1903, %v1954
        %v2122 = vmul.f32 %v1903, %v1958
        %v2123 = vmul.f32 %v1903, %v1962
        %v2124 = vmul.f32 %v1903, %v1966
        %v2125 = vmul.f32 %v1903, %v1970
        %v2126 = vmul.f32 %v1903, %v1974
        %v2127 = vmul.f32 %v1903, %v1978
        %v2128 = vmul.f32 %v1903, %v1982
        %v2129 = vmul.f32 %v1903, %v1986
        %v2130 = vmul.f32 %v1903, %v1990
        %v2131 = vmul.f32 %v1903, %v1994
        %v2132 = vmul.f32 %v1903, %v1998
        %v2133 = vmul.f32 %v1903, %v2002
        %v2134 = vmul.f32 %v1903, %v2006
        %v2135 = vmul.f32 %v1907, %v1946
        %v2136 = vmul.f32 %v1907, %v1950
        %v2137 = vmul.f32 %v1907, %v1954
        %v2138 = vmul.f32 %v1907, %v1958
        %v2139 = vmul.f32 %v1907, %v1962
        %v2140 = vmul.f32 %v1907, %v1966
        %v2141 = vmul.f32 %v1907, %v1970
        %v2142 = vmul.f32 %v1907, %v1974
        %v2143 = vmul.f32 %v1907, %v1978
        %v2144 = vmul.f32 %v1907, %v1982
        %v2145 = vmul.f32 %v1907, %v1986
        %v2146 = vmul.f32 %v1907, %v1990
        %v2147 = vmul.f32 %v1907, %v1994
        %v2148 = vmul.f32 %v1907, %v1998
        %v2149 = vmul.f32 %v1907, %v2002
        %v2150 = vmul.f32 %v1907, %v2006
        %v2151 = vmul.f32 %v1911, %v1946
        %v2152 = vmul.f32 %v1911, %v1950
        %v2153 = vmul.f32 %v1911, %v1954
        %v2154 = vmul.f32 %v1911, %v1958
        %v2155 = vmul.f32 %v1911, %v1962
        %v2156 = vmul.f32 %v1911, %v1966
        %v2157 = vmul.f32 %v1911, %v1970
        %v2158 = vmul.f32 %v1911, %v1974
        %v2159 = vmul.f32 %v1911, %v1978
        %v2160 = vmul.f32 %v1911, %v1982
        %v2161 = vmul.f32 %v1911, %v1986
        %v2162 = vmul.f32 %v1911, %v1990
        %v2163 = vmul.f32 %v1911, %v1994
        %v2164 = vmul.f32 %v1911, %v1998
        %v2165 = vmul.f32 %v1911, %v2002
        %v2166 = vmul.f32 %v1911, %v2006
        %v2167 = vmul.f32 %v1915, %v1946
        %v2168 = vmul.f32 %v1915, %v1950
        %v2169 = vmul.f32 %v1915, %v1954
        %v2170 = vmul.f32 %v1915, %v1958
        %v2171 = vmul.f32 %v1915, %v1962
        %v2172 = vmul.f32 %v1915, %v1966
        %v2173 = vmul.f32 %v1915, %v1970
        %v2174 = vmul.f32 %v1915, %v1974
        %v2175 = vmul.f32 %v1915, %v1978
        %v2176 = vmul.f32 %v1915, %v1982
        %v2177 = vmul.f32 %v1915, %v1986
        %v2178 = vmul.f32 %v1915, %v1990
        %v2179 = vmul.f32 %v1915, %v1994
        %v2180 = vmul.f32 %v1915, %v1998
        %v2181 = vmul.f32 %v1915, %v2002
        %v2182 = vmul.f32 %v1915, %v2006
        %v2183 = vmul.f32 %v1919, %v1946
        %v2184 = vmul.f32 %v1919, %v1950
        %v2185 = vmul.f32 %v1919, %v1954
        %v2186 = vmul.f32 %v1919, %v1958
        %v2187 = vmul.f32 %v1919, %v1962
        %v2188 = vmul.f32 %v1919, %v1966
        %v2189 = vmul.f32 %v1919, %v1970
        %v2190 = vmul.f32 %v1919, %v1974
        %v2191 = vmul.f32 %v1919, %v1978
        %v2192 = vmul.f32 %v1919, %v1982
        %v2193 = vmul.f32 %v1919, %v1986
        %v2194 = vmul.f32 %v1919, %v1990
        %v2195 = vmul.f32 %v1919, %v1994
        %v2196 = vmul.f32 %v1919, %v1998
        %v2197 = vmul.f32 %v1919, %v2002
        %v2198 = vmul.f32 %v1919, %v2006
        %v2199 = vmul.f32 %v1923, %v1946
        %v2200 = vmul.f32 %v1923, %v1950
        %v2201 = vmul.f32 %v1923, %v1954
        %v2202 = vmul.f32 %v1923, %v1958
        %v2203 = vmul.f32 %v1923, %v1962
        %v2204 = vmul.f32 %v1923, %v1966
        %v2205 = vmul.f32 %v1923, %v1970
        %v2206 = vmul.f32 %v1923, %v1974
        %v2207 = vmul.f32 %v1923, %v1978
        %v2208 = vmul.f32 %v1923, %v1982
        %v2209 = vmul.f32 %v1923, %v1986
        %v2210 = vmul.f32 %v1923, %v1990
        %v2211 = vmul.f32 %v1923, %v1994
        %v2212 = vmul.f32 %v1923, %v1998
        %v2213 = vmul.f32 %v1923, %v2002
        %v2214 = vmul.f32 %v1923, %v2006
        %v2215 = vmul.f32 %v1927, %v1946
        %v2216 = vmul.f32 %v1927, %v1950
        %v2217 = vmul.f32 %v1927, %v1954
        %v2218 = vmul.f32 %v1927, %v1958
        %v2219 = vmul.f32 %v1927, %v1962
        %v2220 = vmul.f32 %v1927, %v1966
        %v2221 = vmul.f32 %v1927, %v1970
        %v2222 = vmul.f32 %v1927, %v1974
        %v2223 = vmul.f32 %v1927, %v1978
        %v2224 = vmul.f32 %v1927, %v1982
        %v2225 = vmul.f32 %v1927, %v1986
        %v2226 = vmul.f32 %v1927, %v1990
        %v2227 = vmul.f32 %v1927, %v1994
        %v2228 = vmul.f32 %v1927, %v1998
        %v2229 = vmul.f32 %v1927, %v2002
        %v2230 = vmul.f32 %v1927, %v2006
        %v2231 = vmul.f32 %v1931, %v1946
        %v2232 = vmul.f32 %v1931, %v1950
        %v2233 = vmul.f32 %v1931, %v1954
        %v2234 = vmul.f32 %v1931, %v1958
        %v2235 = vmul.f32 %v1931, %v1962
        %v2236 = vmul.f32 %v1931, %v1966
        %v2237 = vmul.f32 %v1931, %v1970
        %v2238 = vmul.f32 %v1931, %v1974
        %v2239 = vmul.f32 %v1931, %v1978
        %v2240 = vmul.f32 %v1931, %v1982
        %v2241 = vmul.f32 %v1931, %v1986
        %v2242 = vmul.f32 %v1931, %v1990
        %v2243 = vmul.f32 %v1931, %v1994
        %v2244 = vmul.f32 %v1931, %v1998
        %v2245 = vmul.f32 %v1931, %v2002
        %v2246 = vmul.f32 %v1931, %v2006
        %v2247 = vmul.f32 %v1935, %v1946
        %v2248 = vmul.f32 %v1935, %v1950
        %v2249 = vmul.f32 %v1935, %v1954
        %v2250 = vmul.f32 %v1935, %v1958
        %v2251 = vmul.f32 %v1935, %v1962
        %v2252 = vmul.f32 %v1935, %v1966
        %v2253 = vmul.f32 %v1935, %v1970
        %v2254 = vmul.f32 %v1935, %v1974
        %v2255 = vmul.f32 %v1935, %v1978
        %v2256 = vmul.f32 %v1935, %v1982
        %v2257 = vmul.f32 %v1935, %v1986
        %v2258 = vmul.f32 %v1935, %v1990
        %v2259 = vmul.f32 %v1935, %v1994
        %v2260 = vmul.f32 %v1935, %v1998
        %v2261 = vmul.f32 %v1935, %v2002
        %v2262 = vmul.f32 %v1935, %v2006
        %v2263 = vmul.f32 %v1939, %v1946
        %v2264 = vmul.f32 %v1939, %v1950
        %v2265 = vmul.f32 %v1939, %v1954
        %v2266 = vmul.f32 %v1939, %v1958
        %v2267 = vmul.f32 %v1939, %v1962
        %v2268 = vmul.f32 %v1939, %v1966
        %v2269 = vmul.f32 %v1939, %v1970
        %v2270 = vmul.f32 %v1939, %v1974
        %v2271 = vmul.f32 %v1939, %v1978
        %v2272 = vmul.f32 %v1939, %v1982
        %v2273 = vmul.f32 %v1939, %v1986
        %v2274 = vmul.f32 %v1939, %v1990
        %v2275 = vmul.f32 %v1939, %v1994
        %v2276 = vmul.f32 %v1939, %v1998
        %v2277 = vmul.f32 %v1939, %v2002
        %v2278 = vmul.f32 %v1939, %v2006
        %v2279 = vadd.f32 %v1617, %v2023
        %v2280 = vadd.f32 %v1618, %v2024
        %v2281 = vadd.f32 %v1619, %v2025
        %v2282 = vadd.f32 %v1620, %v2026
        %v2283 = vadd.f32 %v1621, %v2027
        %v2284 = vadd.f32 %v1622, %v2028
        %v2285 = vadd.f32 %v1623, %v2029
        %v2286 = vadd.f32 %v1624, %v2030
        %v2287 = vadd.f32 %v1625, %v2031
        %v2288 = vadd.f32 %v1626, %v2032
        %v2289 = vadd.f32 %v1627, %v2033
        %v2290 = vadd.f32 %v1628, %v2034
        %v2291 = vadd.f32 %v1629, %v2035
        %v2292 = vadd.f32 %v1630, %v2036
        %v2293 = vadd.f32 %v1631, %v2037
        %v2294 = vadd.f32 %v1632, %v2038
        %v2295 = vadd.f32 %v1633, %v2039
        %v2296 = vadd.f32 %v1634, %v2040
        %v2297 = vadd.f32 %v1635, %v2041
        %v2298 = vadd.f32 %v1636, %v2042
        %v2299 = vadd.f32 %v1637, %v2043
        %v2300 = vadd.f32 %v1638, %v2044
        %v2301 = vadd.f32 %v1639, %v2045
        %v2302 = vadd.f32 %v1640, %v2046
        %v2303 = vadd.f32 %v1641, %v2047
        %v2304 = vadd.f32 %v1642, %v2048
        %v2305 = vadd.f32 %v1643, %v2049
        %v2306 = vadd.f32 %v1644, %v2050
        %v2307 = vadd.f32 %v1645, %v2051
        %v2308 = vadd.f32 %v1646, %v2052
        %v2309 = vadd.f32 %v1647, %v2053
        %v2310 = vadd.f32 %v1648, %v2054
        %v2311 = vadd.f32 %v1649, %v2055
        %v2312 = vadd.f32 %v1650, %v2056
        %v2313 = vadd.f32 %v1651, %v2057
        %v2314 = vadd.f32 %v1652, %v2058
        %v2315 = vadd.f32 %v1653, %v2059
        %v2316 = vadd.f32 %v1654, %v2060
        %v2317 = vadd.f32 %v1655, %v2061
        %v2318 = vadd.f32 %v1656, %v2062
        %v2319 = vadd.f32 %v1657, %v2063
        %v2320 = vadd.f32 %v1658, %v2064
        %v2321 = vadd.f32 %v1659, %v2065
        %v2322 = vadd.f32 %v1660, %v2066
        %v2323 = vadd.f32 %v1661, %v2067
        %v2324 = vadd.f32 %v1662, %v2068
        %v2325 = vadd.f32 %v1663, %v2069
        %v2326 = vadd.f32 %v1664, %v2070
        %v2327 = vadd.f32 %v1665, %v2071
        %v2328 = vadd.f32 %v1666, %v2072
        %v2329 = vadd.f32 %v1667, %v2073
        %v2330 = vadd.f32 %v1668, %v2074
        %v2331 = vadd.f32 %v1669, %v2075
        %v2332 = vadd.f32 %v1670, %v2076
        %v2333 = vadd.f32 %v1671, %v2077
        %v2334 = vadd.f32 %v1672, %v2078
        %v2335 = vadd.f32 %v1673, %v2079
        %v2336 = vadd.f32 %v1674, %v2080
        %v2337 = vadd.f32 %v1675, %v2081
        %v2338 = vadd.f32 %v1676, %v2082
        %v2339 = vadd.f32 %v1677, %v2083
        %v2340 = vadd.f32 %v1678, %v2084
        %v2341 = vadd.f32 %v1679, %v2085
        %v2342 = vadd.f32 %v1680, %v2086
        %v2343 = vadd.f32 %v1681, %v2087
        %v2344 = vadd.f32 %v1682, %v2088
        %v2345 = vadd.f32 %v1683, %v2089
        %v2346 = vadd.f32 %v1684, %v2090
        %v2347 = vadd.f32 %v1685, %v2091
        %v2348 = vadd.f32 %v1686, %v2092
        %v2349 = vadd.f32 %v1687, %v2093
        %v2350 = vadd.f32 %v1688, %v2094
        %v2351 = vadd.f32 %v1689, %v2095
        %v2352 = vadd.f32 %v1690, %v2096
        %v2353 = vadd.f32 %v1691, %v2097
        %v2354 = vadd.f32 %v1692, %v2098
        %v2355 = vadd.f32 %v1693, %v2099
        %v2356 = vadd.f32 %v1694, %v2100
        %v2357 = vadd.f32 %v1695, %v2101
        %v2358 = vadd.f32 %v1696, %v2102
        %v2359 = vadd.f32 %v1697, %v2103
        %v2360 = vadd.f32 %v1698, %v2104
        %v2361 = vadd.f32 %v1699, %v2105
        %v2362 = vadd.f32 %v1700, %v2106
        %v2363 = vadd.f32 %v1701, %v2107
        %v2364 = vadd.f32 %v1702, %v2108
        %v2365 = vadd.f32 %v1703, %v2109
        %v2366 = vadd.f32 %v1704, %v2110
        %v2367 = vadd.f32 %v1705, %v2111
        %v2368 = vadd.f32 %v1706, %v2112
        %v2369 = vadd.f32 %v1707, %v2113
        %v2370 = vadd.f32 %v1708, %v2114
        %v2371 = vadd.f32 %v1709, %v2115
        %v2372 = vadd.f32 %v1710, %v2116
        %v2373 = vadd.f32 %v1711, %v2117
        %v2374 = vadd.f32 %v1712, %v2118
        %v2375 = vadd.f32 %v1713, %v2119
        %v2376 = vadd.f32 %v1714, %v2120
        %v2377 = vadd.f32 %v1715, %v2121
        %v2378 = vadd.f32 %v1716, %v2122
        %v2379 = vadd.f32 %v1717, %v2123
        %v2380 = vadd.f32 %v1718, %v2124
        %v2381 = vadd.f32 %v1719, %v2125
        %v2382 = vadd.f32 %v1720, %v2126
        %v2383 = vadd.f32 %v1721, %v2127
        %v2384 = vadd.f32 %v1722, %v2128
        %v2385 = vadd.f32 %v1723, %v2129
        %v2386 = vadd.f32 %v1724, %v2130
        %v2387 = vadd.f32 %v1725, %v2131
        %v2388 = vadd.f32 %v1726, %v2132
        %v2389 = vadd.f32 %v1727, %v2133
        %v2390 = vadd.f32 %v1728, %v2134
        %v2391 = vadd.f32 %v1729, %v2135
        %v2392 = vadd.f32 %v1730, %v2136
        %v2393 = vadd.f32 %v1731, %v2137
        %v2394 = vadd.f32 %v1732, %v2138
        %v2395 = vadd.f32 %v1733, %v2139
        %v2396 = vadd.f32 %v1734, %v2140
        %v2397 = vadd.f32 %v1735, %v2141
        %v2398 = vadd.f32 %v1736, %v2142
        %v2399 = vadd.f32 %v1737, %v2143
        %v2400 = vadd.f32 %v1738, %v2144
        %v2401 = vadd.f32 %v1739, %v2145
        %v2402 = vadd.f32 %v1740, %v2146
        %v2403 = vadd.f32 %v1741, %v2147
        %v2404 = vadd.f32 %v1742, %v2148
        %v2405 = vadd.f32 %v1743, %v2149
        %v2406 = vadd.f32 %v1744, %v2150
        %v2407 = vadd.f32 %v1745, %v2151
        %v2408 = vadd.f32 %v1746, %v2152
        %v2409 = vadd.f32 %v1747, %v2153
        %v2410 = vadd.f32 %v1748, %v2154
        %v2411 = vadd.f32 %v1749, %v2155
        %v2412 = vadd.f32 %v1750, %v2156
        %v2413 = vadd.f32 %v1751, %v2157
        %v2414 = vadd.f32 %v1752, %v2158
        %v2415 = vadd.f32 %v1753, %v2159
        %v2416 = vadd.f32 %v1754, %v2160
        %v2417 = vadd.f32 %v1755, %v2161
        %v2418 = vadd.f32 %v1756, %v2162
        %v2419 = vadd.f32 %v1757, %v2163
        %v2420 = vadd.f32 %v1758, %v2164
        %v2421 = vadd.f32 %v1759, %v2165
        %v2422 = vadd.f32 %v1760, %v2166
        %v2423 = vadd.f32 %v1761, %v2167
        %v2424 = vadd.f32 %v1762, %v2168
        %v2425 = vadd.f32 %v1763, %v2169
        %v2426 = vadd.f32 %v1764, %v2170
        %v2427 = vadd.f32 %v1765, %v2171
        %v2428 = vadd.f32 %v1766, %v2172
        %v2429 = vadd.f32 %v1767, %v2173
        %v2430 = vadd.f32 %v1768, %v2174
        %v2431 = vadd.f32 %v1769, %v2175
        %v2432 = vadd.f32 %v1770, %v2176
        %v2433 = vadd.f32 %v1771, %v2177
        %v2434 = vadd.f32 %v1772, %v2178
        %v2435 = vadd.f32 %v1773, %v2179
        %v2436 = vadd.f32 %v1774, %v2180
        %v2437 = vadd.f32 %v1775, %v2181
        %v2438 = vadd.f32 %v1776, %v2182
        %v2439 = vadd.f32 %v1777, %v2183
        %v2440 = vadd.f32 %v1778, %v2184
        %v2441 = vadd.f32 %v1779, %v2185
        %v2442 = vadd.f32 %v1780, %v2186
        %v2443 = vadd.f32 %v1781, %v2187
        %v2444 = vadd.f32 %v1782, %v2188
        %v2445 = vadd.f32 %v1783, %v2189
        %v2446 = vadd.f32 %v1784, %v2190
        %v2447 = vadd.f32 %v1785, %v2191
        %v2448 = vadd.f32 %v1786, %v2192
        %v2449 = vadd.f32 %v1787, %v2193
        %v2450 = vadd.f32 %v1788, %v2194
        %v2451 = vadd.f32 %v1789, %v2195
        %v2452 = vadd.f32 %v1790, %v2196
        %v2453 = vadd.f32 %v1791, %v2197
        %v2454 = vadd.f32 %v1792, %v2198
        %v2455 = vadd.f32 %v1793, %v2199
        %v2456 = vadd.f32 %v1794, %v2200
        %v2457 = vadd.f32 %v1795, %v2201
        %v2458 = vadd.f32 %v1796, %v2202
        %v2459 = vadd.f32 %v1797, %v2203
        %v2460 = vadd.f32 %v1798, %v2204
        %v2461 = vadd.f32 %v1799, %v2205
        %v2462 = vadd.f32 %v1800, %v2206
        %v2463 = vadd.f32 %v1801, %v2207
        %v2464 = vadd.f32 %v1802, %v2208
        %v2465 = vadd.f32 %v1803, %v2209
        %v2466 = vadd.f32 %v1804, %v2210
        %v2467 = vadd.f32 %v1805, %v2211
        %v2468 = vadd.f32 %v1806, %v2212
        %v2469 = vadd.f32 %v1807, %v2213
        %v2470 = vadd.f32 %v1808, %v2214
        %v2471 = vadd.f32 %v1809, %v2215
        %v2472 = vadd.f32 %v1810, %v2216
        %v2473 = vadd.f32 %v1811, %v2217
        %v2474 = vadd.f32 %v1812, %v2218
        %v2475 = vadd.f32 %v1813, %v2219
        %v2476 = vadd.f32 %v1814, %v2220
        %v2477 = vadd.f32 %v1815, %v2221
        %v2478 = vadd.f32 %v1816, %v2222
        %v2479 = vadd.f32 %v1817, %v2223
        %v2480 = vadd.f32 %v1818, %v2224
        %v2481 = vadd.f32 %v1819, %v2225
        %v2482 = vadd.f32 %v1820, %v2226
        %v2483 = vadd.f32 %v1821, %v2227
        %v2484 = vadd.f32 %v1822, %v2228
        %v2485 = vadd.f32 %v1823, %v2229
        %v2486 = vadd.f32 %v1824, %v2230
        %v2487 = vadd.f32 %v1825, %v2231
        %v2488 = vadd.f32 %v1826, %v2232
        %v2489 = vadd.f32 %v1827, %v2233
        %v2490 = vadd.f32 %v1828, %v2234
        %v2491 = vadd.f32 %v1829, %v2235
        %v2492 = vadd.f32 %v1830, %v2236
        %v2493 = vadd.f32 %v1831, %v2237
        %v2494 = vadd.f32 %v1832, %v2238
        %v2495 = vadd.f32 %v1833, %v2239
        %v2496 = vadd.f32 %v1834, %v2240
        %v2497 = vadd.f32 %v1835, %v2241
        %v2498 = vadd.f32 %v1836, %v2242
        %v2499 = vadd.f32 %v1837, %v2243
        %v2500 = vadd.f32 %v1838, %v2244
        %v2501 = vadd.f32 %v1839, %v2245
        %v2502 = vadd.f32 %v1840, %v2246
        %v2503 = vadd.f32 %v1841, %v2247
        %v2504 = vadd.f32 %v1842, %v2248
        %v2505 = vadd.f32 %v1843, %v2249
        %v2506 = vadd.f32 %v1844, %v2250
        %v2507 = vadd.f32 %v1845, %v2251
        %v2508 = vadd.f32 %v1846, %v2252
        %v2509 = vadd.f32 %v1847, %v2253
        %v2510 = vadd.f32 %v1848, %v2254
        %v2511 = vadd.f32 %v1849, %v2255
        %v2512 = vadd.f32 %v1850, %v2256
        %v2513 = vadd.f32 %v1851, %v2257
        %v2514 = vadd.f32 %v1852, %v2258
        %v2515 = vadd.f32 %v1853, %v2259
        %v2516 = vadd.f32 %v1854, %v2260
        %v2517 = vadd.f32 %v1855, %v2261
        %v2518 = vadd.f32 %v1856, %v2262
        %v2519 = vadd.f32 %v1857, %v2263
        %v2520 = vadd.f32 %v1858, %v2264
        %v2521 = vadd.f32 %v1859, %v2265
        %v2522 = vadd.f32 %v1860, %v2266
        %v2523 = vadd.f32 %v1861, %v2267
        %v2524 = vadd.f32 %v1862, %v2268
        %v2525 = vadd.f32 %v1863, %v2269
        %v2526 = vadd.f32 %v1864, %v2270
        %v2527 = vadd.f32 %v1865, %v2271
        %v2528 = vadd.f32 %v1866, %v2272
        %v2529 = vadd.f32 %v1867, %v2273
        %v2530 = vadd.f32 %v1868, %v2274
        %v2531 = vadd.f32 %v1869, %v2275
        %v2532 = vadd.f32 %v1870, %v2276
        %v2533 = vadd.f32 %v1871, %v2277
        %v2534 = vadd.f32 %v1872, %v2278
        %v2535 = vld [vmem:[#allocation6] sm:$0xff]
        %v2536 = vld [vmem:[#allocation6 + $0x8] sm:$0xff]
        %v2539 = vlaneseq
        %v2540 = vshrl.u32 %v2539, 7
        %v2541 = vsub.s32 0, %v2540
        %v2542 = vrot.slane %v2535, %v2541
        %v2543 = vlaneseq
        %v2544 = vshrl.u32 %v2543, 7
        %v2545 = vsub.s32 1, %v2544
        %v2546 = vrot.slane %v2535, %v2545
        %v2547 = vlaneseq
        %v2548 = vshrl.u32 %v2547, 7
        %v2549 = vsub.s32 2, %v2548
        %v2550 = vrot.slane %v2535, %v2549
        %v2551 = vlaneseq
        %v2552 = vshrl.u32 %v2551, 7
        %v2553 = vsub.s32 3, %v2552
        %v2554 = vrot.slane %v2535, %v2553
        %v2555 = vlaneseq
        %v2556 = vshrl.u32 %v2555, 7
        %v2557 = vsub.s32 4, %v2556
        %v2558 = vrot.slane %v2535, %v2557
        %v2559 = vlaneseq
        %v2560 = vshrl.u32 %v2559, 7
        %v2561 = vsub.s32 5, %v2560
        %v2562 = vrot.slane %v2535, %v2561
        %v2563 = vlaneseq
        %v2564 = vshrl.u32 %v2563, 7
        %v2565 = vsub.s32 6, %v2564
        %v2566 = vrot.slane %v2535, %v2565
        %v2567 = vlaneseq
        %v2568 = vshrl.u32 %v2567, 7
        %v2569 = vsub.s32 7, %v2568
        %v2570 = vrot.slane %v2535, %v2569
        %v2571 = vlaneseq
        %v2572 = vshrl.u32 %v2571, 7
        %v2573 = vsub.s32 0, %v2572
        %v2574 = vrot.slane %v2536, %v2573
        %v2575 = vlaneseq
        %v2576 = vshrl.u32 %v2575, 7
        %v2577 = vsub.s32 1, %v2576
        %v2578 = vrot.slane %v2536, %v2577
        %v2579 = vlaneseq
        %v2580 = vshrl.u32 %v2579, 7
        %v2581 = vsub.s32 2, %v2580
        %v2582 = vrot.slane %v2536, %v2581
        %v2583 = vlaneseq
        %v2584 = vshrl.u32 %v2583, 7
        %v2585 = vsub.s32 3, %v2584
        %v2586 = vrot.slane %v2536, %v2585
        %v2587 = vlaneseq
        %v2588 = vshrl.u32 %v2587, 7
        %v2589 = vsub.s32 4, %v2588
        %v2590 = vrot.slane %v2536, %v2589
        %v2591 = vlaneseq
        %v2592 = vshrl.u32 %v2591, 7
        %v2593 = vsub.s32 5, %v2592
        %v2594 = vrot.slane %v2536, %v2593
        %v2595 = vlaneseq
        %v2596 = vshrl.u32 %v2595, 7
        %v2597 = vsub.s32 6, %v2596
        %v2598 = vrot.slane %v2536, %v2597
        %v2599 = vlaneseq
        %v2600 = vshrl.u32 %v2599, 7
        %v2601 = vsub.s32 7, %v2600
        %v2602 = vrot.slane %v2536, %v2601
        %v2619 = vadd.f32 %v2279, %v2542
        %v2620 = vadd.f32 %v2280, %v2546
        %v2621 = vadd.f32 %v2281, %v2550
        %v2622 = vadd.f32 %v2282, %v2554
        %v2623 = vadd.f32 %v2283, %v2558
        %v2624 = vadd.f32 %v2284, %v2562
        %v2625 = vadd.f32 %v2285, %v2566
        %v2626 = vadd.f32 %v2286, %v2570
        %v2627 = vadd.f32 %v2287, %v2574
        %v2628 = vadd.f32 %v2288, %v2578
        %v2629 = vadd.f32 %v2289, %v2582
        %v2630 = vadd.f32 %v2290, %v2586
        %v2631 = vadd.f32 %v2291, %v2590
        %v2632 = vadd.f32 %v2292, %v2594
        %v2633 = vadd.f32 %v2293, %v2598
        %v2634 = vadd.f32 %v2294, %v2602
        %v2635 = vadd.f32 %v2295, %v2542
        %v2636 = vadd.f32 %v2296, %v2546
        %v2637 = vadd.f32 %v2297, %v2550
        %v2638 = vadd.f32 %v2298, %v2554
        %v2639 = vadd.f32 %v2299, %v2558
        %v2640 = vadd.f32 %v2300, %v2562
        %v2641 = vadd.f32 %v2301, %v2566
        %v2642 = vadd.f32 %v2302, %v2570
        %v2643 = vadd.f32 %v2303, %v2574
        %v2644 = vadd.f32 %v2304, %v2578
        %v2645 = vadd.f32 %v2305, %v2582
        %v2646 = vadd.f32 %v2306, %v2586
        %v2647 = vadd.f32 %v2307, %v2590
        %v2648 = vadd.f32 %v2308, %v2594
        %v2649 = vadd.f32 %v2309, %v2598
        %v2650 = vadd.f32 %v2310, %v2602
        %v2651 = vadd.f32 %v2311, %v2542
        %v2652 = vadd.f32 %v2312, %v2546
        %v2653 = vadd.f32 %v2313, %v2550
        %v2654 = vadd.f32 %v2314, %v2554
        %v2655 = vadd.f32 %v2315, %v2558
        %v2656 = vadd.f32 %v2316, %v2562
        %v2657 = vadd.f32 %v2317, %v2566
        %v2658 = vadd.f32 %v2318, %v2570
        %v2659 = vadd.f32 %v2319, %v2574
        %v2660 = vadd.f32 %v2320, %v2578
        %v2661 = vadd.f32 %v2321, %v2582
        %v2662 = vadd.f32 %v2322, %v2586
        %v2663 = vadd.f32 %v2323, %v2590
        %v2664 = vadd.f32 %v2324, %v2594
        %v2665 = vadd.f32 %v2325, %v2598
        %v2666 = vadd.f32 %v2326, %v2602
        %v2667 = vadd.f32 %v2327, %v2542
        %v2668 = vadd.f32 %v2328, %v2546
        %v2669 = vadd.f32 %v2329, %v2550
        %v2670 = vadd.f32 %v2330, %v2554
        %v2671 = vadd.f32 %v2331, %v2558
        %v2672 = vadd.f32 %v2332, %v2562
        %v2673 = vadd.f32 %v2333, %v2566
        %v2674 = vadd.f32 %v2334, %v2570
        %v2675 = vadd.f32 %v2335, %v2574
        %v2676 = vadd.f32 %v2336, %v2578
        %v2677 = vadd.f32 %v2337, %v2582
        %v2678 = vadd.f32 %v2338, %v2586
        %v2679 = vadd.f32 %v2339, %v2590
        %v2680 = vadd.f32 %v2340, %v2594
        %v2681 = vadd.f32 %v2341, %v2598
        %v2682 = vadd.f32 %v2342, %v2602
        %v2683 = vadd.f32 %v2343, %v2542
        %v2684 = vadd.f32 %v2344, %v2546
        %v2685 = vadd.f32 %v2345, %v2550
        %v2686 = vadd.f32 %v2346, %v2554
        %v2687 = vadd.f32 %v2347, %v2558
        %v2688 = vadd.f32 %v2348, %v2562
        %v2689 = vadd.f32 %v2349, %v2566
        %v2690 = vadd.f32 %v2350, %v2570
        %v2691 = vadd.f32 %v2351, %v2574
        %v2692 = vadd.f32 %v2352, %v2578
        %v2693 = vadd.f32 %v2353, %v2582
        %v2694 = vadd.f32 %v2354, %v2586
        %v2695 = vadd.f32 %v2355, %v2590
        %v2696 = vadd.f32 %v2356, %v2594
        %v2697 = vadd.f32 %v2357, %v2598
        %v2698 = vadd.f32 %v2358, %v2602
        %v2699 = vadd.f32 %v2359, %v2542
        %v2700 = vadd.f32 %v2360, %v2546
        %v2701 = vadd.f32 %v2361, %v2550
        %v2702 = vadd.f32 %v2362, %v2554
        %v2703 = vadd.f32 %v2363, %v2558
        %v2704 = vadd.f32 %v2364, %v2562
        %v2705 = vadd.f32 %v2365, %v2566
        %v2706 = vadd.f32 %v2366, %v2570
        %v2707 = vadd.f32 %v2367, %v2574
        %v2708 = vadd.f32 %v2368, %v2578
        %v2709 = vadd.f32 %v2369, %v2582
        %v2710 = vadd.f32 %v2370, %v2586
        %v2711 = vadd.f32 %v2371, %v2590
        %v2712 = vadd.f32 %v2372, %v2594
        %v2713 = vadd.f32 %v2373, %v2598
        %v2714 = vadd.f32 %v2374, %v2602
        %v2715 = vadd.f32 %v2375, %v2542
        %v2716 = vadd.f32 %v2376, %v2546
        %v2717 = vadd.f32 %v2377, %v2550
        %v2718 = vadd.f32 %v2378, %v2554
        %v2719 = vadd.f32 %v2379, %v2558
        %v2720 = vadd.f32 %v2380, %v2562
        %v2721 = vadd.f32 %v2381, %v2566
        %v2722 = vadd.f32 %v2382, %v2570
        %v2723 = vadd.f32 %v2383, %v2574
        %v2724 = vadd.f32 %v2384, %v2578
        %v2725 = vadd.f32 %v2385, %v2582
        %v2726 = vadd.f32 %v2386, %v2586
        %v2727 = vadd.f32 %v2387, %v2590
        %v2728 = vadd.f32 %v2388, %v2594
        %v2729 = vadd.f32 %v2389, %v2598
        %v2730 = vadd.f32 %v2390, %v2602
        %v2731 = vadd.f32 %v2391, %v2542
        %v2732 = vadd.f32 %v2392, %v2546
        %v2733 = vadd.f32 %v2393, %v2550
        %v2734 = vadd.f32 %v2394, %v2554
        %v2735 = vadd.f32 %v2395, %v2558
        %v2736 = vadd.f32 %v2396, %v2562
        %v2737 = vadd.f32 %v2397, %v2566
        %v2738 = vadd.f32 %v2398, %v2570
        %v2739 = vadd.f32 %v2399, %v2574
        %v2740 = vadd.f32 %v2400, %v2578
        %v2741 = vadd.f32 %v2401, %v2582
        %v2742 = vadd.f32 %v2402, %v2586
        %v2743 = vadd.f32 %v2403, %v2590
        %v2744 = vadd.f32 %v2404, %v2594
        %v2745 = vadd.f32 %v2405, %v2598
        %v2746 = vadd.f32 %v2406, %v2602
        %v2747 = vadd.f32 %v2407, %v2542
        %v2748 = vadd.f32 %v2408, %v2546
        %v2749 = vadd.f32 %v2409, %v2550
        %v2750 = vadd.f32 %v2410, %v2554
        %v2751 = vadd.f32 %v2411, %v2558
        %v2752 = vadd.f32 %v2412, %v2562
        %v2753 = vadd.f32 %v2413, %v2566
        %v2754 = vadd.f32 %v2414, %v2570
        %v2755 = vadd.f32 %v2415, %v2574
        %v2756 = vadd.f32 %v2416, %v2578
        %v2757 = vadd.f32 %v2417, %v2582
        %v2758 = vadd.f32 %v2418, %v2586
        %v2759 = vadd.f32 %v2419, %v2590
        %v2760 = vadd.f32 %v2420, %v2594
        %v2761 = vadd.f32 %v2421, %v2598
        %v2762 = vadd.f32 %v2422, %v2602
        %v2763 = vadd.f32 %v2423, %v2542
        %v2764 = vadd.f32 %v2424, %v2546
        %v2765 = vadd.f32 %v2425, %v2550
        %v2766 = vadd.f32 %v2426, %v2554
        %v2767 = vadd.f32 %v2427, %v2558
        %v2768 = vadd.f32 %v2428, %v2562
        %v2769 = vadd.f32 %v2429, %v2566
        %v2770 = vadd.f32 %v2430, %v2570
        %v2771 = vadd.f32 %v2431, %v2574
        %v2772 = vadd.f32 %v2432, %v2578
        %v2773 = vadd.f32 %v2433, %v2582
        %v2774 = vadd.f32 %v2434, %v2586
        %v2775 = vadd.f32 %v2435, %v2590
        %v2776 = vadd.f32 %v2436, %v2594
        %v2777 = vadd.f32 %v2437, %v2598
        %v2778 = vadd.f32 %v2438, %v2602
        %v2779 = vadd.f32 %v2439, %v2542
        %v2780 = vadd.f32 %v2440, %v2546
        %v2781 = vadd.f32 %v2441, %v2550
        %v2782 = vadd.f32 %v2442, %v2554
        %v2783 = vadd.f32 %v2443, %v2558
        %v2784 = vadd.f32 %v2444, %v2562
        %v2785 = vadd.f32 %v2445, %v2566
        %v2786 = vadd.f32 %v2446, %v2570
        %v2787 = vadd.f32 %v2447, %v2574
        %v2788 = vadd.f32 %v2448, %v2578
        %v2789 = vadd.f32 %v2449, %v2582
        %v2790 = vadd.f32 %v2450, %v2586
        %v2791 = vadd.f32 %v2451, %v2590
        %v2792 = vadd.f32 %v2452, %v2594
        %v2793 = vadd.f32 %v2453, %v2598
        %v2794 = vadd.f32 %v2454, %v2602
        %v2795 = vadd.f32 %v2455, %v2542
        %v2796 = vadd.f32 %v2456, %v2546
        %v2797 = vadd.f32 %v2457, %v2550
        %v2798 = vadd.f32 %v2458, %v2554
        %v2799 = vadd.f32 %v2459, %v2558
        %v2800 = vadd.f32 %v2460, %v2562
        %v2801 = vadd.f32 %v2461, %v2566
        %v2802 = vadd.f32 %v2462, %v2570
        %v2803 = vadd.f32 %v2463, %v2574
        %v2804 = vadd.f32 %v2464, %v2578
        %v2805 = vadd.f32 %v2465, %v2582
        %v2806 = vadd.f32 %v2466, %v2586
        %v2807 = vadd.f32 %v2467, %v2590
        %v2808 = vadd.f32 %v2468, %v2594
        %v2809 = vadd.f32 %v2469, %v2598
        %v2810 = vadd.f32 %v2470, %v2602
        %v2811 = vadd.f32 %v2471, %v2542
        %v2812 = vadd.f32 %v2472, %v2546
        %v2813 = vadd.f32 %v2473, %v2550
        %v2814 = vadd.f32 %v2474, %v2554
        %v2815 = vadd.f32 %v2475, %v2558
        %v2816 = vadd.f32 %v2476, %v2562
        %v2817 = vadd.f32 %v2477, %v2566
        %v2818 = vadd.f32 %v2478, %v2570
        %v2819 = vadd.f32 %v2479, %v2574
        %v2820 = vadd.f32 %v2480, %v2578
        %v2821 = vadd.f32 %v2481, %v2582
        %v2822 = vadd.f32 %v2482, %v2586
        %v2823 = vadd.f32 %v2483, %v2590
        %v2824 = vadd.f32 %v2484, %v2594
        %v2825 = vadd.f32 %v2485, %v2598
        %v2826 = vadd.f32 %v2486, %v2602
        %v2827 = vadd.f32 %v2487, %v2542
        %v2828 = vadd.f32 %v2488, %v2546
        %v2829 = vadd.f32 %v2489, %v2550
        %v2830 = vadd.f32 %v2490, %v2554
        %v2831 = vadd.f32 %v2491, %v2558
        %v2832 = vadd.f32 %v2492, %v2562
        %v2833 = vadd.f32 %v2493, %v2566
        %v2834 = vadd.f32 %v2494, %v2570
        %v2835 = vadd.f32 %v2495, %v2574
        %v2836 = vadd.f32 %v2496, %v2578
        %v2837 = vadd.f32 %v2497, %v2582
        %v2838 = vadd.f32 %v2498, %v2586
        %v2839 = vadd.f32 %v2499, %v2590
        %v2840 = vadd.f32 %v2500, %v2594
        %v2841 = vadd.f32 %v2501, %v2598
        %v2842 = vadd.f32 %v2502, %v2602
        %v2843 = vadd.f32 %v2503, %v2542
        %v2844 = vadd.f32 %v2504, %v2546
        %v2845 = vadd.f32 %v2505, %v2550
        %v2846 = vadd.f32 %v2506, %v2554
        %v2847 = vadd.f32 %v2507, %v2558
        %v2848 = vadd.f32 %v2508, %v2562
        %v2849 = vadd.f32 %v2509, %v2566
        %v2850 = vadd.f32 %v2510, %v2570
        %v2851 = vadd.f32 %v2511, %v2574
        %v2852 = vadd.f32 %v2512, %v2578
        %v2853 = vadd.f32 %v2513, %v2582
        %v2854 = vadd.f32 %v2514, %v2586
        %v2855 = vadd.f32 %v2515, %v2590
        %v2856 = vadd.f32 %v2516, %v2594
        %v2857 = vadd.f32 %v2517, %v2598
        %v2858 = vadd.f32 %v2518, %v2602
        %v2859 = vadd.f32 %v2519, %v2542
        %v2860 = vadd.f32 %v2520, %v2546
        %v2861 = vadd.f32 %v2521, %v2550
        %v2862 = vadd.f32 %v2522, %v2554
        %v2863 = vadd.f32 %v2523, %v2558
        %v2864 = vadd.f32 %v2524, %v2562
        %v2865 = vadd.f32 %v2525, %v2566
        %v2866 = vadd.f32 %v2526, %v2570
        %v2867 = vadd.f32 %v2527, %v2574
        %v2868 = vadd.f32 %v2528, %v2578
        %v2869 = vadd.f32 %v2529, %v2582
        %v2870 = vadd.f32 %v2530, %v2586
        %v2871 = vadd.f32 %v2531, %v2590
        %v2872 = vadd.f32 %v2532, %v2594
        %v2873 = vadd.f32 %v2533, %v2598
        %v2874 = vadd.f32 %v2534, %v2602
        %v2875 = vmax.f32 %v2619, 0.0
        %v2876 = vmax.f32 %v2620, 0.0
        %v2877 = vmax.f32 %v2621, 0.0
        %v2878 = vmax.f32 %v2622, 0.0
        %v2879 = vmax.f32 %v2623, 0.0
        %v2880 = vmax.f32 %v2624, 0.0
        %v2881 = vmax.f32 %v2625, 0.0
        %v2882 = vmax.f32 %v2626, 0.0
        %v2883 = vmax.f32 %v2627, 0.0
        %v2884 = vmax.f32 %v2628, 0.0
        %v2885 = vmax.f32 %v2629, 0.0
        %v2886 = vmax.f32 %v2630, 0.0
        %v2887 = vmax.f32 %v2631, 0.0
        %v2888 = vmax.f32 %v2632, 0.0
        %v2889 = vmax.f32 %v2633, 0.0
        %v2890 = vmax.f32 %v2634, 0.0
        %v2891 = vmax.f32 %v2635, 0.0
        %v2892 = vmax.f32 %v2636, 0.0
        %v2893 = vmax.f32 %v2637, 0.0
        %v2894 = vmax.f32 %v2638, 0.0
        %v2895 = vmax.f32 %v2639, 0.0
        %v2896 = vmax.f32 %v2640, 0.0
        %v2897 = vmax.f32 %v2641, 0.0
        %v2898 = vmax.f32 %v2642, 0.0
        %v2899 = vmax.f32 %v2643, 0.0
        %v2900 = vmax.f32 %v2644, 0.0
        %v2901 = vmax.f32 %v2645, 0.0
        %v2902 = vmax.f32 %v2646, 0.0
        %v2903 = vmax.f32 %v2647, 0.0
        %v2904 = vmax.f32 %v2648, 0.0
        %v2905 = vmax.f32 %v2649, 0.0
        %v2906 = vmax.f32 %v2650, 0.0
        %v2907 = vmax.f32 %v2651, 0.0
        %v2908 = vmax.f32 %v2652, 0.0
        %v2909 = vmax.f32 %v2653, 0.0
        %v2910 = vmax.f32 %v2654, 0.0
        %v2911 = vmax.f32 %v2655, 0.0
        %v2912 = vmax.f32 %v2656, 0.0
        %v2913 = vmax.f32 %v2657, 0.0
        %v2914 = vmax.f32 %v2658, 0.0
        %v2915 = vmax.f32 %v2659, 0.0
        %v2916 = vmax.f32 %v2660, 0.0
        %v2917 = vmax.f32 %v2661, 0.0
        %v2918 = vmax.f32 %v2662, 0.0
        %v2919 = vmax.f32 %v2663, 0.0
        %v2920 = vmax.f32 %v2664, 0.0
        %v2921 = vmax.f32 %v2665, 0.0
        %v2922 = vmax.f32 %v2666, 0.0
        %v2923 = vmax.f32 %v2667, 0.0
        %v2924 = vmax.f32 %v2668, 0.0
        %v2925 = vmax.f32 %v2669, 0.0
        %v2926 = vmax.f32 %v2670, 0.0
        %v2927 = vmax.f32 %v2671, 0.0
        %v2928 = vmax.f32 %v2672, 0.0
        %v2929 = vmax.f32 %v2673, 0.0
        %v2930 = vmax.f32 %v2674, 0.0
        %v2931 = vmax.f32 %v2675, 0.0
        %v2932 = vmax.f32 %v2676, 0.0
        %v2933 = vmax.f32 %v2677, 0.0
        %v2934 = vmax.f32 %v2678, 0.0
        %v2935 = vmax.f32 %v2679, 0.0
        %v2936 = vmax.f32 %v2680, 0.0
        %v2937 = vmax.f32 %v2681, 0.0
        %v2938 = vmax.f32 %v2682, 0.0
        %v2939 = vmax.f32 %v2683, 0.0
        %v2940 = vmax.f32 %v2684, 0.0
        %v2941 = vmax.f32 %v2685, 0.0
        %v2942 = vmax.f32 %v2686, 0.0
        %v2943 = vmax.f32 %v2687, 0.0
        %v2944 = vmax.f32 %v2688, 0.0
        %v2945 = vmax.f32 %v2689, 0.0
        %v2946 = vmax.f32 %v2690, 0.0
        %v2947 = vmax.f32 %v2691, 0.0
        %v2948 = vmax.f32 %v2692, 0.0
        %v2949 = vmax.f32 %v2693, 0.0
        %v2950 = vmax.f32 %v2694, 0.0
        %v2951 = vmax.f32 %v2695, 0.0
        %v2952 = vmax.f32 %v2696, 0.0
        %v2953 = vmax.f32 %v2697, 0.0
        %v2954 = vmax.f32 %v2698, 0.0
        %v2955 = vmax.f32 %v2699, 0.0
        %v2956 = vmax.f32 %v2700, 0.0
        %v2957 = vmax.f32 %v2701, 0.0
        %v2958 = vmax.f32 %v2702, 0.0
        %v2959 = vmax.f32 %v2703, 0.0
        %v2960 = vmax.f32 %v2704, 0.0
        %v2961 = vmax.f32 %v2705, 0.0
        %v2962 = vmax.f32 %v2706, 0.0
        %v2963 = vmax.f32 %v2707, 0.0
        %v2964 = vmax.f32 %v2708, 0.0
        %v2965 = vmax.f32 %v2709, 0.0
        %v2966 = vmax.f32 %v2710, 0.0
        %v2967 = vmax.f32 %v2711, 0.0
        %v2968 = vmax.f32 %v2712, 0.0
        %v2969 = vmax.f32 %v2713, 0.0
        %v2970 = vmax.f32 %v2714, 0.0
        %v2971 = vmax.f32 %v2715, 0.0
        %v2972 = vmax.f32 %v2716, 0.0
        %v2973 = vmax.f32 %v2717, 0.0
        %v2974 = vmax.f32 %v2718, 0.0
        %v2975 = vmax.f32 %v2719, 0.0
        %v2976 = vmax.f32 %v2720, 0.0
        %v2977 = vmax.f32 %v2721, 0.0
        %v2978 = vmax.f32 %v2722, 0.0
        %v2979 = vmax.f32 %v2723, 0.0
        %v2980 = vmax.f32 %v2724, 0.0
        %v2981 = vmax.f32 %v2725, 0.0
        %v2982 = vmax.f32 %v2726, 0.0
        %v2983 = vmax.f32 %v2727, 0.0
        %v2984 = vmax.f32 %v2728, 0.0
        %v2985 = vmax.f32 %v2729, 0.0
        %v2986 = vmax.f32 %v2730, 0.0
        %v2987 = vmax.f32 %v2731, 0.0
        %v2988 = vmax.f32 %v2732, 0.0
        %v2989 = vmax.f32 %v2733, 0.0
        %v2990 = vmax.f32 %v2734, 0.0
        %v2991 = vmax.f32 %v2735, 0.0
        %v2992 = vmax.f32 %v2736, 0.0
        %v2993 = vmax.f32 %v2737, 0.0
        %v2994 = vmax.f32 %v2738, 0.0
        %v2995 = vmax.f32 %v2739, 0.0
        %v2996 = vmax.f32 %v2740, 0.0
        %v2997 = vmax.f32 %v2741, 0.0
        %v2998 = vmax.f32 %v2742, 0.0
        %v2999 = vmax.f32 %v2743, 0.0
        %v3000 = vmax.f32 %v2744, 0.0
        %v3001 = vmax.f32 %v2745, 0.0
        %v3002 = vmax.f32 %v2746, 0.0
        %v3003 = vmax.f32 %v2747, 0.0
        %v3004 = vmax.f32 %v2748, 0.0
        %v3005 = vmax.f32 %v2749, 0.0
        %v3006 = vmax.f32 %v2750, 0.0
        %v3007 = vmax.f32 %v2751, 0.0
        %v3008 = vmax.f32 %v2752, 0.0
        %v3009 = vmax.f32 %v2753, 0.0
        %v3010 = vmax.f32 %v2754, 0.0
        %v3011 = vmax.f32 %v2755, 0.0
        %v3012 = vmax.f32 %v2756, 0.0
        %v3013 = vmax.f32 %v2757, 0.0
        %v3014 = vmax.f32 %v2758, 0.0
        %v3015 = vmax.f32 %v2759, 0.0
        %v3016 = vmax.f32 %v2760, 0.0
        %v3017 = vmax.f32 %v2761, 0.0
        %v3018 = vmax.f32 %v2762, 0.0
        %v3019 = vmax.f32 %v2763, 0.0
        %v3020 = vmax.f32 %v2764, 0.0
        %v3021 = vmax.f32 %v2765, 0.0
        %v3022 = vmax.f32 %v2766, 0.0
        %v3023 = vmax.f32 %v2767, 0.0
        %v3024 = vmax.f32 %v2768, 0.0
        %v3025 = vmax.f32 %v2769, 0.0
        %v3026 = vmax.f32 %v2770, 0.0
        %v3027 = vmax.f32 %v2771, 0.0
        %v3028 = vmax.f32 %v2772, 0.0
        %v3029 = vmax.f32 %v2773, 0.0
        %v3030 = vmax.f32 %v2774, 0.0
        %v3031 = vmax.f32 %v2775, 0.0
        %v3032 = vmax.f32 %v2776, 0.0
        %v3033 = vmax.f32 %v2777, 0.0
        %v3034 = vmax.f32 %v2778, 0.0
        %v3035 = vmax.f32 %v2779, 0.0
        %v3036 = vmax.f32 %v2780, 0.0
        %v3037 = vmax.f32 %v2781, 0.0
        %v3038 = vmax.f32 %v2782, 0.0
        %v3039 = vmax.f32 %v2783, 0.0
        %v3040 = vmax.f32 %v2784, 0.0
        %v3041 = vmax.f32 %v2785, 0.0
        %v3042 = vmax.f32 %v2786, 0.0
        %v3043 = vmax.f32 %v2787, 0.0
        %v3044 = vmax.f32 %v2788, 0.0
        %v3045 = vmax.f32 %v2789, 0.0
        %v3046 = vmax.f32 %v2790, 0.0
        %v3047 = vmax.f32 %v2791, 0.0
        %v3048 = vmax.f32 %v2792, 0.0
        %v3049 = vmax.f32 %v2793, 0.0
        %v3050 = vmax.f32 %v2794, 0.0
        %v3051 = vmax.f32 %v2795, 0.0
        %v3052 = vmax.f32 %v2796, 0.0
        %v3053 = vmax.f32 %v2797, 0.0
        %v3054 = vmax.f32 %v2798, 0.0
        %v3055 = vmax.f32 %v2799, 0.0
        %v3056 = vmax.f32 %v2800, 0.0
        %v3057 = vmax.f32 %v2801, 0.0
        %v3058 = vmax.f32 %v2802, 0.0
        %v3059 = vmax.f32 %v2803, 0.0
        %v3060 = vmax.f32 %v2804, 0.0
        %v3061 = vmax.f32 %v2805, 0.0
        %v3062 = vmax.f32 %v2806, 0.0
        %v3063 = vmax.f32 %v2807, 0.0
        %v3064 = vmax.f32 %v2808, 0.0
        %v3065 = vmax.f32 %v2809, 0.0
        %v3066 = vmax.f32 %v2810, 0.0
        %v3067 = vmax.f32 %v2811, 0.0
        %v3068 = vmax.f32 %v2812, 0.0
        %v3069 = vmax.f32 %v2813, 0.0
        %v3070 = vmax.f32 %v2814, 0.0
        %v3071 = vmax.f32 %v2815, 0.0
        %v3072 = vmax.f32 %v2816, 0.0
        %v3073 = vmax.f32 %v2817, 0.0
        %v3074 = vmax.f32 %v2818, 0.0
        %v3075 = vmax.f32 %v2819, 0.0
        %v3076 = vmax.f32 %v2820, 0.0
        %v3077 = vmax.f32 %v2821, 0.0
        %v3078 = vmax.f32 %v2822, 0.0
        %v3079 = vmax.f32 %v2823, 0.0
        %v3080 = vmax.f32 %v2824, 0.0
        %v3081 = vmax.f32 %v2825, 0.0
        %v3082 = vmax.f32 %v2826, 0.0
        %v3083 = vmax.f32 %v2827, 0.0
        %v3084 = vmax.f32 %v2828, 0.0
        %v3085 = vmax.f32 %v2829, 0.0
        %v3086 = vmax.f32 %v2830, 0.0
        %v3087 = vmax.f32 %v2831, 0.0
        %v3088 = vmax.f32 %v2832, 0.0
        %v3089 = vmax.f32 %v2833, 0.0
        %v3090 = vmax.f32 %v2834, 0.0
        %v3091 = vmax.f32 %v2835, 0.0
        %v3092 = vmax.f32 %v2836, 0.0
        %v3093 = vmax.f32 %v2837, 0.0
        %v3094 = vmax.f32 %v2838, 0.0
        %v3095 = vmax.f32 %v2839, 0.0
        %v3096 = vmax.f32 %v2840, 0.0
        %v3097 = vmax.f32 %v2841, 0.0
        %v3098 = vmax.f32 %v2842, 0.0
        %v3099 = vmax.f32 %v2843, 0.0
        %v3100 = vmax.f32 %v2844, 0.0
        %v3101 = vmax.f32 %v2845, 0.0
        %v3102 = vmax.f32 %v2846, 0.0
        %v3103 = vmax.f32 %v2847, 0.0
        %v3104 = vmax.f32 %v2848, 0.0
        %v3105 = vmax.f32 %v2849, 0.0
        %v3106 = vmax.f32 %v2850, 0.0
        %v3107 = vmax.f32 %v2851, 0.0
        %v3108 = vmax.f32 %v2852, 0.0
        %v3109 = vmax.f32 %v2853, 0.0
        %v3110 = vmax.f32 %v2854, 0.0
        %v3111 = vmax.f32 %v2855, 0.0
        %v3112 = vmax.f32 %v2856, 0.0
        %v3113 = vmax.f32 %v2857, 0.0
        %v3114 = vmax.f32 %v2858, 0.0
        %v3115 = vmax.f32 %v2859, 0.0
        %v3116 = vmax.f32 %v2860, 0.0
        %v3117 = vmax.f32 %v2861, 0.0
        %v3118 = vmax.f32 %v2862, 0.0
        %v3119 = vmax.f32 %v2863, 0.0
        %v3120 = vmax.f32 %v2864, 0.0
        %v3121 = vmax.f32 %v2865, 0.0
        %v3122 = vmax.f32 %v2866, 0.0
        %v3123 = vmax.f32 %v2867, 0.0
        %v3124 = vmax.f32 %v2868, 0.0
        %v3125 = vmax.f32 %v2869, 0.0
        %v3126 = vmax.f32 %v2870, 0.0
        %v3127 = vmax.f32 %v2871, 0.0
        %v3128 = vmax.f32 %v2872, 0.0
        %v3129 = vmax.f32 %v2873, 0.0
        %v3130 = vmax.f32 %v2874, 0.0
        %v3131 = vpack.c.bf16 %v2891, %v2875
        %v3132 = vpack.c.bf16 %v2892, %v2876
        %v3133 = vpack.c.bf16 %v2893, %v2877
        %v3134 = vpack.c.bf16 %v2894, %v2878
        %v3135 = vpack.c.bf16 %v2895, %v2879
        %v3136 = vpack.c.bf16 %v2896, %v2880
        %v3137 = vpack.c.bf16 %v2897, %v2881
        %v3138 = vpack.c.bf16 %v2898, %v2882
        %v3139 = vpack.c.bf16 %v2899, %v2883
        %v3140 = vpack.c.bf16 %v2900, %v2884
        %v3141 = vpack.c.bf16 %v2901, %v2885
        %v3142 = vpack.c.bf16 %v2902, %v2886
        %v3143 = vpack.c.bf16 %v2903, %v2887
        %v3144 = vpack.c.bf16 %v2904, %v2888
        %v3145 = vpack.c.bf16 %v2905, %v2889
        %v3146 = vpack.c.bf16 %v2906, %v2890
        %v3147 = vpack.c.bf16 %v2923, %v2907
        %v3148 = vpack.c.bf16 %v2924, %v2908
        %v3149 = vpack.c.bf16 %v2925, %v2909
        %v3150 = vpack.c.bf16 %v2926, %v2910
        %v3151 = vpack.c.bf16 %v2927, %v2911
        %v3152 = vpack.c.bf16 %v2928, %v2912
        %v3153 = vpack.c.bf16 %v2929, %v2913
        %v3154 = vpack.c.bf16 %v2930, %v2914
        %v3155 = vpack.c.bf16 %v2931, %v2915
        %v3156 = vpack.c.bf16 %v2932, %v2916
        %v3157 = vpack.c.bf16 %v2933, %v2917
        %v3158 = vpack.c.bf16 %v2934, %v2918
        %v3159 = vpack.c.bf16 %v2935, %v2919
        %v3160 = vpack.c.bf16 %v2936, %v2920
        %v3161 = vpack.c.bf16 %v2937, %v2921
        %v3162 = vpack.c.bf16 %v2938, %v2922
        %v3163 = vpack.c.bf16 %v2955, %v2939
        %v3164 = vpack.c.bf16 %v2956, %v2940
        %v3165 = vpack.c.bf16 %v2957, %v2941
        %v3166 = vpack.c.bf16 %v2958, %v2942
        %v3167 = vpack.c.bf16 %v2959, %v2943
        %v3168 = vpack.c.bf16 %v2960, %v2944
        %v3169 = vpack.c.bf16 %v2961, %v2945
        %v3170 = vpack.c.bf16 %v2962, %v2946
        %v3171 = vpack.c.bf16 %v2963, %v2947
        %v3172 = vpack.c.bf16 %v2964, %v2948
        %v3173 = vpack.c.bf16 %v2965, %v2949
        %v3174 = vpack.c.bf16 %v2966, %v2950
        %v3175 = vpack.c.bf16 %v2967, %v2951
        %v3176 = vpack.c.bf16 %v2968, %v2952
        %v3177 = vpack.c.bf16 %v2969, %v2953
        %v3178 = vpack.c.bf16 %v2970, %v2954
        %v3179 = vpack.c.bf16 %v2987, %v2971
        %v3180 = vpack.c.bf16 %v2988, %v2972
        %v3181 = vpack.c.bf16 %v2989, %v2973
        %v3182 = vpack.c.bf16 %v2990, %v2974
        %v3183 = vpack.c.bf16 %v2991, %v2975
        %v3184 = vpack.c.bf16 %v2992, %v2976
        %v3185 = vpack.c.bf16 %v2993, %v2977
        %v3186 = vpack.c.bf16 %v2994, %v2978
        %v3187 = vpack.c.bf16 %v2995, %v2979
        %v3188 = vpack.c.bf16 %v2996, %v2980
        %v3189 = vpack.c.bf16 %v2997, %v2981
        %v3190 = vpack.c.bf16 %v2998, %v2982
        %v3191 = vpack.c.bf16 %v2999, %v2983
        %v3192 = vpack.c.bf16 %v3000, %v2984
        %v3193 = vpack.c.bf16 %v3001, %v2985
        %v3194 = vpack.c.bf16 %v3002, %v2986
        %v3195 = vpack.c.bf16 %v3019, %v3003
        %v3196 = vpack.c.bf16 %v3020, %v3004
        %v3197 = vpack.c.bf16 %v3021, %v3005
        %v3198 = vpack.c.bf16 %v3022, %v3006
        %v3199 = vpack.c.bf16 %v3023, %v3007
        %v3200 = vpack.c.bf16 %v3024, %v3008
        %v3201 = vpack.c.bf16 %v3025, %v3009
        %v3202 = vpack.c.bf16 %v3026, %v3010
        %v3203 = vpack.c.bf16 %v3027, %v3011
        %v3204 = vpack.c.bf16 %v3028, %v3012
        %v3205 = vpack.c.bf16 %v3029, %v3013
        %v3206 = vpack.c.bf16 %v3030, %v3014
        %v3207 = vpack.c.bf16 %v3031, %v3015
        %v3208 = vpack.c.bf16 %v3032, %v3016
        %v3209 = vpack.c.bf16 %v3033, %v3017
        %v3210 = vpack.c.bf16 %v3034, %v3018
        %v3211 = vpack.c.bf16 %v3051, %v3035
        %v3212 = vpack.c.bf16 %v3052, %v3036
        %v3213 = vpack.c.bf16 %v3053, %v3037
        %v3214 = vpack.c.bf16 %v3054, %v3038
        %v3215 = vpack.c.bf16 %v3055, %v3039
        %v3216 = vpack.c.bf16 %v3056, %v3040
        %v3217 = vpack.c.bf16 %v3057, %v3041
        %v3218 = vpack.c.bf16 %v3058, %v3042
        %v3219 = vpack.c.bf16 %v3059, %v3043
        %v3220 = vpack.c.bf16 %v3060, %v3044
        %v3221 = vpack.c.bf16 %v3061, %v3045
        %v3222 = vpack.c.bf16 %v3062, %v3046
        %v3223 = vpack.c.bf16 %v3063, %v3047
        %v3224 = vpack.c.bf16 %v3064, %v3048
        %v3225 = vpack.c.bf16 %v3065, %v3049
        %v3226 = vpack.c.bf16 %v3066, %v3050
        %v3227 = vpack.c.bf16 %v3083, %v3067
        %v3228 = vpack.c.bf16 %v3084, %v3068
        %v3229 = vpack.c.bf16 %v3085, %v3069
        %v3230 = vpack.c.bf16 %v3086, %v3070
        %v3231 = vpack.c.bf16 %v3087, %v3071
        %v3232 = vpack.c.bf16 %v3088, %v3072
        %v3233 = vpack.c.bf16 %v3089, %v3073
        %v3234 = vpack.c.bf16 %v3090, %v3074
        %v3235 = vpack.c.bf16 %v3091, %v3075
        %v3236 = vpack.c.bf16 %v3092, %v3076
        %v3237 = vpack.c.bf16 %v3093, %v3077
        %v3238 = vpack.c.bf16 %v3094, %v3078
        %v3239 = vpack.c.bf16 %v3095, %v3079
        %v3240 = vpack.c.bf16 %v3096, %v3080
        %v3241 = vpack.c.bf16 %v3097, %v3081
        %v3242 = vpack.c.bf16 %v3098, %v3082
        %v3243 = vpack.c.bf16 %v3115, %v3099
        %v3244 = vpack.c.bf16 %v3116, %v3100
        %v3245 = vpack.c.bf16 %v3117, %v3101
        %v3246 = vpack.c.bf16 %v3118, %v3102
        %v3247 = vpack.c.bf16 %v3119, %v3103
        %v3248 = vpack.c.bf16 %v3120, %v3104
        %v3249 = vpack.c.bf16 %v3121, %v3105
        %v3250 = vpack.c.bf16 %v3122, %v3106
        %v3251 = vpack.c.bf16 %v3123, %v3107
        %v3252 = vpack.c.bf16 %v3124, %v3108
        %v3253 = vpack.c.bf16 %v3125, %v3109
        %v3254 = vpack.c.bf16 %v3126, %v3110
        %v3255 = vpack.c.bf16 %v3127, %v3111
        %v3256 = vpack.c.bf16 %v3128, %v3112
        %v3257 = vpack.c.bf16 %v3129, %v3113
        %v3258 = vpack.c.bf16 %v3130, %v3114
        %v3387 = vunpack.c.l.b16 %v3131
        %v3388 = vunpack.c.l.b16 %v3132
        %v3389 = vunpack.c.l.b16 %v3133
        %v3390 = vunpack.c.l.b16 %v3134
        %v3391 = vunpack.c.l.b16 %v3135
        %v3392 = vunpack.c.l.b16 %v3136
        %v3393 = vunpack.c.l.b16 %v3137
        %v3394 = vunpack.c.l.b16 %v3138
        %v3395 = vunpack.c.l.b16 %v3139
        %v3396 = vunpack.c.l.b16 %v3140
        %v3397 = vunpack.c.l.b16 %v3141
        %v3398 = vunpack.c.l.b16 %v3142
        %v3399 = vunpack.c.l.b16 %v3143
        %v3400 = vunpack.c.l.b16 %v3144
        %v3401 = vunpack.c.l.b16 %v3145
        %v3402 = vunpack.c.l.b16 %v3146
        %v3403 = vunpack.c.h.b16 %v3131
        %v3404 = vunpack.c.h.b16 %v3132
        %v3405 = vunpack.c.h.b16 %v3133
        %v3406 = vunpack.c.h.b16 %v3134
        %v3407 = vunpack.c.h.b16 %v3135
        %v3408 = vunpack.c.h.b16 %v3136
        %v3409 = vunpack.c.h.b16 %v3137
        %v3410 = vunpack.c.h.b16 %v3138
        %v3411 = vunpack.c.h.b16 %v3139
        %v3412 = vunpack.c.h.b16 %v3140
        %v3413 = vunpack.c.h.b16 %v3141
        %v3414 = vunpack.c.h.b16 %v3142
        %v3415 = vunpack.c.h.b16 %v3143
        %v3416 = vunpack.c.h.b16 %v3144
        %v3417 = vunpack.c.h.b16 %v3145
        %v3418 = vunpack.c.h.b16 %v3146
        %v3419 = vunpack.c.l.b16 %v3147
        %v3420 = vunpack.c.l.b16 %v3148
        %v3421 = vunpack.c.l.b16 %v3149
        %v3422 = vunpack.c.l.b16 %v3150
        %v3423 = vunpack.c.l.b16 %v3151
        %v3424 = vunpack.c.l.b16 %v3152
        %v3425 = vunpack.c.l.b16 %v3153
        %v3426 = vunpack.c.l.b16 %v3154
        %v3427 = vunpack.c.l.b16 %v3155
        %v3428 = vunpack.c.l.b16 %v3156
        %v3429 = vunpack.c.l.b16 %v3157
        %v3430 = vunpack.c.l.b16 %v3158
        %v3431 = vunpack.c.l.b16 %v3159
        %v3432 = vunpack.c.l.b16 %v3160
        %v3433 = vunpack.c.l.b16 %v3161
        %v3434 = vunpack.c.l.b16 %v3162
        %v3435 = vunpack.c.h.b16 %v3147
        %v3436 = vunpack.c.h.b16 %v3148
        %v3437 = vunpack.c.h.b16 %v3149
        %v3438 = vunpack.c.h.b16 %v3150
        %v3439 = vunpack.c.h.b16 %v3151
        %v3440 = vunpack.c.h.b16 %v3152
        %v3441 = vunpack.c.h.b16 %v3153
        %v3442 = vunpack.c.h.b16 %v3154
        %v3443 = vunpack.c.h.b16 %v3155
        %v3444 = vunpack.c.h.b16 %v3156
        %v3445 = vunpack.c.h.b16 %v3157
        %v3446 = vunpack.c.h.b16 %v3158
        %v3447 = vunpack.c.h.b16 %v3159
        %v3448 = vunpack.c.h.b16 %v3160
        %v3449 = vunpack.c.h.b16 %v3161
        %v3450 = vunpack.c.h.b16 %v3162
        %v3451 = vunpack.c.l.b16 %v3163
        %v3452 = vunpack.c.l.b16 %v3164
        %v3453 = vunpack.c.l.b16 %v3165
        %v3454 = vunpack.c.l.b16 %v3166
        %v3455 = vunpack.c.l.b16 %v3167
        %v3456 = vunpack.c.l.b16 %v3168
        %v3457 = vunpack.c.l.b16 %v3169
        %v3458 = vunpack.c.l.b16 %v3170
        %v3459 = vunpack.c.l.b16 %v3171
        %v3460 = vunpack.c.l.b16 %v3172
        %v3461 = vunpack.c.l.b16 %v3173
        %v3462 = vunpack.c.l.b16 %v3174
        %v3463 = vunpack.c.l.b16 %v3175
        %v3464 = vunpack.c.l.b16 %v3176
        %v3465 = vunpack.c.l.b16 %v3177
        %v3466 = vunpack.c.l.b16 %v3178
        %v3467 = vunpack.c.h.b16 %v3163
        %v3468 = vunpack.c.h.b16 %v3164
        %v3469 = vunpack.c.h.b16 %v3165
        %v3470 = vunpack.c.h.b16 %v3166
        %v3471 = vunpack.c.h.b16 %v3167
        %v3472 = vunpack.c.h.b16 %v3168
        %v3473 = vunpack.c.h.b16 %v3169
        %v3474 = vunpack.c.h.b16 %v3170
        %v3475 = vunpack.c.h.b16 %v3171
        %v3476 = vunpack.c.h.b16 %v3172
        %v3477 = vunpack.c.h.b16 %v3173
        %v3478 = vunpack.c.h.b16 %v3174
        %v3479 = vunpack.c.h.b16 %v3175
        %v3480 = vunpack.c.h.b16 %v3176
        %v3481 = vunpack.c.h.b16 %v3177
        %v3482 = vunpack.c.h.b16 %v3178
        %v3483 = vunpack.c.l.b16 %v3179
        %v3484 = vunpack.c.l.b16 %v3180
        %v3485 = vunpack.c.l.b16 %v3181
        %v3486 = vunpack.c.l.b16 %v3182
        %v3487 = vunpack.c.l.b16 %v3183
        %v3488 = vunpack.c.l.b16 %v3184
        %v3489 = vunpack.c.l.b16 %v3185
        %v3490 = vunpack.c.l.b16 %v3186
        %v3491 = vunpack.c.l.b16 %v3187
        %v3492 = vunpack.c.l.b16 %v3188
        %v3493 = vunpack.c.l.b16 %v3189
        %v3494 = vunpack.c.l.b16 %v3190
        %v3495 = vunpack.c.l.b16 %v3191
        %v3496 = vunpack.c.l.b16 %v3192
        %v3497 = vunpack.c.l.b16 %v3193
        %v3498 = vunpack.c.l.b16 %v3194
        %v3499 = vunpack.c.h.b16 %v3179
        %v3500 = vunpack.c.h.b16 %v3180
        %v3501 = vunpack.c.h.b16 %v3181
        %v3502 = vunpack.c.h.b16 %v3182
        %v3503 = vunpack.c.h.b16 %v3183
        %v3504 = vunpack.c.h.b16 %v3184
        %v3505 = vunpack.c.h.b16 %v3185
        %v3506 = vunpack.c.h.b16 %v3186
        %v3507 = vunpack.c.h.b16 %v3187
        %v3508 = vunpack.c.h.b16 %v3188
        %v3509 = vunpack.c.h.b16 %v3189
        %v3510 = vunpack.c.h.b16 %v3190
        %v3511 = vunpack.c.h.b16 %v3191
        %v3512 = vunpack.c.h.b16 %v3192
        %v3513 = vunpack.c.h.b16 %v3193
        %v3514 = vunpack.c.h.b16 %v3194
        %v3515 = vunpack.c.l.b16 %v3195
        %v3516 = vunpack.c.l.b16 %v3196
        %v3517 = vunpack.c.l.b16 %v3197
        %v3518 = vunpack.c.l.b16 %v3198
        %v3519 = vunpack.c.l.b16 %v3199
        %v3520 = vunpack.c.l.b16 %v3200
        %v3521 = vunpack.c.l.b16 %v3201
        %v3522 = vunpack.c.l.b16 %v3202
        %v3523 = vunpack.c.l.b16 %v3203
        %v3524 = vunpack.c.l.b16 %v3204
        %v3525 = vunpack.c.l.b16 %v3205
        %v3526 = vunpack.c.l.b16 %v3206
        %v3527 = vunpack.c.l.b16 %v3207
        %v3528 = vunpack.c.l.b16 %v3208
        %v3529 = vunpack.c.l.b16 %v3209
        %v3530 = vunpack.c.l.b16 %v3210
        %v3531 = vunpack.c.h.b16 %v3195
        %v3532 = vunpack.c.h.b16 %v3196
        %v3533 = vunpack.c.h.b16 %v3197
        %v3534 = vunpack.c.h.b16 %v3198
        %v3535 = vunpack.c.h.b16 %v3199
        %v3536 = vunpack.c.h.b16 %v3200
        %v3537 = vunpack.c.h.b16 %v3201
        %v3538 = vunpack.c.h.b16 %v3202
        %v3539 = vunpack.c.h.b16 %v3203
        %v3540 = vunpack.c.h.b16 %v3204
        %v3541 = vunpack.c.h.b16 %v3205
        %v3542 = vunpack.c.h.b16 %v3206
        %v3543 = vunpack.c.h.b16 %v3207
        %v3544 = vunpack.c.h.b16 %v3208
        %v3545 = vunpack.c.h.b16 %v3209
        %v3546 = vunpack.c.h.b16 %v3210
        %v3547 = vunpack.c.l.b16 %v3211
        %v3548 = vunpack.c.l.b16 %v3212
        %v3549 = vunpack.c.l.b16 %v3213
        %v3550 = vunpack.c.l.b16 %v3214
        %v3551 = vunpack.c.l.b16 %v3215
        %v3552 = vunpack.c.l.b16 %v3216
        %v3553 = vunpack.c.l.b16 %v3217
        %v3554 = vunpack.c.l.b16 %v3218
        %v3555 = vunpack.c.l.b16 %v3219
        %v3556 = vunpack.c.l.b16 %v3220
        %v3557 = vunpack.c.l.b16 %v3221
        %v3558 = vunpack.c.l.b16 %v3222
        %v3559 = vunpack.c.l.b16 %v3223
        %v3560 = vunpack.c.l.b16 %v3224
        %v3561 = vunpack.c.l.b16 %v3225
        %v3562 = vunpack.c.l.b16 %v3226
        %v3563 = vunpack.c.h.b16 %v3211
        %v3564 = vunpack.c.h.b16 %v3212
        %v3565 = vunpack.c.h.b16 %v3213
        %v3566 = vunpack.c.h.b16 %v3214
        %v3567 = vunpack.c.h.b16 %v3215
        %v3568 = vunpack.c.h.b16 %v3216
        %v3569 = vunpack.c.h.b16 %v3217
        %v3570 = vunpack.c.h.b16 %v3218
        %v3571 = vunpack.c.h.b16 %v3219
        %v3572 = vunpack.c.h.b16 %v3220
        %v3573 = vunpack.c.h.b16 %v3221
        %v3574 = vunpack.c.h.b16 %v3222
        %v3575 = vunpack.c.h.b16 %v3223
        %v3576 = vunpack.c.h.b16 %v3224
        %v3577 = vunpack.c.h.b16 %v3225
        %v3578 = vunpack.c.h.b16 %v3226
        %v3579 = vunpack.c.l.b16 %v3227
        %v3580 = vunpack.c.l.b16 %v3228
        %v3581 = vunpack.c.l.b16 %v3229
        %v3582 = vunpack.c.l.b16 %v3230
        %v3583 = vunpack.c.l.b16 %v3231
        %v3584 = vunpack.c.l.b16 %v3232
        %v3585 = vunpack.c.l.b16 %v3233
        %v3586 = vunpack.c.l.b16 %v3234
        %v3587 = vunpack.c.l.b16 %v3235
        %v3588 = vunpack.c.l.b16 %v3236
        %v3589 = vunpack.c.l.b16 %v3237
        %v3590 = vunpack.c.l.b16 %v3238
        %v3591 = vunpack.c.l.b16 %v3239
        %v3592 = vunpack.c.l.b16 %v3240
        %v3593 = vunpack.c.l.b16 %v3241
        %v3594 = vunpack.c.l.b16 %v3242
        %v3595 = vunpack.c.h.b16 %v3227
        %v3596 = vunpack.c.h.b16 %v3228
        %v3597 = vunpack.c.h.b16 %v3229
        %v3598 = vunpack.c.h.b16 %v3230
        %v3599 = vunpack.c.h.b16 %v3231
        %v3600 = vunpack.c.h.b16 %v3232
        %v3601 = vunpack.c.h.b16 %v3233
        %v3602 = vunpack.c.h.b16 %v3234
        %v3603 = vunpack.c.h.b16 %v3235
        %v3604 = vunpack.c.h.b16 %v3236
        %v3605 = vunpack.c.h.b16 %v3237
        %v3606 = vunpack.c.h.b16 %v3238
        %v3607 = vunpack.c.h.b16 %v3239
        %v3608 = vunpack.c.h.b16 %v3240
        %v3609 = vunpack.c.h.b16 %v3241
        %v3610 = vunpack.c.h.b16 %v3242
        %v3611 = vunpack.c.l.b16 %v3243
        %v3612 = vunpack.c.l.b16 %v3244
        %v3613 = vunpack.c.l.b16 %v3245
        %v3614 = vunpack.c.l.b16 %v3246
        %v3615 = vunpack.c.l.b16 %v3247
        %v3616 = vunpack.c.l.b16 %v3248
        %v3617 = vunpack.c.l.b16 %v3249
        %v3618 = vunpack.c.l.b16 %v3250
        %v3619 = vunpack.c.l.b16 %v3251
        %v3620 = vunpack.c.l.b16 %v3252
        %v3621 = vunpack.c.l.b16 %v3253
        %v3622 = vunpack.c.l.b16 %v3254
        %v3623 = vunpack.c.l.b16 %v3255
        %v3624 = vunpack.c.l.b16 %v3256
        %v3625 = vunpack.c.l.b16 %v3257
        %v3626 = vunpack.c.l.b16 %v3258
        %v3627 = vunpack.c.h.b16 %v3243
        %v3628 = vunpack.c.h.b16 %v3244
        %v3629 = vunpack.c.h.b16 %v3245
        %v3630 = vunpack.c.h.b16 %v3246
        %v3631 = vunpack.c.h.b16 %v3247
        %v3632 = vunpack.c.h.b16 %v3248
        %v3633 = vunpack.c.h.b16 %v3249
        %v3634 = vunpack.c.h.b16 %v3250
        %v3635 = vunpack.c.h.b16 %v3251
        %v3636 = vunpack.c.h.b16 %v3252
        %v3637 = vunpack.c.h.b16 %v3253
        %v3638 = vunpack.c.h.b16 %v3254
        %v3639 = vunpack.c.h.b16 %v3255
        %v3640 = vunpack.c.h.b16 %v3256
        %v3641 = vunpack.c.h.b16 %v3257
        %v3642 = vunpack.c.h.b16 %v3258
        %v3643 = vpack.c.b16 %v3388, %v3387
        %v3644 = vpack.c.b16 %v3390, %v3389
        %v3645 = vpack.c.b16 %v3392, %v3391
        %v3646 = vpack.c.b16 %v3394, %v3393
        %v3647 = vpack.c.b16 %v3396, %v3395
        %v3648 = vpack.c.b16 %v3398, %v3397
        %v3649 = vpack.c.b16 %v3400, %v3399
        %v3650 = vpack.c.b16 %v3402, %v3401
        %v3651 = vpack.c.b16 %v3404, %v3403
        %v3652 = vpack.c.b16 %v3406, %v3405
        %v3653 = vpack.c.b16 %v3408, %v3407
        %v3654 = vpack.c.b16 %v3410, %v3409
        %v3655 = vpack.c.b16 %v3412, %v3411
        %v3656 = vpack.c.b16 %v3414, %v3413
        %v3657 = vpack.c.b16 %v3416, %v3415
        %v3658 = vpack.c.b16 %v3418, %v3417
        %v3659 = vpack.c.b16 %v3420, %v3419
        %v3660 = vpack.c.b16 %v3422, %v3421
        %v3661 = vpack.c.b16 %v3424, %v3423
        %v3662 = vpack.c.b16 %v3426, %v3425
        %v3663 = vpack.c.b16 %v3428, %v3427
        %v3664 = vpack.c.b16 %v3430, %v3429
        %v3665 = vpack.c.b16 %v3432, %v3431
        %v3666 = vpack.c.b16 %v3434, %v3433
        %v3667 = vpack.c.b16 %v3436, %v3435
        %v3668 = vpack.c.b16 %v3438, %v3437
        %v3669 = vpack.c.b16 %v3440, %v3439
        %v3670 = vpack.c.b16 %v3442, %v3441
        %v3671 = vpack.c.b16 %v3444, %v3443
        %v3672 = vpack.c.b16 %v3446, %v3445
        %v3673 = vpack.c.b16 %v3448, %v3447
        %v3674 = vpack.c.b16 %v3450, %v3449
        %v3675 = vpack.c.b16 %v3452, %v3451
        %v3676 = vpack.c.b16 %v3454, %v3453
        %v3677 = vpack.c.b16 %v3456, %v3455
        %v3678 = vpack.c.b16 %v3458, %v3457
        %v3679 = vpack.c.b16 %v3460, %v3459
        %v3680 = vpack.c.b16 %v3462, %v3461
        %v3681 = vpack.c.b16 %v3464, %v3463
        %v3682 = vpack.c.b16 %v3466, %v3465
        %v3683 = vpack.c.b16 %v3468, %v3467
        %v3684 = vpack.c.b16 %v3470, %v3469
        %v3685 = vpack.c.b16 %v3472, %v3471
        %v3686 = vpack.c.b16 %v3474, %v3473
        %v3687 = vpack.c.b16 %v3476, %v3475
        %v3688 = vpack.c.b16 %v3478, %v3477
        %v3689 = vpack.c.b16 %v3480, %v3479
        %v3690 = vpack.c.b16 %v3482, %v3481
        %v3691 = vpack.c.b16 %v3484, %v3483
        %v3692 = vpack.c.b16 %v3486, %v3485
        %v3693 = vpack.c.b16 %v3488, %v3487
        %v3694 = vpack.c.b16 %v3490, %v3489
        %v3695 = vpack.c.b16 %v3492, %v3491
        %v3696 = vpack.c.b16 %v3494, %v3493
        %v3697 = vpack.c.b16 %v3496, %v3495
        %v3698 = vpack.c.b16 %v3498, %v3497
        %v3699 = vpack.c.b16 %v3500, %v3499
        %v3700 = vpack.c.b16 %v3502, %v3501
        %v3701 = vpack.c.b16 %v3504, %v3503
        %v3702 = vpack.c.b16 %v3506, %v3505
        %v3703 = vpack.c.b16 %v3508, %v3507
        %v3704 = vpack.c.b16 %v3510, %v3509
        %v3705 = vpack.c.b16 %v3512, %v3511
        %v3706 = vpack.c.b16 %v3514, %v3513
        %v3707 = vpack.c.b16 %v3516, %v3515
        %v3708 = vpack.c.b16 %v3518, %v3517
        %v3709 = vpack.c.b16 %v3520, %v3519
        %v3710 = vpack.c.b16 %v3522, %v3521
        %v3711 = vpack.c.b16 %v3524, %v3523
        %v3712 = vpack.c.b16 %v3526, %v3525
        %v3713 = vpack.c.b16 %v3528, %v3527
        %v3714 = vpack.c.b16 %v3530, %v3529
        %v3715 = vpack.c.b16 %v3532, %v3531
        %v3716 = vpack.c.b16 %v3534, %v3533
        %v3717 = vpack.c.b16 %v3536, %v3535
        %v3718 = vpack.c.b16 %v3538, %v3537
        %v3719 = vpack.c.b16 %v3540, %v3539
        %v3720 = vpack.c.b16 %v3542, %v3541
        %v3721 = vpack.c.b16 %v3544, %v3543
        %v3722 = vpack.c.b16 %v3546, %v3545
        %v3723 = vpack.c.b16 %v3548, %v3547
        %v3724 = vpack.c.b16 %v3550, %v3549
        %v3725 = vpack.c.b16 %v3552, %v3551
        %v3726 = vpack.c.b16 %v3554, %v3553
        %v3727 = vpack.c.b16 %v3556, %v3555
        %v3728 = vpack.c.b16 %v3558, %v3557
        %v3729 = vpack.c.b16 %v3560, %v3559
        %v3730 = vpack.c.b16 %v3562, %v3561
        %v3731 = vpack.c.b16 %v3564, %v3563
        %v3732 = vpack.c.b16 %v3566, %v3565
        %v3733 = vpack.c.b16 %v3568, %v3567
        %v3734 = vpack.c.b16 %v3570, %v3569
        %v3735 = vpack.c.b16 %v3572, %v3571
        %v3736 = vpack.c.b16 %v3574, %v3573
        %v3737 = vpack.c.b16 %v3576, %v3575
        %v3738 = vpack.c.b16 %v3578, %v3577
        %v3739 = vpack.c.b16 %v3580, %v3579
        %v3740 = vpack.c.b16 %v3582, %v3581
        %v3741 = vpack.c.b16 %v3584, %v3583
        %v3742 = vpack.c.b16 %v3586, %v3585
        %v3743 = vpack.c.b16 %v3588, %v3587
        %v3744 = vpack.c.b16 %v3590, %v3589
        %v3745 = vpack.c.b16 %v3592, %v3591
        %v3746 = vpack.c.b16 %v3594, %v3593
        %v3747 = vpack.c.b16 %v3596, %v3595
        %v3748 = vpack.c.b16 %v3598, %v3597
        %v3749 = vpack.c.b16 %v3600, %v3599
        %v3750 = vpack.c.b16 %v3602, %v3601
        %v3751 = vpack.c.b16 %v3604, %v3603
        %v3752 = vpack.c.b16 %v3606, %v3605
        %v3753 = vpack.c.b16 %v3608, %v3607
        %v3754 = vpack.c.b16 %v3610, %v3609
        %v3755 = vpack.c.b16 %v3612, %v3611
        %v3756 = vpack.c.b16 %v3614, %v3613
        %v3757 = vpack.c.b16 %v3616, %v3615
        %v3758 = vpack.c.b16 %v3618, %v3617
        %v3759 = vpack.c.b16 %v3620, %v3619
        %v3760 = vpack.c.b16 %v3622, %v3621
        %v3761 = vpack.c.b16 %v3624, %v3623
        %v3762 = vpack.c.b16 %v3626, %v3625
        %v3763 = vpack.c.b16 %v3628, %v3627
        %v3764 = vpack.c.b16 %v3630, %v3629
        %v3765 = vpack.c.b16 %v3632, %v3631
        %v3766 = vpack.c.b16 %v3634, %v3633
        %v3767 = vpack.c.b16 %v3636, %v3635
        %v3768 = vpack.c.b16 %v3638, %v3637
        %v3769 = vpack.c.b16 %v3640, %v3639
        %v3770 = vpack.c.b16 %v3642, %v3641
        %3899 = vst [vmem:[%s730] sm:$0xff] %v3643
        %3900 = vst [vmem:[%s730 + $0x8] sm:$0xff] %v3644
        %3901 = vst [vmem:[%s730 + $0x10] sm:$0xff] %v3645
        %3902 = vst [vmem:[%s730 + $0x18] sm:$0xff] %v3646
        %3903 = vst [vmem:[%s730 + $0x20] sm:$0xff] %v3647
        %3904 = vst [vmem:[%s730 + $0x28] sm:$0xff] %v3648
        %3905 = vst [vmem:[%s730 + $0x30] sm:$0xff] %v3649
        %3906 = vst [vmem:[%s730 + $0x38] sm:$0xff] %v3650
        %3907 = vst [vmem:[%s730 + $0x40] sm:$0xff] %v3651
        %3908 = vst [vmem:[%s730 + $0x48] sm:$0xff] %v3652
        %3909 = vst [vmem:[%s730 + $0x50] sm:$0xff] %v3653
        %3910 = vst [vmem:[%s730 + $0x58] sm:$0xff] %v3654
        %3911 = vst [vmem:[%s730 + $0x60] sm:$0xff] %v3655
        %3912 = vst [vmem:[%s730 + $0x68] sm:$0xff] %v3656
        %3913 = vst [vmem:[%s730 + $0x70] sm:$0xff] %v3657
        %3914 = vst [vmem:[%s730 + $0x78] sm:$0xff] %v3658
        %3915 = vst [vmem:[%s730 + $0x80] sm:$0xff] %v3659
        %3916 = vst [vmem:[%s730 + $0x88] sm:$0xff] %v3660
        %3917 = vst [vmem:[%s730 + $0x90] sm:$0xff] %v3661
        %3918 = vst [vmem:[%s730 + $0x98] sm:$0xff] %v3662
        %3919 = vst [vmem:[%s730 + $0xa0] sm:$0xff] %v3663
        %3920 = vst [vmem:[%s730 + $0xa8] sm:$0xff] %v3664
        %3921 = vst [vmem:[%s730 + $0xb0] sm:$0xff] %v3665
        %3922 = vst [vmem:[%s730 + $0xb8] sm:$0xff] %v3666
        %3923 = vst [vmem:[%s730 + $0xc0] sm:$0xff] %v3667
        %3924 = vst [vmem:[%s730 + $0xc8] sm:$0xff] %v3668
        %3925 = vst [vmem:[%s730 + $0xd0] sm:$0xff] %v3669
        %3926 = vst [vmem:[%s730 + $0xd8] sm:$0xff] %v3670
        %3927 = vst [vmem:[%s730 + $0xe0] sm:$0xff] %v3671
        %3928 = vst [vmem:[%s730 + $0xe8] sm:$0xff] %v3672
        %3929 = vst [vmem:[%s730 + $0xf0] sm:$0xff] %v3673
        %3930 = vst [vmem:[%s730 + $0xf8] sm:$0xff] %v3674
        %3931 = vst [vmem:[%s730 + $0x100] sm:$0xff] %v3675
        %3932 = vst [vmem:[%s730 + $0x108] sm:$0xff] %v3676
        %3933 = vst [vmem:[%s730 + $0x110] sm:$0xff] %v3677
        %3934 = vst [vmem:[%s730 + $0x118] sm:$0xff] %v3678
        %3935 = vst [vmem:[%s730 + $0x120] sm:$0xff] %v3679
        %3936 = vst [vmem:[%s730 + $0x128] sm:$0xff] %v3680
        %3937 = vst [vmem:[%s730 + $0x130] sm:$0xff] %v3681
        %3938 = vst [vmem:[%s730 + $0x138] sm:$0xff] %v3682
        %3939 = vst [vmem:[%s730 + $0x140] sm:$0xff] %v3683
        %3940 = vst [vmem:[%s730 + $0x148] sm:$0xff] %v3684
        %3941 = vst [vmem:[%s730 + $0x150] sm:$0xff] %v3685
        %3942 = vst [vmem:[%s730 + $0x158] sm:$0xff] %v3686
        %3943 = vst [vmem:[%s730 + $0x160] sm:$0xff] %v3687
        %3944 = vst [vmem:[%s730 + $0x168] sm:$0xff] %v3688
        %3945 = vst [vmem:[%s730 + $0x170] sm:$0xff] %v3689
        %3946 = vst [vmem:[%s730 + $0x178] sm:$0xff] %v3690
        %3947 = vst [vmem:[%s730 + $0x180] sm:$0xff] %v3691
        %3948 = vst [vmem:[%s730 + $0x188] sm:$0xff] %v3692
        %3949 = vst [vmem:[%s730 + $0x190] sm:$0xff] %v3693
        %3950 = vst [vmem:[%s730 + $0x198] sm:$0xff] %v3694
        %3951 = vst [vmem:[%s730 + $0x1a0] sm:$0xff] %v3695
        %3952 = vst [vmem:[%s730 + $0x1a8] sm:$0xff] %v3696
        %3953 = vst [vmem:[%s730 + $0x1b0] sm:$0xff] %v3697
        %3954 = vst [vmem:[%s730 + $0x1b8] sm:$0xff] %v3698
        %3955 = vst [vmem:[%s730 + $0x1c0] sm:$0xff] %v3699
        %3956 = vst [vmem:[%s730 + $0x1c8] sm:$0xff] %v3700
        %3957 = vst [vmem:[%s730 + $0x1d0] sm:$0xff] %v3701
        %3958 = vst [vmem:[%s730 + $0x1d8] sm:$0xff] %v3702
        %3959 = vst [vmem:[%s730 + $0x1e0] sm:$0xff] %v3703
        %3960 = vst [vmem:[%s730 + $0x1e8] sm:$0xff] %v3704
        %3961 = vst [vmem:[%s730 + $0x1f0] sm:$0xff] %v3705
        %3962 = vst [vmem:[%s730 + $0x1f8] sm:$0xff] %v3706
        %3963 = vst [vmem:[%s730 + $0x200] sm:$0xff] %v3707
        %3964 = vst [vmem:[%s730 + $0x208] sm:$0xff] %v3708
        %3965 = vst [vmem:[%s730 + $0x210] sm:$0xff] %v3709
        %3966 = vst [vmem:[%s730 + $0x218] sm:$0xff] %v3710
        %3967 = vst [vmem:[%s730 + $0x220] sm:$0xff] %v3711
        %3968 = vst [vmem:[%s730 + $0x228] sm:$0xff] %v3712
        %3969 = vst [vmem:[%s730 + $0x230] sm:$0xff] %v3713
        %3970 = vst [vmem:[%s730 + $0x238] sm:$0xff] %v3714
        %3971 = vst [vmem:[%s730 + $0x240] sm:$0xff] %v3715
        %3972 = vst [vmem:[%s730 + $0x248] sm:$0xff] %v3716
        %3973 = vst [vmem:[%s730 + $0x250] sm:$0xff] %v3717
        %3974 = vst [vmem:[%s730 + $0x258] sm:$0xff] %v3718
        %3975 = vst [vmem:[%s730 + $0x260] sm:$0xff] %v3719
        %3976 = vst [vmem:[%s730 + $0x268] sm:$0xff] %v3720
        %3977 = vst [vmem:[%s730 + $0x270] sm:$0xff] %v3721
        %3978 = vst [vmem:[%s730 + $0x278] sm:$0xff] %v3722
        %3979 = vst [vmem:[%s730 + $0x280] sm:$0xff] %v3723
        %3980 = vst [vmem:[%s730 + $0x288] sm:$0xff] %v3724
        %3981 = vst [vmem:[%s730 + $0x290] sm:$0xff] %v3725
        %3982 = vst [vmem:[%s730 + $0x298] sm:$0xff] %v3726
        %3983 = vst [vmem:[%s730 + $0x2a0] sm:$0xff] %v3727
        %3984 = vst [vmem:[%s730 + $0x2a8] sm:$0xff] %v3728
        %3985 = vst [vmem:[%s730 + $0x2b0] sm:$0xff] %v3729
        %3986 = vst [vmem:[%s730 + $0x2b8] sm:$0xff] %v3730
        %3987 = vst [vmem:[%s730 + $0x2c0] sm:$0xff] %v3731
        %3988 = vst [vmem:[%s730 + $0x2c8] sm:$0xff] %v3732
        %3989 = vst [vmem:[%s730 + $0x2d0] sm:$0xff] %v3733
        %3990 = vst [vmem:[%s730 + $0x2d8] sm:$0xff] %v3734
        %3991 = vst [vmem:[%s730 + $0x2e0] sm:$0xff] %v3735
        %3992 = vst [vmem:[%s730 + $0x2e8] sm:$0xff] %v3736
        %3993 = vst [vmem:[%s730 + $0x2f0] sm:$0xff] %v3737
        %3994 = vst [vmem:[%s730 + $0x2f8] sm:$0xff] %v3738
        %3995 = vst [vmem:[%s730 + $0x300] sm:$0xff] %v3739
        %3996 = vst [vmem:[%s730 + $0x308] sm:$0xff] %v3740
        %3997 = vst [vmem:[%s730 + $0x310] sm:$0xff] %v3741
        %3998 = vst [vmem:[%s730 + $0x318] sm:$0xff] %v3742
        %3999 = vst [vmem:[%s730 + $0x320] sm:$0xff] %v3743
        %4000 = vst [vmem:[%s730 + $0x328] sm:$0xff] %v3744
        %4001 = vst [vmem:[%s730 + $0x330] sm:$0xff] %v3745
        %4002 = vst [vmem:[%s730 + $0x338] sm:$0xff] %v3746
        %4003 = vst [vmem:[%s730 + $0x340] sm:$0xff] %v3747
        %4004 = vst [vmem:[%s730 + $0x348] sm:$0xff] %v3748
        %4005 = vst [vmem:[%s730 + $0x350] sm:$0xff] %v3749
        %4006 = vst [vmem:[%s730 + $0x358] sm:$0xff] %v3750
        %4007 = vst [vmem:[%s730 + $0x360] sm:$0xff] %v3751
        %4008 = vst [vmem:[%s730 + $0x368] sm:$0xff] %v3752
        %4009 = vst [vmem:[%s730 + $0x370] sm:$0xff] %v3753
        %4010 = vst [vmem:[%s730 + $0x378] sm:$0xff] %v3754
        %4011 = vst [vmem:[%s730 + $0x380] sm:$0xff] %v3755
        %4012 = vst [vmem:[%s730 + $0x388] sm:$0xff] %v3756
        %4013 = vst [vmem:[%s730 + $0x390] sm:$0xff] %v3757
        %4014 = vst [vmem:[%s730 + $0x398] sm:$0xff] %v3758
        %4015 = vst [vmem:[%s730 + $0x3a0] sm:$0xff] %v3759
        %4016 = vst [vmem:[%s730 + $0x3a8] sm:$0xff] %v3760
        %4017 = vst [vmem:[%s730 + $0x3b0] sm:$0xff] %v3761
        %4018 = vst [vmem:[%s730 + $0x3b8] sm:$0xff] %v3762
        %4019 = vst [vmem:[%s730 + $0x3c0] sm:$0xff] %v3763
        %4020 = vst [vmem:[%s730 + $0x3c8] sm:$0xff] %v3764
        %4021 = vst [vmem:[%s730 + $0x3d0] sm:$0xff] %v3765
        %4022 = vst [vmem:[%s730 + $0x3d8] sm:$0xff] %v3766
        %4023 = vst [vmem:[%s730 + $0x3e0] sm:$0xff] %v3767
        %4024 = vst [vmem:[%s730 + $0x3e8] sm:$0xff] %v3768
        %4025 = vst [vmem:[%s730 + $0x3f0] sm:$0xff] %v3769
        %4026 = vst [vmem:[%s730 + $0x3f8] sm:$0xff] %v3770
        %v4027 = vld [vmem:[#allocation2] sm:$0xff]
        %v4028 = vld [vmem:[#allocation2 + $0x8] sm:$0xff]
        %v4029 = vadd.f32 %v2875, %v2891
        %v4030 = vadd.f32 %v4029, %v2907
        %v4031 = vadd.f32 %v4030, %v2923
        %v4032 = vadd.f32 %v4031, %v2939
        %v4033 = vadd.f32 %v4032, %v2955
        %v4034 = vadd.f32 %v4033, %v2971
        %v4035 = vadd.f32 %v4034, %v2987
        %v4036 = vadd.f32 %v4035, %v3003
        %v4037 = vadd.f32 %v4036, %v3019
        %v4038 = vadd.f32 %v4037, %v3035
        %v4039 = vadd.f32 %v4038, %v3051
        %v4040 = vadd.f32 %v4039, %v3067
        %v4041 = vadd.f32 %v4040, %v3083
        %v4042 = vadd.f32 %v4041, %v3099
        %v4043 = vadd.f32 %v4042, %v3115
        %v4044 = vrot.slane %v4043, 4
        %v4045 = vadd.f32 %v4043, %v4044
        %v4046 = vrot.slane %v4045, 2
        %v4047 = vadd.f32 %v4045, %v4046
        %v4048 = vrot.slane %v4047, 1
        %v4049 = vadd.f32 %v4047, %v4048
        %v4050 = vadd.f32 %v2876, %v2892
        %v4051 = vadd.f32 %v4050, %v2908
        %v4052 = vadd.f32 %v4051, %v2924
        %v4053 = vadd.f32 %v4052, %v2940
        %v4054 = vadd.f32 %v4053, %v2956
        %v4055 = vadd.f32 %v4054, %v2972
        %v4056 = vadd.f32 %v4055, %v2988
        %v4057 = vadd.f32 %v4056, %v3004
        %v4058 = vadd.f32 %v4057, %v3020
        %v4059 = vadd.f32 %v4058, %v3036
        %v4060 = vadd.f32 %v4059, %v3052
        %v4061 = vadd.f32 %v4060, %v3068
        %v4062 = vadd.f32 %v4061, %v3084
        %v4063 = vadd.f32 %v4062, %v3100
        %v4064 = vadd.f32 %v4063, %v3116
        %v4065 = vrot.slane %v4064, 4
        %v4066 = vadd.f32 %v4064, %v4065
        %v4067 = vrot.slane %v4066, 2
        %v4068 = vadd.f32 %v4066, %v4067
        %v4069 = vrot.slane %v4068, 1
        %v4070 = vadd.f32 %v4068, %v4069
        %v4071 = vadd.f32 %v2877, %v2893
        %v4072 = vadd.f32 %v4071, %v2909
        %v4073 = vadd.f32 %v4072, %v2925
        %v4074 = vadd.f32 %v4073, %v2941
        %v4075 = vadd.f32 %v4074, %v2957
        %v4076 = vadd.f32 %v4075, %v2973
        %v4077 = vadd.f32 %v4076, %v2989
        %v4078 = vadd.f32 %v4077, %v3005
        %v4079 = vadd.f32 %v4078, %v3021
        %v4080 = vadd.f32 %v4079, %v3037
        %v4081 = vadd.f32 %v4080, %v3053
        %v4082 = vadd.f32 %v4081, %v3069
        %v4083 = vadd.f32 %v4082, %v3085
        %v4084 = vadd.f32 %v4083, %v3101
        %v4085 = vadd.f32 %v4084, %v3117
        %v4086 = vrot.slane %v4085, 4
        %v4087 = vadd.f32 %v4085, %v4086
        %v4088 = vrot.slane %v4087, 2
        %v4089 = vadd.f32 %v4087, %v4088
        %v4090 = vrot.slane %v4089, 1
        %v4091 = vadd.f32 %v4089, %v4090
        %v4092 = vadd.f32 %v2878, %v2894
        %v4093 = vadd.f32 %v4092, %v2910
        %v4094 = vadd.f32 %v4093, %v2926
        %v4095 = vadd.f32 %v4094, %v2942
        %v4096 = vadd.f32 %v4095, %v2958
        %v4097 = vadd.f32 %v4096, %v2974
        %v4098 = vadd.f32 %v4097, %v2990
        %v4099 = vadd.f32 %v4098, %v3006
        %v4100 = vadd.f32 %v4099, %v3022
        %v4101 = vadd.f32 %v4100, %v3038
        %v4102 = vadd.f32 %v4101, %v3054
        %v4103 = vadd.f32 %v4102, %v3070
        %v4104 = vadd.f32 %v4103, %v3086
        %v4105 = vadd.f32 %v4104, %v3102
        %v4106 = vadd.f32 %v4105, %v3118
        %v4107 = vrot.slane %v4106, 4
        %v4108 = vadd.f32 %v4106, %v4107
        %v4109 = vrot.slane %v4108, 2
        %v4110 = vadd.f32 %v4108, %v4109
        %v4111 = vrot.slane %v4110, 1
        %v4112 = vadd.f32 %v4110, %v4111
        %v4113 = vadd.f32 %v2879, %v2895
        %v4114 = vadd.f32 %v4113, %v2911
        %v4115 = vadd.f32 %v4114, %v2927
        %v4116 = vadd.f32 %v4115, %v2943
        %v4117 = vadd.f32 %v4116, %v2959
        %v4118 = vadd.f32 %v4117, %v2975
        %v4119 = vadd.f32 %v4118, %v2991
        %v4120 = vadd.f32 %v4119, %v3007
        %v4121 = vadd.f32 %v4120, %v3023
        %v4122 = vadd.f32 %v4121, %v3039
        %v4123 = vadd.f32 %v4122, %v3055
        %v4124 = vadd.f32 %v4123, %v3071
        %v4125 = vadd.f32 %v4124, %v3087
        %v4126 = vadd.f32 %v4125, %v3103
        %v4127 = vadd.f32 %v4126, %v3119
        %v4128 = vrot.slane %v4127, 4
        %v4129 = vadd.f32 %v4127, %v4128
        %v4130 = vrot.slane %v4129, 2
        %v4131 = vadd.f32 %v4129, %v4130
        %v4132 = vrot.slane %v4131, 1
        %v4133 = vadd.f32 %v4131, %v4132
        %v4134 = vadd.f32 %v2880, %v2896
        %v4135 = vadd.f32 %v4134, %v2912
        %v4136 = vadd.f32 %v4135, %v2928
        %v4137 = vadd.f32 %v4136, %v2944
        %v4138 = vadd.f32 %v4137, %v2960
        %v4139 = vadd.f32 %v4138, %v2976
        %v4140 = vadd.f32 %v4139, %v2992
        %v4141 = vadd.f32 %v4140, %v3008
        %v4142 = vadd.f32 %v4141, %v3024
        %v4143 = vadd.f32 %v4142, %v3040
        %v4144 = vadd.f32 %v4143, %v3056
        %v4145 = vadd.f32 %v4144, %v3072
        %v4146 = vadd.f32 %v4145, %v3088
        %v4147 = vadd.f32 %v4146, %v3104
        %v4148 = vadd.f32 %v4147, %v3120
        %v4149 = vrot.slane %v4148, 4
        %v4150 = vadd.f32 %v4148, %v4149
        %v4151 = vrot.slane %v4150, 2
        %v4152 = vadd.f32 %v4150, %v4151
        %v4153 = vrot.slane %v4152, 1
        %v4154 = vadd.f32 %v4152, %v4153
        %v4155 = vadd.f32 %v2881, %v2897
        %v4156 = vadd.f32 %v4155, %v2913
        %v4157 = vadd.f32 %v4156, %v2929
        %v4158 = vadd.f32 %v4157, %v2945
        %v4159 = vadd.f32 %v4158, %v2961
        %v4160 = vadd.f32 %v4159, %v2977
        %v4161 = vadd.f32 %v4160, %v2993
        %v4162 = vadd.f32 %v4161, %v3009
        %v4163 = vadd.f32 %v4162, %v3025
        %v4164 = vadd.f32 %v4163, %v3041
        %v4165 = vadd.f32 %v4164, %v3057
        %v4166 = vadd.f32 %v4165, %v3073
        %v4167 = vadd.f32 %v4166, %v3089
        %v4168 = vadd.f32 %v4167, %v3105
        %v4169 = vadd.f32 %v4168, %v3121
        %v4170 = vrot.slane %v4169, 4
        %v4171 = vadd.f32 %v4169, %v4170
        %v4172 = vrot.slane %v4171, 2
        %v4173 = vadd.f32 %v4171, %v4172
        %v4174 = vrot.slane %v4173, 1
        %v4175 = vadd.f32 %v4173, %v4174
        %v4176 = vadd.f32 %v2882, %v2898
        %v4177 = vadd.f32 %v4176, %v2914
        %v4178 = vadd.f32 %v4177, %v2930
        %v4179 = vadd.f32 %v4178, %v2946
        %v4180 = vadd.f32 %v4179, %v2962
        %v4181 = vadd.f32 %v4180, %v2978
        %v4182 = vadd.f32 %v4181, %v2994
        %v4183 = vadd.f32 %v4182, %v3010
        %v4184 = vadd.f32 %v4183, %v3026
        %v4185 = vadd.f32 %v4184, %v3042
        %v4186 = vadd.f32 %v4185, %v3058
        %v4187 = vadd.f32 %v4186, %v3074
        %v4188 = vadd.f32 %v4187, %v3090
        %v4189 = vadd.f32 %v4188, %v3106
        %v4190 = vadd.f32 %v4189, %v3122
        %v4191 = vrot.slane %v4190, 4
        %v4192 = vadd.f32 %v4190, %v4191
        %v4193 = vrot.slane %v4192, 2
        %v4194 = vadd.f32 %v4192, %v4193
        %v4195 = vrot.slane %v4194, 1
        %v4196 = vadd.f32 %v4194, %v4195
        %v4197 = vadd.f32 %v2883, %v2899
        %v4198 = vadd.f32 %v4197, %v2915
        %v4199 = vadd.f32 %v4198, %v2931
        %v4200 = vadd.f32 %v4199, %v2947
        %v4201 = vadd.f32 %v4200, %v2963
        %v4202 = vadd.f32 %v4201, %v2979
        %v4203 = vadd.f32 %v4202, %v2995
        %v4204 = vadd.f32 %v4203, %v3011
        %v4205 = vadd.f32 %v4204, %v3027
        %v4206 = vadd.f32 %v4205, %v3043
        %v4207 = vadd.f32 %v4206, %v3059
        %v4208 = vadd.f32 %v4207, %v3075
        %v4209 = vadd.f32 %v4208, %v3091
        %v4210 = vadd.f32 %v4209, %v3107
        %v4211 = vadd.f32 %v4210, %v3123
        %v4212 = vrot.slane %v4211, 4
        %v4213 = vadd.f32 %v4211, %v4212
        %v4214 = vrot.slane %v4213, 2
        %v4215 = vadd.f32 %v4213, %v4214
        %v4216 = vrot.slane %v4215, 1
        %v4217 = vadd.f32 %v4215, %v4216
        %v4218 = vadd.f32 %v2884, %v2900
        %v4219 = vadd.f32 %v4218, %v2916
        %v4220 = vadd.f32 %v4219, %v2932
        %v4221 = vadd.f32 %v4220, %v2948
        %v4222 = vadd.f32 %v4221, %v2964
        %v4223 = vadd.f32 %v4222, %v2980
        %v4224 = vadd.f32 %v4223, %v2996
        %v4225 = vadd.f32 %v4224, %v3012
        %v4226 = vadd.f32 %v4225, %v3028
        %v4227 = vadd.f32 %v4226, %v3044
        %v4228 = vadd.f32 %v4227, %v3060
        %v4229 = vadd.f32 %v4228, %v3076
        %v4230 = vadd.f32 %v4229, %v3092
        %v4231 = vadd.f32 %v4230, %v3108
        %v4232 = vadd.f32 %v4231, %v3124
        %v4233 = vrot.slane %v4232, 4
        %v4234 = vadd.f32 %v4232, %v4233
        %v4235 = vrot.slane %v4234, 2
        %v4236 = vadd.f32 %v4234, %v4235
        %v4237 = vrot.slane %v4236, 1
        %v4238 = vadd.f32 %v4236, %v4237
        %v4239 = vadd.f32 %v2885, %v2901
        %v4240 = vadd.f32 %v4239, %v2917
        %v4241 = vadd.f32 %v4240, %v2933
        %v4242 = vadd.f32 %v4241, %v2949
        %v4243 = vadd.f32 %v4242, %v2965
        %v4244 = vadd.f32 %v4243, %v2981
        %v4245 = vadd.f32 %v4244, %v2997
        %v4246 = vadd.f32 %v4245, %v3013
        %v4247 = vadd.f32 %v4246, %v3029
        %v4248 = vadd.f32 %v4247, %v3045
        %v4249 = vadd.f32 %v4248, %v3061
        %v4250 = vadd.f32 %v4249, %v3077
        %v4251 = vadd.f32 %v4250, %v3093
        %v4252 = vadd.f32 %v4251, %v3109
        %v4253 = vadd.f32 %v4252, %v3125
        %v4254 = vrot.slane %v4253, 4
        %v4255 = vadd.f32 %v4253, %v4254
        %v4256 = vrot.slane %v4255, 2
        %v4257 = vadd.f32 %v4255, %v4256
        %v4258 = vrot.slane %v4257, 1
        %v4259 = vadd.f32 %v4257, %v4258
        %v4260 = vadd.f32 %v2886, %v2902
        %v4261 = vadd.f32 %v4260, %v2918
        %v4262 = vadd.f32 %v4261, %v2934
        %v4263 = vadd.f32 %v4262, %v2950
        %v4264 = vadd.f32 %v4263, %v2966
        %v4265 = vadd.f32 %v4264, %v2982
        %v4266 = vadd.f32 %v4265, %v2998
        %v4267 = vadd.f32 %v4266, %v3014
        %v4268 = vadd.f32 %v4267, %v3030
        %v4269 = vadd.f32 %v4268, %v3046
        %v4270 = vadd.f32 %v4269, %v3062
        %v4271 = vadd.f32 %v4270, %v3078
        %v4272 = vadd.f32 %v4271, %v3094
        %v4273 = vadd.f32 %v4272, %v3110
        %v4274 = vadd.f32 %v4273, %v3126
        %v4275 = vrot.slane %v4274, 4
        %v4276 = vadd.f32 %v4274, %v4275
        %v4277 = vrot.slane %v4276, 2
        %v4278 = vadd.f32 %v4276, %v4277
        %v4279 = vrot.slane %v4278, 1
        %v4280 = vadd.f32 %v4278, %v4279
        %v4281 = vadd.f32 %v2887, %v2903
        %v4282 = vadd.f32 %v4281, %v2919
        %v4283 = vadd.f32 %v4282, %v2935
        %v4284 = vadd.f32 %v4283, %v2951
        %v4285 = vadd.f32 %v4284, %v2967
        %v4286 = vadd.f32 %v4285, %v2983
        %v4287 = vadd.f32 %v4286, %v2999
        %v4288 = vadd.f32 %v4287, %v3015
        %v4289 = vadd.f32 %v4288, %v3031
        %v4290 = vadd.f32 %v4289, %v3047
        %v4291 = vadd.f32 %v4290, %v3063
        %v4292 = vadd.f32 %v4291, %v3079
        %v4293 = vadd.f32 %v4292, %v3095
        %v4294 = vadd.f32 %v4293, %v3111
        %v4295 = vadd.f32 %v4294, %v3127
        %v4296 = vrot.slane %v4295, 4
        %v4297 = vadd.f32 %v4295, %v4296
        %v4298 = vrot.slane %v4297, 2
        %v4299 = vadd.f32 %v4297, %v4298
        %v4300 = vrot.slane %v4299, 1
        %v4301 = vadd.f32 %v4299, %v4300
        %v4302 = vadd.f32 %v2888, %v2904
        %v4303 = vadd.f32 %v4302, %v2920
        %v4304 = vadd.f32 %v4303, %v2936
        %v4305 = vadd.f32 %v4304, %v2952
        %v4306 = vadd.f32 %v4305, %v2968
        %v4307 = vadd.f32 %v4306, %v2984
        %v4308 = vadd.f32 %v4307, %v3000
        %v4309 = vadd.f32 %v4308, %v3016
        %v4310 = vadd.f32 %v4309, %v3032
        %v4311 = vadd.f32 %v4310, %v3048
        %v4312 = vadd.f32 %v4311, %v3064
        %v4313 = vadd.f32 %v4312, %v3080
        %v4314 = vadd.f32 %v4313, %v3096
        %v4315 = vadd.f32 %v4314, %v3112
        %v4316 = vadd.f32 %v4315, %v3128
        %v4317 = vrot.slane %v4316, 4
        %v4318 = vadd.f32 %v4316, %v4317
        %v4319 = vrot.slane %v4318, 2
        %v4320 = vadd.f32 %v4318, %v4319
        %v4321 = vrot.slane %v4320, 1
        %v4322 = vadd.f32 %v4320, %v4321
        %v4323 = vadd.f32 %v2889, %v2905
        %v4324 = vadd.f32 %v4323, %v2921
        %v4325 = vadd.f32 %v4324, %v2937
        %v4326 = vadd.f32 %v4325, %v2953
        %v4327 = vadd.f32 %v4326, %v2969
        %v4328 = vadd.f32 %v4327, %v2985
        %v4329 = vadd.f32 %v4328, %v3001
        %v4330 = vadd.f32 %v4329, %v3017
        %v4331 = vadd.f32 %v4330, %v3033
        %v4332 = vadd.f32 %v4331, %v3049
        %v4333 = vadd.f32 %v4332, %v3065
        %v4334 = vadd.f32 %v4333, %v3081
        %v4335 = vadd.f32 %v4334, %v3097
        %v4336 = vadd.f32 %v4335, %v3113
        %v4337 = vadd.f32 %v4336, %v3129
        %v4338 = vrot.slane %v4337, 4
        %v4339 = vadd.f32 %v4337, %v4338
        %v4340 = vrot.slane %v4339, 2
        %v4341 = vadd.f32 %v4339, %v4340
        %v4342 = vrot.slane %v4341, 1
        %v4343 = vadd.f32 %v4341, %v4342
        %v4344 = vadd.f32 %v2890, %v2906
        %v4345 = vadd.f32 %v4344, %v2922
        %v4346 = vadd.f32 %v4345, %v2938
        %v4347 = vadd.f32 %v4346, %v2954
        %v4348 = vadd.f32 %v4347, %v2970
        %v4349 = vadd.f32 %v4348, %v2986
        %v4350 = vadd.f32 %v4349, %v3002
        %v4351 = vadd.f32 %v4350, %v3018
        %v4352 = vadd.f32 %v4351, %v3034
        %v4353 = vadd.f32 %v4352, %v3050
        %v4354 = vadd.f32 %v4353, %v3066
        %v4355 = vadd.f32 %v4354, %v3082
        %v4356 = vadd.f32 %v4355, %v3098
        %v4357 = vadd.f32 %v4356, %v3114
        %v4358 = vadd.f32 %v4357, %v3130
        %v4359 = vrot.slane %v4358, 4
        %v4360 = vadd.f32 %v4358, %v4359
        %v4361 = vrot.slane %v4360, 2
        %v4362 = vadd.f32 %v4360, %v4361
        %v4363 = vrot.slane %v4362, 1
        %v4364 = vadd.f32 %v4362, %v4363
        %v4381 = vcombine.low %v4049, %v4070
        %v4382 = vcombine.low %v4091, %v4112
        %v4383 = vcombine.low %v4133, %v4154
        %v4384 = vcombine.low %v4175, %v4196
        %v4386 = vunpack.c.l.s4 1966171168
        %v4387 = vunpack.c.0.s8 %v4386
        %v4388 = vlaneseq
        %v4389 = vshrl.u32 %v4388, 7
        %v4390 = vsub.s32 %v4387, %v4389
        %v4391 = vrot.slane %v4381, %v4390
        %v4393 = vunpack.c.l.s4 1966171168
        %v4394 = vunpack.c.0.s8 %v4393
        %v4395 = vlaneseq
        %v4396 = vshrl.u32 %v4395, 7
        %v4397 = vsub.s32 %v4394, %v4396
        %v4398 = vrot.slane %v4382, %v4397
        %v4400 = vunpack.c.l.s4 1966171168
        %v4401 = vunpack.c.0.s8 %v4400
        %v4402 = vlaneseq
        %v4403 = vshrl.u32 %v4402, 7
        %v4404 = vsub.s32 %v4401, %v4403
        %v4405 = vrot.slane %v4383, %v4404
        %v4407 = vunpack.c.l.s4 1966171168
        %v4408 = vunpack.c.0.s8 %v4407
        %v4409 = vlaneseq
        %v4410 = vshrl.u32 %v4409, 7
        %v4411 = vsub.s32 %v4408, %v4410
        %v4412 = vrot.slane %v4384, %v4411
        %v4413 = vcombine.low %v4391, %v4398
        %v4414 = vcombine.low %v4405, %v4412
        %v4416 = vunpack.c.l.s4 1966171168
        %v4417 = vunpack.c.0.s8 %v4416
        %v4418 = vlaneseq
        %v4419 = vshrl.u32 %v4418, 7
        %v4420 = vsub.s32 %v4417, %v4419
        %v4421 = vrot.slane %v4413, %v4420
        %v4423 = vunpack.c.l.s4 1966171168
        %v4424 = vunpack.c.0.s8 %v4423
        %v4425 = vlaneseq
        %v4426 = vshrl.u32 %v4425, 7
        %v4427 = vsub.s32 %v4424, %v4426
        %v4428 = vrot.slane %v4414, %v4427
        %v4429 = vcombine.low %v4421, %v4428
        %v4430 = vcombine.low %v4217, %v4238
        %v4431 = vcombine.low %v4259, %v4280
        %v4432 = vcombine.low %v4301, %v4322
        %v4433 = vcombine.low %v4343, %v4364
        %v4435 = vunpack.c.l.s4 1966171168
        %v4436 = vunpack.c.0.s8 %v4435
        %v4437 = vlaneseq
        %v4438 = vshrl.u32 %v4437, 7
        %v4439 = vsub.s32 %v4436, %v4438
        %v4440 = vrot.slane %v4430, %v4439
        %v4442 = vunpack.c.l.s4 1966171168
        %v4443 = vunpack.c.0.s8 %v4442
        %v4444 = vlaneseq
        %v4445 = vshrl.u32 %v4444, 7
        %v4446 = vsub.s32 %v4443, %v4445
        %v4447 = vrot.slane %v4431, %v4446
        %v4449 = vunpack.c.l.s4 1966171168
        %v4450 = vunpack.c.0.s8 %v4449
        %v4451 = vlaneseq
        %v4452 = vshrl.u32 %v4451, 7
        %v4453 = vsub.s32 %v4450, %v4452
        %v4454 = vrot.slane %v4432, %v4453
        %v4456 = vunpack.c.l.s4 1966171168
        %v4457 = vunpack.c.0.s8 %v4456
        %v4458 = vlaneseq
        %v4459 = vshrl.u32 %v4458, 7
        %v4460 = vsub.s32 %v4457, %v4459
        %v4461 = vrot.slane %v4433, %v4460
        %v4462 = vcombine.low %v4440, %v4447
        %v4463 = vcombine.low %v4454, %v4461
        %v4465 = vunpack.c.l.s4 1966171168
        %v4466 = vunpack.c.0.s8 %v4465
        %v4467 = vlaneseq
        %v4468 = vshrl.u32 %v4467, 7
        %v4469 = vsub.s32 %v4466, %v4468
        %v4470 = vrot.slane %v4462, %v4469
        %v4472 = vunpack.c.l.s4 1966171168
        %v4473 = vunpack.c.0.s8 %v4472
        %v4474 = vlaneseq
        %v4475 = vshrl.u32 %v4474, 7
        %v4476 = vsub.s32 %v4473, %v4475
        %v4477 = vrot.slane %v4463, %v4476
        %v4478 = vcombine.low %v4470, %v4477
        %v4481 = vadd.f32 %v4027, %v4429
        %v4482 = vadd.f32 %v4028, %v4478
        %4483 = vst [vmem:[#allocation2] sm:$0xff] %v4481
        %4484 = vst [vmem:[#allocation2 + $0x8] sm:$0xff] %v4482
        %p4485 = scmp.eq.s32.totalorder %s50, 1
        // Predicated region
        $region125: #{tpu_custom_call.1} parent=71 // pred_check
          %p4486 = pneg %p4485
        $region126: #{tpu_custom_call.1} parent=71 // pred_check_branch
          %4488 = sbr.rel (%p4486) target = $region128
        $region127: #{tpu_custom_call.1} parent=71 // pred_region
          %v4489 = vld [vmem:[#allocation2] sm:$0xff]
          %v4490 = vld [vmem:[#allocation2 + $0x8] sm:$0xff]
          %v4491 = vmul.f32 %v4489, 0.00390625
          %v4492 = vmul.f32 %v4490, 0.00390625
          %4493 = vst [vmem:[%s737] sm:$0xff] %v4491
          %4494 = vst [vmem:[%s737 + $0x8] sm:$0xff] %v4492
          %v4495 = vld [vmem:[#allocation11] sm:$0xff]
          %v4496 = vld [vmem:[#allocation11 + $0x8] sm:$0xff]
          %v4497 = vsub.f32 %v4491, %v4495
          %v4498 = vsub.f32 %v4492, %v4496
          %v4499 = vld [vmem:[#allocation12] sm:$0xff]
          %v4500 = vld [vmem:[#allocation12 + $0x8] sm:$0xff]
          %v4501 = vadd.f32 %v4499, 1e-05
          %v4502 = vadd.f32 %v4500, 1e-05
          %v4503 = vrsqrt.pop %v4501
          %v4504 = vrsqrt.pop %v4502
          %v4505 = vmul.f32 %v4497, %v4503
          %v4506 = vmul.f32 %v4498, %v4504
          %v4507 = vld [vmem:[#allocation8] sm:$0xff]
          %v4508 = vld [vmem:[#allocation8 + $0x8] sm:$0xff]
          %v4509 = vmul.f32 %v4505, %v4507
          %v4510 = vmul.f32 %v4506, %v4508
          %v4511 = vld [vmem:[#allocation9] sm:$0xff]
          %v4512 = vld [vmem:[#allocation9 + $0x8] sm:$0xff]
          %v4513 = vadd.f32 %v4509, %v4511
          %v4514 = vadd.f32 %v4510, %v4512
          %4515 = vst [vmem:[%s744] sm:$0xff] %v4513
          %4516 = vst [vmem:[%s744 + $0x8] sm:$0xff] %v4514
          %v4517 = vld [vmem:[#allocation14] sm:$0xff]
          %v4518 = vld [vmem:[#allocation14 + $0x8] sm:$0xff]
          %v4519 = vld [vmem:[#allocation14 + $0x10] sm:$0xff]
          %v4520 = vld [vmem:[#allocation14 + $0x18] sm:$0xff]
          %v4521 = vld [vmem:[#allocation14 + $0x20] sm:$0xff]
          %v4522 = vld [vmem:[#allocation14 + $0x28] sm:$0xff]
          %v4523 = vld [vmem:[#allocation14 + $0x30] sm:$0xff]
          %v4524 = vld [vmem:[#allocation14 + $0x38] sm:$0xff]
          %v4525 = vld [vmem:[#allocation14 + $0x40] sm:$0xff]
          %v4526 = vld [vmem:[#allocation14 + $0x48] sm:$0xff]
          %v4527 = vld [vmem:[#allocation14 + $0x50] sm:$0xff]
          %v4528 = vld [vmem:[#allocation14 + $0x58] sm:$0xff]
          %v4529 = vld [vmem:[#allocation14 + $0x60] sm:$0xff]
          %v4530 = vld [vmem:[#allocation14 + $0x68] sm:$0xff]
          %v4531 = vld [vmem:[#allocation14 + $0x70] sm:$0xff]
          %v4532 = vld [vmem:[#allocation14 + $0x78] sm:$0xff]
          %v4533 = vld [vmem:[#allocation14 + $0x80] sm:$0xff]
          %v4534 = vld [vmem:[#allocation14 + $0x88] sm:$0xff]
          %v4535 = vld [vmem:[#allocation14 + $0x90] sm:$0xff]
          %v4536 = vld [vmem:[#allocation14 + $0x98] sm:$0xff]
          %v4537 = vld [vmem:[#allocation14 + $0xa0] sm:$0xff]
          %v4538 = vld [vmem:[#allocation14 + $0xa8] sm:$0xff]
          %v4539 = vld [vmem:[#allocation14 + $0xb0] sm:$0xff]
          %v4540 = vld [vmem:[#allocation14 + $0xb8] sm:$0xff]
          %v4541 = vld [vmem:[#allocation14 + $0xc0] sm:$0xff]
          %v4542 = vld [vmem:[#allocation14 + $0xc8] sm:$0xff]
          %v4543 = vld [vmem:[#allocation14 + $0xd0] sm:$0xff]
          %v4544 = vld [vmem:[#allocation14 + $0xd8] sm:$0xff]
          %v4545 = vld [vmem:[#allocation14 + $0xe0] sm:$0xff]
          %v4546 = vld [vmem:[#allocation14 + $0xe8] sm:$0xff]
          %v4547 = vld [vmem:[#allocation14 + $0xf0] sm:$0xff]
          %v4548 = vld [vmem:[#allocation14 + $0xf8] sm:$0xff]
          %v4549 = vld [vmem:[#allocation14 + $0x100] sm:$0xff]
          %v4550 = vld [vmem:[#allocation14 + $0x108] sm:$0xff]
          %v4551 = vld [vmem:[#allocation14 + $0x110] sm:$0xff]
          %v4552 = vld [vmem:[#allocation14 + $0x118] sm:$0xff]
          %v4553 = vld [vmem:[#allocation14 + $0x120] sm:$0xff]
          %v4554 = vld [vmem:[#allocation14 + $0x128] sm:$0xff]
          %v4555 = vld [vmem:[#allocation14 + $0x130] sm:$0xff]
          %v4556 = vld [vmem:[#allocation14 + $0x138] sm:$0xff]
          %v4557 = vld [vmem:[#allocation14 + $0x140] sm:$0xff]
          %v4558 = vld [vmem:[#allocation14 + $0x148] sm:$0xff]
          %v4559 = vld [vmem:[#allocation14 + $0x150] sm:$0xff]
          %v4560 = vld [vmem:[#allocation14 + $0x158] sm:$0xff]
          %v4561 = vld [vmem:[#allocation14 + $0x160] sm:$0xff]
          %v4562 = vld [vmem:[#allocation14 + $0x168] sm:$0xff]
          %v4563 = vld [vmem:[#allocation14 + $0x170] sm:$0xff]
          %v4564 = vld [vmem:[#allocation14 + $0x178] sm:$0xff]
          %v4565 = vld [vmem:[#allocation14 + $0x180] sm:$0xff]
          %v4566 = vld [vmem:[#allocation14 + $0x188] sm:$0xff]
          %v4567 = vld [vmem:[#allocation14 + $0x190] sm:$0xff]
          %v4568 = vld [vmem:[#allocation14 + $0x198] sm:$0xff]
          %v4569 = vld [vmem:[#allocation14 + $0x1a0] sm:$0xff]
          %v4570 = vld [vmem:[#allocation14 + $0x1a8] sm:$0xff]
          %v4571 = vld [vmem:[#allocation14 + $0x1b0] sm:$0xff]
          %v4572 = vld [vmem:[#allocation14 + $0x1b8] sm:$0xff]
          %v4573 = vld [vmem:[#allocation14 + $0x1c0] sm:$0xff]
          %v4574 = vld [vmem:[#allocation14 + $0x1c8] sm:$0xff]
          %v4575 = vld [vmem:[#allocation14 + $0x1d0] sm:$0xff]
          %v4576 = vld [vmem:[#allocation14 + $0x1d8] sm:$0xff]
          %v4577 = vld [vmem:[#allocation14 + $0x1e0] sm:$0xff]
          %v4578 = vld [vmem:[#allocation14 + $0x1e8] sm:$0xff]
          %v4579 = vld [vmem:[#allocation14 + $0x1f0] sm:$0xff]
          %v4580 = vld [vmem:[#allocation14 + $0x1f8] sm:$0xff]
          %v4581 = vld [vmem:[#allocation14 + $0x200] sm:$0xff]
          %v4582 = vld [vmem:[#allocation14 + $0x208] sm:$0xff]
          %v4583 = vld [vmem:[#allocation14 + $0x210] sm:$0xff]
          %v4584 = vld [vmem:[#allocation14 + $0x218] sm:$0xff]
          %v4585 = vld [vmem:[#allocation14 + $0x220] sm:$0xff]
          %v4586 = vld [vmem:[#allocation14 + $0x228] sm:$0xff]
          %v4587 = vld [vmem:[#allocation14 + $0x230] sm:$0xff]
          %v4588 = vld [vmem:[#allocation14 + $0x238] sm:$0xff]
          %v4589 = vld [vmem:[#allocation14 + $0x240] sm:$0xff]
          %v4590 = vld [vmem:[#allocation14 + $0x248] sm:$0xff]
          %v4591 = vld [vmem:[#allocation14 + $0x250] sm:$0xff]
          %v4592 = vld [vmem:[#allocation14 + $0x258] sm:$0xff]
          %v4593 = vld [vmem:[#allocation14 + $0x260] sm:$0xff]
          %v4594 = vld [vmem:[#allocation14 + $0x268] sm:$0xff]
          %v4595 = vld [vmem:[#allocation14 + $0x270] sm:$0xff]
          %v4596 = vld [vmem:[#allocation14 + $0x278] sm:$0xff]
          %v4597 = vld [vmem:[#allocation14 + $0x280] sm:$0xff]
          %v4598 = vld [vmem:[#allocation14 + $0x288] sm:$0xff]
          %v4599 = vld [vmem:[#allocation14 + $0x290] sm:$0xff]
          %v4600 = vld [vmem:[#allocation14 + $0x298] sm:$0xff]
          %v4601 = vld [vmem:[#allocation14 + $0x2a0] sm:$0xff]
          %v4602 = vld [vmem:[#allocation14 + $0x2a8] sm:$0xff]
          %v4603 = vld [vmem:[#allocation14 + $0x2b0] sm:$0xff]
          %v4604 = vld [vmem:[#allocation14 + $0x2b8] sm:$0xff]
          %v4605 = vld [vmem:[#allocation14 + $0x2c0] sm:$0xff]
          %v4606 = vld [vmem:[#allocation14 + $0x2c8] sm:$0xff]
          %v4607 = vld [vmem:[#allocation14 + $0x2d0] sm:$0xff]
          %v4608 = vld [vmem:[#allocation14 + $0x2d8] sm:$0xff]
          %v4609 = vld [vmem:[#allocation14 + $0x2e0] sm:$0xff]
          %v4610 = vld [vmem:[#allocation14 + $0x2e8] sm:$0xff]
          %v4611 = vld [vmem:[#allocation14 + $0x2f0] sm:$0xff]
          %v4612 = vld [vmem:[#allocation14 + $0x2f8] sm:$0xff]
          %v4613 = vld [vmem:[#allocation14 + $0x300] sm:$0xff]
          %v4614 = vld [vmem:[#allocation14 + $0x308] sm:$0xff]
          %v4615 = vld [vmem:[#allocation14 + $0x310] sm:$0xff]
          %v4616 = vld [vmem:[#allocation14 + $0x318] sm:$0xff]
          %v4617 = vld [vmem:[#allocation14 + $0x320] sm:$0xff]
          %v4618 = vld [vmem:[#allocation14 + $0x328] sm:$0xff]
          %v4619 = vld [vmem:[#allocation14 + $0x330] sm:$0xff]
          %v4620 = vld [vmem:[#allocation14 + $0x338] sm:$0xff]
          %v4621 = vld [vmem:[#allocation14 + $0x340] sm:$0xff]
          %v4622 = vld [vmem:[#allocation14 + $0x348] sm:$0xff]
          %v4623 = vld [vmem:[#allocation14 + $0x350] sm:$0xff]
          %v4624 = vld [vmem:[#allocation14 + $0x358] sm:$0xff]
          %v4625 = vld [vmem:[#allocation14 + $0x360] sm:$0xff]
          %v4626 = vld [vmem:[#allocation14 + $0x368] sm:$0xff]
          %v4627 = vld [vmem:[#allocation14 + $0x370] sm:$0xff]
          %v4628 = vld [vmem:[#allocation14 + $0x378] sm:$0xff]
          %v4629 = vld [vmem:[#allocation14 + $0x380] sm:$0xff]
          %v4630 = vld [vmem:[#allocation14 + $0x388] sm:$0xff]
          %v4631 = vld [vmem:[#allocation14 + $0x390] sm:$0xff]
          %v4632 = vld [vmem:[#allocation14 + $0x398] sm:$0xff]
          %v4633 = vld [vmem:[#allocation14 + $0x3a0] sm:$0xff]
          %v4634 = vld [vmem:[#allocation14 + $0x3a8] sm:$0xff]
          %v4635 = vld [vmem:[#allocation14 + $0x3b0] sm:$0xff]
          %v4636 = vld [vmem:[#allocation14 + $0x3b8] sm:$0xff]
          %v4637 = vld [vmem:[#allocation14 + $0x3c0] sm:$0xff]
          %v4638 = vld [vmem:[#allocation14 + $0x3c8] sm:$0xff]
          %v4639 = vld [vmem:[#allocation14 + $0x3d0] sm:$0xff]
          %v4640 = vld [vmem:[#allocation14 + $0x3d8] sm:$0xff]
          %v4641 = vld [vmem:[#allocation14 + $0x3e0] sm:$0xff]
          %v4642 = vld [vmem:[#allocation14 + $0x3e8] sm:$0xff]
          %v4643 = vld [vmem:[#allocation14 + $0x3f0] sm:$0xff]
          %v4644 = vld [vmem:[#allocation14 + $0x3f8] sm:$0xff]
          %v4645 = vld [vmem:[#allocation14 + $0x400] sm:$0xff]
          %v4646 = vld [vmem:[#allocation14 + $0x408] sm:$0xff]
          %v4647 = vld [vmem:[#allocation14 + $0x410] sm:$0xff]
          %v4648 = vld [vmem:[#allocation14 + $0x418] sm:$0xff]
          %v4649 = vld [vmem:[#allocation14 + $0x420] sm:$0xff]
          %v4650 = vld [vmem:[#allocation14 + $0x428] sm:$0xff]
          %v4651 = vld [vmem:[#allocation14 + $0x430] sm:$0xff]
          %v4652 = vld [vmem:[#allocation14 + $0x438] sm:$0xff]
          %v4653 = vld [vmem:[#allocation14 + $0x440] sm:$0xff]
          %v4654 = vld [vmem:[#allocation14 + $0x448] sm:$0xff]
          %v4655 = vld [vmem:[#allocation14 + $0x450] sm:$0xff]
          %v4656 = vld [vmem:[#allocation14 + $0x458] sm:$0xff]
          %v4657 = vld [vmem:[#allocation14 + $0x460] sm:$0xff]
          %v4658 = vld [vmem:[#allocation14 + $0x468] sm:$0xff]
          %v4659 = vld [vmem:[#allocation14 + $0x470] sm:$0xff]
          %v4660 = vld [vmem:[#allocation14 + $0x478] sm:$0xff]
          %v4661 = vld [vmem:[#allocation14 + $0x480] sm:$0xff]
          %v4662 = vld [vmem:[#allocation14 + $0x488] sm:$0xff]
          %v4663 = vld [vmem:[#allocation14 + $0x490] sm:$0xff]
          %v4664 = vld [vmem:[#allocation14 + $0x498] sm:$0xff]
          %v4665 = vld [vmem:[#allocation14 + $0x4a0] sm:$0xff]
          %v4666 = vld [vmem:[#allocation14 + $0x4a8] sm:$0xff]
          %v4667 = vld [vmem:[#allocation14 + $0x4b0] sm:$0xff]
          %v4668 = vld [vmem:[#allocation14 + $0x4b8] sm:$0xff]
          %v4669 = vld [vmem:[#allocation14 + $0x4c0] sm:$0xff]
          %v4670 = vld [vmem:[#allocation14 + $0x4c8] sm:$0xff]
          %v4671 = vld [vmem:[#allocation14 + $0x4d0] sm:$0xff]
          %v4672 = vld [vmem:[#allocation14 + $0x4d8] sm:$0xff]
          %v4673 = vld [vmem:[#allocation14 + $0x4e0] sm:$0xff]
          %v4674 = vld [vmem:[#allocation14 + $0x4e8] sm:$0xff]
          %v4675 = vld [vmem:[#allocation14 + $0x4f0] sm:$0xff]
          %v4676 = vld [vmem:[#allocation14 + $0x4f8] sm:$0xff]
          %v4677 = vld [vmem:[#allocation14 + $0x500] sm:$0xff]
          %v4678 = vld [vmem:[#allocation14 + $0x508] sm:$0xff]
          %v4679 = vld [vmem:[#allocation14 + $0x510] sm:$0xff]
          %v4680 = vld [vmem:[#allocation14 + $0x518] sm:$0xff]
          %v4681 = vld [vmem:[#allocation14 + $0x520] sm:$0xff]
          %v4682 = vld [vmem:[#allocation14 + $0x528] sm:$0xff]
          %v4683 = vld [vmem:[#allocation14 + $0x530] sm:$0xff]
          %v4684 = vld [vmem:[#allocation14 + $0x538] sm:$0xff]
          %v4685 = vld [vmem:[#allocation14 + $0x540] sm:$0xff]
          %v4686 = vld [vmem:[#allocation14 + $0x548] sm:$0xff]
          %v4687 = vld [vmem:[#allocation14 + $0x550] sm:$0xff]
          %v4688 = vld [vmem:[#allocation14 + $0x558] sm:$0xff]
          %v4689 = vld [vmem:[#allocation14 + $0x560] sm:$0xff]
          %v4690 = vld [vmem:[#allocation14 + $0x568] sm:$0xff]
          %v4691 = vld [vmem:[#allocation14 + $0x570] sm:$0xff]
          %v4692 = vld [vmem:[#allocation14 + $0x578] sm:$0xff]
          %v4693 = vld [vmem:[#allocation14 + $0x580] sm:$0xff]
          %v4694 = vld [vmem:[#allocation14 + $0x588] sm:$0xff]
          %v4695 = vld [vmem:[#allocation14 + $0x590] sm:$0xff]
          %v4696 = vld [vmem:[#allocation14 + $0x598] sm:$0xff]
          %v4697 = vld [vmem:[#allocation14 + $0x5a0] sm:$0xff]
          %v4698 = vld [vmem:[#allocation14 + $0x5a8] sm:$0xff]
          %v4699 = vld [vmem:[#allocation14 + $0x5b0] sm:$0xff]
          %v4700 = vld [vmem:[#allocation14 + $0x5b8] sm:$0xff]
          %v4701 = vld [vmem:[#allocation14 + $0x5c0] sm:$0xff]
          %v4702 = vld [vmem:[#allocation14 + $0x5c8] sm:$0xff]
          %v4703 = vld [vmem:[#allocation14 + $0x5d0] sm:$0xff]
          %v4704 = vld [vmem:[#allocation14 + $0x5d8] sm:$0xff]
          %v4705 = vld [vmem:[#allocation14 + $0x5e0] sm:$0xff]
          %v4706 = vld [vmem:[#allocation14 + $0x5e8] sm:$0xff]
          %v4707 = vld [vmem:[#allocation14 + $0x5f0] sm:$0xff]
          %v4708 = vld [vmem:[#allocation14 + $0x5f8] sm:$0xff]
          %v4709 = vld [vmem:[#allocation14 + $0x600] sm:$0xff]
          %v4710 = vld [vmem:[#allocation14 + $0x608] sm:$0xff]
          %v4711 = vld [vmem:[#allocation14 + $0x610] sm:$0xff]
          %v4712 = vld [vmem:[#allocation14 + $0x618] sm:$0xff]
          %v4713 = vld [vmem:[#allocation14 + $0x620] sm:$0xff]
          %v4714 = vld [vmem:[#allocation14 + $0x628] sm:$0xff]
          %v4715 = vld [vmem:[#allocation14 + $0x630] sm:$0xff]
          %v4716 = vld [vmem:[#allocation14 + $0x638] sm:$0xff]
          %v4717 = vld [vmem:[#allocation14 + $0x640] sm:$0xff]
          %v4718 = vld [vmem:[#allocation14 + $0x648] sm:$0xff]
          %v4719 = vld [vmem:[#allocation14 + $0x650] sm:$0xff]
          %v4720 = vld [vmem:[#allocation14 + $0x658] sm:$0xff]
          %v4721 = vld [vmem:[#allocation14 + $0x660] sm:$0xff]
          %v4722 = vld [vmem:[#allocation14 + $0x668] sm:$0xff]
          %v4723 = vld [vmem:[#allocation14 + $0x670] sm:$0xff]
          %v4724 = vld [vmem:[#allocation14 + $0x678] sm:$0xff]
          %v4725 = vld [vmem:[#allocation14 + $0x680] sm:$0xff]
          %v4726 = vld [vmem:[#allocation14 + $0x688] sm:$0xff]
          %v4727 = vld [vmem:[#allocation14 + $0x690] sm:$0xff]
          %v4728 = vld [vmem:[#allocation14 + $0x698] sm:$0xff]
          %v4729 = vld [vmem:[#allocation14 + $0x6a0] sm:$0xff]
          %v4730 = vld [vmem:[#allocation14 + $0x6a8] sm:$0xff]
          %v4731 = vld [vmem:[#allocation14 + $0x6b0] sm:$0xff]
          %v4732 = vld [vmem:[#allocation14 + $0x6b8] sm:$0xff]
          %v4733 = vld [vmem:[#allocation14 + $0x6c0] sm:$0xff]
          %v4734 = vld [vmem:[#allocation14 + $0x6c8] sm:$0xff]
          %v4735 = vld [vmem:[#allocation14 + $0x6d0] sm:$0xff]
          %v4736 = vld [vmem:[#allocation14 + $0x6d8] sm:$0xff]
          %v4737 = vld [vmem:[#allocation14 + $0x6e0] sm:$0xff]
          %v4738 = vld [vmem:[#allocation14 + $0x6e8] sm:$0xff]
          %v4739 = vld [vmem:[#allocation14 + $0x6f0] sm:$0xff]
          %v4740 = vld [vmem:[#allocation14 + $0x6f8] sm:$0xff]
          %v4741 = vld [vmem:[#allocation14 + $0x700] sm:$0xff]
          %v4742 = vld [vmem:[#allocation14 + $0x708] sm:$0xff]
          %v4743 = vld [vmem:[#allocation14 + $0x710] sm:$0xff]
          %v4744 = vld [vmem:[#allocation14 + $0x718] sm:$0xff]
          %v4745 = vld [vmem:[#allocation14 + $0x720] sm:$0xff]
          %v4746 = vld [vmem:[#allocation14 + $0x728] sm:$0xff]
          %v4747 = vld [vmem:[#allocation14 + $0x730] sm:$0xff]
          %v4748 = vld [vmem:[#allocation14 + $0x738] sm:$0xff]
          %v4749 = vld [vmem:[#allocation14 + $0x740] sm:$0xff]
          %v4750 = vld [vmem:[#allocation14 + $0x748] sm:$0xff]
          %v4751 = vld [vmem:[#allocation14 + $0x750] sm:$0xff]
          %v4752 = vld [vmem:[#allocation14 + $0x758] sm:$0xff]
          %v4753 = vld [vmem:[#allocation14 + $0x760] sm:$0xff]
          %v4754 = vld [vmem:[#allocation14 + $0x768] sm:$0xff]
          %v4755 = vld [vmem:[#allocation14 + $0x770] sm:$0xff]
          %v4756 = vld [vmem:[#allocation14 + $0x778] sm:$0xff]
          %v4757 = vld [vmem:[#allocation14 + $0x780] sm:$0xff]
          %v4758 = vld [vmem:[#allocation14 + $0x788] sm:$0xff]
          %v4759 = vld [vmem:[#allocation14 + $0x790] sm:$0xff]
          %v4760 = vld [vmem:[#allocation14 + $0x798] sm:$0xff]
          %v4761 = vld [vmem:[#allocation14 + $0x7a0] sm:$0xff]
          %v4762 = vld [vmem:[#allocation14 + $0x7a8] sm:$0xff]
          %v4763 = vld [vmem:[#allocation14 + $0x7b0] sm:$0xff]
          %v4764 = vld [vmem:[#allocation14 + $0x7b8] sm:$0xff]
          %v4765 = vld [vmem:[#allocation14 + $0x7c0] sm:$0xff]
          %v4766 = vld [vmem:[#allocation14 + $0x7c8] sm:$0xff]
          %v4767 = vld [vmem:[#allocation14 + $0x7d0] sm:$0xff]
          %v4768 = vld [vmem:[#allocation14 + $0x7d8] sm:$0xff]
          %v4769 = vld [vmem:[#allocation14 + $0x7e0] sm:$0xff]
          %v4770 = vld [vmem:[#allocation14 + $0x7e8] sm:$0xff]
          %v4771 = vld [vmem:[#allocation14 + $0x7f0] sm:$0xff]
          %v4772 = vld [vmem:[#allocation14 + $0x7f8] sm:$0xff]
          %v4773 = vld [vmem:[#allocation15] sm:$0x1]
          %v4776 = vlaneseq
          %v4777 = vshrl.u32 %v4776, 7
          %v4778 = vsub.s32 0, %v4777
          %v4779 = vrot.slane %v4513, %v4778
          %v4780 = vlaneseq
          %v4781 = vshrl.u32 %v4780, 7
          %v4782 = vsub.s32 1, %v4781
          %v4783 = vrot.slane %v4513, %v4782
          %v4784 = vlaneseq
          %v4785 = vshrl.u32 %v4784, 7
          %v4786 = vsub.s32 2, %v4785
          %v4787 = vrot.slane %v4513, %v4786
          %v4788 = vlaneseq
          %v4789 = vshrl.u32 %v4788, 7
          %v4790 = vsub.s32 3, %v4789
          %v4791 = vrot.slane %v4513, %v4790
          %v4792 = vlaneseq
          %v4793 = vshrl.u32 %v4792, 7
          %v4794 = vsub.s32 4, %v4793
          %v4795 = vrot.slane %v4513, %v4794
          %v4796 = vlaneseq
          %v4797 = vshrl.u32 %v4796, 7
          %v4798 = vsub.s32 5, %v4797
          %v4799 = vrot.slane %v4513, %v4798
          %v4800 = vlaneseq
          %v4801 = vshrl.u32 %v4800, 7
          %v4802 = vsub.s32 6, %v4801
          %v4803 = vrot.slane %v4513, %v4802
          %v4804 = vlaneseq
          %v4805 = vshrl.u32 %v4804, 7
          %v4806 = vsub.s32 7, %v4805
          %v4807 = vrot.slane %v4513, %v4806
          %v4808 = vlaneseq
          %v4809 = vshrl.u32 %v4808, 7
          %v4810 = vsub.s32 0, %v4809
          %v4811 = vrot.slane %v4514, %v4810
          %v4812 = vlaneseq
          %v4813 = vshrl.u32 %v4812, 7
          %v4814 = vsub.s32 1, %v4813
          %v4815 = vrot.slane %v4514, %v4814
          %v4816 = vlaneseq
          %v4817 = vshrl.u32 %v4816, 7
          %v4818 = vsub.s32 2, %v4817
          %v4819 = vrot.slane %v4514, %v4818
          %v4820 = vlaneseq
          %v4821 = vshrl.u32 %v4820, 7
          %v4822 = vsub.s32 3, %v4821
          %v4823 = vrot.slane %v4514, %v4822
          %v4824 = vlaneseq
          %v4825 = vshrl.u32 %v4824, 7
          %v4826 = vsub.s32 4, %v4825
          %v4827 = vrot.slane %v4514, %v4826
          %v4828 = vlaneseq
          %v4829 = vshrl.u32 %v4828, 7
          %v4830 = vsub.s32 5, %v4829
          %v4831 = vrot.slane %v4514, %v4830
          %v4832 = vlaneseq
          %v4833 = vshrl.u32 %v4832, 7
          %v4834 = vsub.s32 6, %v4833
          %v4835 = vrot.slane %v4514, %v4834
          %v4836 = vlaneseq
          %v4837 = vshrl.u32 %v4836, 7
          %v4838 = vsub.s32 7, %v4837
          %v4839 = vrot.slane %v4514, %v4838
          %4856 = vmatprep.subr.mxu0 0.0
          %4857 = vmatpush1.msra.mxu0 %v4517
          %4858 = vmatprep.subr.mxu0 0.0
          %4859 = vmatpush1.msra.mxu0 %v4518
          %4860 = vmatprep.subr.mxu0 0.0
          %4861 = vmatpush1.msra.mxu0 %v4519
          %4862 = vmatprep.subr.mxu0 0.0
          %4863 = vmatpush1.msra.mxu0 %v4520
          %4864 = vmatprep.subr.mxu0 0.0
          %4865 = vmatpush1.msra.mxu0 %v4521
          %4866 = vmatprep.subr.mxu0 0.0
          %4867 = vmatpush1.msra.mxu0 %v4522
          %4868 = vmatprep.subr.mxu0 0.0
          %4869 = vmatpush1.msra.mxu0 %v4523
          %4870 = vmatprep.subr.mxu0 0.0
          %4871 = vmatpush1.msra.mxu0 %v4524
          %4872 = vmatprep.subr.mxu0 0.0
          %4873 = vmatpush1.msra.mxu0 %v4525
          %4874 = vmatprep.subr.mxu0 0.0
          %4875 = vmatpush1.msra.mxu0 %v4526
          %4876 = vmatprep.subr.mxu0 0.0
          %4877 = vmatpush1.msra.mxu0 %v4527
          %4878 = vmatprep.subr.mxu0 0.0
          %4879 = vmatpush1.msra.mxu0 %v4528
          %4880 = vmatprep.subr.mxu0 0.0
          %4881 = vmatpush1.msra.mxu0 %v4529
          %4882 = vmatprep.subr.mxu0 0.0
          %4883 = vmatpush1.msra.mxu0 %v4530
          %4884 = vmatprep.subr.mxu0 0.0
          %4885 = vmatpush1.msra.mxu0 %v4531
          %4886 = vmatprep.subr.mxu0 0.0
          %4887 = vmatpush1.msra.mxu0 %v4532
          %4888 = vmatprep.subr.mxu0 0.0
          %4889 = vmatpush1.msra.mxu0 %v4533
          %4890 = vmatprep.subr.mxu0 0.0
          %4891 = vmatpush1.msra.mxu0 %v4534
          %4892 = vmatprep.subr.mxu0 0.0
          %4893 = vmatpush1.msra.mxu0 %v4535
          %4894 = vmatprep.subr.mxu0 0.0
          %4895 = vmatpush1.msra.mxu0 %v4536
          %4896 = vmatprep.subr.mxu0 0.0
          %4897 = vmatpush1.msra.mxu0 %v4537
          %4898 = vmatprep.subr.mxu0 0.0
          %4899 = vmatpush1.msra.mxu0 %v4538
          %4900 = vmatprep.subr.mxu0 0.0
          %4901 = vmatpush1.msra.mxu0 %v4539
          %4902 = vmatprep.subr.mxu0 0.0
          %4903 = vmatpush1.msra.mxu0 %v4540
          %4904 = vmatprep.subr.mxu0 0.0
          %4905 = vmatpush1.msra.mxu0 %v4541
          %4906 = vmatprep.subr.mxu0 0.0
          %4907 = vmatpush1.msra.mxu0 %v4542
          %4908 = vmatprep.subr.mxu0 0.0
          %4909 = vmatpush1.msra.mxu0 %v4543
          %4910 = vmatprep.subr.mxu0 0.0
          %4911 = vmatpush1.msra.mxu0 %v4544
          %4912 = vmatprep.subr.mxu0 0.0
          %4913 = vmatpush1.msra.mxu0 %v4545
          %4914 = vmatprep.subr.mxu0 0.0
          %4915 = vmatpush1.msra.mxu0 %v4546
          %4916 = vmatprep.subr.mxu0 0.0
          %4917 = vmatpush1.msra.mxu0 %v4547
          %4918 = vmatprep.subr.mxu0 0.0
          %4919 = vmatpush1.msra.mxu0 %v4548
          %4920 = vmatprep.mubr.f32.mxu0 %v4783
          %4921 = vmatmul.mubr.f32.gmra.mrb[0].mxu0 %v4779
          %v4922 = vpop.f32.mrb[0].mxu0
          %v4923 = vadd.f32 %v4773, %v4922
          %v4924 = vpop.f32.mrb[0].mxu0
          %4925 = vdwg.mxu0
          %4926 = vmatprep.subr.mxu0 0.0
          %4927 = vmatpush1.msra.mxu0 %v4549
          %4928 = vmatprep.subr.mxu0 0.0
          %4929 = vmatpush1.msra.mxu0 %v4550
          %4930 = vmatprep.subr.mxu0 0.0
          %4931 = vmatpush1.msra.mxu0 %v4551
          %4932 = vmatprep.subr.mxu0 0.0
          %4933 = vmatpush1.msra.mxu0 %v4552
          %4934 = vmatprep.subr.mxu0 0.0
          %4935 = vmatpush1.msra.mxu0 %v4553
          %4936 = vmatprep.subr.mxu0 0.0
          %4937 = vmatpush1.msra.mxu0 %v4554
          %4938 = vmatprep.subr.mxu0 0.0
          %4939 = vmatpush1.msra.mxu0 %v4555
          %4940 = vmatprep.subr.mxu0 0.0
          %4941 = vmatpush1.msra.mxu0 %v4556
          %4942 = vmatprep.subr.mxu0 0.0
          %4943 = vmatpush1.msra.mxu0 %v4557
          %4944 = vmatprep.subr.mxu0 0.0
          %4945 = vmatpush1.msra.mxu0 %v4558
          %4946 = vmatprep.subr.mxu0 0.0
          %4947 = vmatpush1.msra.mxu0 %v4559
          %4948 = vmatprep.subr.mxu0 0.0
          %4949 = vmatpush1.msra.mxu0 %v4560
          %4950 = vmatprep.subr.mxu0 0.0
          %4951 = vmatpush1.msra.mxu0 %v4561
          %4952 = vmatprep.subr.mxu0 0.0
          %4953 = vmatpush1.msra.mxu0 %v4562
          %4954 = vmatprep.subr.mxu0 0.0
          %4955 = vmatpush1.msra.mxu0 %v4563
          %4956 = vmatprep.subr.mxu0 0.0
          %4957 = vmatpush1.msra.mxu0 %v4564
          %4958 = vmatprep.subr.mxu0 0.0
          %4959 = vmatpush1.msra.mxu0 %v4565
          %4960 = vmatprep.subr.mxu0 0.0
          %4961 = vmatpush1.msra.mxu0 %v4566
          %4962 = vmatprep.subr.mxu0 0.0
          %4963 = vmatpush1.msra.mxu0 %v4567
          %4964 = vmatprep.subr.mxu0 0.0
          %4965 = vmatpush1.msra.mxu0 %v4568
          %4966 = vmatprep.subr.mxu0 0.0
          %4967 = vmatpush1.msra.mxu0 %v4569
          %4968 = vmatprep.subr.mxu0 0.0
          %4969 = vmatpush1.msra.mxu0 %v4570
          %4970 = vmatprep.subr.mxu0 0.0
          %4971 = vmatpush1.msra.mxu0 %v4571
          %4972 = vmatprep.subr.mxu0 0.0
          %4973 = vmatpush1.msra.mxu0 %v4572
          %4974 = vmatprep.subr.mxu0 0.0
          %4975 = vmatpush1.msra.mxu0 %v4573
          %4976 = vmatprep.subr.mxu0 0.0
          %4977 = vmatpush1.msra.mxu0 %v4574
          %4978 = vmatprep.subr.mxu0 0.0
          %4979 = vmatpush1.msra.mxu0 %v4575
          %4980 = vmatprep.subr.mxu0 0.0
          %4981 = vmatpush1.msra.mxu0 %v4576
          %4982 = vmatprep.subr.mxu0 0.0
          %4983 = vmatpush1.msra.mxu0 %v4577
          %4984 = vmatprep.subr.mxu0 0.0
          %4985 = vmatpush1.msra.mxu0 %v4578
          %4986 = vmatprep.subr.mxu0 0.0
          %4987 = vmatpush1.msra.mxu0 %v4579
          %4988 = vmatprep.subr.mxu0 0.0
          %4989 = vmatpush1.msra.mxu0 %v4580
          %4990 = vmatprep.mubr.f32.mxu0 %v4791
          %4991 = vmatmul.mubr.f32.gmra.mrb[0].mxu0 %v4787
          %v4992 = vpop.f32.mrb[0].mxu0
          %v4993 = vadd.f32 %v4923, %v4992
          %v4994 = vpop.f32.mrb[0].mxu0
          %4995 = vdwg.mxu0
          %4996 = vmatprep.subr.mxu0 0.0
          %4997 = vmatpush1.msra.mxu0 %v4581
          %4998 = vmatprep.subr.mxu0 0.0
          %4999 = vmatpush1.msra.mxu0 %v4582
          %5000 = vmatprep.subr.mxu0 0.0
          %5001 = vmatpush1.msra.mxu0 %v4583
          %5002 = vmatprep.subr.mxu0 0.0
          %5003 = vmatpush1.msra.mxu0 %v4584
          %5004 = vmatprep.subr.mxu0 0.0
          %5005 = vmatpush1.msra.mxu0 %v4585
          %5006 = vmatprep.subr.mxu0 0.0
          %5007 = vmatpush1.msra.mxu0 %v4586
          %5008 = vmatprep.subr.mxu0 0.0
          %5009 = vmatpush1.msra.mxu0 %v4587
          %5010 = vmatprep.subr.mxu0 0.0
          %5011 = vmatpush1.msra.mxu0 %v4588
          %5012 = vmatprep.subr.mxu0 0.0
          %5013 = vmatpush1.msra.mxu0 %v4589
          %5014 = vmatprep.subr.mxu0 0.0
          %5015 = vmatpush1.msra.mxu0 %v4590
          %5016 = vmatprep.subr.mxu0 0.0
          %5017 = vmatpush1.msra.mxu0 %v4591
          %5018 = vmatprep.subr.mxu0 0.0
          %5019 = vmatpush1.msra.mxu0 %v4592
          %5020 = vmatprep.subr.mxu0 0.0
          %5021 = vmatpush1.msra.mxu0 %v4593
          %5022 = vmatprep.subr.mxu0 0.0
          %5023 = vmatpush1.msra.mxu0 %v4594
          %5024 = vmatprep.subr.mxu0 0.0
          %5025 = vmatpush1.msra.mxu0 %v4595
          %5026 = vmatprep.subr.mxu0 0.0
          %5027 = vmatpush1.msra.mxu0 %v4596
          %5028 = vmatprep.subr.mxu0 0.0
          %5029 = vmatpush1.msra.mxu0 %v4597
          %5030 = vmatprep.subr.mxu0 0.0
          %5031 = vmatpush1.msra.mxu0 %v4598
          %5032 = vmatprep.subr.mxu0 0.0
          %5033 = vmatpush1.msra.mxu0 %v4599
          %5034 = vmatprep.subr.mxu0 0.0
          %5035 = vmatpush1.msra.mxu0 %v4600
          %5036 = vmatprep.subr.mxu0 0.0
          %5037 = vmatpush1.msra.mxu0 %v4601
          %5038 = vmatprep.subr.mxu0 0.0
          %5039 = vmatpush1.msra.mxu0 %v4602
          %5040 = vmatprep.subr.mxu0 0.0
          %5041 = vmatpush1.msra.mxu0 %v4603
          %5042 = vmatprep.subr.mxu0 0.0
          %5043 = vmatpush1.msra.mxu0 %v4604
          %5044 = vmatprep.subr.mxu0 0.0
          %5045 = vmatpush1.msra.mxu0 %v4605
          %5046 = vmatprep.subr.mxu0 0.0
          %5047 = vmatpush1.msra.mxu0 %v4606
          %5048 = vmatprep.subr.mxu0 0.0
          %5049 = vmatpush1.msra.mxu0 %v4607
          %5050 = vmatprep.subr.mxu0 0.0
          %5051 = vmatpush1.msra.mxu0 %v4608
          %5052 = vmatprep.subr.mxu0 0.0
          %5053 = vmatpush1.msra.mxu0 %v4609
          %5054 = vmatprep.subr.mxu0 0.0
          %5055 = vmatpush1.msra.mxu0 %v4610
          %5056 = vmatprep.subr.mxu0 0.0
          %5057 = vmatpush1.msra.mxu0 %v4611
          %5058 = vmatprep.subr.mxu0 0.0
          %5059 = vmatpush1.msra.mxu0 %v4612
          %5060 = vmatprep.mubr.f32.mxu0 %v4799
          %5061 = vmatmul.mubr.f32.gmra.mrb[0].mxu0 %v4795
          %v5062 = vpop.f32.mrb[0].mxu0
          %v5063 = vadd.f32 %v4993, %v5062
          %v5064 = vpop.f32.mrb[0].mxu0
          %5065 = vdwg.mxu0
          %5066 = vmatprep.subr.mxu0 0.0
          %5067 = vmatpush1.msra.mxu0 %v4613
          %5068 = vmatprep.subr.mxu0 0.0
          %5069 = vmatpush1.msra.mxu0 %v4614
          %5070 = vmatprep.subr.mxu0 0.0
          %5071 = vmatpush1.msra.mxu0 %v4615
          %5072 = vmatprep.subr.mxu0 0.0
          %5073 = vmatpush1.msra.mxu0 %v4616
          %5074 = vmatprep.subr.mxu0 0.0
          %5075 = vmatpush1.msra.mxu0 %v4617
          %5076 = vmatprep.subr.mxu0 0.0
          %5077 = vmatpush1.msra.mxu0 %v4618
          %5078 = vmatprep.subr.mxu0 0.0
          %5079 = vmatpush1.msra.mxu0 %v4619
          %5080 = vmatprep.subr.mxu0 0.0
          %5081 = vmatpush1.msra.mxu0 %v4620
          %5082 = vmatprep.subr.mxu0 0.0
          %5083 = vmatpush1.msra.mxu0 %v4621
          %5084 = vmatprep.subr.mxu0 0.0
          %5085 = vmatpush1.msra.mxu0 %v4622
          %5086 = vmatprep.subr.mxu0 0.0
          %5087 = vmatpush1.msra.mxu0 %v4623
          %5088 = vmatprep.subr.mxu0 0.0
          %5089 = vmatpush1.msra.mxu0 %v4624
          %5090 = vmatprep.subr.mxu0 0.0
          %5091 = vmatpush1.msra.mxu0 %v4625
          %5092 = vmatprep.subr.mxu0 0.0
          %5093 = vmatpush1.msra.mxu0 %v4626
          %5094 = vmatprep.subr.mxu0 0.0
          %5095 = vmatpush1.msra.mxu0 %v4627
          %5096 = vmatprep.subr.mxu0 0.0
          %5097 = vmatpush1.msra.mxu0 %v4628
          %5098 = vmatprep.subr.mxu0 0.0
          %5099 = vmatpush1.msra.mxu0 %v4629
          %5100 = vmatprep.subr.mxu0 0.0
          %5101 = vmatpush1.msra.mxu0 %v4630
          %5102 = vmatprep.subr.mxu0 0.0
          %5103 = vmatpush1.msra.mxu0 %v4631
          %5104 = vmatprep.subr.mxu0 0.0
          %5105 = vmatpush1.msra.mxu0 %v4632
          %5106 = vmatprep.subr.mxu0 0.0
          %5107 = vmatpush1.msra.mxu0 %v4633
          %5108 = vmatprep.subr.mxu0 0.0
          %5109 = vmatpush1.msra.mxu0 %v4634
          %5110 = vmatprep.subr.mxu0 0.0
          %5111 = vmatpush1.msra.mxu0 %v4635
          %5112 = vmatprep.subr.mxu0 0.0
          %5113 = vmatpush1.msra.mxu0 %v4636
          %5114 = vmatprep.subr.mxu0 0.0
          %5115 = vmatpush1.msra.mxu0 %v4637
          %5116 = vmatprep.subr.mxu0 0.0
          %5117 = vmatpush1.msra.mxu0 %v4638
          %5118 = vmatprep.subr.mxu0 0.0
          %5119 = vmatpush1.msra.mxu0 %v4639
          %5120 = vmatprep.subr.mxu0 0.0
          %5121 = vmatpush1.msra.mxu0 %v4640
          %5122 = vmatprep.subr.mxu0 0.0
          %5123 = vmatpush1.msra.mxu0 %v4641
          %5124 = vmatprep.subr.mxu0 0.0
          %5125 = vmatpush1.msra.mxu0 %v4642
          %5126 = vmatprep.subr.mxu0 0.0
          %5127 = vmatpush1.msra.mxu0 %v4643
          %5128 = vmatprep.subr.mxu0 0.0
          %5129 = vmatpush1.msra.mxu0 %v4644
          %5130 = vmatprep.mubr.f32.mxu0 %v4807
          %5131 = vmatmul.mubr.f32.gmra.mrb[0].mxu0 %v4803
          %v5132 = vpop.f32.mrb[0].mxu0
          %v5133 = vadd.f32 %v5063, %v5132
          %v5134 = vpop.f32.mrb[0].mxu0
          %5135 = vdwg.mxu0
          %5136 = vmatprep.subr.mxu0 0.0
          %5137 = vmatpush1.msra.mxu0 %v4645
          %5138 = vmatprep.subr.mxu0 0.0
          %5139 = vmatpush1.msra.mxu0 %v4646
          %5140 = vmatprep.subr.mxu0 0.0
          %5141 = vmatpush1.msra.mxu0 %v4647
          %5142 = vmatprep.subr.mxu0 0.0
          %5143 = vmatpush1.msra.mxu0 %v4648
          %5144 = vmatprep.subr.mxu0 0.0
          %5145 = vmatpush1.msra.mxu0 %v4649
          %5146 = vmatprep.subr.mxu0 0.0
          %5147 = vmatpush1.msra.mxu0 %v4650
          %5148 = vmatprep.subr.mxu0 0.0
          %5149 = vmatpush1.msra.mxu0 %v4651
          %5150 = vmatprep.subr.mxu0 0.0
          %5151 = vmatpush1.msra.mxu0 %v4652
          %5152 = vmatprep.subr.mxu0 0.0
          %5153 = vmatpush1.msra.mxu0 %v4653
          %5154 = vmatprep.subr.mxu0 0.0
          %5155 = vmatpush1.msra.mxu0 %v4654
          %5156 = vmatprep.subr.mxu0 0.0
          %5157 = vmatpush1.msra.mxu0 %v4655
          %5158 = vmatprep.subr.mxu0 0.0
          %5159 = vmatpush1.msra.mxu0 %v4656
          %5160 = vmatprep.subr.mxu0 0.0
          %5161 = vmatpush1.msra.mxu0 %v4657
          %5162 = vmatprep.subr.mxu0 0.0
          %5163 = vmatpush1.msra.mxu0 %v4658
          %5164 = vmatprep.subr.mxu0 0.0
          %5165 = vmatpush1.msra.mxu0 %v4659
          %5166 = vmatprep.subr.mxu0 0.0
          %5167 = vmatpush1.msra.mxu0 %v4660
          %5168 = vmatprep.subr.mxu0 0.0
          %5169 = vmatpush1.msra.mxu0 %v4661
          %5170 = vmatprep.subr.mxu0 0.0
          %5171 = vmatpush1.msra.mxu0 %v4662
          %5172 = vmatprep.subr.mxu0 0.0
          %5173 = vmatpush1.msra.mxu0 %v4663
          %5174 = vmatprep.subr.mxu0 0.0
          %5175 = vmatpush1.msra.mxu0 %v4664
          %5176 = vmatprep.subr.mxu0 0.0
          %5177 = vmatpush1.msra.mxu0 %v4665
          %5178 = vmatprep.subr.mxu0 0.0
          %5179 = vmatpush1.msra.mxu0 %v4666
          %5180 = vmatprep.subr.mxu0 0.0
          %5181 = vmatpush1.msra.mxu0 %v4667
          %5182 = vmatprep.subr.mxu0 0.0
          %5183 = vmatpush1.msra.mxu0 %v4668
          %5184 = vmatprep.subr.mxu0 0.0
          %5185 = vmatpush1.msra.mxu0 %v4669
          %5186 = vmatprep.subr.mxu0 0.0
          %5187 = vmatpush1.msra.mxu0 %v4670
          %5188 = vmatprep.subr.mxu0 0.0
          %5189 = vmatpush1.msra.mxu0 %v4671
          %5190 = vmatprep.subr.mxu0 0.0
          %5191 = vmatpush1.msra.mxu0 %v4672
          %5192 = vmatprep.subr.mxu0 0.0
          %5193 = vmatpush1.msra.mxu0 %v4673
          %5194 = vmatprep.subr.mxu0 0.0
          %5195 = vmatpush1.msra.mxu0 %v4674
          %5196 = vmatprep.subr.mxu0 0.0
          %5197 = vmatpush1.msra.mxu0 %v4675
          %5198 = vmatprep.subr.mxu0 0.0
          %5199 = vmatpush1.msra.mxu0 %v4676
          %5200 = vmatprep.mubr.f32.mxu0 %v4815
          %5201 = vmatmul.mubr.f32.gmra.mrb[0].mxu0 %v4811
          %v5202 = vpop.f32.mrb[0].mxu0
          %v5203 = vadd.f32 %v5133, %v5202
          %v5204 = vpop.f32.mrb[0].mxu0
          %5205 = vdwg.mxu0
          %5206 = vmatprep.subr.mxu0 0.0
          %5207 = vmatpush1.msra.mxu0 %v4677
          %5208 = vmatprep.subr.mxu0 0.0
          %5209 = vmatpush1.msra.mxu0 %v4678
          %5210 = vmatprep.subr.mxu0 0.0
          %5211 = vmatpush1.msra.mxu0 %v4679
          %5212 = vmatprep.subr.mxu0 0.0
          %5213 = vmatpush1.msra.mxu0 %v4680
          %5214 = vmatprep.subr.mxu0 0.0
          %5215 = vmatpush1.msra.mxu0 %v4681
          %5216 = vmatprep.subr.mxu0 0.0
          %5217 = vmatpush1.msra.mxu0 %v4682
          %5218 = vmatprep.subr.mxu0 0.0
          %5219 = vmatpush1.msra.mxu0 %v4683
          %5220 = vmatprep.subr.mxu0 0.0
          %5221 = vmatpush1.msra.mxu0 %v4684
          %5222 = vmatprep.subr.mxu0 0.0
          %5223 = vmatpush1.msra.mxu0 %v4685
          %5224 = vmatprep.subr.mxu0 0.0
          %5225 = vmatpush1.msra.mxu0 %v4686
          %5226 = vmatprep.subr.mxu0 0.0
          %5227 = vmatpush1.msra.mxu0 %v4687
          %5228 = vmatprep.subr.mxu0 0.0
          %5229 = vmatpush1.msra.mxu0 %v4688
          %5230 = vmatprep.subr.mxu0 0.0
          %5231 = vmatpush1.msra.mxu0 %v4689
          %5232 = vmatprep.subr.mxu0 0.0
          %5233 = vmatpush1.msra.mxu0 %v4690
          %5234 = vmatprep.subr.mxu0 0.0
          %5235 = vmatpush1.msra.mxu0 %v4691
          %5236 = vmatprep.subr.mxu0 0.0
          %5237 = vmatpush1.msra.mxu0 %v4692
          %5238 = vmatprep.subr.mxu0 0.0
          %5239 = vmatpush1.msra.mxu0 %v4693
          %5240 = vmatprep.subr.mxu0 0.0
          %5241 = vmatpush1.msra.mxu0 %v4694
          %5242 = vmatprep.subr.mxu0 0.0
          %5243 = vmatpush1.msra.mxu0 %v4695
          %5244 = vmatprep.subr.mxu0 0.0
          %5245 = vmatpush1.msra.mxu0 %v4696
          %5246 = vmatprep.subr.mxu0 0.0
          %5247 = vmatpush1.msra.mxu0 %v4697
          %5248 = vmatprep.subr.mxu0 0.0
          %5249 = vmatpush1.msra.mxu0 %v4698
          %5250 = vmatprep.subr.mxu0 0.0
          %5251 = vmatpush1.msra.mxu0 %v4699
          %5252 = vmatprep.subr.mxu0 0.0
          %5253 = vmatpush1.msra.mxu0 %v4700
          %5254 = vmatprep.subr.mxu0 0.0
          %5255 = vmatpush1.msra.mxu0 %v4701
          %5256 = vmatprep.subr.mxu0 0.0
          %5257 = vmatpush1.msra.mxu0 %v4702
          %5258 = vmatprep.subr.mxu0 0.0
          %5259 = vmatpush1.msra.mxu0 %v4703
          %5260 = vmatprep.subr.mxu0 0.0
          %5261 = vmatpush1.msra.mxu0 %v4704
          %5262 = vmatprep.subr.mxu0 0.0
          %5263 = vmatpush1.msra.mxu0 %v4705
          %5264 = vmatprep.subr.mxu0 0.0
          %5265 = vmatpush1.msra.mxu0 %v4706
          %5266 = vmatprep.subr.mxu0 0.0
          %5267 = vmatpush1.msra.mxu0 %v4707
          %5268 = vmatprep.subr.mxu0 0.0
          %5269 = vmatpush1.msra.mxu0 %v4708
          %5270 = vmatprep.mubr.f32.mxu0 %v4823
          %5271 = vmatmul.mubr.f32.gmra.mrb[0].mxu0 %v4819
          %v5272 = vpop.f32.mrb[0].mxu0
          %v5273 = vadd.f32 %v5203, %v5272
          %v5274 = vpop.f32.mrb[0].mxu0
          %5275 = vdwg.mxu0
          %5276 = vmatprep.subr.mxu0 0.0
          %5277 = vmatpush1.msra.mxu0 %v4709
          %5278 = vmatprep.subr.mxu0 0.0
          %5279 = vmatpush1.msra.mxu0 %v4710
          %5280 = vmatprep.subr.mxu0 0.0
          %5281 = vmatpush1.msra.mxu0 %v4711
          %5282 = vmatprep.subr.mxu0 0.0
          %5283 = vmatpush1.msra.mxu0 %v4712
          %5284 = vmatprep.subr.mxu0 0.0
          %5285 = vmatpush1.msra.mxu0 %v4713
          %5286 = vmatprep.subr.mxu0 0.0
          %5287 = vmatpush1.msra.mxu0 %v4714
          %5288 = vmatprep.subr.mxu0 0.0
          %5289 = vmatpush1.msra.mxu0 %v4715
          %5290 = vmatprep.subr.mxu0 0.0
          %5291 = vmatpush1.msra.mxu0 %v4716
          %5292 = vmatprep.subr.mxu0 0.0
          %5293 = vmatpush1.msra.mxu0 %v4717
          %5294 = vmatprep.subr.mxu0 0.0
          %5295 = vmatpush1.msra.mxu0 %v4718
          %5296 = vmatprep.subr.mxu0 0.0
          %5297 = vmatpush1.msra.mxu0 %v4719
          %5298 = vmatprep.subr.mxu0 0.0
          %5299 = vmatpush1.msra.mxu0 %v4720
          %5300 = vmatprep.subr.mxu0 0.0
          %5301 = vmatpush1.msra.mxu0 %v4721
          %5302 = vmatprep.subr.mxu0 0.0
          %5303 = vmatpush1.msra.mxu0 %v4722
          %5304 = vmatprep.subr.mxu0 0.0
          %5305 = vmatpush1.msra.mxu0 %v4723
          %5306 = vmatprep.subr.mxu0 0.0
          %5307 = vmatpush1.msra.mxu0 %v4724
          %5308 = vmatprep.subr.mxu0 0.0
          %5309 = vmatpush1.msra.mxu0 %v4725
          %5310 = vmatprep.subr.mxu0 0.0
          %5311 = vmatpush1.msra.mxu0 %v4726
          %5312 = vmatprep.subr.mxu0 0.0
          %5313 = vmatpush1.msra.mxu0 %v4727
          %5314 = vmatprep.subr.mxu0 0.0
          %5315 = vmatpush1.msra.mxu0 %v4728
          %5316 = vmatprep.subr.mxu0 0.0
          %5317 = vmatpush1.msra.mxu0 %v4729
          %5318 = vmatprep.subr.mxu0 0.0
          %5319 = vmatpush1.msra.mxu0 %v4730
          %5320 = vmatprep.subr.mxu0 0.0
          %5321 = vmatpush1.msra.mxu0 %v4731
          %5322 = vmatprep.subr.mxu0 0.0
          %5323 = vmatpush1.msra.mxu0 %v4732
          %5324 = vmatprep.subr.mxu0 0.0
          %5325 = vmatpush1.msra.mxu0 %v4733
          %5326 = vmatprep.subr.mxu0 0.0
          %5327 = vmatpush1.msra.mxu0 %v4734
          %5328 = vmatprep.subr.mxu0 0.0
          %5329 = vmatpush1.msra.mxu0 %v4735
          %5330 = vmatprep.subr.mxu0 0.0
          %5331 = vmatpush1.msra.mxu0 %v4736
          %5332 = vmatprep.subr.mxu0 0.0
          %5333 = vmatpush1.msra.mxu0 %v4737
          %5334 = vmatprep.subr.mxu0 0.0
          %5335 = vmatpush1.msra.mxu0 %v4738
          %5336 = vmatprep.subr.mxu0 0.0
          %5337 = vmatpush1.msra.mxu0 %v4739
          %5338 = vmatprep.subr.mxu0 0.0
          %5339 = vmatpush1.msra.mxu0 %v4740
          %5340 = vmatprep.mubr.f32.mxu0 %v4831
          %5341 = vmatmul.mubr.f32.gmra.mrb[0].mxu0 %v4827
          %v5342 = vpop.f32.mrb[0].mxu0
          %v5343 = vadd.f32 %v5273, %v5342
          %v5344 = vpop.f32.mrb[0].mxu0
          %5345 = vdwg.mxu0
          %5346 = vmatprep.subr.mxu0 0.0
          %5347 = vmatpush1.msra.mxu0 %v4741
          %5348 = vmatprep.subr.mxu0 0.0
          %5349 = vmatpush1.msra.mxu0 %v4742
          %5350 = vmatprep.subr.mxu0 0.0
          %5351 = vmatpush1.msra.mxu0 %v4743
          %5352 = vmatprep.subr.mxu0 0.0
          %5353 = vmatpush1.msra.mxu0 %v4744
          %5354 = vmatprep.subr.mxu0 0.0
          %5355 = vmatpush1.msra.mxu0 %v4745
          %5356 = vmatprep.subr.mxu0 0.0
          %5357 = vmatpush1.msra.mxu0 %v4746
          %5358 = vmatprep.subr.mxu0 0.0
          %5359 = vmatpush1.msra.mxu0 %v4747
          %5360 = vmatprep.subr.mxu0 0.0
          %5361 = vmatpush1.msra.mxu0 %v4748
          %5362 = vmatprep.subr.mxu0 0.0
          %5363 = vmatpush1.msra.mxu0 %v4749
          %5364 = vmatprep.subr.mxu0 0.0
          %5365 = vmatpush1.msra.mxu0 %v4750
          %5366 = vmatprep.subr.mxu0 0.0
          %5367 = vmatpush1.msra.mxu0 %v4751
          %5368 = vmatprep.subr.mxu0 0.0
          %5369 = vmatpush1.msra.mxu0 %v4752
          %5370 = vmatprep.subr.mxu0 0.0
          %5371 = vmatpush1.msra.mxu0 %v4753
          %5372 = vmatprep.subr.mxu0 0.0
          %5373 = vmatpush1.msra.mxu0 %v4754
          %5374 = vmatprep.subr.mxu0 0.0
          %5375 = vmatpush1.msra.mxu0 %v4755
          %5376 = vmatprep.subr.mxu0 0.0
          %5377 = vmatpush1.msra.mxu0 %v4756
          %5378 = vmatprep.subr.mxu0 0.0
          %5379 = vmatpush1.msra.mxu0 %v4757
          %5380 = vmatprep.subr.mxu0 0.0
          %5381 = vmatpush1.msra.mxu0 %v4758
          %5382 = vmatprep.subr.mxu0 0.0
          %5383 = vmatpush1.msra.mxu0 %v4759
          %5384 = vmatprep.subr.mxu0 0.0
          %5385 = vmatpush1.msra.mxu0 %v4760
          %5386 = vmatprep.subr.mxu0 0.0
          %5387 = vmatpush1.msra.mxu0 %v4761
          %5388 = vmatprep.subr.mxu0 0.0
          %5389 = vmatpush1.msra.mxu0 %v4762
          %5390 = vmatprep.subr.mxu0 0.0
          %5391 = vmatpush1.msra.mxu0 %v4763
          %5392 = vmatprep.subr.mxu0 0.0
          %5393 = vmatpush1.msra.mxu0 %v4764
          %5394 = vmatprep.subr.mxu0 0.0
          %5395 = vmatpush1.msra.mxu0 %v4765
          %5396 = vmatprep.subr.mxu0 0.0
          %5397 = vmatpush1.msra.mxu0 %v4766
          %5398 = vmatprep.subr.mxu0 0.0
          %5399 = vmatpush1.msra.mxu0 %v4767
          %5400 = vmatprep.subr.mxu0 0.0
          %5401 = vmatpush1.msra.mxu0 %v4768
          %5402 = vmatprep.subr.mxu0 0.0
          %5403 = vmatpush1.msra.mxu0 %v4769
          %5404 = vmatprep.subr.mxu0 0.0
          %5405 = vmatpush1.msra.mxu0 %v4770
          %5406 = vmatprep.subr.mxu0 0.0
          %5407 = vmatpush1.msra.mxu0 %v4771
          %5408 = vmatprep.subr.mxu0 0.0
          %5409 = vmatpush1.msra.mxu0 %v4772
          %5410 = vmatprep.mubr.f32.mxu0 %v4839
          %5411 = vmatmul.mubr.f32.gmra.mrb[0].mxu0 %v4835
          %v5412 = vpop.f32.mrb[0].mxu0
          %v5413 = vadd.f32 %v5343, %v5412
          %v5414 = vpop.f32.mrb[0].mxu0
          %5415 = vdwg.mxu0
          %5416 = vst [vmem:[%s750] sm:$0x1] %v5413
          %v5417 = vld [vmem:[#allocation17] sm:$0xff]
          %v5418 = vld [vmem:[#allocation17 + $0x8] sm:$0xff]
          %v5419 = vld [vmem:[#allocation17 + $0x10] sm:$0xff]
          %v5420 = vld [vmem:[#allocation17 + $0x18] sm:$0xff]
          %v5421 = vld [vmem:[#allocation17 + $0x20] sm:$0xff]
          %v5422 = vld [vmem:[#allocation17 + $0x28] sm:$0xff]
          %v5423 = vld [vmem:[#allocation17 + $0x30] sm:$0xff]
          %v5424 = vld [vmem:[#allocation17 + $0x38] sm:$0xff]
          %v5425 = vld [vmem:[#allocation17 + $0x40] sm:$0xff]
          %v5426 = vld [vmem:[#allocation17 + $0x48] sm:$0xff]
          %v5427 = vld [vmem:[#allocation17 + $0x50] sm:$0xff]
          %v5428 = vld [vmem:[#allocation17 + $0x58] sm:$0xff]
          %v5429 = vld [vmem:[#allocation17 + $0x60] sm:$0xff]
          %v5430 = vld [vmem:[#allocation17 + $0x68] sm:$0xff]
          %v5431 = vld [vmem:[#allocation17 + $0x70] sm:$0xff]
          %v5432 = vld [vmem:[#allocation17 + $0x78] sm:$0xff]
          %v5433 = vld [vmem:[#allocation17 + $0x80] sm:$0xff]
          %v5434 = vld [vmem:[#allocation17 + $0x88] sm:$0xff]
          %v5435 = vld [vmem:[#allocation17 + $0x90] sm:$0xff]
          %v5436 = vld [vmem:[#allocation17 + $0x98] sm:$0xff]
          %v5437 = vld [vmem:[#allocation17 + $0xa0] sm:$0xff]
          %v5438 = vld [vmem:[#allocation17 + $0xa8] sm:$0xff]
          %v5439 = vld [vmem:[#allocation17 + $0xb0] sm:$0xff]
          %v5440 = vld [vmem:[#allocation17 + $0xb8] sm:$0xff]
          %v5441 = vld [vmem:[#allocation17 + $0xc0] sm:$0xff]
          %v5442 = vld [vmem:[#allocation17 + $0xc8] sm:$0xff]
          %v5443 = vld [vmem:[#allocation17 + $0xd0] sm:$0xff]
          %v5444 = vld [vmem:[#allocation17 + $0xd8] sm:$0xff]
          %v5445 = vld [vmem:[#allocation17 + $0xe0] sm:$0xff]
          %v5446 = vld [vmem:[#allocation17 + $0xe8] sm:$0xff]
          %v5447 = vld [vmem:[#allocation17 + $0xf0] sm:$0xff]
          %v5448 = vld [vmem:[#allocation17 + $0xf8] sm:$0xff]
          %v5449 = vld [vmem:[#allocation17 + $0x100] sm:$0xff]
          %v5450 = vld [vmem:[#allocation17 + $0x108] sm:$0xff]
          %v5451 = vld [vmem:[#allocation17 + $0x110] sm:$0xff]
          %v5452 = vld [vmem:[#allocation17 + $0x118] sm:$0xff]
          %v5453 = vld [vmem:[#allocation17 + $0x120] sm:$0xff]
          %v5454 = vld [vmem:[#allocation17 + $0x128] sm:$0xff]
          %v5455 = vld [vmem:[#allocation17 + $0x130] sm:$0xff]
          %v5456 = vld [vmem:[#allocation17 + $0x138] sm:$0xff]
          %v5457 = vld [vmem:[#allocation17 + $0x140] sm:$0xff]
          %v5458 = vld [vmem:[#allocation17 + $0x148] sm:$0xff]
          %v5459 = vld [vmem:[#allocation17 + $0x150] sm:$0xff]
          %v5460 = vld [vmem:[#allocation17 + $0x158] sm:$0xff]
          %v5461 = vld [vmem:[#allocation17 + $0x160] sm:$0xff]
          %v5462 = vld [vmem:[#allocation17 + $0x168] sm:$0xff]
          %v5463 = vld [vmem:[#allocation17 + $0x170] sm:$0xff]
          %v5464 = vld [vmem:[#allocation17 + $0x178] sm:$0xff]
          %v5465 = vld [vmem:[#allocation17 + $0x180] sm:$0xff]
          %v5466 = vld [vmem:[#allocation17 + $0x188] sm:$0xff]
          %v5467 = vld [vmem:[#allocation17 + $0x190] sm:$0xff]
          %v5468 = vld [vmem:[#allocation17 + $0x198] sm:$0xff]
          %v5469 = vld [vmem:[#allocation17 + $0x1a0] sm:$0xff]
          %v5470 = vld [vmem:[#allocation17 + $0x1a8] sm:$0xff]
          %v5471 = vld [vmem:[#allocation17 + $0x1b0] sm:$0xff]
          %v5472 = vld [vmem:[#allocation17 + $0x1b8] sm:$0xff]
          %v5473 = vld [vmem:[#allocation17 + $0x1c0] sm:$0xff]
          %v5474 = vld [vmem:[#allocation17 + $0x1c8] sm:$0xff]
          %v5475 = vld [vmem:[#allocation17 + $0x1d0] sm:$0xff]
          %v5476 = vld [vmem:[#allocation17 + $0x1d8] sm:$0xff]
          %v5477 = vld [vmem:[#allocation17 + $0x1e0] sm:$0xff]
          %v5478 = vld [vmem:[#allocation17 + $0x1e8] sm:$0xff]
          %v5479 = vld [vmem:[#allocation17 + $0x1f0] sm:$0xff]
          %v5480 = vld [vmem:[#allocation17 + $0x1f8] sm:$0xff]
          %v5481 = vld [vmem:[#allocation17 + $0x200] sm:$0xff]
          %v5482 = vld [vmem:[#allocation17 + $0x208] sm:$0xff]
          %v5483 = vld [vmem:[#allocation17 + $0x210] sm:$0xff]
          %v5484 = vld [vmem:[#allocation17 + $0x218] sm:$0xff]
          %v5485 = vld [vmem:[#allocation17 + $0x220] sm:$0xff]
          %v5486 = vld [vmem:[#allocation17 + $0x228] sm:$0xff]
          %v5487 = vld [vmem:[#allocation17 + $0x230] sm:$0xff]
          %v5488 = vld [vmem:[#allocation17 + $0x238] sm:$0xff]
          %v5489 = vld [vmem:[#allocation17 + $0x240] sm:$0xff]
          %v5490 = vld [vmem:[#allocation17 + $0x248] sm:$0xff]
          %v5491 = vld [vmem:[#allocation17 + $0x250] sm:$0xff]
          %v5492 = vld [vmem:[#allocation17 + $0x258] sm:$0xff]
          %v5493 = vld [vmem:[#allocation17 + $0x260] sm:$0xff]
          %v5494 = vld [vmem:[#allocation17 + $0x268] sm:$0xff]
          %v5495 = vld [vmem:[#allocation17 + $0x270] sm:$0xff]
          %v5496 = vld [vmem:[#allocation17 + $0x278] sm:$0xff]
          %v5497 = vld [vmem:[#allocation17 + $0x280] sm:$0xff]
          %v5498 = vld [vmem:[#allocation17 + $0x288] sm:$0xff]
          %v5499 = vld [vmem:[#allocation17 + $0x290] sm:$0xff]
          %v5500 = vld [vmem:[#allocation17 + $0x298] sm:$0xff]
          %v5501 = vld [vmem:[#allocation17 + $0x2a0] sm:$0xff]
          %v5502 = vld [vmem:[#allocation17 + $0x2a8] sm:$0xff]
          %v5503 = vld [vmem:[#allocation17 + $0x2b0] sm:$0xff]
          %v5504 = vld [vmem:[#allocation17 + $0x2b8] sm:$0xff]
          %v5505 = vld [vmem:[#allocation17 + $0x2c0] sm:$0xff]
          %v5506 = vld [vmem:[#allocation17 + $0x2c8] sm:$0xff]
          %v5507 = vld [vmem:[#allocation17 + $0x2d0] sm:$0xff]
          %v5508 = vld [vmem:[#allocation17 + $0x2d8] sm:$0xff]
          %v5509 = vld [vmem:[#allocation17 + $0x2e0] sm:$0xff]
          %v5510 = vld [vmem:[#allocation17 + $0x2e8] sm:$0xff]
          %v5511 = vld [vmem:[#allocation17 + $0x2f0] sm:$0xff]
          %v5512 = vld [vmem:[#allocation17 + $0x2f8] sm:$0xff]
          %v5513 = vld [vmem:[#allocation17 + $0x300] sm:$0xff]
          %v5514 = vld [vmem:[#allocation17 + $0x308] sm:$0xff]
          %v5515 = vld [vmem:[#allocation17 + $0x310] sm:$0xff]
          %v5516 = vld [vmem:[#allocation17 + $0x318] sm:$0xff]
          %v5517 = vld [vmem:[#allocation17 + $0x320] sm:$0xff]
          %v5518 = vld [vmem:[#allocation17 + $0x328] sm:$0xff]
          %v5519 = vld [vmem:[#allocation17 + $0x330] sm:$0xff]
          %v5520 = vld [vmem:[#allocation17 + $0x338] sm:$0xff]
          %v5521 = vld [vmem:[#allocation17 + $0x340] sm:$0xff]
          %v5522 = vld [vmem:[#allocation17 + $0x348] sm:$0xff]
          %v5523 = vld [vmem:[#allocation17 + $0x350] sm:$0xff]
          %v5524 = vld [vmem:[#allocation17 + $0x358] sm:$0xff]
          %v5525 = vld [vmem:[#allocation17 + $0x360] sm:$0xff]
          %v5526 = vld [vmem:[#allocation17 + $0x368] sm:$0xff]
          %v5527 = vld [vmem:[#allocation17 + $0x370] sm:$0xff]
          %v5528 = vld [vmem:[#allocation17 + $0x378] sm:$0xff]
          %v5529 = vld [vmem:[#allocation17 + $0x380] sm:$0xff]
          %v5530 = vld [vmem:[#allocation17 + $0x388] sm:$0xff]
          %v5531 = vld [vmem:[#allocation17 + $0x390] sm:$0xff]
          %v5532 = vld [vmem:[#allocation17 + $0x398] sm:$0xff]
          %v5533 = vld [vmem:[#allocation17 + $0x3a0] sm:$0xff]
          %v5534 = vld [vmem:[#allocation17 + $0x3a8] sm:$0xff]
          %v5535 = vld [vmem:[#allocation17 + $0x3b0] sm:$0xff]
          %v5536 = vld [vmem:[#allocation17 + $0x3b8] sm:$0xff]
          %v5537 = vld [vmem:[#allocation17 + $0x3c0] sm:$0xff]
          %v5538 = vld [vmem:[#allocation17 + $0x3c8] sm:$0xff]
          %v5539 = vld [vmem:[#allocation17 + $0x3d0] sm:$0xff]
          %v5540 = vld [vmem:[#allocation17 + $0x3d8] sm:$0xff]
          %v5541 = vld [vmem:[#allocation17 + $0x3e0] sm:$0xff]
          %v5542 = vld [vmem:[#allocation17 + $0x3e8] sm:$0xff]
          %v5543 = vld [vmem:[#allocation17 + $0x3f0] sm:$0xff]
          %v5544 = vld [vmem:[#allocation17 + $0x3f8] sm:$0xff]
          %v5545 = vld [vmem:[#allocation17 + $0x400] sm:$0xff]
          %v5546 = vld [vmem:[#allocation17 + $0x408] sm:$0xff]
          %v5547 = vld [vmem:[#allocation17 + $0x410] sm:$0xff]
          %v5548 = vld [vmem:[#allocation17 + $0x418] sm:$0xff]
          %v5549 = vld [vmem:[#allocation17 + $0x420] sm:$0xff]
          %v5550 = vld [vmem:[#allocation17 + $0x428] sm:$0xff]
          %v5551 = vld [vmem:[#allocation17 + $0x430] sm:$0xff]
          %v5552 = vld [vmem:[#allocation17 + $0x438] sm:$0xff]
          %v5553 = vld [vmem:[#allocation17 + $0x440] sm:$0xff]
          %v5554 = vld [vmem:[#allocation17 + $0x448] sm:$0xff]
          %v5555 = vld [vmem:[#allocation17 + $0x450] sm:$0xff]
          %v5556 = vld [vmem:[#allocation17 + $0x458] sm:$0xff]
          %v5557 = vld [vmem:[#allocation17 + $0x460] sm:$0xff]
          %v5558 = vld [vmem:[#allocation17 + $0x468] sm:$0xff]
          %v5559 = vld [vmem:[#allocation17 + $0x470] sm:$0xff]
          %v5560 = vld [vmem:[#allocation17 + $0x478] sm:$0xff]
          %v5561 = vld [vmem:[#allocation17 + $0x480] sm:$0xff]
          %v5562 = vld [vmem:[#allocation17 + $0x488] sm:$0xff]
          %v5563 = vld [vmem:[#allocation17 + $0x490] sm:$0xff]
          %v5564 = vld [vmem:[#allocation17 + $0x498] sm:$0xff]
          %v5565 = vld [vmem:[#allocation17 + $0x4a0] sm:$0xff]
          %v5566 = vld [vmem:[#allocation17 + $0x4a8] sm:$0xff]
          %v5567 = vld [vmem:[#allocation17 + $0x4b0] sm:$0xff]
          %v5568 = vld [vmem:[#allocation17 + $0x4b8] sm:$0xff]
          %v5569 = vld [vmem:[#allocation17 + $0x4c0] sm:$0xff]
          %v5570 = vld [vmem:[#allocation17 + $0x4c8] sm:$0xff]
          %v5571 = vld [vmem:[#allocation17 + $0x4d0] sm:$0xff]
          %v5572 = vld [vmem:[#allocation17 + $0x4d8] sm:$0xff]
          %v5573 = vld [vmem:[#allocation17 + $0x4e0] sm:$0xff]
          %v5574 = vld [vmem:[#allocation17 + $0x4e8] sm:$0xff]
          %v5575 = vld [vmem:[#allocation17 + $0x4f0] sm:$0xff]
          %v5576 = vld [vmem:[#allocation17 + $0x4f8] sm:$0xff]
          %v5577 = vld [vmem:[#allocation17 + $0x500] sm:$0xff]
          %v5578 = vld [vmem:[#allocation17 + $0x508] sm:$0xff]
          %v5579 = vld [vmem:[#allocation17 + $0x510] sm:$0xff]
          %v5580 = vld [vmem:[#allocation17 + $0x518] sm:$0xff]
          %v5581 = vld [vmem:[#allocation17 + $0x520] sm:$0xff]
          %v5582 = vld [vmem:[#allocation17 + $0x528] sm:$0xff]
          %v5583 = vld [vmem:[#allocation17 + $0x530] sm:$0xff]
          %v5584 = vld [vmem:[#allocation17 + $0x538] sm:$0xff]
          %v5585 = vld [vmem:[#allocation17 + $0x540] sm:$0xff]
          %v5586 = vld [vmem:[#allocation17 + $0x548] sm:$0xff]
          %v5587 = vld [vmem:[#allocation17 + $0x550] sm:$0xff]
          %v5588 = vld [vmem:[#allocation17 + $0x558] sm:$0xff]
          %v5589 = vld [vmem:[#allocation17 + $0x560] sm:$0xff]
          %v5590 = vld [vmem:[#allocation17 + $0x568] sm:$0xff]
          %v5591 = vld [vmem:[#allocation17 + $0x570] sm:$0xff]
          %v5592 = vld [vmem:[#allocation17 + $0x578] sm:$0xff]
          %v5593 = vld [vmem:[#allocation17 + $0x580] sm:$0xff]
          %v5594 = vld [vmem:[#allocation17 + $0x588] sm:$0xff]
          %v5595 = vld [vmem:[#allocation17 + $0x590] sm:$0xff]
          %v5596 = vld [vmem:[#allocation17 + $0x598] sm:$0xff]
          %v5597 = vld [vmem:[#allocation17 + $0x5a0] sm:$0xff]
          %v5598 = vld [vmem:[#allocation17 + $0x5a8] sm:$0xff]
          %v5599 = vld [vmem:[#allocation17 + $0x5b0] sm:$0xff]
          %v5600 = vld [vmem:[#allocation17 + $0x5b8] sm:$0xff]
          %v5601 = vld [vmem:[#allocation17 + $0x5c0] sm:$0xff]
          %v5602 = vld [vmem:[#allocation17 + $0x5c8] sm:$0xff]
          %v5603 = vld [vmem:[#allocation17 + $0x5d0] sm:$0xff]
          %v5604 = vld [vmem:[#allocation17 + $0x5d8] sm:$0xff]
          %v5605 = vld [vmem:[#allocation17 + $0x5e0] sm:$0xff]
          %v5606 = vld [vmem:[#allocation17 + $0x5e8] sm:$0xff]
          %v5607 = vld [vmem:[#allocation17 + $0x5f0] sm:$0xff]
          %v5608 = vld [vmem:[#allocation17 + $0x5f8] sm:$0xff]
          %v5609 = vld [vmem:[#allocation17 + $0x600] sm:$0xff]
          %v5610 = vld [vmem:[#allocation17 + $0x608] sm:$0xff]
          %v5611 = vld [vmem:[#allocation17 + $0x610] sm:$0xff]
          %v5612 = vld [vmem:[#allocation17 + $0x618] sm:$0xff]
          %v5613 = vld [vmem:[#allocation17 + $0x620] sm:$0xff]
          %v5614 = vld [vmem:[#allocation17 + $0x628] sm:$0xff]
          %v5615 = vld [vmem:[#allocation17 + $0x630] sm:$0xff]
          %v5616 = vld [vmem:[#allocation17 + $0x638] sm:$0xff]
          %v5617 = vld [vmem:[#allocation17 + $0x640] sm:$0xff]
          %v5618 = vld [vmem:[#allocation17 + $0x648] sm:$0xff]
          %v5619 = vld [vmem:[#allocation17 + $0x650] sm:$0xff]
          %v5620 = vld [vmem:[#allocation17 + $0x658] sm:$0xff]
          %v5621 = vld [vmem:[#allocation17 + $0x660] sm:$0xff]
          %v5622 = vld [vmem:[#allocation17 + $0x668] sm:$0xff]
          %v5623 = vld [vmem:[#allocation17 + $0x670] sm:$0xff]
          %v5624 = vld [vmem:[#allocation17 + $0x678] sm:$0xff]
          %v5625 = vld [vmem:[#allocation17 + $0x680] sm:$0xff]
          %v5626 = vld [vmem:[#allocation17 + $0x688] sm:$0xff]
          %v5627 = vld [vmem:[#allocation17 + $0x690] sm:$0xff]
          %v5628 = vld [vmem:[#allocation17 + $0x698] sm:$0xff]
          %v5629 = vld [vmem:[#allocation17 + $0x6a0] sm:$0xff]
          %v5630 = vld [vmem:[#allocation17 + $0x6a8] sm:$0xff]
          %v5631 = vld [vmem:[#allocation17 + $0x6b0] sm:$0xff]
          %v5632 = vld [vmem:[#allocation17 + $0x6b8] sm:$0xff]
          %v5633 = vld [vmem:[#allocation17 + $0x6c0] sm:$0xff]
          %v5634 = vld [vmem:[#allocation17 + $0x6c8] sm:$0xff]
          %v5635 = vld [vmem:[#allocation17 + $0x6d0] sm:$0xff]
          %v5636 = vld [vmem:[#allocation17 + $0x6d8] sm:$0xff]
          %v5637 = vld [vmem:[#allocation17 + $0x6e0] sm:$0xff]
          %v5638 = vld [vmem:[#allocation17 + $0x6e8] sm:$0xff]
          %v5639 = vld [vmem:[#allocation17 + $0x6f0] sm:$0xff]
          %v5640 = vld [vmem:[#allocation17 + $0x6f8] sm:$0xff]
          %v5641 = vld [vmem:[#allocation17 + $0x700] sm:$0xff]
          %v5642 = vld [vmem:[#allocation17 + $0x708] sm:$0xff]
          %v5643 = vld [vmem:[#allocation17 + $0x710] sm:$0xff]
          %v5644 = vld [vmem:[#allocation17 + $0x718] sm:$0xff]
          %v5645 = vld [vmem:[#allocation17 + $0x720] sm:$0xff]
          %v5646 = vld [vmem:[#allocation17 + $0x728] sm:$0xff]
          %v5647 = vld [vmem:[#allocation17 + $0x730] sm:$0xff]
          %v5648 = vld [vmem:[#allocation17 + $0x738] sm:$0xff]
          %v5649 = vld [vmem:[#allocation17 + $0x740] sm:$0xff]
          %v5650 = vld [vmem:[#allocation17 + $0x748] sm:$0xff]
          %v5651 = vld [vmem:[#allocation17 + $0x750] sm:$0xff]
          %v5652 = vld [vmem:[#allocation17 + $0x758] sm:$0xff]
          %v5653 = vld [vmem:[#allocation17 + $0x760] sm:$0xff]
          %v5654 = vld [vmem:[#allocation17 + $0x768] sm:$0xff]
          %v5655 = vld [vmem:[#allocation17 + $0x770] sm:$0xff]
          %v5656 = vld [vmem:[#allocation17 + $0x778] sm:$0xff]
          %v5657 = vld [vmem:[#allocation17 + $0x780] sm:$0xff]
          %v5658 = vld [vmem:[#allocation17 + $0x788] sm:$0xff]
          %v5659 = vld [vmem:[#allocation17 + $0x790] sm:$0xff]
          %v5660 = vld [vmem:[#allocation17 + $0x798] sm:$0xff]
          %v5661 = vld [vmem:[#allocation17 + $0x7a0] sm:$0xff]
          %v5662 = vld [vmem:[#allocation17 + $0x7a8] sm:$0xff]
          %v5663 = vld [vmem:[#allocation17 + $0x7b0] sm:$0xff]
          %v5664 = vld [vmem:[#allocation17 + $0x7b8] sm:$0xff]
          %v5665 = vld [vmem:[#allocation17 + $0x7c0] sm:$0xff]
          %v5666 = vld [vmem:[#allocation17 + $0x7c8] sm:$0xff]
          %v5667 = vld [vmem:[#allocation17 + $0x7d0] sm:$0xff]
          %v5668 = vld [vmem:[#allocation17 + $0x7d8] sm:$0xff]
          %v5669 = vld [vmem:[#allocation17 + $0x7e0] sm:$0xff]
          %v5670 = vld [vmem:[#allocation17 + $0x7e8] sm:$0xff]
          %v5671 = vld [vmem:[#allocation17 + $0x7f0] sm:$0xff]
          %v5672 = vld [vmem:[#allocation17 + $0x7f8] sm:$0xff]
          %v5673 = vld [vmem:[#allocation17 + $0x800] sm:$0xff]
          %v5674 = vld [vmem:[#allocation17 + $0x808] sm:$0xff]
          %v5675 = vld [vmem:[#allocation17 + $0x810] sm:$0xff]
          %v5676 = vld [vmem:[#allocation17 + $0x818] sm:$0xff]
          %v5677 = vld [vmem:[#allocation17 + $0x820] sm:$0xff]
          %v5678 = vld [vmem:[#allocation17 + $0x828] sm:$0xff]
          %v5679 = vld [vmem:[#allocation17 + $0x830] sm:$0xff]
          %v5680 = vld [vmem:[#allocation17 + $0x838] sm:$0xff]
          %v5681 = vld [vmem:[#allocation17 + $0x840] sm:$0xff]
          %v5682 = vld [vmem:[#allocation17 + $0x848] sm:$0xff]
          %v5683 = vld [vmem:[#allocation17 + $0x850] sm:$0xff]
          %v5684 = vld [vmem:[#allocation17 + $0x858] sm:$0xff]
          %v5685 = vld [vmem:[#allocation17 + $0x860] sm:$0xff]
          %v5686 = vld [vmem:[#allocation17 + $0x868] sm:$0xff]
          %v5687 = vld [vmem:[#allocation17 + $0x870] sm:$0xff]
          %v5688 = vld [vmem:[#allocation17 + $0x878] sm:$0xff]
          %v5689 = vld [vmem:[#allocation17 + $0x880] sm:$0xff]
          %v5690 = vld [vmem:[#allocation17 + $0x888] sm:$0xff]
          %v5691 = vld [vmem:[#allocation17 + $0x890] sm:$0xff]
          %v5692 = vld [vmem:[#allocation17 + $0x898] sm:$0xff]
          %v5693 = vld [vmem:[#allocation17 + $0x8a0] sm:$0xff]
          %v5694 = vld [vmem:[#allocation17 + $0x8a8] sm:$0xff]
          %v5695 = vld [vmem:[#allocation17 + $0x8b0] sm:$0xff]
          %v5696 = vld [vmem:[#allocation17 + $0x8b8] sm:$0xff]
          %v5697 = vld [vmem:[#allocation17 + $0x8c0] sm:$0xff]
          %v5698 = vld [vmem:[#allocation17 + $0x8c8] sm:$0xff]
          %v5699 = vld [vmem:[#allocation17 + $0x8d0] sm:$0xff]
          %v5700 = vld [vmem:[#allocation17 + $0x8d8] sm:$0xff]
          %v5701 = vld [vmem:[#allocation17 + $0x8e0] sm:$0xff]
          %v5702 = vld [vmem:[#allocation17 + $0x8e8] sm:$0xff]
          %v5703 = vld [vmem:[#allocation17 + $0x8f0] sm:$0xff]
          %v5704 = vld [vmem:[#allocation17 + $0x8f8] sm:$0xff]
          %v5705 = vld [vmem:[#allocation17 + $0x900] sm:$0xff]
          %v5706 = vld [vmem:[#allocation17 + $0x908] sm:$0xff]
          %v5707 = vld [vmem:[#allocation17 + $0x910] sm:$0xff]
          %v5708 = vld [vmem:[#allocation17 + $0x918] sm:$0xff]
          %v5709 = vld [vmem:[#allocation17 + $0x920] sm:$0xff]
          %v5710 = vld [vmem:[#allocation17 + $0x928] sm:$0xff]
          %v5711 = vld [vmem:[#allocation17 + $0x930] sm:$0xff]
          %v5712 = vld [vmem:[#allocation17 + $0x938] sm:$0xff]
          %v5713 = vld [vmem:[#allocation17 + $0x940] sm:$0xff]
          %v5714 = vld [vmem:[#allocation17 + $0x948] sm:$0xff]
          %v5715 = vld [vmem:[#allocation17 + $0x950] sm:$0xff]
          %v5716 = vld [vmem:[#allocation17 + $0x958] sm:$0xff]
          %v5717 = vld [vmem:[#allocation17 + $0x960] sm:$0xff]
          %v5718 = vld [vmem:[#allocation17 + $0x968] sm:$0xff]
          %v5719 = vld [vmem:[#allocation17 + $0x970] sm:$0xff]
          %v5720 = vld [vmem:[#allocation17 + $0x978] sm:$0xff]
          %v5721 = vld [vmem:[#allocation17 + $0x980] sm:$0xff]
          %v5722 = vld [vmem:[#allocation17 + $0x988] sm:$0xff]
          %v5723 = vld [vmem:[#allocation17 + $0x990] sm:$0xff]
          %v5724 = vld [vmem:[#allocation17 + $0x998] sm:$0xff]
          %v5725 = vld [vmem:[#allocation17 + $0x9a0] sm:$0xff]
          %v5726 = vld [vmem:[#allocation17 + $0x9a8] sm:$0xff]
          %v5727 = vld [vmem:[#allocation17 + $0x9b0] sm:$0xff]
          %v5728 = vld [vmem:[#allocation17 + $0x9b8] sm:$0xff]
          %v5729 = vld [vmem:[#allocation17 + $0x9c0] sm:$0xff]
          %v5730 = vld [vmem:[#allocation17 + $0x9c8] sm:$0xff]
          %v5731 = vld [vmem:[#allocation17 + $0x9d0] sm:$0xff]
          %v5732 = vld [vmem:[#allocation17 + $0x9d8] sm:$0xff]
          %v5733 = vld [vmem:[#allocation17 + $0x9e0] sm:$0xff]
          %v5734 = vld [vmem:[#allocation17 + $0x9e8] sm:$0xff]
          %v5735 = vld [vmem:[#allocation17 + $0x9f0] sm:$0xff]
          %v5736 = vld [vmem:[#allocation17 + $0x9f8] sm:$0xff]
          %v5737 = vld [vmem:[#allocation17 + $0xa00] sm:$0xff]
          %v5738 = vld [vmem:[#allocation17 + $0xa08] sm:$0xff]
          %v5739 = vld [vmem:[#allocation17 + $0xa10] sm:$0xff]
          %v5740 = vld [vmem:[#allocation17 + $0xa18] sm:$0xff]
          %v5741 = vld [vmem:[#allocation17 + $0xa20] sm:$0xff]
          %v5742 = vld [vmem:[#allocation17 + $0xa28] sm:$0xff]
          %v5743 = vld [vmem:[#allocation17 + $0xa30] sm:$0xff]
          %v5744 = vld [vmem:[#allocation17 + $0xa38] sm:$0xff]
          %v5745 = vld [vmem:[#allocation17 + $0xa40] sm:$0xff]
          %v5746 = vld [vmem:[#allocation17 + $0xa48] sm:$0xff]
          %v5747 = vld [vmem:[#allocation17 + $0xa50] sm:$0xff]
          %v5748 = vld [vmem:[#allocation17 + $0xa58] sm:$0xff]
          %v5749 = vld [vmem:[#allocation17 + $0xa60] sm:$0xff]
          %v5750 = vld [vmem:[#allocation17 + $0xa68] sm:$0xff]
          %v5751 = vld [vmem:[#allocation17 + $0xa70] sm:$0xff]
          %v5752 = vld [vmem:[#allocation17 + $0xa78] sm:$0xff]
          %v5753 = vld [vmem:[#allocation17 + $0xa80] sm:$0xff]
          %v5754 = vld [vmem:[#allocation17 + $0xa88] sm:$0xff]
          %v5755 = vld [vmem:[#allocation17 + $0xa90] sm:$0xff]
          %v5756 = vld [vmem:[#allocation17 + $0xa98] sm:$0xff]
          %v5757 = vld [vmem:[#allocation17 + $0xaa0] sm:$0xff]
          %v5758 = vld [vmem:[#allocation17 + $0xaa8] sm:$0xff]
          %v5759 = vld [vmem:[#allocation17 + $0xab0] sm:$0xff]
          %v5760 = vld [vmem:[#allocation17 + $0xab8] sm:$0xff]
          %v5761 = vld [vmem:[#allocation17 + $0xac0] sm:$0xff]
          %v5762 = vld [vmem:[#allocation17 + $0xac8] sm:$0xff]
          %v5763 = vld [vmem:[#allocation17 + $0xad0] sm:$0xff]
          %v5764 = vld [vmem:[#allocation17 + $0xad8] sm:$0xff]
          %v5765 = vld [vmem:[#allocation17 + $0xae0] sm:$0xff]
          %v5766 = vld [vmem:[#allocation17 + $0xae8] sm:$0xff]
          %v5767 = vld [vmem:[#allocation17 + $0xaf0] sm:$0xff]
          %v5768 = vld [vmem:[#allocation17 + $0xaf8] sm:$0xff]
          %v5769 = vld [vmem:[#allocation17 + $0xb00] sm:$0xff]
          %v5770 = vld [vmem:[#allocation17 + $0xb08] sm:$0xff]
          %v5771 = vld [vmem:[#allocation17 + $0xb10] sm:$0xff]
          %v5772 = vld [vmem:[#allocation17 + $0xb18] sm:$0xff]
          %v5773 = vld [vmem:[#allocation17 + $0xb20] sm:$0xff]
          %v5774 = vld [vmem:[#allocation17 + $0xb28] sm:$0xff]
          %v5775 = vld [vmem:[#allocation17 + $0xb30] sm:$0xff]
          %v5776 = vld [vmem:[#allocation17 + $0xb38] sm:$0xff]
          %v5777 = vld [vmem:[#allocation17 + $0xb40] sm:$0xff]
          %v5778 = vld [vmem:[#allocation17 + $0xb48] sm:$0xff]
          %v5779 = vld [vmem:[#allocation17 + $0xb50] sm:$0xff]
          %v5780 = vld [vmem:[#allocation17 + $0xb58] sm:$0xff]
          %v5781 = vld [vmem:[#allocation17 + $0xb60] sm:$0xff]
          %v5782 = vld [vmem:[#allocation17 + $0xb68] sm:$0xff]
          %v5783 = vld [vmem:[#allocation17 + $0xb70] sm:$0xff]
          %v5784 = vld [vmem:[#allocation17 + $0xb78] sm:$0xff]
          %v5785 = vld [vmem:[#allocation17 + $0xb80] sm:$0xff]
          %v5786 = vld [vmem:[#allocation17 + $0xb88] sm:$0xff]
          %v5787 = vld [vmem:[#allocation17 + $0xb90] sm:$0xff]
          %v5788 = vld [vmem:[#allocation17 + $0xb98] sm:$0xff]
          %v5789 = vld [vmem:[#allocation17 + $0xba0] sm:$0xff]
          %v5790 = vld [vmem:[#allocation17 + $0xba8] sm:$0xff]
          %v5791 = vld [vmem:[#allocation17 + $0xbb0] sm:$0xff]
          %v5792 = vld [vmem:[#allocation17 + $0xbb8] sm:$0xff]
          %v5793 = vld [vmem:[#allocation17 + $0xbc0] sm:$0xff]
          %v5794 = vld [vmem:[#allocation17 + $0xbc8] sm:$0xff]
          %v5795 = vld [vmem:[#allocation17 + $0xbd0] sm:$0xff]
          %v5796 = vld [vmem:[#allocation17 + $0xbd8] sm:$0xff]
          %v5797 = vld [vmem:[#allocation17 + $0xbe0] sm:$0xff]
          %v5798 = vld [vmem:[#allocation17 + $0xbe8] sm:$0xff]
          %v5799 = vld [vmem:[#allocation17 + $0xbf0] sm:$0xff]
          %v5800 = vld [vmem:[#allocation17 + $0xbf8] sm:$0xff]
          %v5801 = vld [vmem:[#allocation17 + $0xc00] sm:$0xff]
          %v5802 = vld [vmem:[#allocation17 + $0xc08] sm:$0xff]
          %v5803 = vld [vmem:[#allocation17 + $0xc10] sm:$0xff]
          %v5804 = vld [vmem:[#allocation17 + $0xc18] sm:$0xff]
          %v5805 = vld [vmem:[#allocation17 + $0xc20] sm:$0xff]
          %v5806 = vld [vmem:[#allocation17 + $0xc28] sm:$0xff]
          %v5807 = vld [vmem:[#allocation17 + $0xc30] sm:$0xff]
          %v5808 = vld [vmem:[#allocation17 + $0xc38] sm:$0xff]
          %v5809 = vld [vmem:[#allocation17 + $0xc40] sm:$0xff]
          %v5810 = vld [vmem:[#allocation17 + $0xc48] sm:$0xff]
          %v5811 = vld [vmem:[#allocation17 + $0xc50] sm:$0xff]
          %v5812 = vld [vmem:[#allocation17 + $0xc58] sm:$0xff]
          %v5813 = vld [vmem:[#allocation17 + $0xc60] sm:$0xff]
          %v5814 = vld [vmem:[#allocation17 + $0xc68] sm:$0xff]
          %v5815 = vld [vmem:[#allocation17 + $0xc70] sm:$0xff]
          %v5816 = vld [vmem:[#allocation17 + $0xc78] sm:$0xff]
          %v5817 = vld [vmem:[#allocation17 + $0xc80] sm:$0xff]
          %v5818 = vld [vmem:[#allocation17 + $0xc88] sm:$0xff]
          %v5819 = vld [vmem:[#allocation17 + $0xc90] sm:$0xff]
          %v5820 = vld [vmem:[#allocation17 + $0xc98] sm:$0xff]
          %v5821 = vld [vmem:[#allocation17 + $0xca0] sm:$0xff]
          %v5822 = vld [vmem:[#allocation17 + $0xca8] sm:$0xff]
          %v5823 = vld [vmem:[#allocation17 + $0xcb0] sm:$0xff]
          %v5824 = vld [vmem:[#allocation17 + $0xcb8] sm:$0xff]
          %v5825 = vld [vmem:[#allocation17 + $0xcc0] sm:$0xff]
          %v5826 = vld [vmem:[#allocation17 + $0xcc8] sm:$0xff]
          %v5827 = vld [vmem:[#allocation17 + $0xcd0] sm:$0xff]
          %v5828 = vld [vmem:[#allocation17 + $0xcd8] sm:$0xff]
          %v5829 = vld [vmem:[#allocation17 + $0xce0] sm:$0xff]
          %v5830 = vld [vmem:[#allocation17 + $0xce8] sm:$0xff]
          %v5831 = vld [vmem:[#allocation17 + $0xcf0] sm:$0xff]
          %v5832 = vld [vmem:[#allocation17 + $0xcf8] sm:$0xff]
          %v5833 = vld [vmem:[#allocation17 + $0xd00] sm:$0xff]
          %v5834 = vld [vmem:[#allocation17 + $0xd08] sm:$0xff]
          %v5835 = vld [vmem:[#allocation17 + $0xd10] sm:$0xff]
          %v5836 = vld [vmem:[#allocation17 + $0xd18] sm:$0xff]
          %v5837 = vld [vmem:[#allocation17 + $0xd20] sm:$0xff]
          %v5838 = vld [vmem:[#allocation17 + $0xd28] sm:$0xff]
          %v5839 = vld [vmem:[#allocation17 + $0xd30] sm:$0xff]
          %v5840 = vld [vmem:[#allocation17 + $0xd38] sm:$0xff]
          %v5841 = vld [vmem:[#allocation17 + $0xd40] sm:$0xff]
          %v5842 = vld [vmem:[#allocation17 + $0xd48] sm:$0xff]
          %v5843 = vld [vmem:[#allocation17 + $0xd50] sm:$0xff]
          %v5844 = vld [vmem:[#allocation17 + $0xd58] sm:$0xff]
          %v5845 = vld [vmem:[#allocation17 + $0xd60] sm:$0xff]
          %v5846 = vld [vmem:[#allocation17 + $0xd68] sm:$0xff]
          %v5847 = vld [vmem:[#allocation17 + $0xd70] sm:$0xff]
          %v5848 = vld [vmem:[#allocation17 + $0xd78] sm:$0xff]
          %v5849 = vld [vmem:[#allocation17 + $0xd80] sm:$0xff]
          %v5850 = vld [vmem:[#allocation17 + $0xd88] sm:$0xff]
          %v5851 = vld [vmem:[#allocation17 + $0xd90] sm:$0xff]
          %v5852 = vld [vmem:[#allocation17 + $0xd98] sm:$0xff]
          %v5853 = vld [vmem:[#allocation17 + $0xda0] sm:$0xff]
          %v5854 = vld [vmem:[#allocation17 + $0xda8] sm:$0xff]
          %v5855 = vld [vmem:[#allocation17 + $0xdb0] sm:$0xff]
          %v5856 = vld [vmem:[#allocation17 + $0xdb8] sm:$0xff]
          %v5857 = vld [vmem:[#allocation17 + $0xdc0] sm:$0xff]
          %v5858 = vld [vmem:[#allocation17 + $0xdc8] sm:$0xff]
          %v5859 = vld [vmem:[#allocation17 + $0xdd0] sm:$0xff]
          %v5860 = vld [vmem:[#allocation17 + $0xdd8] sm:$0xff]
          %v5861 = vld [vmem:[#allocation17 + $0xde0] sm:$0xff]
          %v5862 = vld [vmem:[#allocation17 + $0xde8] sm:$0xff]
          %v5863 = vld [vmem:[#allocation17 + $0xdf0] sm:$0xff]
          %v5864 = vld [vmem:[#allocation17 + $0xdf8] sm:$0xff]
          %v5865 = vld [vmem:[#allocation17 + $0xe00] sm:$0xff]
          %v5866 = vld [vmem:[#allocation17 + $0xe08] sm:$0xff]
          %v5867 = vld [vmem:[#allocation17 + $0xe10] sm:$0xff]
          %v5868 = vld [vmem:[#allocation17 + $0xe18] sm:$0xff]
          %v5869 = vld [vmem:[#allocation17 + $0xe20] sm:$0xff]
          %v5870 = vld [vmem:[#allocation17 + $0xe28] sm:$0xff]
          %v5871 = vld [vmem:[#allocation17 + $0xe30] sm:$0xff]
          %v5872 = vld [vmem:[#allocation17 + $0xe38] sm:$0xff]
          %v5873 = vld [vmem:[#allocation17 + $0xe40] sm:$0xff]
          %v5874 = vld [vmem:[#allocation17 + $0xe48] sm:$0xff]
          %v5875 = vld [vmem:[#allocation17 + $0xe50] sm:$0xff]
          %v5876 = vld [vmem:[#allocation17 + $0xe58] sm:$0xff]
          %v5877 = vld [vmem:[#allocation17 + $0xe60] sm:$0xff]
          %v5878 = vld [vmem:[#allocation17 + $0xe68] sm:$0xff]
          %v5879 = vld [vmem:[#allocation17 + $0xe70] sm:$0xff]
          %v5880 = vld [vmem:[#allocation17 + $0xe78] sm:$0xff]
          %v5881 = vld [vmem:[#allocation17 + $0xe80] sm:$0xff]
          %v5882 = vld [vmem:[#allocation17 + $0xe88] sm:$0xff]
          %v5883 = vld [vmem:[#allocation17 + $0xe90] sm:$0xff]
          %v5884 = vld [vmem:[#allocation17 + $0xe98] sm:$0xff]
          %v5885 = vld [vmem:[#allocation17 + $0xea0] sm:$0xff]
          %v5886 = vld [vmem:[#allocation17 + $0xea8] sm:$0xff]
          %v5887 = vld [vmem:[#allocation17 + $0xeb0] sm:$0xff]
          %v5888 = vld [vmem:[#allocation17 + $0xeb8] sm:$0xff]
          %v5889 = vld [vmem:[#allocation17 + $0xec0] sm:$0xff]
          %v5890 = vld [vmem:[#allocation17 + $0xec8] sm:$0xff]
          %v5891 = vld [vmem:[#allocation17 + $0xed0] sm:$0xff]
          %v5892 = vld [vmem:[#allocation17 + $0xed8] sm:$0xff]
          %v5893 = vld [vmem:[#allocation17 + $0xee0] sm:$0xff]
          %v5894 = vld [vmem:[#allocation17 + $0xee8] sm:$0xff]
          %v5895 = vld [vmem:[#allocation17 + $0xef0] sm:$0xff]
          %v5896 = vld [vmem:[#allocation17 + $0xef8] sm:$0xff]
          %v5897 = vld [vmem:[#allocation17 + $0xf00] sm:$0xff]
          %v5898 = vld [vmem:[#allocation17 + $0xf08] sm:$0xff]
          %v5899 = vld [vmem:[#allocation17 + $0xf10] sm:$0xff]
          %v5900 = vld [vmem:[#allocation17 + $0xf18] sm:$0xff]
          %v5901 = vld [vmem:[#allocation17 + $0xf20] sm:$0xff]
          %v5902 = vld [vmem:[#allocation17 + $0xf28] sm:$0xff]
          %v5903 = vld [vmem:[#allocation17 + $0xf30] sm:$0xff]
          %v5904 = vld [vmem:[#allocation17 + $0xf38] sm:$0xff]
          %v5905 = vld [vmem:[#allocation17 + $0xf40] sm:$0xff]
          %v5906 = vld [vmem:[#allocation17 + $0xf48] sm:$0xff]
          %v5907 = vld [vmem:[#allocation17 + $0xf50] sm:$0xff]
          %v5908 = vld [vmem:[#allocation17 + $0xf58] sm:$0xff]
          %v5909 = vld [vmem:[#allocation17 + $0xf60] sm:$0xff]
          %v5910 = vld [vmem:[#allocation17 + $0xf68] sm:$0xff]
          %v5911 = vld [vmem:[#allocation17 + $0xf70] sm:$0xff]
          %v5912 = vld [vmem:[#allocation17 + $0xf78] sm:$0xff]
          %v5913 = vld [vmem:[#allocation17 + $0xf80] sm:$0xff]
          %v5914 = vld [vmem:[#allocation17 + $0xf88] sm:$0xff]
          %v5915 = vld [vmem:[#allocation17 + $0xf90] sm:$0xff]
          %v5916 = vld [vmem:[#allocation17 + $0xf98] sm:$0xff]
          %v5917 = vld [vmem:[#allocation17 + $0xfa0] sm:$0xff]
          %v5918 = vld [vmem:[#allocation17 + $0xfa8] sm:$0xff]
          %v5919 = vld [vmem:[#allocation17 + $0xfb0] sm:$0xff]
          %v5920 = vld [vmem:[#allocation17 + $0xfb8] sm:$0xff]
          %v5921 = vld [vmem:[#allocation17 + $0xfc0] sm:$0xff]
          %v5922 = vld [vmem:[#allocation17 + $0xfc8] sm:$0xff]
          %v5923 = vld [vmem:[#allocation17 + $0xfd0] sm:$0xff]
          %v5924 = vld [vmem:[#allocation17 + $0xfd8] sm:$0xff]
          %v5925 = vld [vmem:[#allocation17 + $0xfe0] sm:$0xff]
          %v5926 = vld [vmem:[#allocation17 + $0xfe8] sm:$0xff]
          %v5927 = vld [vmem:[#allocation17 + $0xff0] sm:$0xff]
          %v5928 = vld [vmem:[#allocation17 + $0xff8] sm:$0xff]
          %v5929 = vld [vmem:[#allocation17 + $0x1000] sm:$0xff]
          %v5930 = vld [vmem:[#allocation17 + $0x1008] sm:$0xff]
          %v5931 = vld [vmem:[#allocation17 + $0x1010] sm:$0xff]
          %v5932 = vld [vmem:[#allocation17 + $0x1018] sm:$0xff]
          %v5933 = vld [vmem:[#allocation17 + $0x1020] sm:$0xff]
          %v5934 = vld [vmem:[#allocation17 + $0x1028] sm:$0xff]
          %v5935 = vld [vmem:[#allocation17 + $0x1030] sm:$0xff]
          %v5936 = vld [vmem:[#allocation17 + $0x1038] sm:$0xff]
          %v5937 = vld [vmem:[#allocation17 + $0x1040] sm:$0xff]
          %v5938 = vld [vmem:[#allocation17 + $0x1048] sm:$0xff]
          %v5939 = vld [vmem:[#allocation17 + $0x1050] sm:$0xff]
          %v5940 = vld [vmem:[#allocation17 + $0x1058] sm:$0xff]
          %v5941 = vld [vmem:[#allocation17 + $0x1060] sm:$0xff]
          %v5942 = vld [vmem:[#allocation17 + $0x1068] sm:$0xff]
          %v5943 = vld [vmem:[#allocation17 + $0x1070] sm:$0xff]
          %v5944 = vld [vmem:[#allocation17 + $0x1078] sm:$0xff]
          %v5945 = vld [vmem:[#allocation17 + $0x1080] sm:$0xff]
          %v5946 = vld [vmem:[#allocation17 + $0x1088] sm:$0xff]
          %v5947 = vld [vmem:[#allocation17 + $0x1090] sm:$0xff]
          %v5948 = vld [vmem:[#allocation17 + $0x1098] sm:$0xff]
          %v5949 = vld [vmem:[#allocation17 + $0x10a0] sm:$0xff]
          %v5950 = vld [vmem:[#allocation17 + $0x10a8] sm:$0xff]
          %v5951 = vld [vmem:[#allocation17 + $0x10b0] sm:$0xff]
          %v5952 = vld [vmem:[#allocation17 + $0x10b8] sm:$0xff]
          %v5953 = vld [vmem:[#allocation17 + $0x10c0] sm:$0xff]
          %v5954 = vld [vmem:[#allocation17 + $0x10c8] sm:$0xff]
          %v5955 = vld [vmem:[#allocation17 + $0x10d0] sm:$0xff]
          %v5956 = vld [vmem:[#allocation17 + $0x10d8] sm:$0xff]
          %v5957 = vld [vmem:[#allocation17 + $0x10e0] sm:$0xff]
          %v5958 = vld [vmem:[#allocation17 + $0x10e8] sm:$0xff]
          %v5959 = vld [vmem:[#allocation17 + $0x10f0] sm:$0xff]
          %v5960 = vld [vmem:[#allocation17 + $0x10f8] sm:$0xff]
          %v5961 = vld [vmem:[#allocation17 + $0x1100] sm:$0xff]
          %v5962 = vld [vmem:[#allocation17 + $0x1108] sm:$0xff]
          %v5963 = vld [vmem:[#allocation17 + $0x1110] sm:$0xff]
          %v5964 = vld [vmem:[#allocation17 + $0x1118] sm:$0xff]
          %v5965 = vld [vmem:[#allocation17 + $0x1120] sm:$0xff]
          %v5966 = vld [vmem:[#allocation17 + $0x1128] sm:$0xff]
          %v5967 = vld [vmem:[#allocation17 + $0x1130] sm:$0xff]
          %v5968 = vld [vmem:[#allocation17 + $0x1138] sm:$0xff]
          %v5969 = vld [vmem:[#allocation17 + $0x1140] sm:$0xff]
          %v5970 = vld [vmem:[#allocation17 + $0x1148] sm:$0xff]
          %v5971 = vld [vmem:[#allocation17 + $0x1150] sm:$0xff]
          %v5972 = vld [vmem:[#allocation17 + $0x1158] sm:$0xff]
          %v5973 = vld [vmem:[#allocation17 + $0x1160] sm:$0xff]
          %v5974 = vld [vmem:[#allocation17 + $0x1168] sm:$0xff]
          %v5975 = vld [vmem:[#allocation17 + $0x1170] sm:$0xff]
          %v5976 = vld [vmem:[#allocation17 + $0x1178] sm:$0xff]
          %v5977 = vld [vmem:[#allocation17 + $0x1180] sm:$0xff]
          %v5978 = vld [vmem:[#allocation17 + $0x1188] sm:$0xff]
          %v5979 = vld [vmem:[#allocation17 + $0x1190] sm:$0xff]
          %v5980 = vld [vmem:[#allocation17 + $0x1198] sm:$0xff]
          %v5981 = vld [vmem:[#allocation17 + $0x11a0] sm:$0xff]
          %v5982 = vld [vmem:[#allocation17 + $0x11a8] sm:$0xff]
          %v5983 = vld [vmem:[#allocation17 + $0x11b0] sm:$0xff]
          %v5984 = vld [vmem:[#allocation17 + $0x11b8] sm:$0xff]
          %v5985 = vld [vmem:[#allocation17 + $0x11c0] sm:$0xff]
          %v5986 = vld [vmem:[#allocation17 + $0x11c8] sm:$0xff]
          %v5987 = vld [vmem:[#allocation17 + $0x11d0] sm:$0xff]
          %v5988 = vld [vmem:[#allocation17 + $0x11d8] sm:$0xff]
          %v5989 = vld [vmem:[#allocation17 + $0x11e0] sm:$0xff]
          %v5990 = vld [vmem:[#allocation17 + $0x11e8] sm:$0xff]
          %v5991 = vld [vmem:[#allocation17 + $0x11f0] sm:$0xff]
          %v5992 = vld [vmem:[#allocation17 + $0x11f8] sm:$0xff]
          %v5993 = vld [vmem:[#allocation17 + $0x1200] sm:$0xff]
          %v5994 = vld [vmem:[#allocation17 + $0x1208] sm:$0xff]
          %v5995 = vld [vmem:[#allocation17 + $0x1210] sm:$0xff]
          %v5996 = vld [vmem:[#allocation17 + $0x1218] sm:$0xff]
          %v5997 = vld [vmem:[#allocation17 + $0x1220] sm:$0xff]
          %v5998 = vld [vmem:[#allocation17 + $0x1228] sm:$0xff]
          %v5999 = vld [vmem:[#allocation17 + $0x1230] sm:$0xff]
          %v6000 = vld [vmem:[#allocation17 + $0x1238] sm:$0xff]
          %v6001 = vld [vmem:[#allocation17 + $0x1240] sm:$0xff]
          %v6002 = vld [vmem:[#allocation17 + $0x1248] sm:$0xff]
          %v6003 = vld [vmem:[#allocation17 + $0x1250] sm:$0xff]
          %v6004 = vld [vmem:[#allocation17 + $0x1258] sm:$0xff]
          %v6005 = vld [vmem:[#allocation17 + $0x1260] sm:$0xff]
          %v6006 = vld [vmem:[#allocation17 + $0x1268] sm:$0xff]
          %v6007 = vld [vmem:[#allocation17 + $0x1270] sm:$0xff]
          %v6008 = vld [vmem:[#allocation17 + $0x1278] sm:$0xff]
          %v6009 = vld [vmem:[#allocation17 + $0x1280] sm:$0xff]
          %v6010 = vld [vmem:[#allocation17 + $0x1288] sm:$0xff]
          %v6011 = vld [vmem:[#allocation17 + $0x1290] sm:$0xff]
          %v6012 = vld [vmem:[#allocation17 + $0x1298] sm:$0xff]
          %v6013 = vld [vmem:[#allocation17 + $0x12a0] sm:$0xff]
          %v6014 = vld [vmem:[#allocation17 + $0x12a8] sm:$0xff]
          %v6015 = vld [vmem:[#allocation17 + $0x12b0] sm:$0xff]
          %v6016 = vld [vmem:[#allocation17 + $0x12b8] sm:$0xff]
          %v6017 = vld [vmem:[#allocation17 + $0x12c0] sm:$0xff]
          %v6018 = vld [vmem:[#allocation17 + $0x12c8] sm:$0xff]
          %v6019 = vld [vmem:[#allocation17 + $0x12d0] sm:$0xff]
          %v6020 = vld [vmem:[#allocation17 + $0x12d8] sm:$0xff]
          %v6021 = vld [vmem:[#allocation17 + $0x12e0] sm:$0xff]
          %v6022 = vld [vmem:[#allocation17 + $0x12e8] sm:$0xff]
          %v6023 = vld [vmem:[#allocation17 + $0x12f0] sm:$0xff]
          %v6024 = vld [vmem:[#allocation17 + $0x12f8] sm:$0xff]
          %v6025 = vld [vmem:[#allocation17 + $0x1300] sm:$0xff]
          %v6026 = vld [vmem:[#allocation17 + $0x1308] sm:$0xff]
          %v6027 = vld [vmem:[#allocation17 + $0x1310] sm:$0xff]
          %v6028 = vld [vmem:[#allocation17 + $0x1318] sm:$0xff]
          %v6029 = vld [vmem:[#allocation17 + $0x1320] sm:$0xff]
          %v6030 = vld [vmem:[#allocation17 + $0x1328] sm:$0xff]
          %v6031 = vld [vmem:[#allocation17 + $0x1330] sm:$0xff]
          %v6032 = vld [vmem:[#allocation17 + $0x1338] sm:$0xff]
          %v6033 = vld [vmem:[#allocation17 + $0x1340] sm:$0xff]
          %v6034 = vld [vmem:[#allocation17 + $0x1348] sm:$0xff]
          %v6035 = vld [vmem:[#allocation17 + $0x1350] sm:$0xff]
          %v6036 = vld [vmem:[#allocation17 + $0x1358] sm:$0xff]
          %v6037 = vld [vmem:[#allocation17 + $0x1360] sm:$0xff]
          %v6038 = vld [vmem:[#allocation17 + $0x1368] sm:$0xff]
          %v6039 = vld [vmem:[#allocation17 + $0x1370] sm:$0xff]
          %v6040 = vld [vmem:[#allocation17 + $0x1378] sm:$0xff]
          %v6041 = vld [vmem:[#allocation17 + $0x1380] sm:$0xff]
          %v6042 = vld [vmem:[#allocation17 + $0x1388] sm:$0xff]
          %v6043 = vld [vmem:[#allocation17 + $0x1390] sm:$0xff]
          %v6044 = vld [vmem:[#allocation17 + $0x1398] sm:$0xff]
          %v6045 = vld [vmem:[#allocation17 + $0x13a0] sm:$0xff]
          %v6046 = vld [vmem:[#allocation17 + $0x13a8] sm:$0xff]
          %v6047 = vld [vmem:[#allocation17 + $0x13b0] sm:$0xff]
          %v6048 = vld [vmem:[#allocation17 + $0x13b8] sm:$0xff]
          %v6049 = vld [vmem:[#allocation17 + $0x13c0] sm:$0xff]
          %v6050 = vld [vmem:[#allocation17 + $0x13c8] sm:$0xff]
          %v6051 = vld [vmem:[#allocation17 + $0x13d0] sm:$0xff]
          %v6052 = vld [vmem:[#allocation17 + $0x13d8] sm:$0xff]
          %v6053 = vld [vmem:[#allocation17 + $0x13e0] sm:$0xff]
          %v6054 = vld [vmem:[#allocation17 + $0x13e8] sm:$0xff]
          %v6055 = vld [vmem:[#allocation17 + $0x13f0] sm:$0xff]
          %v6056 = vld [vmem:[#allocation17 + $0x13f8] sm:$0xff]
          %v6057 = vld [vmem:[#allocation17 + $0x1400] sm:$0xff]
          %v6058 = vld [vmem:[#allocation17 + $0x1408] sm:$0xff]
          %v6059 = vld [vmem:[#allocation17 + $0x1410] sm:$0xff]
          %v6060 = vld [vmem:[#allocation17 + $0x1418] sm:$0xff]
          %v6061 = vld [vmem:[#allocation17 + $0x1420] sm:$0xff]
          %v6062 = vld [vmem:[#allocation17 + $0x1428] sm:$0xff]
          %v6063 = vld [vmem:[#allocation17 + $0x1430] sm:$0xff]
          %v6064 = vld [vmem:[#allocation17 + $0x1438] sm:$0xff]
          %v6065 = vld [vmem:[#allocation17 + $0x1440] sm:$0xff]
          %v6066 = vld [vmem:[#allocation17 + $0x1448] sm:$0xff]
          %v6067 = vld [vmem:[#allocation17 + $0x1450] sm:$0xff]
          %v6068 = vld [vmem:[#allocation17 + $0x1458] sm:$0xff]
          %v6069 = vld [vmem:[#allocation17 + $0x1460] sm:$0xff]
          %v6070 = vld [vmem:[#allocation17 + $0x1468] sm:$0xff]
          %v6071 = vld [vmem:[#allocation17 + $0x1470] sm:$0xff]
          %v6072 = vld [vmem:[#allocation17 + $0x1478] sm:$0xff]
          %v6073 = vld [vmem:[#allocation17 + $0x1480] sm:$0xff]
          %v6074 = vld [vmem:[#allocation17 + $0x1488] sm:$0xff]
          %v6075 = vld [vmem:[#allocation17 + $0x1490] sm:$0xff]
          %v6076 = vld [vmem:[#allocation17 + $0x1498] sm:$0xff]
          %v6077 = vld [vmem:[#allocation17 + $0x14a0] sm:$0xff]
          %v6078 = vld [vmem:[#allocation17 + $0x14a8] sm:$0xff]
          %v6079 = vld [vmem:[#allocation17 + $0x14b0] sm:$0xff]
          %v6080 = vld [vmem:[#allocation17 + $0x14b8] sm:$0xff]
          %v6081 = vld [vmem:[#allocation17 + $0x14c0] sm:$0xff]
          %v6082 = vld [vmem:[#allocation17 + $0x14c8] sm:$0xff]
          %v6083 = vld [vmem:[#allocation17 + $0x14d0] sm:$0xff]
          %v6084 = vld [vmem:[#allocation17 + $0x14d8] sm:$0xff]
          %v6085 = vld [vmem:[#allocation17 + $0x14e0] sm:$0xff]
          %v6086 = vld [vmem:[#allocation17 + $0x14e8] sm:$0xff]
          %v6087 = vld [vmem:[#allocation17 + $0x14f0] sm:$0xff]
          %v6088 = vld [vmem:[#allocation17 + $0x14f8] sm:$0xff]
          %v6089 = vld [vmem:[#allocation17 + $0x1500] sm:$0xff]
          %v6090 = vld [vmem:[#allocation17 + $0x1508] sm:$0xff]
          %v6091 = vld [vmem:[#allocation17 + $0x1510] sm:$0xff]
          %v6092 = vld [vmem:[#allocation17 + $0x1518] sm:$0xff]
          %v6093 = vld [vmem:[#allocation17 + $0x1520] sm:$0xff]
          %v6094 = vld [vmem:[#allocation17 + $0x1528] sm:$0xff]
          %v6095 = vld [vmem:[#allocation17 + $0x1530] sm:$0xff]
          %v6096 = vld [vmem:[#allocation17 + $0x1538] sm:$0xff]
          %v6097 = vld [vmem:[#allocation17 + $0x1540] sm:$0xff]
          %v6098 = vld [vmem:[#allocation17 + $0x1548] sm:$0xff]
          %v6099 = vld [vmem:[#allocation17 + $0x1550] sm:$0xff]
          %v6100 = vld [vmem:[#allocation17 + $0x1558] sm:$0xff]
          %v6101 = vld [vmem:[#allocation17 + $0x1560] sm:$0xff]
          %v6102 = vld [vmem:[#allocation17 + $0x1568] sm:$0xff]
          %v6103 = vld [vmem:[#allocation17 + $0x1570] sm:$0xff]
          %v6104 = vld [vmem:[#allocation17 + $0x1578] sm:$0xff]
          %v6105 = vld [vmem:[#allocation17 + $0x1580] sm:$0xff]
          %v6106 = vld [vmem:[#allocation17 + $0x1588] sm:$0xff]
          %v6107 = vld [vmem:[#allocation17 + $0x1590] sm:$0xff]
          %v6108 = vld [vmem:[#allocation17 + $0x1598] sm:$0xff]
          %v6109 = vld [vmem:[#allocation17 + $0x15a0] sm:$0xff]
          %v6110 = vld [vmem:[#allocation17 + $0x15a8] sm:$0xff]
          %v6111 = vld [vmem:[#allocation17 + $0x15b0] sm:$0xff]
          %v6112 = vld [vmem:[#allocation17 + $0x15b8] sm:$0xff]
          %v6113 = vld [vmem:[#allocation17 + $0x15c0] sm:$0xff]
          %v6114 = vld [vmem:[#allocation17 + $0x15c8] sm:$0xff]
          %v6115 = vld [vmem:[#allocation17 + $0x15d0] sm:$0xff]
          %v6116 = vld [vmem:[#allocation17 + $0x15d8] sm:$0xff]
          %v6117 = vld [vmem:[#allocation17 + $0x15e0] sm:$0xff]
          %v6118 = vld [vmem:[#allocation17 + $0x15e8] sm:$0xff]
          %v6119 = vld [vmem:[#allocation17 + $0x15f0] sm:$0xff]
          %v6120 = vld [vmem:[#allocation17 + $0x15f8] sm:$0xff]
          %v6121 = vld [vmem:[#allocation17 + $0x1600] sm:$0xff]
          %v6122 = vld [vmem:[#allocation17 + $0x1608] sm:$0xff]
          %v6123 = vld [vmem:[#allocation17 + $0x1610] sm:$0xff]
          %v6124 = vld [vmem:[#allocation17 + $0x1618] sm:$0xff]
          %v6125 = vld [vmem:[#allocation17 + $0x1620] sm:$0xff]
          %v6126 = vld [vmem:[#allocation17 + $0x1628] sm:$0xff]
          %v6127 = vld [vmem:[#allocation17 + $0x1630] sm:$0xff]
          %v6128 = vld [vmem:[#allocation17 + $0x1638] sm:$0xff]
          %v6129 = vld [vmem:[#allocation17 + $0x1640] sm:$0xff]
          %v6130 = vld [vmem:[#allocation17 + $0x1648] sm:$0xff]
          %v6131 = vld [vmem:[#allocation17 + $0x1650] sm:$0xff]
          %v6132 = vld [vmem:[#allocation17 + $0x1658] sm:$0xff]
          %v6133 = vld [vmem:[#allocation17 + $0x1660] sm:$0xff]
          %v6134 = vld [vmem:[#allocation17 + $0x1668] sm:$0xff]
          %v6135 = vld [vmem:[#allocation17 + $0x1670] sm:$0xff]
          %v6136 = vld [vmem:[#allocation17 + $0x1678] sm:$0xff]
          %v6137 = vld [vmem:[#allocation17 + $0x1680] sm:$0xff]
          %v6138 = vld [vmem:[#allocation17 + $0x1688] sm:$0xff]
          %v6139 = vld [vmem:[#allocation17 + $0x1690] sm:$0xff]
          %v6140 = vld [vmem:[#allocation17 + $0x1698] sm:$0xff]
          %v6141 = vld [vmem:[#allocation17 + $0x16a0] sm:$0xff]
          %v6142 = vld [vmem:[#allocation17 + $0x16a8] sm:$0xff]
          %v6143 = vld [vmem:[#allocation17 + $0x16b0] sm:$0xff]
          %v6144 = vld [vmem:[#allocation17 + $0x16b8] sm:$0xff]
          %v6145 = vld [vmem:[#allocation17 + $0x16c0] sm:$0xff]
          %v6146 = vld [vmem:[#allocation17 + $0x16c8] sm:$0xff]
          %v6147 = vld [vmem:[#allocation17 + $0x16d0] sm:$0xff]
          %v6148 = vld [vmem:[#allocation17 + $0x16d8] sm:$0xff]
          %v6149 = vld [vmem:[#allocation17 + $0x16e0] sm:$0xff]
          %v6150 = vld [vmem:[#allocation17 + $0x16e8] sm:$0xff]
          %v6151 = vld [vmem:[#allocation17 + $0x16f0] sm:$0xff]
          %v6152 = vld [vmem:[#allocation17 + $0x16f8] sm:$0xff]
          %v6153 = vld [vmem:[#allocation17 + $0x1700] sm:$0xff]
          %v6154 = vld [vmem:[#allocation17 + $0x1708] sm:$0xff]
          %v6155 = vld [vmem:[#allocation17 + $0x1710] sm:$0xff]
          %v6156 = vld [vmem:[#allocation17 + $0x1718] sm:$0xff]
          %v6157 = vld [vmem:[#allocation17 + $0x1720] sm:$0xff]
          %v6158 = vld [vmem:[#allocation17 + $0x1728] sm:$0xff]
          %v6159 = vld [vmem:[#allocation17 + $0x1730] sm:$0xff]
          %v6160 = vld [vmem:[#allocation17 + $0x1738] sm:$0xff]
          %v6161 = vld [vmem:[#allocation17 + $0x1740] sm:$0xff]
          %v6162 = vld [vmem:[#allocation17 + $0x1748] sm:$0xff]
          %v6163 = vld [vmem:[#allocation17 + $0x1750] sm:$0xff]
          %v6164 = vld [vmem:[#allocation17 + $0x1758] sm:$0xff]
          %v6165 = vld [vmem:[#allocation17 + $0x1760] sm:$0xff]
          %v6166 = vld [vmem:[#allocation17 + $0x1768] sm:$0xff]
          %v6167 = vld [vmem:[#allocation17 + $0x1770] sm:$0xff]
          %v6168 = vld [vmem:[#allocation17 + $0x1778] sm:$0xff]
          %v6169 = vld [vmem:[#allocation17 + $0x1780] sm:$0xff]
          %v6170 = vld [vmem:[#allocation17 + $0x1788] sm:$0xff]
          %v6171 = vld [vmem:[#allocation17 + $0x1790] sm:$0xff]
          %v6172 = vld [vmem:[#allocation17 + $0x1798] sm:$0xff]
          %v6173 = vld [vmem:[#allocation17 + $0x17a0] sm:$0xff]
          %v6174 = vld [vmem:[#allocation17 + $0x17a8] sm:$0xff]
          %v6175 = vld [vmem:[#allocation17 + $0x17b0] sm:$0xff]
          %v6176 = vld [vmem:[#allocation17 + $0x17b8] sm:$0xff]
          %v6177 = vld [vmem:[#allocation17 + $0x17c0] sm:$0xff]
          %v6178 = vld [vmem:[#allocation17 + $0x17c8] sm:$0xff]
          %v6179 = vld [vmem:[#allocation17 + $0x17d0] sm:$0xff]
          %v6180 = vld [vmem:[#allocation17 + $0x17d8] sm:$0xff]
          %v6181 = vld [vmem:[#allocation17 + $0x17e0] sm:$0xff]
          %v6182 = vld [vmem:[#allocation17 + $0x17e8] sm:$0xff]
          %v6183 = vld [vmem:[#allocation17 + $0x17f0] sm:$0xff]
          %v6184 = vld [vmem:[#allocation17 + $0x17f8] sm:$0xff]
          %v6185 = vld [vmem:[#allocation17 + $0x1800] sm:$0xff]
          %v6186 = vld [vmem:[#allocation17 + $0x1808] sm:$0xff]
          %v6187 = vld [vmem:[#allocation17 + $0x1810] sm:$0xff]
          %v6188 = vld [vmem:[#allocation17 + $0x1818] sm:$0xff]
          %v6189 = vld [vmem:[#allocation17 + $0x1820] sm:$0xff]
          %v6190 = vld [vmem:[#allocation17 + $0x1828] sm:$0xff]
          %v6191 = vld [vmem:[#allocation17 + $0x1830] sm:$0xff]
          %v6192 = vld [vmem:[#allocation17 + $0x1838] sm:$0xff]
          %v6193 = vld [vmem:[#allocation17 + $0x1840] sm:$0xff]
          %v6194 = vld [vmem:[#allocation17 + $0x1848] sm:$0xff]
          %v6195 = vld [vmem:[#allocation17 + $0x1850] sm:$0xff]
          %v6196 = vld [vmem:[#allocation17 + $0x1858] sm:$0xff]
          %v6197 = vld [vmem:[#allocation17 + $0x1860] sm:$0xff]
          %v6198 = vld [vmem:[#allocation17 + $0x1868] sm:$0xff]
          %v6199 = vld [vmem:[#allocation17 + $0x1870] sm:$0xff]
          %v6200 = vld [vmem:[#allocation17 + $0x1878] sm:$0xff]
          %v6201 = vld [vmem:[#allocation17 + $0x1880] sm:$0xff]
          %v6202 = vld [vmem:[#allocation17 + $0x1888] sm:$0xff]
          %v6203 = vld [vmem:[#allocation17 + $0x1890] sm:$0xff]
          %v6204 = vld [vmem:[#allocation17 + $0x1898] sm:$0xff]
          %v6205 = vld [vmem:[#allocation17 + $0x18a0] sm:$0xff]
          %v6206 = vld [vmem:[#allocation17 + $0x18a8] sm:$0xff]
          %v6207 = vld [vmem:[#allocation17 + $0x18b0] sm:$0xff]
          %v6208 = vld [vmem:[#allocation17 + $0x18b8] sm:$0xff]
          %v6209 = vld [vmem:[#allocation17 + $0x18c0] sm:$0xff]
          %v6210 = vld [vmem:[#allocation17 + $0x18c8] sm:$0xff]
          %v6211 = vld [vmem:[#allocation17 + $0x18d0] sm:$0xff]
          %v6212 = vld [vmem:[#allocation17 + $0x18d8] sm:$0xff]
          %v6213 = vld [vmem:[#allocation17 + $0x18e0] sm:$0xff]
          %v6214 = vld [vmem:[#allocation17 + $0x18e8] sm:$0xff]
          %v6215 = vld [vmem:[#allocation17 + $0x18f0] sm:$0xff]
          %v6216 = vld [vmem:[#allocation17 + $0x18f8] sm:$0xff]
          %v6217 = vld [vmem:[#allocation17 + $0x1900] sm:$0xff]
          %v6218 = vld [vmem:[#allocation17 + $0x1908] sm:$0xff]
          %v6219 = vld [vmem:[#allocation17 + $0x1910] sm:$0xff]
          %v6220 = vld [vmem:[#allocation17 + $0x1918] sm:$0xff]
          %v6221 = vld [vmem:[#allocation17 + $0x1920] sm:$0xff]
          %v6222 = vld [vmem:[#allocation17 + $0x1928] sm:$0xff]
          %v6223 = vld [vmem:[#allocation17 + $0x1930] sm:$0xff]
          %v6224 = vld [vmem:[#allocation17 + $0x1938] sm:$0xff]
          %v6225 = vld [vmem:[#allocation17 + $0x1940] sm:$0xff]
          %v6226 = vld [vmem:[#allocation17 + $0x1948] sm:$0xff]
          %v6227 = vld [vmem:[#allocation17 + $0x1950] sm:$0xff]
          %v6228 = vld [vmem:[#allocation17 + $0x1958] sm:$0xff]
          %v6229 = vld [vmem:[#allocation17 + $0x1960] sm:$0xff]
          %v6230 = vld [vmem:[#allocation17 + $0x1968] sm:$0xff]
          %v6231 = vld [vmem:[#allocation17 + $0x1970] sm:$0xff]
          %v6232 = vld [vmem:[#allocation17 + $0x1978] sm:$0xff]
          %v6233 = vld [vmem:[#allocation17 + $0x1980] sm:$0xff]
          %v6234 = vld [vmem:[#allocation17 + $0x1988] sm:$0xff]
          %v6235 = vld [vmem:[#allocation17 + $0x1990] sm:$0xff]
          %v6236 = vld [vmem:[#allocation17 + $0x1998] sm:$0xff]
          %v6237 = vld [vmem:[#allocation17 + $0x19a0] sm:$0xff]
          %v6238 = vld [vmem:[#allocation17 + $0x19a8] sm:$0xff]
          %v6239 = vld [vmem:[#allocation17 + $0x19b0] sm:$0xff]
          %v6240 = vld [vmem:[#allocation17 + $0x19b8] sm:$0xff]
          %v6241 = vld [vmem:[#allocation17 + $0x19c0] sm:$0xff]
          %v6242 = vld [vmem:[#allocation17 + $0x19c8] sm:$0xff]
          %v6243 = vld [vmem:[#allocation17 + $0x19d0] sm:$0xff]
          %v6244 = vld [vmem:[#allocation17 + $0x19d8] sm:$0xff]
          %v6245 = vld [vmem:[#allocation17 + $0x19e0] sm:$0xff]
          %v6246 = vld [vmem:[#allocation17 + $0x19e8] sm:$0xff]
          %v6247 = vld [vmem:[#allocation17 + $0x19f0] sm:$0xff]
          %v6248 = vld [vmem:[#allocation17 + $0x19f8] sm:$0xff]
          %v6249 = vld [vmem:[#allocation17 + $0x1a00] sm:$0xff]
          %v6250 = vld [vmem:[#allocation17 + $0x1a08] sm:$0xff]
          %v6251 = vld [vmem:[#allocation17 + $0x1a10] sm:$0xff]
          %v6252 = vld [vmem:[#allocation17 + $0x1a18] sm:$0xff]
          %v6253 = vld [vmem:[#allocation17 + $0x1a20] sm:$0xff]
          %v6254 = vld [vmem:[#allocation17 + $0x1a28] sm:$0xff]
          %v6255 = vld [vmem:[#allocation17 + $0x1a30] sm:$0xff]
          %v6256 = vld [vmem:[#allocation17 + $0x1a38] sm:$0xff]
          %v6257 = vld [vmem:[#allocation17 + $0x1a40] sm:$0xff]
          %v6258 = vld [vmem:[#allocation17 + $0x1a48] sm:$0xff]
          %v6259 = vld [vmem:[#allocation17 + $0x1a50] sm:$0xff]
          %v6260 = vld [vmem:[#allocation17 + $0x1a58] sm:$0xff]
          %v6261 = vld [vmem:[#allocation17 + $0x1a60] sm:$0xff]
          %v6262 = vld [vmem:[#allocation17 + $0x1a68] sm:$0xff]
          %v6263 = vld [vmem:[#allocation17 + $0x1a70] sm:$0xff]
          %v6264 = vld [vmem:[#allocation17 + $0x1a78] sm:$0xff]
          %v6265 = vld [vmem:[#allocation17 + $0x1a80] sm:$0xff]
          %v6266 = vld [vmem:[#allocation17 + $0x1a88] sm:$0xff]
          %v6267 = vld [vmem:[#allocation17 + $0x1a90] sm:$0xff]
          %v6268 = vld [vmem:[#allocation17 + $0x1a98] sm:$0xff]
          %v6269 = vld [vmem:[#allocation17 + $0x1aa0] sm:$0xff]
          %v6270 = vld [vmem:[#allocation17 + $0x1aa8] sm:$0xff]
          %v6271 = vld [vmem:[#allocation17 + $0x1ab0] sm:$0xff]
          %v6272 = vld [vmem:[#allocation17 + $0x1ab8] sm:$0xff]
          %v6273 = vld [vmem:[#allocation17 + $0x1ac0] sm:$0xff]
          %v6274 = vld [vmem:[#allocation17 + $0x1ac8] sm:$0xff]
          %v6275 = vld [vmem:[#allocation17 + $0x1ad0] sm:$0xff]
          %v6276 = vld [vmem:[#allocation17 + $0x1ad8] sm:$0xff]
          %v6277 = vld [vmem:[#allocation17 + $0x1ae0] sm:$0xff]
          %v6278 = vld [vmem:[#allocation17 + $0x1ae8] sm:$0xff]
          %v6279 = vld [vmem:[#allocation17 + $0x1af0] sm:$0xff]
          %v6280 = vld [vmem:[#allocation17 + $0x1af8] sm:$0xff]
          %v6281 = vld [vmem:[#allocation17 + $0x1b00] sm:$0xff]
          %v6282 = vld [vmem:[#allocation17 + $0x1b08] sm:$0xff]
          %v6283 = vld [vmem:[#allocation17 + $0x1b10] sm:$0xff]
          %v6284 = vld [vmem:[#allocation17 + $0x1b18] sm:$0xff]
          %v6285 = vld [vmem:[#allocation17 + $0x1b20] sm:$0xff]
          %v6286 = vld [vmem:[#allocation17 + $0x1b28] sm:$0xff]
          %v6287 = vld [vmem:[#allocation17 + $0x1b30] sm:$0xff]
          %v6288 = vld [vmem:[#allocation17 + $0x1b38] sm:$0xff]
          %v6289 = vld [vmem:[#allocation17 + $0x1b40] sm:$0xff]
          %v6290 = vld [vmem:[#allocation17 + $0x1b48] sm:$0xff]
          %v6291 = vld [vmem:[#allocation17 + $0x1b50] sm:$0xff]
          %v6292 = vld [vmem:[#allocation17 + $0x1b58] sm:$0xff]
          %v6293 = vld [vmem:[#allocation17 + $0x1b60] sm:$0xff]
          %v6294 = vld [vmem:[#allocation17 + $0x1b68] sm:$0xff]
          %v6295 = vld [vmem:[#allocation17 + $0x1b70] sm:$0xff]
          %v6296 = vld [vmem:[#allocation17 + $0x1b78] sm:$0xff]
          %v6297 = vld [vmem:[#allocation17 + $0x1b80] sm:$0xff]
          %v6298 = vld [vmem:[#allocation17 + $0x1b88] sm:$0xff]
          %v6299 = vld [vmem:[#allocation17 + $0x1b90] sm:$0xff]
          %v6300 = vld [vmem:[#allocation17 + $0x1b98] sm:$0xff]
          %v6301 = vld [vmem:[#allocation17 + $0x1ba0] sm:$0xff]
          %v6302 = vld [vmem:[#allocation17 + $0x1ba8] sm:$0xff]
          %v6303 = vld [vmem:[#allocation17 + $0x1bb0] sm:$0xff]
          %v6304 = vld [vmem:[#allocation17 + $0x1bb8] sm:$0xff]
          %v6305 = vld [vmem:[#allocation17 + $0x1bc0] sm:$0xff]
          %v6306 = vld [vmem:[#allocation17 + $0x1bc8] sm:$0xff]
          %v6307 = vld [vmem:[#allocation17 + $0x1bd0] sm:$0xff]
          %v6308 = vld [vmem:[#allocation17 + $0x1bd8] sm:$0xff]
          %v6309 = vld [vmem:[#allocation17 + $0x1be0] sm:$0xff]
          %v6310 = vld [vmem:[#allocation17 + $0x1be8] sm:$0xff]
          %v6311 = vld [vmem:[#allocation17 + $0x1bf0] sm:$0xff]
          %v6312 = vld [vmem:[#allocation17 + $0x1bf8] sm:$0xff]
          %v6313 = vld [vmem:[#allocation17 + $0x1c00] sm:$0xff]
          %v6314 = vld [vmem:[#allocation17 + $0x1c08] sm:$0xff]
          %v6315 = vld [vmem:[#allocation17 + $0x1c10] sm:$0xff]
          %v6316 = vld [vmem:[#allocation17 + $0x1c18] sm:$0xff]
          %v6317 = vld [vmem:[#allocation17 + $0x1c20] sm:$0xff]
          %v6318 = vld [vmem:[#allocation17 + $0x1c28] sm:$0xff]
          %v6319 = vld [vmem:[#allocation17 + $0x1c30] sm:$0xff]
          %v6320 = vld [vmem:[#allocation17 + $0x1c38] sm:$0xff]
          %v6321 = vld [vmem:[#allocation17 + $0x1c40] sm:$0xff]
          %v6322 = vld [vmem:[#allocation17 + $0x1c48] sm:$0xff]
          %v6323 = vld [vmem:[#allocation17 + $0x1c50] sm:$0xff]
          %v6324 = vld [vmem:[#allocation17 + $0x1c58] sm:$0xff]
          %v6325 = vld [vmem:[#allocation17 + $0x1c60] sm:$0xff]
          %v6326 = vld [vmem:[#allocation17 + $0x1c68] sm:$0xff]
          %v6327 = vld [vmem:[#allocation17 + $0x1c70] sm:$0xff]
          %v6328 = vld [vmem:[#allocation17 + $0x1c78] sm:$0xff]
          %v6329 = vld [vmem:[#allocation17 + $0x1c80] sm:$0xff]
          %v6330 = vld [vmem:[#allocation17 + $0x1c88] sm:$0xff]
          %v6331 = vld [vmem:[#allocation17 + $0x1c90] sm:$0xff]
          %v6332 = vld [vmem:[#allocation17 + $0x1c98] sm:$0xff]
          %v6333 = vld [vmem:[#allocation17 + $0x1ca0] sm:$0xff]
          %v6334 = vld [vmem:[#allocation17 + $0x1ca8] sm:$0xff]
          %v6335 = vld [vmem:[#allocation17 + $0x1cb0] sm:$0xff]
          %v6336 = vld [vmem:[#allocation17 + $0x1cb8] sm:$0xff]
          %v6337 = vld [vmem:[#allocation17 + $0x1cc0] sm:$0xff]
          %v6338 = vld [vmem:[#allocation17 + $0x1cc8] sm:$0xff]
          %v6339 = vld [vmem:[#allocation17 + $0x1cd0] sm:$0xff]
          %v6340 = vld [vmem:[#allocation17 + $0x1cd8] sm:$0xff]
          %v6341 = vld [vmem:[#allocation17 + $0x1ce0] sm:$0xff]
          %v6342 = vld [vmem:[#allocation17 + $0x1ce8] sm:$0xff]
          %v6343 = vld [vmem:[#allocation17 + $0x1cf0] sm:$0xff]
          %v6344 = vld [vmem:[#allocation17 + $0x1cf8] sm:$0xff]
          %v6345 = vld [vmem:[#allocation17 + $0x1d00] sm:$0xff]
          %v6346 = vld [vmem:[#allocation17 + $0x1d08] sm:$0xff]
          %v6347 = vld [vmem:[#allocation17 + $0x1d10] sm:$0xff]
          %v6348 = vld [vmem:[#allocation17 + $0x1d18] sm:$0xff]
          %v6349 = vld [vmem:[#allocation17 + $0x1d20] sm:$0xff]
          %v6350 = vld [vmem:[#allocation17 + $0x1d28] sm:$0xff]
          %v6351 = vld [vmem:[#allocation17 + $0x1d30] sm:$0xff]
          %v6352 = vld [vmem:[#allocation17 + $0x1d38] sm:$0xff]
          %v6353 = vld [vmem:[#allocation17 + $0x1d40] sm:$0xff]
          %v6354 = vld [vmem:[#allocation17 + $0x1d48] sm:$0xff]
          %v6355 = vld [vmem:[#allocation17 + $0x1d50] sm:$0xff]
          %v6356 = vld [vmem:[#allocation17 + $0x1d58] sm:$0xff]
          %v6357 = vld [vmem:[#allocation17 + $0x1d60] sm:$0xff]
          %v6358 = vld [vmem:[#allocation17 + $0x1d68] sm:$0xff]
          %v6359 = vld [vmem:[#allocation17 + $0x1d70] sm:$0xff]
          %v6360 = vld [vmem:[#allocation17 + $0x1d78] sm:$0xff]
          %v6361 = vld [vmem:[#allocation17 + $0x1d80] sm:$0xff]
          %v6362 = vld [vmem:[#allocation17 + $0x1d88] sm:$0xff]
          %v6363 = vld [vmem:[#allocation17 + $0x1d90] sm:$0xff]
          %v6364 = vld [vmem:[#allocation17 + $0x1d98] sm:$0xff]
          %v6365 = vld [vmem:[#allocation17 + $0x1da0] sm:$0xff]
          %v6366 = vld [vmem:[#allocation17 + $0x1da8] sm:$0xff]
          %v6367 = vld [vmem:[#allocation17 + $0x1db0] sm:$0xff]
          %v6368 = vld [vmem:[#allocation17 + $0x1db8] sm:$0xff]
          %v6369 = vld [vmem:[#allocation17 + $0x1dc0] sm:$0xff]
          %v6370 = vld [vmem:[#allocation17 + $0x1dc8] sm:$0xff]
          %v6371 = vld [vmem:[#allocation17 + $0x1dd0] sm:$0xff]
          %v6372 = vld [vmem:[#allocation17 + $0x1dd8] sm:$0xff]
          %v6373 = vld [vmem:[#allocation17 + $0x1de0] sm:$0xff]
          %v6374 = vld [vmem:[#allocation17 + $0x1de8] sm:$0xff]
          %v6375 = vld [vmem:[#allocation17 + $0x1df0] sm:$0xff]
          %v6376 = vld [vmem:[#allocation17 + $0x1df8] sm:$0xff]
          %v6377 = vld [vmem:[#allocation17 + $0x1e00] sm:$0xff]
          %v6378 = vld [vmem:[#allocation17 + $0x1e08] sm:$0xff]
          %v6379 = vld [vmem:[#allocation17 + $0x1e10] sm:$0xff]
          %v6380 = vld [vmem:[#allocation17 + $0x1e18] sm:$0xff]
          %v6381 = vld [vmem:[#allocation17 + $0x1e20] sm:$0xff]
          %v6382 = vld [vmem:[#allocation17 + $0x1e28] sm:$0xff]
          %v6383 = vld [vmem:[#allocation17 + $0x1e30] sm:$0xff]
          %v6384 = vld [vmem:[#allocation17 + $0x1e38] sm:$0xff]
          %v6385 = vld [vmem:[#allocation17 + $0x1e40] sm:$0xff]
          %v6386 = vld [vmem:[#allocation17 + $0x1e48] sm:$0xff]
          %v6387 = vld [vmem:[#allocation17 + $0x1e50] sm:$0xff]
          %v6388 = vld [vmem:[#allocation17 + $0x1e58] sm:$0xff]
          %v6389 = vld [vmem:[#allocation17 + $0x1e60] sm:$0xff]
          %v6390 = vld [vmem:[#allocation17 + $0x1e68] sm:$0xff]
          %v6391 = vld [vmem:[#allocation17 + $0x1e70] sm:$0xff]
          %v6392 = vld [vmem:[#allocation17 + $0x1e78] sm:$0xff]
          %v6393 = vld [vmem:[#allocation17 + $0x1e80] sm:$0xff]
          %v6394 = vld [vmem:[#allocation17 + $0x1e88] sm:$0xff]
          %v6395 = vld [vmem:[#allocation17 + $0x1e90] sm:$0xff]
          %v6396 = vld [vmem:[#allocation17 + $0x1e98] sm:$0xff]
          %v6397 = vld [vmem:[#allocation17 + $0x1ea0] sm:$0xff]
          %v6398 = vld [vmem:[#allocation17 + $0x1ea8] sm:$0xff]
          %v6399 = vld [vmem:[#allocation17 + $0x1eb0] sm:$0xff]
          %v6400 = vld [vmem:[#allocation17 + $0x1eb8] sm:$0xff]
          %v6401 = vld [vmem:[#allocation17 + $0x1ec0] sm:$0xff]
          %v6402 = vld [vmem:[#allocation17 + $0x1ec8] sm:$0xff]
          %v6403 = vld [vmem:[#allocation17 + $0x1ed0] sm:$0xff]
          %v6404 = vld [vmem:[#allocation17 + $0x1ed8] sm:$0xff]
          %v6405 = vld [vmem:[#allocation17 + $0x1ee0] sm:$0xff]
          %v6406 = vld [vmem:[#allocation17 + $0x1ee8] sm:$0xff]
          %v6407 = vld [vmem:[#allocation17 + $0x1ef0] sm:$0xff]
          %v6408 = vld [vmem:[#allocation17 + $0x1ef8] sm:$0xff]
          %v6409 = vld [vmem:[#allocation17 + $0x1f00] sm:$0xff]
          %v6410 = vld [vmem:[#allocation17 + $0x1f08] sm:$0xff]
          %v6411 = vld [vmem:[#allocation17 + $0x1f10] sm:$0xff]
          %v6412 = vld [vmem:[#allocation17 + $0x1f18] sm:$0xff]
          %v6413 = vld [vmem:[#allocation17 + $0x1f20] sm:$0xff]
          %v6414 = vld [vmem:[#allocation17 + $0x1f28] sm:$0xff]
          %v6415 = vld [vmem:[#allocation17 + $0x1f30] sm:$0xff]
          %v6416 = vld [vmem:[#allocation17 + $0x1f38] sm:$0xff]
          %v6417 = vld [vmem:[#allocation17 + $0x1f40] sm:$0xff]
          %v6418 = vld [vmem:[#allocation17 + $0x1f48] sm:$0xff]
          %v6419 = vld [vmem:[#allocation17 + $0x1f50] sm:$0xff]
          %v6420 = vld [vmem:[#allocation17 + $0x1f58] sm:$0xff]
          %v6421 = vld [vmem:[#allocation17 + $0x1f60] sm:$0xff]
          %v6422 = vld [vmem:[#allocation17 + $0x1f68] sm:$0xff]
          %v6423 = vld [vmem:[#allocation17 + $0x1f70] sm:$0xff]
          %v6424 = vld [vmem:[#allocation17 + $0x1f78] sm:$0xff]
          %v6425 = vld [vmem:[#allocation17 + $0x1f80] sm:$0xff]
          %v6426 = vld [vmem:[#allocation17 + $0x1f88] sm:$0xff]
          %v6427 = vld [vmem:[#allocation17 + $0x1f90] sm:$0xff]
          %v6428 = vld [vmem:[#allocation17 + $0x1f98] sm:$0xff]
          %v6429 = vld [vmem:[#allocation17 + $0x1fa0] sm:$0xff]
          %v6430 = vld [vmem:[#allocation17 + $0x1fa8] sm:$0xff]
          %v6431 = vld [vmem:[#allocation17 + $0x1fb0] sm:$0xff]
          %v6432 = vld [vmem:[#allocation17 + $0x1fb8] sm:$0xff]
          %v6433 = vld [vmem:[#allocation17 + $0x1fc0] sm:$0xff]
          %v6434 = vld [vmem:[#allocation17 + $0x1fc8] sm:$0xff]
          %v6435 = vld [vmem:[#allocation17 + $0x1fd0] sm:$0xff]
          %v6436 = vld [vmem:[#allocation17 + $0x1fd8] sm:$0xff]
          %v6437 = vld [vmem:[#allocation17 + $0x1fe0] sm:$0xff]
          %v6438 = vld [vmem:[#allocation17 + $0x1fe8] sm:$0xff]
          %v6439 = vld [vmem:[#allocation17 + $0x1ff0] sm:$0xff]
          %v6440 = vld [vmem:[#allocation17 + $0x1ff8] sm:$0xff]
          %v6441 = vld [vmem:[#allocation18] sm:$0xf]
          %v6443 = vlaneseq
          %v6444 = vshrl.u32 %v6443, 7
          %v6445 = vsub.s32 0, %v6444
          %v6446 = vrot.slane %v6441, %v6445
          %v6447 = vlaneseq
          %v6448 = vshrl.u32 %v6447, 7
          %v6449 = vsub.s32 1, %v6448
          %v6450 = vrot.slane %v6441, %v6449
          %v6451 = vlaneseq
          %v6452 = vshrl.u32 %v6451, 7
          %v6453 = vsub.s32 2, %v6452
          %v6454 = vrot.slane %v6441, %v6453
          %v6455 = vlaneseq
          %v6456 = vshrl.u32 %v6455, 7
          %v6457 = vsub.s32 3, %v6456
          %v6458 = vrot.slane %v6441, %v6457
          %6463 = vmatprep.subr.mxu0 %v5418
          %6464 = vmatpush1.msra.mxu0 %v5417
          %6465 = vmatprep.subr.mxu0 %v5422
          %6466 = vmatpush1.msra.mxu0 %v5421
          %6467 = vmatprep.subr.mxu0 %v5426
          %6468 = vmatpush1.msra.mxu0 %v5425
          %6469 = vmatprep.subr.mxu0 %v5430
          %6470 = vmatpush1.msra.mxu0 %v5429
          %6471 = vmatprep.subr.mxu0 %v5434
          %6472 = vmatpush1.msra.mxu0 %v5433
          %6473 = vmatprep.subr.mxu0 %v5438
          %6474 = vmatpush1.msra.mxu0 %v5437
          %6475 = vmatprep.subr.mxu0 %v5442
          %6476 = vmatpush1.msra.mxu0 %v5441
          %6477 = vmatprep.subr.mxu0 %v5446
          %6478 = vmatpush1.msra.mxu0 %v5445
          %6479 = vmatprep.subr.mxu0 %v5450
          %6480 = vmatpush1.msra.mxu0 %v5449
          %6481 = vmatprep.subr.mxu0 %v5454
          %6482 = vmatpush1.msra.mxu0 %v5453
          %6483 = vmatprep.subr.mxu0 %v5458
          %6484 = vmatpush1.msra.mxu0 %v5457
          %6485 = vmatprep.subr.mxu0 %v5462
          %6486 = vmatpush1.msra.mxu0 %v5461
          %6487 = vmatprep.subr.mxu0 %v5466
          %6488 = vmatpush1.msra.mxu0 %v5465
          %6489 = vmatprep.subr.mxu0 %v5470
          %6490 = vmatpush1.msra.mxu0 %v5469
          %6491 = vmatprep.subr.mxu0 %v5474
          %6492 = vmatpush1.msra.mxu0 %v5473
          %6493 = vmatprep.subr.mxu0 %v5478
          %6494 = vmatpush1.msra.mxu0 %v5477
          %6495 = vmatprep.subr.mxu0 %v5482
          %6496 = vmatpush1.msra.mxu0 %v5481
          %6497 = vmatprep.subr.mxu0 %v5486
          %6498 = vmatpush1.msra.mxu0 %v5485
          %6499 = vmatprep.subr.mxu0 %v5490
          %6500 = vmatpush1.msra.mxu0 %v5489
          %6501 = vmatprep.subr.mxu0 %v5494
          %6502 = vmatpush1.msra.mxu0 %v5493
          %6503 = vmatprep.subr.mxu0 %v5498
          %6504 = vmatpush1.msra.mxu0 %v5497
          %6505 = vmatprep.subr.mxu0 %v5502
          %6506 = vmatpush1.msra.mxu0 %v5501
          %6507 = vmatprep.subr.mxu0 %v5506
          %6508 = vmatpush1.msra.mxu0 %v5505
          %6509 = vmatprep.subr.mxu0 %v5510
          %6510 = vmatpush1.msra.mxu0 %v5509
          %6511 = vmatprep.subr.mxu0 %v5514
          %6512 = vmatpush1.msra.mxu0 %v5513
          %6513 = vmatprep.subr.mxu0 %v5518
          %6514 = vmatpush1.msra.mxu0 %v5517
          %6515 = vmatprep.subr.mxu0 %v5522
          %6516 = vmatpush1.msra.mxu0 %v5521
          %6517 = vmatprep.subr.mxu0 %v5526
          %6518 = vmatpush1.msra.mxu0 %v5525
          %6519 = vmatprep.subr.mxu0 %v5530
          %6520 = vmatpush1.msra.mxu0 %v5529
          %6521 = vmatprep.subr.mxu0 %v5534
          %6522 = vmatpush1.msra.mxu0 %v5533
          %6523 = vmatprep.subr.mxu0 %v5538
          %6524 = vmatpush1.msra.mxu0 %v5537
          %6525 = vmatprep.subr.mxu0 %v5542
          %6526 = vmatpush1.msra.mxu0 %v5541
          %6527 = vmatprep.mubr.f32.mxu0 %v4783
          %6528 = vmatmul.mubr.f32.gmra.mrb[0].mxu0 %v4779
          %v6529 = vpop.f32.mrb[0].mxu0
          %v6530 = vadd.f32 %v6446, %v6529
          %v6531 = vpop.f32.mrb[0].mxu0
          %v6532 = vadd.f32 %v6450, %v6531
          %6533 = vdwg.mxu0
          %6534 = vmatprep.subr.mxu0 %v5546
          %6535 = vmatpush1.msra.mxu0 %v5545
          %6536 = vmatprep.subr.mxu0 %v5550
          %6537 = vmatpush1.msra.mxu0 %v5549
          %6538 = vmatprep.subr.mxu0 %v5554
          %6539 = vmatpush1.msra.mxu0 %v5553
          %6540 = vmatprep.subr.mxu0 %v5558
          %6541 = vmatpush1.msra.mxu0 %v5557
          %6542 = vmatprep.subr.mxu0 %v5562
          %6543 = vmatpush1.msra.mxu0 %v5561
          %6544 = vmatprep.subr.mxu0 %v5566
          %6545 = vmatpush1.msra.mxu0 %v5565
          %6546 = vmatprep.subr.mxu0 %v5570
          %6547 = vmatpush1.msra.mxu0 %v5569
          %6548 = vmatprep.subr.mxu0 %v5574
          %6549 = vmatpush1.msra.mxu0 %v5573
          %6550 = vmatprep.subr.mxu0 %v5578
          %6551 = vmatpush1.msra.mxu0 %v5577
          %6552 = vmatprep.subr.mxu0 %v5582
          %6553 = vmatpush1.msra.mxu0 %v5581
          %6554 = vmatprep.subr.mxu0 %v5586
          %6555 = vmatpush1.msra.mxu0 %v5585
          %6556 = vmatprep.subr.mxu0 %v5590
          %6557 = vmatpush1.msra.mxu0 %v5589
          %6558 = vmatprep.subr.mxu0 %v5594
          %6559 = vmatpush1.msra.mxu0 %v5593
          %6560 = vmatprep.subr.mxu0 %v5598
          %6561 = vmatpush1.msra.mxu0 %v5597
          %6562 = vmatprep.subr.mxu0 %v5602
          %6563 = vmatpush1.msra.mxu0 %v5601
          %6564 = vmatprep.subr.mxu0 %v5606
          %6565 = vmatpush1.msra.mxu0 %v5605
          %6566 = vmatprep.subr.mxu0 %v5610
          %6567 = vmatpush1.msra.mxu0 %v5609
          %6568 = vmatprep.subr.mxu0 %v5614
          %6569 = vmatpush1.msra.mxu0 %v5613
          %6570 = vmatprep.subr.mxu0 %v5618
          %6571 = vmatpush1.msra.mxu0 %v5617
          %6572 = vmatprep.subr.mxu0 %v5622
          %6573 = vmatpush1.msra.mxu0 %v5621
          %6574 = vmatprep.subr.mxu0 %v5626
          %6575 = vmatpush1.msra.mxu0 %v5625
          %6576 = vmatprep.subr.mxu0 %v5630
          %6577 = vmatpush1.msra.mxu0 %v5629
          %6578 = vmatprep.subr.mxu0 %v5634
          %6579 = vmatpush1.msra.mxu0 %v5633
          %6580 = vmatprep.subr.mxu0 %v5638
          %6581 = vmatpush1.msra.mxu0 %v5637
          %6582 = vmatprep.subr.mxu0 %v5642
          %6583 = vmatpush1.msra.mxu0 %v5641
          %6584 = vmatprep.subr.mxu0 %v5646
          %6585 = vmatpush1.msra.mxu0 %v5645
          %6586 = vmatprep.subr.mxu0 %v5650
          %6587 = vmatpush1.msra.mxu0 %v5649
          %6588 = vmatprep.subr.mxu0 %v5654
          %6589 = vmatpush1.msra.mxu0 %v5653
          %6590 = vmatprep.subr.mxu0 %v5658
          %6591 = vmatpush1.msra.mxu0 %v5657
          %6592 = vmatprep.subr.mxu0 %v5662
          %6593 = vmatpush1.msra.mxu0 %v5661
          %6594 = vmatprep.subr.mxu0 %v5666
          %6595 = vmatpush1.msra.mxu0 %v5665
          %6596 = vmatprep.subr.mxu0 %v5670
          %6597 = vmatpush1.msra.mxu0 %v5669
          %6598 = vmatprep.mubr.f32.mxu0 %v4791
          %6599 = vmatmul.mubr.f32.gmra.mrb[0].mxu0 %v4787
          %v6600 = vpop.f32.mrb[0].mxu0
          %v6601 = vadd.f32 %v6530, %v6600
          %v6602 = vpop.f32.mrb[0].mxu0
          %v6603 = vadd.f32 %v6532, %v6602
          %6604 = vdwg.mxu0
          %6605 = vmatprep.subr.mxu0 %v5674
          %6606 = vmatpush1.msra.mxu0 %v5673
          %6607 = vmatprep.subr.mxu0 %v5678
          %6608 = vmatpush1.msra.mxu0 %v5677
          %6609 = vmatprep.subr.mxu0 %v5682
          %6610 = vmatpush1.msra.mxu0 %v5681
          %6611 = vmatprep.subr.mxu0 %v5686
          %6612 = vmatpush1.msra.mxu0 %v5685
          %6613 = vmatprep.subr.mxu0 %v5690
          %6614 = vmatpush1.msra.mxu0 %v5689
          %6615 = vmatprep.subr.mxu0 %v5694
          %6616 = vmatpush1.msra.mxu0 %v5693
          %6617 = vmatprep.subr.mxu0 %v5698
          %6618 = vmatpush1.msra.mxu0 %v5697
          %6619 = vmatprep.subr.mxu0 %v5702
          %6620 = vmatpush1.msra.mxu0 %v5701
          %6621 = vmatprep.subr.mxu0 %v5706
          %6622 = vmatpush1.msra.mxu0 %v5705
          %6623 = vmatprep.subr.mxu0 %v5710
          %6624 = vmatpush1.msra.mxu0 %v5709
          %6625 = vmatprep.subr.mxu0 %v5714
          %6626 = vmatpush1.msra.mxu0 %v5713
          %6627 = vmatprep.subr.mxu0 %v5718
          %6628 = vmatpush1.msra.mxu0 %v5717
          %6629 = vmatprep.subr.mxu0 %v5722
          %6630 = vmatpush1.msra.mxu0 %v5721
          %6631 = vmatprep.subr.mxu0 %v5726
          %6632 = vmatpush1.msra.mxu0 %v5725
          %6633 = vmatprep.subr.mxu0 %v5730
          %6634 = vmatpush1.msra.mxu0 %v5729
          %6635 = vmatprep.subr.mxu0 %v5734
          %6636 = vmatpush1.msra.mxu0 %v5733
          %6637 = vmatprep.subr.mxu0 %v5738
          %6638 = vmatpush1.msra.mxu0 %v5737
          %6639 = vmatprep.subr.mxu0 %v5742
          %6640 = vmatpush1.msra.mxu0 %v5741
          %6641 = vmatprep.subr.mxu0 %v5746
          %6642 = vmatpush1.msra.mxu0 %v5745
          %6643 = vmatprep.subr.mxu0 %v5750
          %6644 = vmatpush1.msra.mxu0 %v5749
          %6645 = vmatprep.subr.mxu0 %v5754
          %6646 = vmatpush1.msra.mxu0 %v5753
          %6647 = vmatprep.subr.mxu0 %v5758
          %6648 = vmatpush1.msra.mxu0 %v5757
          %6649 = vmatprep.subr.mxu0 %v5762
          %6650 = vmatpush1.msra.mxu0 %v5761
          %6651 = vmatprep.subr.mxu0 %v5766
          %6652 = vmatpush1.msra.mxu0 %v5765
          %6653 = vmatprep.subr.mxu0 %v5770
          %6654 = vmatpush1.msra.mxu0 %v5769
          %6655 = vmatprep.subr.mxu0 %v5774
          %6656 = vmatpush1.msra.mxu0 %v5773
          %6657 = vmatprep.subr.mxu0 %v5778
          %6658 = vmatpush1.msra.mxu0 %v5777
          %6659 = vmatprep.subr.mxu0 %v5782
          %6660 = vmatpush1.msra.mxu0 %v5781
          %6661 = vmatprep.subr.mxu0 %v5786
          %6662 = vmatpush1.msra.mxu0 %v5785
          %6663 = vmatprep.subr.mxu0 %v5790
          %6664 = vmatpush1.msra.mxu0 %v5789
          %6665 = vmatprep.subr.mxu0 %v5794
          %6666 = vmatpush1.msra.mxu0 %v5793
          %6667 = vmatprep.subr.mxu0 %v5798
          %6668 = vmatpush1.msra.mxu0 %v5797
          %6669 = vmatprep.mubr.f32.mxu0 %v4799
          %6670 = vmatmul.mubr.f32.gmra.mrb[0].mxu0 %v4795
          %v6671 = vpop.f32.mrb[0].mxu0
          %v6672 = vadd.f32 %v6601, %v6671
          %v6673 = vpop.f32.mrb[0].mxu0
          %v6674 = vadd.f32 %v6603, %v6673
          %6675 = vdwg.mxu0
          %6676 = vmatprep.subr.mxu0 %v5802
          %6677 = vmatpush1.msra.mxu0 %v5801
          %6678 = vmatprep.subr.mxu0 %v5806
          %6679 = vmatpush1.msra.mxu0 %v5805
          %6680 = vmatprep.subr.mxu0 %v5810
          %6681 = vmatpush1.msra.mxu0 %v5809
          %6682 = vmatprep.subr.mxu0 %v5814
          %6683 = vmatpush1.msra.mxu0 %v5813
          %6684 = vmatprep.subr.mxu0 %v5818
          %6685 = vmatpush1.msra.mxu0 %v5817
          %6686 = vmatprep.subr.mxu0 %v5822
          %6687 = vmatpush1.msra.mxu0 %v5821
          %6688 = vmatprep.subr.mxu0 %v5826
          %6689 = vmatpush1.msra.mxu0 %v5825
          %6690 = vmatprep.subr.mxu0 %v5830
          %6691 = vmatpush1.msra.mxu0 %v5829
          %6692 = vmatprep.subr.mxu0 %v5834
          %6693 = vmatpush1.msra.mxu0 %v5833
          %6694 = vmatprep.subr.mxu0 %v5838
          %6695 = vmatpush1.msra.mxu0 %v5837
          %6696 = vmatprep.subr.mxu0 %v5842
          %6697 = vmatpush1.msra.mxu0 %v5841
          %6698 = vmatprep.subr.mxu0 %v5846
          %6699 = vmatpush1.msra.mxu0 %v5845
          %6700 = vmatprep.subr.mxu0 %v5850
          %6701 = vmatpush1.msra.mxu0 %v5849
          %6702 = vmatprep.subr.mxu0 %v5854
          %6703 = vmatpush1.msra.mxu0 %v5853
          %6704 = vmatprep.subr.mxu0 %v5858
          %6705 = vmatpush1.msra.mxu0 %v5857
          %6706 = vmatprep.subr.mxu0 %v5862
          %6707 = vmatpush1.msra.mxu0 %v5861
          %6708 = vmatprep.subr.mxu0 %v5866
          %6709 = vmatpush1.msra.mxu0 %v5865
          %6710 = vmatprep.subr.mxu0 %v5870
          %6711 = vmatpush1.msra.mxu0 %v5869
          %6712 = vmatprep.subr.mxu0 %v5874
          %6713 = vmatpush1.msra.mxu0 %v5873
          %6714 = vmatprep.subr.mxu0 %v5878
          %6715 = vmatpush1.msra.mxu0 %v5877
          %6716 = vmatprep.subr.mxu0 %v5882
          %6717 = vmatpush1.msra.mxu0 %v5881
          %6718 = vmatprep.subr.mxu0 %v5886
          %6719 = vmatpush1.msra.mxu0 %v5885
          %6720 = vmatprep.subr.mxu0 %v5890
          %6721 = vmatpush1.msra.mxu0 %v5889
          %6722 = vmatprep.subr.mxu0 %v5894
          %6723 = vmatpush1.msra.mxu0 %v5893
          %6724 = vmatprep.subr.mxu0 %v5898
          %6725 = vmatpush1.msra.mxu0 %v5897
          %6726 = vmatprep.subr.mxu0 %v5902
          %6727 = vmatpush1.msra.mxu0 %v5901
          %6728 = vmatprep.subr.mxu0 %v5906
          %6729 = vmatpush1.msra.mxu0 %v5905
          %6730 = vmatprep.subr.mxu0 %v5910
          %6731 = vmatpush1.msra.mxu0 %v5909
          %6732 = vmatprep.subr.mxu0 %v5914
          %6733 = vmatpush1.msra.mxu0 %v5913
          %6734 = vmatprep.subr.mxu0 %v5918
          %6735 = vmatpush1.msra.mxu0 %v5917
          %6736 = vmatprep.subr.mxu0 %v5922
          %6737 = vmatpush1.msra.mxu0 %v5921
          %6738 = vmatprep.subr.mxu0 %v5926
          %6739 = vmatpush1.msra.mxu0 %v5925
          %6740 = vmatprep.mubr.f32.mxu0 %v4807
          %6741 = vmatmul.mubr.f32.gmra.mrb[0].mxu0 %v4803
          %v6742 = vpop.f32.mrb[0].mxu0
          %v6743 = vadd.f32 %v6672, %v6742
          %v6744 = vpop.f32.mrb[0].mxu0
          %v6745 = vadd.f32 %v6674, %v6744
          %6746 = vdwg.mxu0
          %6747 = vmatprep.subr.mxu0 %v5930
          %6748 = vmatpush1.msra.mxu0 %v5929
          %6749 = vmatprep.subr.mxu0 %v5934
          %6750 = vmatpush1.msra.mxu0 %v5933
          %6751 = vmatprep.subr.mxu0 %v5938
          %6752 = vmatpush1.msra.mxu0 %v5937
          %6753 = vmatprep.subr.mxu0 %v5942
          %6754 = vmatpush1.msra.mxu0 %v5941
          %6755 = vmatprep.subr.mxu0 %v5946
          %6756 = vmatpush1.msra.mxu0 %v5945
          %6757 = vmatprep.subr.mxu0 %v5950
          %6758 = vmatpush1.msra.mxu0 %v5949
          %6759 = vmatprep.subr.mxu0 %v5954
          %6760 = vmatpush1.msra.mxu0 %v5953
          %6761 = vmatprep.subr.mxu0 %v5958
          %6762 = vmatpush1.msra.mxu0 %v5957
          %6763 = vmatprep.subr.mxu0 %v5962
          %6764 = vmatpush1.msra.mxu0 %v5961
          %6765 = vmatprep.subr.mxu0 %v5966
          %6766 = vmatpush1.msra.mxu0 %v5965
          %6767 = vmatprep.subr.mxu0 %v5970
          %6768 = vmatpush1.msra.mxu0 %v5969
          %6769 = vmatprep.subr.mxu0 %v5974
          %6770 = vmatpush1.msra.mxu0 %v5973
          %6771 = vmatprep.subr.mxu0 %v5978
          %6772 = vmatpush1.msra.mxu0 %v5977
          %6773 = vmatprep.subr.mxu0 %v5982
          %6774 = vmatpush1.msra.mxu0 %v5981
          %6775 = vmatprep.subr.mxu0 %v5986
          %6776 = vmatpush1.msra.mxu0 %v5985
          %6777 = vmatprep.subr.mxu0 %v5990
          %6778 = vmatpush1.msra.mxu0 %v5989
          %6779 = vmatprep.subr.mxu0 %v5994
          %6780 = vmatpush1.msra.mxu0 %v5993
          %6781 = vmatprep.subr.mxu0 %v5998
          %6782 = vmatpush1.msra.mxu0 %v5997
          %6783 = vmatprep.subr.mxu0 %v6002
          %6784 = vmatpush1.msra.mxu0 %v6001
          %6785 = vmatprep.subr.mxu0 %v6006
          %6786 = vmatpush1.msra.mxu0 %v6005
          %6787 = vmatprep.subr.mxu0 %v6010
          %6788 = vmatpush1.msra.mxu0 %v6009
          %6789 = vmatprep.subr.mxu0 %v6014
          %6790 = vmatpush1.msra.mxu0 %v6013
          %6791 = vmatprep.subr.mxu0 %v6018
          %6792 = vmatpush1.msra.mxu0 %v6017
          %6793 = vmatprep.subr.mxu0 %v6022
          %6794 = vmatpush1.msra.mxu0 %v6021
          %6795 = vmatprep.subr.mxu0 %v6026
          %6796 = vmatpush1.msra.mxu0 %v6025
          %6797 = vmatprep.subr.mxu0 %v6030
          %6798 = vmatpush1.msra.mxu0 %v6029
          %6799 = vmatprep.subr.mxu0 %v6034
          %6800 = vmatpush1.msra.mxu0 %v6033
          %6801 = vmatprep.subr.mxu0 %v6038
          %6802 = vmatpush1.msra.mxu0 %v6037
          %6803 = vmatprep.subr.mxu0 %v6042
          %6804 = vmatpush1.msra.mxu0 %v6041
          %6805 = vmatprep.subr.mxu0 %v6046
          %6806 = vmatpush1.msra.mxu0 %v6045
          %6807 = vmatprep.subr.mxu0 %v6050
          %6808 = vmatpush1.msra.mxu0 %v6049
          %6809 = vmatprep.subr.mxu0 %v6054
          %6810 = vmatpush1.msra.mxu0 %v6053
          %6811 = vmatprep.mubr.f32.mxu0 %v4815
          %6812 = vmatmul.mubr.f32.gmra.mrb[0].mxu0 %v4811
          %v6813 = vpop.f32.mrb[0].mxu0
          %v6814 = vadd.f32 %v6743, %v6813
          %v6815 = vpop.f32.mrb[0].mxu0
          %v6816 = vadd.f32 %v6745, %v6815
          %6817 = vdwg.mxu0
          %6818 = vmatprep.subr.mxu0 %v6058
          %6819 = vmatpush1.msra.mxu0 %v6057
          %6820 = vmatprep.subr.mxu0 %v6062
          %6821 = vmatpush1.msra.mxu0 %v6061
          %6822 = vmatprep.subr.mxu0 %v6066
          %6823 = vmatpush1.msra.mxu0 %v6065
          %6824 = vmatprep.subr.mxu0 %v6070
          %6825 = vmatpush1.msra.mxu0 %v6069
          %6826 = vmatprep.subr.mxu0 %v6074
          %6827 = vmatpush1.msra.mxu0 %v6073
          %6828 = vmatprep.subr.mxu0 %v6078
          %6829 = vmatpush1.msra.mxu0 %v6077
          %6830 = vmatprep.subr.mxu0 %v6082
          %6831 = vmatpush1.msra.mxu0 %v6081
          %6832 = vmatprep.subr.mxu0 %v6086
          %6833 = vmatpush1.msra.mxu0 %v6085
          %6834 = vmatprep.subr.mxu0 %v6090
          %6835 = vmatpush1.msra.mxu0 %v6089
          %6836 = vmatprep.subr.mxu0 %v6094
          %6837 = vmatpush1.msra.mxu0 %v6093
          %6838 = vmatprep.subr.mxu0 %v6098
          %6839 = vmatpush1.msra.mxu0 %v6097
          %6840 = vmatprep.subr.mxu0 %v6102
          %6841 = vmatpush1.msra.mxu0 %v6101
          %6842 = vmatprep.subr.mxu0 %v6106
          %6843 = vmatpush1.msra.mxu0 %v6105
          %6844 = vmatprep.subr.mxu0 %v6110
          %6845 = vmatpush1.msra.mxu0 %v6109
          %6846 = vmatprep.subr.mxu0 %v6114
          %6847 = vmatpush1.msra.mxu0 %v6113
          %6848 = vmatprep.subr.mxu0 %v6118
          %6849 = vmatpush1.msra.mxu0 %v6117
          %6850 = vmatprep.subr.mxu0 %v6122
          %6851 = vmatpush1.msra.mxu0 %v6121
          %6852 = vmatprep.subr.mxu0 %v6126
          %6853 = vmatpush1.msra.mxu0 %v6125
          %6854 = vmatprep.subr.mxu0 %v6130
          %6855 = vmatpush1.msra.mxu0 %v6129
          %6856 = vmatprep.subr.mxu0 %v6134
          %6857 = vmatpush1.msra.mxu0 %v6133
          %6858 = vmatprep.subr.mxu0 %v6138
          %6859 = vmatpush1.msra.mxu0 %v6137
          %6860 = vmatprep.subr.mxu0 %v6142
          %6861 = vmatpush1.msra.mxu0 %v6141
          %6862 = vmatprep.subr.mxu0 %v6146
          %6863 = vmatpush1.msra.mxu0 %v6145
          %6864 = vmatprep.subr.mxu0 %v6150
          %6865 = vmatpush1.msra.mxu0 %v6149
          %6866 = vmatprep.subr.mxu0 %v6154
          %6867 = vmatpush1.msra.mxu0 %v6153
          %6868 = vmatprep.subr.mxu0 %v6158
          %6869 = vmatpush1.msra.mxu0 %v6157
          %6870 = vmatprep.subr.mxu0 %v6162
          %6871 = vmatpush1.msra.mxu0 %v6161
          %6872 = vmatprep.subr.mxu0 %v6166
          %6873 = vmatpush1.msra.mxu0 %v6165
          %6874 = vmatprep.subr.mxu0 %v6170
          %6875 = vmatpush1.msra.mxu0 %v6169
          %6876 = vmatprep.subr.mxu0 %v6174
          %6877 = vmatpush1.msra.mxu0 %v6173
          %6878 = vmatprep.subr.mxu0 %v6178
          %6879 = vmatpush1.msra.mxu0 %v6177
          %6880 = vmatprep.subr.mxu0 %v6182
          %6881 = vmatpush1.msra.mxu0 %v6181
          %6882 = vmatprep.mubr.f32.mxu0 %v4823
          %6883 = vmatmul.mubr.f32.gmra.mrb[0].mxu0 %v4819
          %v6884 = vpop.f32.mrb[0].mxu0
          %v6885 = vadd.f32 %v6814, %v6884
          %v6886 = vpop.f32.mrb[0].mxu0
          %v6887 = vadd.f32 %v6816, %v6886
          %6888 = vdwg.mxu0
          %6889 = vmatprep.subr.mxu0 %v6186
          %6890 = vmatpush1.msra.mxu0 %v6185
          %6891 = vmatprep.subr.mxu0 %v6190
          %6892 = vmatpush1.msra.mxu0 %v6189
          %6893 = vmatprep.subr.mxu0 %v6194
          %6894 = vmatpush1.msra.mxu0 %v6193
          %6895 = vmatprep.subr.mxu0 %v6198
          %6896 = vmatpush1.msra.mxu0 %v6197
          %6897 = vmatprep.subr.mxu0 %v6202
          %6898 = vmatpush1.msra.mxu0 %v6201
          %6899 = vmatprep.subr.mxu0 %v6206
          %6900 = vmatpush1.msra.mxu0 %v6205
          %6901 = vmatprep.subr.mxu0 %v6210
          %6902 = vmatpush1.msra.mxu0 %v6209
          %6903 = vmatprep.subr.mxu0 %v6214
          %6904 = vmatpush1.msra.mxu0 %v6213
          %6905 = vmatprep.subr.mxu0 %v6218
          %6906 = vmatpush1.msra.mxu0 %v6217
          %6907 = vmatprep.subr.mxu0 %v6222
          %6908 = vmatpush1.msra.mxu0 %v6221
          %6909 = vmatprep.subr.mxu0 %v6226
          %6910 = vmatpush1.msra.mxu0 %v6225
          %6911 = vmatprep.subr.mxu0 %v6230
          %6912 = vmatpush1.msra.mxu0 %v6229
          %6913 = vmatprep.subr.mxu0 %v6234
          %6914 = vmatpush1.msra.mxu0 %v6233
          %6915 = vmatprep.subr.mxu0 %v6238
          %6916 = vmatpush1.msra.mxu0 %v6237
          %6917 = vmatprep.subr.mxu0 %v6242
          %6918 = vmatpush1.msra.mxu0 %v6241
          %6919 = vmatprep.subr.mxu0 %v6246
          %6920 = vmatpush1.msra.mxu0 %v6245
          %6921 = vmatprep.subr.mxu0 %v6250
          %6922 = vmatpush1.msra.mxu0 %v6249
          %6923 = vmatprep.subr.mxu0 %v6254
          %6924 = vmatpush1.msra.mxu0 %v6253
          %6925 = vmatprep.subr.mxu0 %v6258
          %6926 = vmatpush1.msra.mxu0 %v6257
          %6927 = vmatprep.subr.mxu0 %v6262
          %6928 = vmatpush1.msra.mxu0 %v6261
          %6929 = vmatprep.subr.mxu0 %v6266
          %6930 = vmatpush1.msra.mxu0 %v6265
          %6931 = vmatprep.subr.mxu0 %v6270
          %6932 = vmatpush1.msra.mxu0 %v6269
          %6933 = vmatprep.subr.mxu0 %v6274
          %6934 = vmatpush1.msra.mxu0 %v6273
          %6935 = vmatprep.subr.mxu0 %v6278
          %6936 = vmatpush1.msra.mxu0 %v6277
          %6937 = vmatprep.subr.mxu0 %v6282
          %6938 = vmatpush1.msra.mxu0 %v6281
          %6939 = vmatprep.subr.mxu0 %v6286
          %6940 = vmatpush1.msra.mxu0 %v6285
          %6941 = vmatprep.subr.mxu0 %v6290
          %6942 = vmatpush1.msra.mxu0 %v6289
          %6943 = vmatprep.subr.mxu0 %v6294
          %6944 = vmatpush1.msra.mxu0 %v6293
          %6945 = vmatprep.subr.mxu0 %v6298
          %6946 = vmatpush1.msra.mxu0 %v6297
          %6947 = vmatprep.subr.mxu0 %v6302
          %6948 = vmatpush1.msra.mxu0 %v6301
          %6949 = vmatprep.subr.mxu0 %v6306
          %6950 = vmatpush1.msra.mxu0 %v6305
          %6951 = vmatprep.subr.mxu0 %v6310
          %6952 = vmatpush1.msra.mxu0 %v6309
          %6953 = vmatprep.mubr.f32.mxu0 %v4831
          %6954 = vmatmul.mubr.f32.gmra.mrb[0].mxu0 %v4827
          %v6955 = vpop.f32.mrb[0].mxu0
          %v6956 = vadd.f32 %v6885, %v6955
          %v6957 = vpop.f32.mrb[0].mxu0
          %v6958 = vadd.f32 %v6887, %v6957
          %6959 = vdwg.mxu0
          %6960 = vmatprep.subr.mxu0 %v6314
          %6961 = vmatpush1.msra.mxu0 %v6313
          %6962 = vmatprep.subr.mxu0 %v6318
          %6963 = vmatpush1.msra.mxu0 %v6317
          %6964 = vmatprep.subr.mxu0 %v6322
          %6965 = vmatpush1.msra.mxu0 %v6321
          %6966 = vmatprep.subr.mxu0 %v6326
          %6967 = vmatpush1.msra.mxu0 %v6325
          %6968 = vmatprep.subr.mxu0 %v6330
          %6969 = vmatpush1.msra.mxu0 %v6329
          %6970 = vmatprep.subr.mxu0 %v6334
          %6971 = vmatpush1.msra.mxu0 %v6333
          %6972 = vmatprep.subr.mxu0 %v6338
          %6973 = vmatpush1.msra.mxu0 %v6337
          %6974 = vmatprep.subr.mxu0 %v6342
          %6975 = vmatpush1.msra.mxu0 %v6341
          %6976 = vmatprep.subr.mxu0 %v6346
          %6977 = vmatpush1.msra.mxu0 %v6345
          %6978 = vmatprep.subr.mxu0 %v6350
          %6979 = vmatpush1.msra.mxu0 %v6349
          %6980 = vmatprep.subr.mxu0 %v6354
          %6981 = vmatpush1.msra.mxu0 %v6353
          %6982 = vmatprep.subr.mxu0 %v6358
          %6983 = vmatpush1.msra.mxu0 %v6357
          %6984 = vmatprep.subr.mxu0 %v6362
          %6985 = vmatpush1.msra.mxu0 %v6361
          %6986 = vmatprep.subr.mxu0 %v6366
          %6987 = vmatpush1.msra.mxu0 %v6365
          %6988 = vmatprep.subr.mxu0 %v6370
          %6989 = vmatpush1.msra.mxu0 %v6369
          %6990 = vmatprep.subr.mxu0 %v6374
          %6991 = vmatpush1.msra.mxu0 %v6373
          %6992 = vmatprep.subr.mxu0 %v6378
          %6993 = vmatpush1.msra.mxu0 %v6377
          %6994 = vmatprep.subr.mxu0 %v6382
          %6995 = vmatpush1.msra.mxu0 %v6381
          %6996 = vmatprep.subr.mxu0 %v6386
          %6997 = vmatpush1.msra.mxu0 %v6385
          %6998 = vmatprep.subr.mxu0 %v6390
          %6999 = vmatpush1.msra.mxu0 %v6389
          %7000 = vmatprep.subr.mxu0 %v6394
          %7001 = vmatpush1.msra.mxu0 %v6393
          %7002 = vmatprep.subr.mxu0 %v6398
          %7003 = vmatpush1.msra.mxu0 %v6397
          %7004 = vmatprep.subr.mxu0 %v6402
          %7005 = vmatpush1.msra.mxu0 %v6401
          %7006 = vmatprep.subr.mxu0 %v6406
          %7007 = vmatpush1.msra.mxu0 %v6405
          %7008 = vmatprep.subr.mxu0 %v6410
          %7009 = vmatpush1.msra.mxu0 %v6409
          %7010 = vmatprep.subr.mxu0 %v6414
          %7011 = vmatpush1.msra.mxu0 %v6413
          %7012 = vmatprep.subr.mxu0 %v6418
          %7013 = vmatpush1.msra.mxu0 %v6417
          %7014 = vmatprep.subr.mxu0 %v6422
          %7015 = vmatpush1.msra.mxu0 %v6421
          %7016 = vmatprep.subr.mxu0 %v6426
          %7017 = vmatpush1.msra.mxu0 %v6425
          %7018 = vmatprep.subr.mxu0 %v6430
          %7019 = vmatpush1.msra.mxu0 %v6429
          %7020 = vmatprep.subr.mxu0 %v6434
          %7021 = vmatpush1.msra.mxu0 %v6433
          %7022 = vmatprep.subr.mxu0 %v6438
          %7023 = vmatpush1.msra.mxu0 %v6437
          %7024 = vmatprep.mubr.f32.mxu0 %v4839
          %7025 = vmatmul.mubr.f32.gmra.mrb[0].mxu0 %v4835
          %v7026 = vpop.f32.mrb[0].mxu0
          %v7027 = vadd.f32 %v6956, %v7026
          %v7028 = vpop.f32.mrb[0].mxu0
          %v7029 = vadd.f32 %v6958, %v7028
          %7030 = vdwg.mxu0
          %7031 = vmatprep.subr.mxu0 %v5420
          %7032 = vmatpush1.msra.mxu0 %v5419
          %7033 = vmatprep.subr.mxu0 %v5424
          %7034 = vmatpush1.msra.mxu0 %v5423
          %7035 = vmatprep.subr.mxu0 %v5428
          %7036 = vmatpush1.msra.mxu0 %v5427
          %7037 = vmatprep.subr.mxu0 %v5432
          %7038 = vmatpush1.msra.mxu0 %v5431
          %7039 = vmatprep.subr.mxu0 %v5436
          %7040 = vmatpush1.msra.mxu0 %v5435
          %7041 = vmatprep.subr.mxu0 %v5440
          %7042 = vmatpush1.msra.mxu0 %v5439
          %7043 = vmatprep.subr.mxu0 %v5444
          %7044 = vmatpush1.msra.mxu0 %v5443
          %7045 = vmatprep.subr.mxu0 %v5448
          %7046 = vmatpush1.msra.mxu0 %v5447
          %7047 = vmatprep.subr.mxu0 %v5452
          %7048 = vmatpush1.msra.mxu0 %v5451
          %7049 = vmatprep.subr.mxu0 %v5456
          %7050 = vmatpush1.msra.mxu0 %v5455
          %7051 = vmatprep.subr.mxu0 %v5460
          %7052 = vmatpush1.msra.mxu0 %v5459
          %7053 = vmatprep.subr.mxu0 %v5464
          %7054 = vmatpush1.msra.mxu0 %v5463
          %7055 = vmatprep.subr.mxu0 %v5468
          %7056 = vmatpush1.msra.mxu0 %v5467
          %7057 = vmatprep.subr.mxu0 %v5472
          %7058 = vmatpush1.msra.mxu0 %v5471
          %7059 = vmatprep.subr.mxu0 %v5476
          %7060 = vmatpush1.msra.mxu0 %v5475
          %7061 = vmatprep.subr.mxu0 %v5480
          %7062 = vmatpush1.msra.mxu0 %v5479
          %7063 = vmatprep.subr.mxu0 %v5484
          %7064 = vmatpush1.msra.mxu0 %v5483
          %7065 = vmatprep.subr.mxu0 %v5488
          %7066 = vmatpush1.msra.mxu0 %v5487
          %7067 = vmatprep.subr.mxu0 %v5492
          %7068 = vmatpush1.msra.mxu0 %v5491
          %7069 = vmatprep.subr.mxu0 %v5496
          %7070 = vmatpush1.msra.mxu0 %v5495
          %7071 = vmatprep.subr.mxu0 %v5500
          %7072 = vmatpush1.msra.mxu0 %v5499
          %7073 = vmatprep.subr.mxu0 %v5504
          %7074 = vmatpush1.msra.mxu0 %v5503
          %7075 = vmatprep.subr.mxu0 %v5508
          %7076 = vmatpush1.msra.mxu0 %v5507
          %7077 = vmatprep.subr.mxu0 %v5512
          %7078 = vmatpush1.msra.mxu0 %v5511
          %7079 = vmatprep.subr.mxu0 %v5516
          %7080 = vmatpush1.msra.mxu0 %v5515
          %7081 = vmatprep.subr.mxu0 %v5520
          %7082 = vmatpush1.msra.mxu0 %v5519
          %7083 = vmatprep.subr.mxu0 %v5524
          %7084 = vmatpush1.msra.mxu0 %v5523
          %7085 = vmatprep.subr.mxu0 %v5528
          %7086 = vmatpush1.msra.mxu0 %v5527
          %7087 = vmatprep.subr.mxu0 %v5532
          %7088 = vmatpush1.msra.mxu0 %v5531
          %7089 = vmatprep.subr.mxu0 %v5536
          %7090 = vmatpush1.msra.mxu0 %v5535
          %7091 = vmatprep.subr.mxu0 %v5540
          %7092 = vmatpush1.msra.mxu0 %v5539
          %7093 = vmatprep.subr.mxu0 %v5544
          %7094 = vmatpush1.msra.mxu0 %v5543
          %7095 = vmatprep.mubr.f32.mxu0 %v4783
          %7096 = vmatmul.mubr.f32.gmra.mrb[0].mxu0 %v4779
          %v7097 = vpop.f32.mrb[0].mxu0
          %v7098 = vadd.f32 %v6454, %v7097
          %v7099 = vpop.f32.mrb[0].mxu0
          %v7100 = vadd.f32 %v6458, %v7099
          %7101 = vdwg.mxu0
          %7102 = vmatprep.subr.mxu0 %v5548
          %7103 = vmatpush1.msra.mxu0 %v5547
          %7104 = vmatprep.subr.mxu0 %v5552
          %7105 = vmatpush1.msra.mxu0 %v5551
          %7106 = vmatprep.subr.mxu0 %v5556
          %7107 = vmatpush1.msra.mxu0 %v5555
          %7108 = vmatprep.subr.mxu0 %v5560
          %7109 = vmatpush1.msra.mxu0 %v5559
          %7110 = vmatprep.subr.mxu0 %v5564
          %7111 = vmatpush1.msra.mxu0 %v5563
          %7112 = vmatprep.subr.mxu0 %v5568
          %7113 = vmatpush1.msra.mxu0 %v5567
          %7114 = vmatprep.subr.mxu0 %v5572
          %7115 = vmatpush1.msra.mxu0 %v5571
          %7116 = vmatprep.subr.mxu0 %v5576
          %7117 = vmatpush1.msra.mxu0 %v5575
          %7118 = vmatprep.subr.mxu0 %v5580
          %7119 = vmatpush1.msra.mxu0 %v5579
          %7120 = vmatprep.subr.mxu0 %v5584
          %7121 = vmatpush1.msra.mxu0 %v5583
          %7122 = vmatprep.subr.mxu0 %v5588
          %7123 = vmatpush1.msra.mxu0 %v5587
          %7124 = vmatprep.subr.mxu0 %v5592
          %7125 = vmatpush1.msra.mxu0 %v5591
          %7126 = vmatprep.subr.mxu0 %v5596
          %7127 = vmatpush1.msra.mxu0 %v5595
          %7128 = vmatprep.subr.mxu0 %v5600
          %7129 = vmatpush1.msra.mxu0 %v5599
          %7130 = vmatprep.subr.mxu0 %v5604
          %7131 = vmatpush1.msra.mxu0 %v5603
          %7132 = vmatprep.subr.mxu0 %v5608
          %7133 = vmatpush1.msra.mxu0 %v5607
          %7134 = vmatprep.subr.mxu0 %v5612
          %7135 = vmatpush1.msra.mxu0 %v5611
          %7136 = vmatprep.subr.mxu0 %v5616
          %7137 = vmatpush1.msra.mxu0 %v5615
          %7138 = vmatprep.subr.mxu0 %v5620
          %7139 = vmatpush1.msra.mxu0 %v5619
          %7140 = vmatprep.subr.mxu0 %v5624
          %7141 = vmatpush1.msra.mxu0 %v5623
          %7142 = vmatprep.subr.mxu0 %v5628
          %7143 = vmatpush1.msra.mxu0 %v5627
          %7144 = vmatprep.subr.mxu0 %v5632
          %7145 = vmatpush1.msra.mxu0 %v5631
          %7146 = vmatprep.subr.mxu0 %v5636
          %7147 = vmatpush1.msra.mxu0 %v5635
          %7148 = vmatprep.subr.mxu0 %v5640
          %7149 = vmatpush1.msra.mxu0 %v5639
          %7150 = vmatprep.subr.mxu0 %v5644
          %7151 = vmatpush1.msra.mxu0 %v5643
          %7152 = vmatprep.subr.mxu0 %v5648
          %7153 = vmatpush1.msra.mxu0 %v5647
          %7154 = vmatprep.subr.mxu0 %v5652
          %7155 = vmatpush1.msra.mxu0 %v5651
          %7156 = vmatprep.subr.mxu0 %v5656
          %7157 = vmatpush1.msra.mxu0 %v5655
          %7158 = vmatprep.subr.mxu0 %v5660
          %7159 = vmatpush1.msra.mxu0 %v5659
          %7160 = vmatprep.subr.mxu0 %v5664
          %7161 = vmatpush1.msra.mxu0 %v5663
          %7162 = vmatprep.subr.mxu0 %v5668
          %7163 = vmatpush1.msra.mxu0 %v5667
          %7164 = vmatprep.subr.mxu0 %v5672
          %7165 = vmatpush1.msra.mxu0 %v5671
          %7166 = vmatprep.mubr.f32.mxu0 %v4791
          %7167 = vmatmul.mubr.f32.gmra.mrb[0].mxu0 %v4787
          %v7168 = vpop.f32.mrb[0].mxu0
          %v7169 = vadd.f32 %v7098, %v7168
          %v7170 = vpop.f32.mrb[0].mxu0
          %v7171 = vadd.f32 %v7100, %v7170
          %7172 = vdwg.mxu0
          %7173 = vmatprep.subr.mxu0 %v5676
          %7174 = vmatpush1.msra.mxu0 %v5675
          %7175 = vmatprep.subr.mxu0 %v5680
          %7176 = vmatpush1.msra.mxu0 %v5679
          %7177 = vmatprep.subr.mxu0 %v5684
          %7178 = vmatpush1.msra.mxu0 %v5683
          %7179 = vmatprep.subr.mxu0 %v5688
          %7180 = vmatpush1.msra.mxu0 %v5687
          %7181 = vmatprep.subr.mxu0 %v5692
          %7182 = vmatpush1.msra.mxu0 %v5691
          %7183 = vmatprep.subr.mxu0 %v5696
          %7184 = vmatpush1.msra.mxu0 %v5695
          %7185 = vmatprep.subr.mxu0 %v5700
          %7186 = vmatpush1.msra.mxu0 %v5699
          %7187 = vmatprep.subr.mxu0 %v5704
          %7188 = vmatpush1.msra.mxu0 %v5703
          %7189 = vmatprep.subr.mxu0 %v5708
          %7190 = vmatpush1.msra.mxu0 %v5707
          %7191 = vmatprep.subr.mxu0 %v5712
          %7192 = vmatpush1.msra.mxu0 %v5711
          %7193 = vmatprep.subr.mxu0 %v5716
          %7194 = vmatpush1.msra.mxu0 %v5715
          %7195 = vmatprep.subr.mxu0 %v5720
          %7196 = vmatpush1.msra.mxu0 %v5719
          %7197 = vmatprep.subr.mxu0 %v5724
          %7198 = vmatpush1.msra.mxu0 %v5723
          %7199 = vmatprep.subr.mxu0 %v5728
          %7200 = vmatpush1.msra.mxu0 %v5727
          %7201 = vmatprep.subr.mxu0 %v5732
          %7202 = vmatpush1.msra.mxu0 %v5731
          %7203 = vmatprep.subr.mxu0 %v5736
          %7204 = vmatpush1.msra.mxu0 %v5735
          %7205 = vmatprep.subr.mxu0 %v5740
          %7206 = vmatpush1.msra.mxu0 %v5739
          %7207 = vmatprep.subr.mxu0 %v5744
          %7208 = vmatpush1.msra.mxu0 %v5743
          %7209 = vmatprep.subr.mxu0 %v5748
          %7210 = vmatpush1.msra.mxu0 %v5747
          %7211 = vmatprep.subr.mxu0 %v5752
          %7212 = vmatpush1.msra.mxu0 %v5751
          %7213 = vmatprep.subr.mxu0 %v5756
          %7214 = vmatpush1.msra.mxu0 %v5755
          %7215 = vmatprep.subr.mxu0 %v5760
          %7216 = vmatpush1.msra.mxu0 %v5759
          %7217 = vmatprep.subr.mxu0 %v5764
          %7218 = vmatpush1.msra.mxu0 %v5763
          %7219 = vmatprep.subr.mxu0 %v5768
          %7220 = vmatpush1.msra.mxu0 %v5767
          %7221 = vmatprep.subr.mxu0 %v5772
          %7222 = vmatpush1.msra.mxu0 %v5771
          %7223 = vmatprep.subr.mxu0 %v5776
          %7224 = vmatpush1.msra.mxu0 %v5775
          %7225 = vmatprep.subr.mxu0 %v5780
          %7226 = vmatpush1.msra.mxu0 %v5779
          %7227 = vmatprep.subr.mxu0 %v5784
          %7228 = vmatpush1.msra.mxu0 %v5783
          %7229 = vmatprep.subr.mxu0 %v5788
          %7230 = vmatpush1.msra.mxu0 %v5787
          %7231 = vmatprep.subr.mxu0 %v5792
          %7232 = vmatpush1.msra.mxu0 %v5791
          %7233 = vmatprep.subr.mxu0 %v5796
          %7234 = vmatpush1.msra.mxu0 %v5795
          %7235 = vmatprep.subr.mxu0 %v5800
          %7236 = vmatpush1.msra.mxu0 %v5799
          %7237 = vmatprep.mubr.f32.mxu0 %v4799
          %7238 = vmatmul.mubr.f32.gmra.mrb[0].mxu0 %v4795
          %v7239 = vpop.f32.mrb[0].mxu0
          %v7240 = vadd.f32 %v7169, %v7239
          %v7241 = vpop.f32.mrb[0].mxu0
          %v7242 = vadd.f32 %v7171, %v7241
          %7243 = vdwg.mxu0
          %7244 = vmatprep.subr.mxu0 %v5804
          %7245 = vmatpush1.msra.mxu0 %v5803
          %7246 = vmatprep.subr.mxu0 %v5808
          %7247 = vmatpush1.msra.mxu0 %v5807
          %7248 = vmatprep.subr.mxu0 %v5812
          %7249 = vmatpush1.msra.mxu0 %v5811
          %7250 = vmatprep.subr.mxu0 %v5816
          %7251 = vmatpush1.msra.mxu0 %v5815
          %7252 = vmatprep.subr.mxu0 %v5820
          %7253 = vmatpush1.msra.mxu0 %v5819
          %7254 = vmatprep.subr.mxu0 %v5824
          %7255 = vmatpush1.msra.mxu0 %v5823
          %7256 = vmatprep.subr.mxu0 %v5828
          %7257 = vmatpush1.msra.mxu0 %v5827
          %7258 = vmatprep.subr.mxu0 %v5832
          %7259 = vmatpush1.msra.mxu0 %v5831
          %7260 = vmatprep.subr.mxu0 %v5836
          %7261 = vmatpush1.msra.mxu0 %v5835
          %7262 = vmatprep.subr.mxu0 %v5840
          %7263 = vmatpush1.msra.mxu0 %v5839
          %7264 = vmatprep.subr.mxu0 %v5844
          %7265 = vmatpush1.msra.mxu0 %v5843
          %7266 = vmatprep.subr.mxu0 %v5848
          %7267 = vmatpush1.msra.mxu0 %v5847
          %7268 = vmatprep.subr.mxu0 %v5852
          %7269 = vmatpush1.msra.mxu0 %v5851
          %7270 = vmatprep.subr.mxu0 %v5856
          %7271 = vmatpush1.msra.mxu0 %v5855
          %7272 = vmatprep.subr.mxu0 %v5860
          %7273 = vmatpush1.msra.mxu0 %v5859
          %7274 = vmatprep.subr.mxu0 %v5864
          %7275 = vmatpush1.msra.mxu0 %v5863
          %7276 = vmatprep.subr.mxu0 %v5868
          %7277 = vmatpush1.msra.mxu0 %v5867
          %7278 = vmatprep.subr.mxu0 %v5872
          %7279 = vmatpush1.msra.mxu0 %v5871
          %7280 = vmatprep.subr.mxu0 %v5876
          %7281 = vmatpush1.msra.mxu0 %v5875
          %7282 = vmatprep.subr.mxu0 %v5880
          %7283 = vmatpush1.msra.mxu0 %v5879
          %7284 = vmatprep.subr.mxu0 %v5884
          %7285 = vmatpush1.msra.mxu0 %v5883
          %7286 = vmatprep.subr.mxu0 %v5888
          %7287 = vmatpush1.msra.mxu0 %v5887
          %7288 = vmatprep.subr.mxu0 %v5892
          %7289 = vmatpush1.msra.mxu0 %v5891
          %7290 = vmatprep.subr.mxu0 %v5896
          %7291 = vmatpush1.msra.mxu0 %v5895
          %7292 = vmatprep.subr.mxu0 %v5900
          %7293 = vmatpush1.msra.mxu0 %v5899
          %7294 = vmatprep.subr.mxu0 %v5904
          %7295 = vmatpush1.msra.mxu0 %v5903
          %7296 = vmatprep.subr.mxu0 %v5908
          %7297 = vmatpush1.msra.mxu0 %v5907
          %7298 = vmatprep.subr.mxu0 %v5912
          %7299 = vmatpush1.msra.mxu0 %v5911
          %7300 = vmatprep.subr.mxu0 %v5916
          %7301 = vmatpush1.msra.mxu0 %v5915
          %7302 = vmatprep.subr.mxu0 %v5920
          %7303 = vmatpush1.msra.mxu0 %v5919
          %7304 = vmatprep.subr.mxu0 %v5924
          %7305 = vmatpush1.msra.mxu0 %v5923
          %7306 = vmatprep.subr.mxu0 %v5928
          %7307 = vmatpush1.msra.mxu0 %v5927
          %7308 = vmatprep.mubr.f32.mxu0 %v4807
          %7309 = vmatmul.mubr.f32.gmra.mrb[0].mxu0 %v4803
          %v7310 = vpop.f32.mrb[0].mxu0
          %v7311 = vadd.f32 %v7240, %v7310
          %v7312 = vpop.f32.mrb[0].mxu0
          %v7313 = vadd.f32 %v7242, %v7312
          %7314 = vdwg.mxu0
          %7315 = vmatprep.subr.mxu0 %v5932
          %7316 = vmatpush1.msra.mxu0 %v5931
          %7317 = vmatprep.subr.mxu0 %v5936
          %7318 = vmatpush1.msra.mxu0 %v5935
          %7319 = vmatprep.subr.mxu0 %v5940
          %7320 = vmatpush1.msra.mxu0 %v5939
          %7321 = vmatprep.subr.mxu0 %v5944
          %7322 = vmatpush1.msra.mxu0 %v5943
          %7323 = vmatprep.subr.mxu0 %v5948
          %7324 = vmatpush1.msra.mxu0 %v5947
          %7325 = vmatprep.subr.mxu0 %v5952
          %7326 = vmatpush1.msra.mxu0 %v5951
          %7327 = vmatprep.subr.mxu0 %v5956
          %7328 = vmatpush1.msra.mxu0 %v5955
          %7329 = vmatprep.subr.mxu0 %v5960
          %7330 = vmatpush1.msra.mxu0 %v5959
          %7331 = vmatprep.subr.mxu0 %v5964
          %7332 = vmatpush1.msra.mxu0 %v5963
          %7333 = vmatprep.subr.mxu0 %v5968
          %7334 = vmatpush1.msra.mxu0 %v5967
          %7335 = vmatprep.subr.mxu0 %v5972
          %7336 = vmatpush1.msra.mxu0 %v5971
          %7337 = vmatprep.subr.mxu0 %v5976
          %7338 = vmatpush1.msra.mxu0 %v5975
          %7339 = vmatprep.subr.mxu0 %v5980
          %7340 = vmatpush1.msra.mxu0 %v5979
          %7341 = vmatprep.subr.mxu0 %v5984
          %7342 = vmatpush1.msra.mxu0 %v5983
          %7343 = vmatprep.subr.mxu0 %v5988
          %7344 = vmatpush1.msra.mxu0 %v5987
          %7345 = vmatprep.subr.mxu0 %v5992
          %7346 = vmatpush1.msra.mxu0 %v5991
          %7347 = vmatprep.subr.mxu0 %v5996
          %7348 = vmatpush1.msra.mxu0 %v5995
          %7349 = vmatprep.subr.mxu0 %v6000
          %7350 = vmatpush1.msra.mxu0 %v5999
          %7351 = vmatprep.subr.mxu0 %v6004
          %7352 = vmatpush1.msra.mxu0 %v6003
          %7353 = vmatprep.subr.mxu0 %v6008
          %7354 = vmatpush1.msra.mxu0 %v6007
          %7355 = vmatprep.subr.mxu0 %v6012
          %7356 = vmatpush1.msra.mxu0 %v6011
          %7357 = vmatprep.subr.mxu0 %v6016
          %7358 = vmatpush1.msra.mxu0 %v6015
          %7359 = vmatprep.subr.mxu0 %v6020
          %7360 = vmatpush1.msra.mxu0 %v6019
          %7361 = vmatprep.subr.mxu0 %v6024
          %7362 = vmatpush1.msra.mxu0 %v6023
          %7363 = vmatprep.subr.mxu0 %v6028
          %7364 = vmatpush1.msra.mxu0 %v6027
          %7365 = vmatprep.subr.mxu0 %v6032
          %7366 = vmatpush1.msra.mxu0 %v6031
          %7367 = vmatprep.subr.mxu0 %v6036
          %7368 = vmatpush1.msra.mxu0 %v6035
          %7369 = vmatprep.subr.mxu0 %v6040
          %7370 = vmatpush1.msra.mxu0 %v6039
          %7371 = vmatprep.subr.mxu0 %v6044
          %7372 = vmatpush1.msra.mxu0 %v6043
          %7373 = vmatprep.subr.mxu0 %v6048
          %7374 = vmatpush1.msra.mxu0 %v6047
          %7375 = vmatprep.subr.mxu0 %v6052
          %7376 = vmatpush1.msra.mxu0 %v6051
          %7377 = vmatprep.subr.mxu0 %v6056
          %7378 = vmatpush1.msra.mxu0 %v6055
          %7379 = vmatprep.mubr.f32.mxu0 %v4815
          %7380 = vmatmul.mubr.f32.gmra.mrb[0].mxu0 %v4811
          %v7381 = vpop.f32.mrb[0].mxu0
          %v7382 = vadd.f32 %v7311, %v7381
          %v7383 = vpop.f32.mrb[0].mxu0
          %v7384 = vadd.f32 %v7313, %v7383
          %7385 = vdwg.mxu0
          %7386 = vmatprep.subr.mxu0 %v6060
          %7387 = vmatpush1.msra.mxu0 %v6059
          %7388 = vmatprep.subr.mxu0 %v6064
          %7389 = vmatpush1.msra.mxu0 %v6063
          %7390 = vmatprep.subr.mxu0 %v6068
          %7391 = vmatpush1.msra.mxu0 %v6067
          %7392 = vmatprep.subr.mxu0 %v6072
          %7393 = vmatpush1.msra.mxu0 %v6071
          %7394 = vmatprep.subr.mxu0 %v6076
          %7395 = vmatpush1.msra.mxu0 %v6075
          %7396 = vmatprep.subr.mxu0 %v6080
          %7397 = vmatpush1.msra.mxu0 %v6079
          %7398 = vmatprep.subr.mxu0 %v6084
          %7399 = vmatpush1.msra.mxu0 %v6083
          %7400 = vmatprep.subr.mxu0 %v6088
          %7401 = vmatpush1.msra.mxu0 %v6087
          %7402 = vmatprep.subr.mxu0 %v6092
          %7403 = vmatpush1.msra.mxu0 %v6091
          %7404 = vmatprep.subr.mxu0 %v6096
          %7405 = vmatpush1.msra.mxu0 %v6095
          %7406 = vmatprep.subr.mxu0 %v6100
          %7407 = vmatpush1.msra.mxu0 %v6099
          %7408 = vmatprep.subr.mxu0 %v6104
          %7409 = vmatpush1.msra.mxu0 %v6103
          %7410 = vmatprep.subr.mxu0 %v6108
          %7411 = vmatpush1.msra.mxu0 %v6107
          %7412 = vmatprep.subr.mxu0 %v6112
          %7413 = vmatpush1.msra.mxu0 %v6111
          %7414 = vmatprep.subr.mxu0 %v6116
          %7415 = vmatpush1.msra.mxu0 %v6115
          %7416 = vmatprep.subr.mxu0 %v6120
          %7417 = vmatpush1.msra.mxu0 %v6119
          %7418 = vmatprep.subr.mxu0 %v6124
          %7419 = vmatpush1.msra.mxu0 %v6123
          %7420 = vmatprep.subr.mxu0 %v6128
          %7421 = vmatpush1.msra.mxu0 %v6127
          %7422 = vmatprep.subr.mxu0 %v6132
          %7423 = vmatpush1.msra.mxu0 %v6131
          %7424 = vmatprep.subr.mxu0 %v6136
          %7425 = vmatpush1.msra.mxu0 %v6135
          %7426 = vmatprep.subr.mxu0 %v6140
          %7427 = vmatpush1.msra.mxu0 %v6139
          %7428 = vmatprep.subr.mxu0 %v6144
          %7429 = vmatpush1.msra.mxu0 %v6143
          %7430 = vmatprep.subr.mxu0 %v6148
          %7431 = vmatpush1.msra.mxu0 %v6147
          %7432 = vmatprep.subr.mxu0 %v6152
          %7433 = vmatpush1.msra.mxu0 %v6151
          %7434 = vmatprep.subr.mxu0 %v6156
          %7435 = vmatpush1.msra.mxu0 %v6155
          %7436 = vmatprep.subr.mxu0 %v6160
          %7437 = vmatpush1.msra.mxu0 %v6159
          %7438 = vmatprep.subr.mxu0 %v6164
          %7439 = vmatpush1.msra.mxu0 %v6163
          %7440 = vmatprep.subr.mxu0 %v6168
          %7441 = vmatpush1.msra.mxu0 %v6167
          %7442 = vmatprep.subr.mxu0 %v6172
          %7443 = vmatpush1.msra.mxu0 %v6171
          %7444 = vmatprep.subr.mxu0 %v6176
          %7445 = vmatpush1.msra.mxu0 %v6175
          %7446 = vmatprep.subr.mxu0 %v6180
          %7447 = vmatpush1.msra.mxu0 %v6179
          %7448 = vmatprep.subr.mxu0 %v6184
          %7449 = vmatpush1.msra.mxu0 %v6183
          %7450 = vmatprep.mubr.f32.mxu0 %v4823
          %7451 = vmatmul.mubr.f32.gmra.mrb[0].mxu0 %v4819
          %v7452 = vpop.f32.mrb[0].mxu0
          %v7453 = vadd.f32 %v7382, %v7452
          %v7454 = vpop.f32.mrb[0].mxu0
          %v7455 = vadd.f32 %v7384, %v7454
          %7456 = vdwg.mxu0
          %7457 = vmatprep.subr.mxu0 %v6188
          %7458 = vmatpush1.msra.mxu0 %v6187
          %7459 = vmatprep.subr.mxu0 %v6192
          %7460 = vmatpush1.msra.mxu0 %v6191
          %7461 = vmatprep.subr.mxu0 %v6196
          %7462 = vmatpush1.msra.mxu0 %v6195
          %7463 = vmatprep.subr.mxu0 %v6200
          %7464 = vmatpush1.msra.mxu0 %v6199
          %7465 = vmatprep.subr.mxu0 %v6204
          %7466 = vmatpush1.msra.mxu0 %v6203
          %7467 = vmatprep.subr.mxu0 %v6208
          %7468 = vmatpush1.msra.mxu0 %v6207
          %7469 = vmatprep.subr.mxu0 %v6212
          %7470 = vmatpush1.msra.mxu0 %v6211
          %7471 = vmatprep.subr.mxu0 %v6216
          %7472 = vmatpush1.msra.mxu0 %v6215
          %7473 = vmatprep.subr.mxu0 %v6220
          %7474 = vmatpush1.msra.mxu0 %v6219
          %7475 = vmatprep.subr.mxu0 %v6224
          %7476 = vmatpush1.msra.mxu0 %v6223
          %7477 = vmatprep.subr.mxu0 %v6228
          %7478 = vmatpush1.msra.mxu0 %v6227
          %7479 = vmatprep.subr.mxu0 %v6232
          %7480 = vmatpush1.msra.mxu0 %v6231
          %7481 = vmatprep.subr.mxu0 %v6236
          %7482 = vmatpush1.msra.mxu0 %v6235
          %7483 = vmatprep.subr.mxu0 %v6240
          %7484 = vmatpush1.msra.mxu0 %v6239
          %7485 = vmatprep.subr.mxu0 %v6244
          %7486 = vmatpush1.msra.mxu0 %v6243
          %7487 = vmatprep.subr.mxu0 %v6248
          %7488 = vmatpush1.msra.mxu0 %v6247
          %7489 = vmatprep.subr.mxu0 %v6252
          %7490 = vmatpush1.msra.mxu0 %v6251
          %7491 = vmatprep.subr.mxu0 %v6256
          %7492 = vmatpush1.msra.mxu0 %v6255
          %7493 = vmatprep.subr.mxu0 %v6260
          %7494 = vmatpush1.msra.mxu0 %v6259
          %7495 = vmatprep.subr.mxu0 %v6264
          %7496 = vmatpush1.msra.mxu0 %v6263
          %7497 = vmatprep.subr.mxu0 %v6268
          %7498 = vmatpush1.msra.mxu0 %v6267
          %7499 = vmatprep.subr.mxu0 %v6272
          %7500 = vmatpush1.msra.mxu0 %v6271
          %7501 = vmatprep.subr.mxu0 %v6276
          %7502 = vmatpush1.msra.mxu0 %v6275
          %7503 = vmatprep.subr.mxu0 %v6280
          %7504 = vmatpush1.msra.mxu0 %v6279
          %7505 = vmatprep.subr.mxu0 %v6284
          %7506 = vmatpush1.msra.mxu0 %v6283
          %7507 = vmatprep.subr.mxu0 %v6288
          %7508 = vmatpush1.msra.mxu0 %v6287
          %7509 = vmatprep.subr.mxu0 %v6292
          %7510 = vmatpush1.msra.mxu0 %v6291
          %7511 = vmatprep.subr.mxu0 %v6296
          %7512 = vmatpush1.msra.mxu0 %v6295
          %7513 = vmatprep.subr.mxu0 %v6300
          %7514 = vmatpush1.msra.mxu0 %v6299
          %7515 = vmatprep.subr.mxu0 %v6304
          %7516 = vmatpush1.msra.mxu0 %v6303
          %7517 = vmatprep.subr.mxu0 %v6308
          %7518 = vmatpush1.msra.mxu0 %v6307
          %7519 = vmatprep.subr.mxu0 %v6312
          %7520 = vmatpush1.msra.mxu0 %v6311
          %7521 = vmatprep.mubr.f32.mxu0 %v4831
          %7522 = vmatmul.mubr.f32.gmra.mrb[0].mxu0 %v4827
          %v7523 = vpop.f32.mrb[0].mxu0
          %v7524 = vadd.f32 %v7453, %v7523
          %v7525 = vpop.f32.mrb[0].mxu0
          %v7526 = vadd.f32 %v7455, %v7525
          %7527 = vdwg.mxu0
          %7528 = vmatprep.subr.mxu0 %v6316
          %7529 = vmatpush1.msra.mxu0 %v6315
          %7530 = vmatprep.subr.mxu0 %v6320
          %7531 = vmatpush1.msra.mxu0 %v6319
          %7532 = vmatprep.subr.mxu0 %v6324
          %7533 = vmatpush1.msra.mxu0 %v6323
          %7534 = vmatprep.subr.mxu0 %v6328
          %7535 = vmatpush1.msra.mxu0 %v6327
          %7536 = vmatprep.subr.mxu0 %v6332
          %7537 = vmatpush1.msra.mxu0 %v6331
          %7538 = vmatprep.subr.mxu0 %v6336
          %7539 = vmatpush1.msra.mxu0 %v6335
          %7540 = vmatprep.subr.mxu0 %v6340
          %7541 = vmatpush1.msra.mxu0 %v6339
          %7542 = vmatprep.subr.mxu0 %v6344
          %7543 = vmatpush1.msra.mxu0 %v6343
          %7544 = vmatprep.subr.mxu0 %v6348
          %7545 = vmatpush1.msra.mxu0 %v6347
          %7546 = vmatprep.subr.mxu0 %v6352
          %7547 = vmatpush1.msra.mxu0 %v6351
          %7548 = vmatprep.subr.mxu0 %v6356
          %7549 = vmatpush1.msra.mxu0 %v6355
          %7550 = vmatprep.subr.mxu0 %v6360
          %7551 = vmatpush1.msra.mxu0 %v6359
          %7552 = vmatprep.subr.mxu0 %v6364
          %7553 = vmatpush1.msra.mxu0 %v6363
          %7554 = vmatprep.subr.mxu0 %v6368
          %7555 = vmatpush1.msra.mxu0 %v6367
          %7556 = vmatprep.subr.mxu0 %v6372
          %7557 = vmatpush1.msra.mxu0 %v6371
          %7558 = vmatprep.subr.mxu0 %v6376
          %7559 = vmatpush1.msra.mxu0 %v6375
          %7560 = vmatprep.subr.mxu0 %v6380
          %7561 = vmatpush1.msra.mxu0 %v6379
          %7562 = vmatprep.subr.mxu0 %v6384
          %7563 = vmatpush1.msra.mxu0 %v6383
          %7564 = vmatprep.subr.mxu0 %v6388
          %7565 = vmatpush1.msra.mxu0 %v6387
          %7566 = vmatprep.subr.mxu0 %v6392
          %7567 = vmatpush1.msra.mxu0 %v6391
          %7568 = vmatprep.subr.mxu0 %v6396
          %7569 = vmatpush1.msra.mxu0 %v6395
          %7570 = vmatprep.subr.mxu0 %v6400
          %7571 = vmatpush1.msra.mxu0 %v6399
          %7572 = vmatprep.subr.mxu0 %v6404
          %7573 = vmatpush1.msra.mxu0 %v6403
          %7574 = vmatprep.subr.mxu0 %v6408
          %7575 = vmatpush1.msra.mxu0 %v6407
          %7576 = vmatprep.subr.mxu0 %v6412
          %7577 = vmatpush1.msra.mxu0 %v6411
          %7578 = vmatprep.subr.mxu0 %v6416
          %7579 = vmatpush1.msra.mxu0 %v6415
          %7580 = vmatprep.subr.mxu0 %v6420
          %7581 = vmatpush1.msra.mxu0 %v6419
          %7582 = vmatprep.subr.mxu0 %v6424
          %7583 = vmatpush1.msra.mxu0 %v6423
          %7584 = vmatprep.subr.mxu0 %v6428
          %7585 = vmatpush1.msra.mxu0 %v6427
          %7586 = vmatprep.subr.mxu0 %v6432
          %7587 = vmatpush1.msra.mxu0 %v6431
          %7588 = vmatprep.subr.mxu0 %v6436
          %7589 = vmatpush1.msra.mxu0 %v6435
          %7590 = vmatprep.subr.mxu0 %v6440
          %7591 = vmatpush1.msra.mxu0 %v6439
          %7592 = vmatprep.mubr.f32.mxu0 %v4839
          %7593 = vmatmul.mubr.f32.gmra.mrb[0].mxu0 %v4835
          %v7594 = vpop.f32.mrb[0].mxu0
          %v7595 = vadd.f32 %v7524, %v7594
          %v7596 = vpop.f32.mrb[0].mxu0
          %v7597 = vadd.f32 %v7526, %v7596
          %7598 = vdwg.mxu0
          %vm7599 = vcmp.ge.f32.partialorder %v7027, 0.0
          %vm7600 = vcmp.ge.f32.partialorder %v7029, 0.0
          %vm7601 = vcmp.ge.f32.partialorder %v7595, 0.0
          %vm7602 = vcmp.ge.f32.partialorder %v7597, 0.0
          %v7603 = vmul.f32 %v7027, 0.01
          %v7604 = vmul.f32 %v7029, 0.01
          %v7605 = vmul.f32 %v7595, 0.01
          %v7606 = vmul.f32 %v7597, 0.01
          %v7607 = vsel %vm7599, %v7027, %v7603
          %v7608 = vsel %vm7600, %v7029, %v7604
          %v7609 = vsel %vm7601, %v7595, %v7605
          %v7610 = vsel %vm7602, %v7597, %v7606
          %v7611 = vld [vmem:[#allocation20] sm:$0xff]
          %v7612 = vld [vmem:[#allocation20 + $0x8] sm:$0xff]
          %v7613 = vld [vmem:[#allocation20 + $0x10] sm:$0xff]
          %v7614 = vld [vmem:[#allocation20 + $0x18] sm:$0xff]
          %v7615 = vld [vmem:[#allocation20 + $0x20] sm:$0xff]
          %v7616 = vld [vmem:[#allocation20 + $0x28] sm:$0xff]
          %v7617 = vld [vmem:[#allocation20 + $0x30] sm:$0xff]
          %v7618 = vld [vmem:[#allocation20 + $0x38] sm:$0xff]
          %v7619 = vld [vmem:[#allocation20 + $0x40] sm:$0xff]
          %v7620 = vld [vmem:[#allocation20 + $0x48] sm:$0xff]
          %v7621 = vld [vmem:[#allocation20 + $0x50] sm:$0xff]
          %v7622 = vld [vmem:[#allocation20 + $0x58] sm:$0xff]
          %v7623 = vld [vmem:[#allocation20 + $0x60] sm:$0xff]
          %v7624 = vld [vmem:[#allocation20 + $0x68] sm:$0xff]
          %v7625 = vld [vmem:[#allocation20 + $0x70] sm:$0xff]
          %v7626 = vld [vmem:[#allocation20 + $0x78] sm:$0xff]
          %v7627 = vld [vmem:[#allocation20 + $0x80] sm:$0xff]
          %v7628 = vld [vmem:[#allocation20 + $0x88] sm:$0xff]
          %v7629 = vld [vmem:[#allocation20 + $0x90] sm:$0xff]
          %v7630 = vld [vmem:[#allocation20 + $0x98] sm:$0xff]
          %v7631 = vld [vmem:[#allocation20 + $0xa0] sm:$0xff]
          %v7632 = vld [vmem:[#allocation20 + $0xa8] sm:$0xff]
          %v7633 = vld [vmem:[#allocation20 + $0xb0] sm:$0xff]
          %v7634 = vld [vmem:[#allocation20 + $0xb8] sm:$0xff]
          %v7635 = vld [vmem:[#allocation20 + $0xc0] sm:$0xff]
          %v7636 = vld [vmem:[#allocation20 + $0xc8] sm:$0xff]
          %v7637 = vld [vmem:[#allocation20 + $0xd0] sm:$0xff]
          %v7638 = vld [vmem:[#allocation20 + $0xd8] sm:$0xff]
          %v7639 = vld [vmem:[#allocation20 + $0xe0] sm:$0xff]
          %v7640 = vld [vmem:[#allocation20 + $0xe8] sm:$0xff]
          %v7641 = vld [vmem:[#allocation20 + $0xf0] sm:$0xff]
          %v7642 = vld [vmem:[#allocation20 + $0xf8] sm:$0xff]
          %v7643 = vld [vmem:[#allocation20 + $0x100] sm:$0xff]
          %v7644 = vld [vmem:[#allocation20 + $0x108] sm:$0xff]
          %v7645 = vld [vmem:[#allocation20 + $0x110] sm:$0xff]
          %v7646 = vld [vmem:[#allocation20 + $0x118] sm:$0xff]
          %v7647 = vld [vmem:[#allocation20 + $0x120] sm:$0xff]
          %v7648 = vld [vmem:[#allocation20 + $0x128] sm:$0xff]
          %v7649 = vld [vmem:[#allocation20 + $0x130] sm:$0xff]
          %v7650 = vld [vmem:[#allocation20 + $0x138] sm:$0xff]
          %v7651 = vld [vmem:[#allocation20 + $0x140] sm:$0xff]
          %v7652 = vld [vmem:[#allocation20 + $0x148] sm:$0xff]
          %v7653 = vld [vmem:[#allocation20 + $0x150] sm:$0xff]
          %v7654 = vld [vmem:[#allocation20 + $0x158] sm:$0xff]
          %v7655 = vld [vmem:[#allocation20 + $0x160] sm:$0xff]
          %v7656 = vld [vmem:[#allocation20 + $0x168] sm:$0xff]
          %v7657 = vld [vmem:[#allocation20 + $0x170] sm:$0xff]
          %v7658 = vld [vmem:[#allocation20 + $0x178] sm:$0xff]
          %v7659 = vld [vmem:[#allocation20 + $0x180] sm:$0xff]
          %v7660 = vld [vmem:[#allocation20 + $0x188] sm:$0xff]
          %v7661 = vld [vmem:[#allocation20 + $0x190] sm:$0xff]
          %v7662 = vld [vmem:[#allocation20 + $0x198] sm:$0xff]
          %v7663 = vld [vmem:[#allocation20 + $0x1a0] sm:$0xff]
          %v7664 = vld [vmem:[#allocation20 + $0x1a8] sm:$0xff]
          %v7665 = vld [vmem:[#allocation20 + $0x1b0] sm:$0xff]
          %v7666 = vld [vmem:[#allocation20 + $0x1b8] sm:$0xff]
          %v7667 = vld [vmem:[#allocation20 + $0x1c0] sm:$0xff]
          %v7668 = vld [vmem:[#allocation20 + $0x1c8] sm:$0xff]
          %v7669 = vld [vmem:[#allocation20 + $0x1d0] sm:$0xff]
          %v7670 = vld [vmem:[#allocation20 + $0x1d8] sm:$0xff]
          %v7671 = vld [vmem:[#allocation20 + $0x1e0] sm:$0xff]
          %v7672 = vld [vmem:[#allocation20 + $0x1e8] sm:$0xff]
          %v7673 = vld [vmem:[#allocation20 + $0x1f0] sm:$0xff]
          %v7674 = vld [vmem:[#allocation20 + $0x1f8] sm:$0xff]
          %v7675 = vld [vmem:[#allocation21] sm:$0x1]
          %7676 = vmatprep.subr.mxu0 0.0
          %7677 = vmatpush1.msra.mxu0 %v7611
          %7678 = vmatprep.subr.mxu0 0.0
          %7679 = vmatpush1.msra.mxu0 %v7612
          %7680 = vmatprep.subr.mxu0 0.0
          %7681 = vmatpush1.msra.mxu0 %v7613
          %7682 = vmatprep.subr.mxu0 0.0
          %7683 = vmatpush1.msra.mxu0 %v7614
          %7684 = vmatprep.subr.mxu0 0.0
          %7685 = vmatpush1.msra.mxu0 %v7615
          %7686 = vmatprep.subr.mxu0 0.0
          %7687 = vmatpush1.msra.mxu0 %v7616
          %7688 = vmatprep.subr.mxu0 0.0
          %7689 = vmatpush1.msra.mxu0 %v7617
          %7690 = vmatprep.subr.mxu0 0.0
          %7691 = vmatpush1.msra.mxu0 %v7618
          %7692 = vmatprep.subr.mxu0 0.0
          %7693 = vmatpush1.msra.mxu0 %v7619
          %7694 = vmatprep.subr.mxu0 0.0
          %7695 = vmatpush1.msra.mxu0 %v7620
          %7696 = vmatprep.subr.mxu0 0.0
          %7697 = vmatpush1.msra.mxu0 %v7621
          %7698 = vmatprep.subr.mxu0 0.0
          %7699 = vmatpush1.msra.mxu0 %v7622
          %7700 = vmatprep.subr.mxu0 0.0
          %7701 = vmatpush1.msra.mxu0 %v7623
          %7702 = vmatprep.subr.mxu0 0.0
          %7703 = vmatpush1.msra.mxu0 %v7624
          %7704 = vmatprep.subr.mxu0 0.0
          %7705 = vmatpush1.msra.mxu0 %v7625
          %7706 = vmatprep.subr.mxu0 0.0
          %7707 = vmatpush1.msra.mxu0 %v7626
          %7708 = vmatprep.subr.mxu0 0.0
          %7709 = vmatpush1.msra.mxu0 %v7627
          %7710 = vmatprep.subr.mxu0 0.0
          %7711 = vmatpush1.msra.mxu0 %v7628
          %7712 = vmatprep.subr.mxu0 0.0
          %7713 = vmatpush1.msra.mxu0 %v7629
          %7714 = vmatprep.subr.mxu0 0.0
          %7715 = vmatpush1.msra.mxu0 %v7630
          %7716 = vmatprep.subr.mxu0 0.0
          %7717 = vmatpush1.msra.mxu0 %v7631
          %7718 = vmatprep.subr.mxu0 0.0
          %7719 = vmatpush1.msra.mxu0 %v7632
          %7720 = vmatprep.subr.mxu0 0.0
          %7721 = vmatpush1.msra.mxu0 %v7633
          %7722 = vmatprep.subr.mxu0 0.0
          %7723 = vmatpush1.msra.mxu0 %v7634
          %7724 = vmatprep.subr.mxu0 0.0
          %7725 = vmatpush1.msra.mxu0 %v7635
          %7726 = vmatprep.subr.mxu0 0.0
          %7727 = vmatpush1.msra.mxu0 %v7636
          %7728 = vmatprep.subr.mxu0 0.0
          %7729 = vmatpush1.msra.mxu0 %v7637
          %7730 = vmatprep.subr.mxu0 0.0
          %7731 = vmatpush1.msra.mxu0 %v7638
          %7732 = vmatprep.subr.mxu0 0.0
          %7733 = vmatpush1.msra.mxu0 %v7639
          %7734 = vmatprep.subr.mxu0 0.0
          %7735 = vmatpush1.msra.mxu0 %v7640
          %7736 = vmatprep.subr.mxu0 0.0
          %7737 = vmatpush1.msra.mxu0 %v7641
          %7738 = vmatprep.subr.mxu0 0.0
          %7739 = vmatpush1.msra.mxu0 %v7642
          %7740 = vmatprep.mubr.f32.mxu0 %v7608
          %7741 = vmatmul.mubr.f32.gmra.mrb[0].mxu0 %v7607
          %v7742 = vpop.f32.mrb[0].mxu0
          %v7743 = vadd.f32 %v7675, %v7742
          %v7744 = vpop.f32.mrb[0].mxu0
          %7745 = vdwg.mxu0
          %7746 = vmatprep.subr.mxu0 0.0
          %7747 = vmatpush1.msra.mxu0 %v7643
          %7748 = vmatprep.subr.mxu0 0.0
          %7749 = vmatpush1.msra.mxu0 %v7644
          %7750 = vmatprep.subr.mxu0 0.0
          %7751 = vmatpush1.msra.mxu0 %v7645
          %7752 = vmatprep.subr.mxu0 0.0
          %7753 = vmatpush1.msra.mxu0 %v7646
          %7754 = vmatprep.subr.mxu0 0.0
          %7755 = vmatpush1.msra.mxu0 %v7647
          %7756 = vmatprep.subr.mxu0 0.0
          %7757 = vmatpush1.msra.mxu0 %v7648
          %7758 = vmatprep.subr.mxu0 0.0
          %7759 = vmatpush1.msra.mxu0 %v7649
          %7760 = vmatprep.subr.mxu0 0.0
          %7761 = vmatpush1.msra.mxu0 %v7650
          %7762 = vmatprep.subr.mxu0 0.0
          %7763 = vmatpush1.msra.mxu0 %v7651
          %7764 = vmatprep.subr.mxu0 0.0
          %7765 = vmatpush1.msra.mxu0 %v7652
          %7766 = vmatprep.subr.mxu0 0.0
          %7767 = vmatpush1.msra.mxu0 %v7653
          %7768 = vmatprep.subr.mxu0 0.0
          %7769 = vmatpush1.msra.mxu0 %v7654
          %7770 = vmatprep.subr.mxu0 0.0
          %7771 = vmatpush1.msra.mxu0 %v7655
          %7772 = vmatprep.subr.mxu0 0.0
          %7773 = vmatpush1.msra.mxu0 %v7656
          %7774 = vmatprep.subr.mxu0 0.0
          %7775 = vmatpush1.msra.mxu0 %v7657
          %7776 = vmatprep.subr.mxu0 0.0
          %7777 = vmatpush1.msra.mxu0 %v7658
          %7778 = vmatprep.subr.mxu0 0.0
          %7779 = vmatpush1.msra.mxu0 %v7659
          %7780 = vmatprep.subr.mxu0 0.0
          %7781 = vmatpush1.msra.mxu0 %v7660
          %7782 = vmatprep.subr.mxu0 0.0
          %7783 = vmatpush1.msra.mxu0 %v7661
          %7784 = vmatprep.subr.mxu0 0.0
          %7785 = vmatpush1.msra.mxu0 %v7662
          %7786 = vmatprep.subr.mxu0 0.0
          %7787 = vmatpush1.msra.mxu0 %v7663
          %7788 = vmatprep.subr.mxu0 0.0
          %7789 = vmatpush1.msra.mxu0 %v7664
          %7790 = vmatprep.subr.mxu0 0.0
          %7791 = vmatpush1.msra.mxu0 %v7665
          %7792 = vmatprep.subr.mxu0 0.0
          %7793 = vmatpush1.msra.mxu0 %v7666
          %7794 = vmatprep.subr.mxu0 0.0
          %7795 = vmatpush1.msra.mxu0 %v7667
          %7796 = vmatprep.subr.mxu0 0.0
          %7797 = vmatpush1.msra.mxu0 %v7668
          %7798 = vmatprep.subr.mxu0 0.0
          %7799 = vmatpush1.msra.mxu0 %v7669
          %7800 = vmatprep.subr.mxu0 0.0
          %7801 = vmatpush1.msra.mxu0 %v7670
          %7802 = vmatprep.subr.mxu0 0.0
          %7803 = vmatpush1.msra.mxu0 %v7671
          %7804 = vmatprep.subr.mxu0 0.0
          %7805 = vmatpush1.msra.mxu0 %v7672
          %7806 = vmatprep.subr.mxu0 0.0
          %7807 = vmatpush1.msra.mxu0 %v7673
          %7808 = vmatprep.subr.mxu0 0.0
          %7809 = vmatpush1.msra.mxu0 %v7674
          %7810 = vmatprep.mubr.f32.mxu0 %v7610
          %7811 = vmatmul.mubr.f32.gmra.mrb[0].mxu0 %v7609
          %v7812 = vpop.f32.mrb[0].mxu0
          %v7813 = vadd.f32 %v7743, %v7812
          %v7814 = vpop.f32.mrb[0].mxu0
          %7815 = vdwg.mxu0
          %v7816 = vxor.u32 %v7813, 2147483648
          %v7817 = vmul.f32 %v7816, 1.442695
          %v7818 = vpow.pop %v7817
          %v7819 = vadd.f32 %v7818, 1.0
          %v7820 = vrcp.pop %v7819
          %v7821 = vmul.f32 1.0, %v7820
          %7822 = vst [vmem:[%s756] sm:$0x1] %v7821
        $region128: #{tpu_custom_call.1} parent=71 // pred_fallthru
          _
        %s7823 = sand.u32 %s347, 1
        %s7824 = scalar_lea.sflag [#allocation5], %s7823
        %s7825 = sand.u32 %s347, 1
        %s7826 = smul.addr %s7825, 1024
        %s7827 = scalar_lea.vmem [#allocation23], %s7826
        %s7828 = sand.u32 %s45, 1
        %s7829 = scalar_lea.sflag [#allocation25], %s7828
        %s7830 = sand.u32 %s373, 1
        %s7831 = smul.addr %s7830, 16
        %s7832 = scalar_lea.vmem [#allocation24], %s7831
        %s7833 = sand.u32 %s45, 1
        %s7834 = scalar_lea.sflag [#allocation25], %s7833
        %s7835 = sand.u32 %s399, 1
        %s7836 = smul.addr %s7835, 16
        %s7837 = scalar_lea.vmem [#allocation26], %s7836
        %s7838 = sand.u32 %s45, 1
        %s7839 = scalar_lea.sflag [#allocation28], %s7838
        %s7840 = sand.u32 %s425, 1
        %s7841 = scalar_lea.vmem [#allocation27], %s7840
        %s7842 = sand.u32 %s45, 1
        %s7843 = scalar_lea.sflag [#allocation28], %s7842
        %s7844 = sand.u32 %s451, 1
        %s7845 = scalar_lea.vmem [#allocation29], %s7844
        // Predicated region
        $region129: #{tpu_custom_call.1} parent=71 // pred_check
          %p7846 = pneg %p357
        $region130: #{tpu_custom_call.1} parent=71 // pred_check_branch
          %7848 = sbr.rel (%p7846) target = $region132
        $region131: #{tpu_custom_call.1} parent=71 // pred_region
          %s7849 = smul.u32 16, %s50
          %s7851 = ssub.s32 16384, 16384
          %7852 = vsyncadd %s7824, %s7851
          %s7853 = smul.addr %s7849, 16
          %s7854 = smul.addr %s49, 512
          %s7855 = sadd.s32 %s7853, %s7854
          %s7856 = smul.addr %s7855, 64
          %s7857 = scalar_lea.hbm %s13, %s7856
          %s7858 = sshll.u32 %s7827, 4
          %s7859 = int_to_ptr.vmem [resolvable:$true] %s7858
          %7864 = dma.vmem_to_hbm [thread:$0]  %s7859, 16384, %s7857, %s7824, 1024, 1024, 64
        $region132: #{tpu_custom_call.1} parent=71 // pred_fallthru
          _
        // Predicated region
        $region133: #{tpu_custom_call.1} parent=71 // pred_check
          %p7865 = pneg %p383
        $region134: #{tpu_custom_call.1} parent=71 // pred_check_branch
          %7867 = sbr.rel (%p7865) target = $region136
        $region135: #{tpu_custom_call.1} parent=71 // pred_region
          %s7869 = ssub.s32 256, 256
          %7870 = vsyncadd %s7829, %s7869
          %s7871 = smul.addr %s49, 16
          %s7872 = smul.addr %s7871, 16
          %s7873 = scalar_lea.hbm %s14, %s7872
          %s7875 = sshll.u32 %s7832, 4
          %s7876 = int_to_ptr.vmem [resolvable:$true] %s7875
          %7878 = dma.vmem_to_hbm [thread:$0]  %s7876, 256, %s7873, %s7829
        $region136: #{tpu_custom_call.1} parent=71 // pred_fallthru
          _
        // Predicated region
        $region137: #{tpu_custom_call.1} parent=71 // pred_check
          %p7879 = pneg %p409
        $region138: #{tpu_custom_call.1} parent=71 // pred_check_branch
          %7881 = sbr.rel (%p7879) target = $region140
        $region139: #{tpu_custom_call.1} parent=71 // pred_region
          %s7883 = ssub.s32 256, 256
          %7884 = vsyncadd %s7834, %s7883
          %s7885 = smul.addr %s49, 16
          %s7886 = smul.addr %s7885, 16
          %s7887 = scalar_lea.hbm %s15, %s7886
          %s7889 = sshll.u32 %s7837, 4
          %s7890 = int_to_ptr.vmem [resolvable:$true] %s7889
          %7892 = dma.vmem_to_hbm [thread:$0]  %s7890, 256, %s7887, %s7834
        $region140: #{tpu_custom_call.1} parent=71 // pred_fallthru
          _
        // Predicated region
        $region141: #{tpu_custom_call.1} parent=71 // pred_check
          %p7893 = pneg %p435
        $region142: #{tpu_custom_call.1} parent=71 // pred_check_branch
          %7895 = sbr.rel (%p7893) target = $region144
        $region143: #{tpu_custom_call.1} parent=71 // pred_region
          %s7897 = ssub.s32 16, 16
          %7898 = vsyncadd %s7839, %s7897
          %s7899 = smul.addr %s49, 16
          %s7900 = scalar_lea.hbm %s16, %s7899
          %s7902 = sshll.u32 %s7841, 4
          %s7903 = int_to_ptr.vmem [resolvable:$true] %s7902
          %7905 = dma.vmem_to_hbm [thread:$0]  %s7903, 16, %s7900, %s7839
        $region144: #{tpu_custom_call.1} parent=71 // pred_fallthru
          _
        // Predicated region
        $region145: #{tpu_custom_call.1} parent=71 // pred_check
          %p7906 = pneg %p461
        $region146: #{tpu_custom_call.1} parent=71 // pred_check_branch
          %7908 = sbr.rel (%p7906) target = $region148
        $region147: #{tpu_custom_call.1} parent=71 // pred_region
          %s7910 = ssub.s32 16, 16
          %7911 = vsyncadd %s7843, %s7910
          %s7912 = smul.addr %s49, 16
          %s7913 = scalar_lea.hbm %s17, %s7912
          %s7915 = sshll.u32 %s7845, 4
          %s7916 = int_to_ptr.vmem [resolvable:$true] %s7915
          %7918 = dma.vmem_to_hbm [thread:$0]  %s7916, 16, %s7913, %s7843
        $region148: #{tpu_custom_call.1} parent=71 // pred_fallthru
          _
      $region72: #{tpu_custom_call.1} parent=5 // pred_fallthru
        _
      %p7919 = scmp.le.s32.totalorder 2, %s40
      // Predicated region
      $region149: #{tpu_custom_call.1} parent=5 // pred_check
        %p7920 = pneg %p7919
      $region150: #{tpu_custom_call.1} parent=5 // pred_check_branch
        %7922 = sbr.rel (%p7920) target = $region152
      $region151: #{tpu_custom_call.1} parent=5 // pred_region
        %s7923 = ssub.s32 %s40, 2
        // Predicated region
        $region153: #{tpu_custom_call.1} parent=151 // pred_check
          %p7924 = pneg %p363
        $region154: #{tpu_custom_call.1} parent=151 // pred_check_branch
          %7926 = sbr.rel (%p7924) target = $region156
        $region155: #{tpu_custom_call.1} parent=151 // pred_region
          %s7927 = sand.u32 %s348, 1
          %s7928 = scalar_lea.sflag [#allocation5], %s7927
          %s7929 = sand.u32 %s348, 1
          %s7930 = smul.addr %s7929, 1024
          %s7931 = scalar_lea.vmem [#allocation23], %s7930
          %7932 = dma.done %s7928, 16384
        $region156: #{tpu_custom_call.1} parent=151 // pred_fallthru
          _
        // Predicated region
        $region157: #{tpu_custom_call.1} parent=151 // pred_check
          %p7933 = pneg %p389
        $region158: #{tpu_custom_call.1} parent=151 // pred_check_branch
          %7935 = sbr.rel (%p7933) target = $region160
        $region159: #{tpu_custom_call.1} parent=151 // pred_region
          %s7936 = sand.u32 %s46, 1
          %s7937 = scalar_lea.sflag [#allocation25], %s7936
          %s7938 = sand.u32 %s374, 1
          %s7939 = smul.addr %s7938, 16
          %s7940 = scalar_lea.vmem [#allocation24], %s7939
          %7941 = dma.done %s7937, 256
        $region160: #{tpu_custom_call.1} parent=151 // pred_fallthru
          _
        // Predicated region
        $region161: #{tpu_custom_call.1} parent=151 // pred_check
          %p7942 = pneg %p415
        $region162: #{tpu_custom_call.1} parent=151 // pred_check_branch
          %7944 = sbr.rel (%p7942) target = $region164
        $region163: #{tpu_custom_call.1} parent=151 // pred_region
          %s7945 = sand.u32 %s46, 1
          %s7946 = scalar_lea.sflag [#allocation25], %s7945
          %s7947 = sand.u32 %s400, 1
          %s7948 = smul.addr %s7947, 16
          %s7949 = scalar_lea.vmem [#allocation26], %s7948
          %7950 = dma.done %s7946, 256
        $region164: #{tpu_custom_call.1} parent=151 // pred_fallthru
          _
        // Predicated region
        $region165: #{tpu_custom_call.1} parent=151 // pred_check
          %p7951 = pneg %p441
        $region166: #{tpu_custom_call.1} parent=151 // pred_check_branch
          %7953 = sbr.rel (%p7951) target = $region168
        $region167: #{tpu_custom_call.1} parent=151 // pred_region
          %s7954 = sand.u32 %s46, 1
          %s7955 = scalar_lea.sflag [#allocation28], %s7954
          %s7956 = sand.u32 %s426, 1
          %s7957 = scalar_lea.vmem [#allocation27], %s7956
          %7958 = dma.done %s7955, 16
        $region168: #{tpu_custom_call.1} parent=151 // pred_fallthru
          _
        // Predicated region
        $region169: #{tpu_custom_call.1} parent=151 // pred_check
          %p7959 = pneg %p467
        $region170: #{tpu_custom_call.1} parent=151 // pred_check_branch
          %7961 = sbr.rel (%p7959) target = $region172
        $region171: #{tpu_custom_call.1} parent=151 // pred_region
          %s7962 = sand.u32 %s46, 1
          %s7963 = scalar_lea.sflag [#allocation28], %s7962
          %s7964 = sand.u32 %s452, 1
          %s7965 = scalar_lea.vmem [#allocation29], %s7964
          %7966 = dma.done %s7963, 16
        $region172: #{tpu_custom_call.1} parent=151 // pred_fallthru
          _
      $region152: #{tpu_custom_call.1} parent=5 // pred_fallthru
        _
    $region6: #{tpu_custom_call.1} parent=1 // loop_footer
      %s44 = sadd.s32 1, %s40
    $region7: #{tpu_custom_call.1} parent=1 // loop_footer_branch
      %39 = sbr.rel target = $region3
    $region8: #{tpu_custom_call.1} parent=1 // loop_exit
      _
    %7967 = vsyncpa [#allocation4], 1
    %s7968 = scalar_lea.sflag [#allocation4], 1
    %7969 = vsyncpa %s7968, 1
    %7970 = vsyncpa [#allocation7], 1
    %7971 = vsyncpa [#allocation10], 1
    %7972 = vsyncpa [#allocation13], 1
    %7973 = vsyncpa [#allocation16], 1
    %7974 = vsyncpa [#allocation19], 1
    %7975 = vsyncpa [#allocation22], 1
    %7976 = vsyncpa [#allocation5], 1
    %s7977 = scalar_lea.sflag [#allocation5], 1
    %7978 = vsyncpa %s7977, 1
    %7979 = vsyncpa [#allocation25], 1
    %s7980 = scalar_lea.sflag [#allocation25], 1
    %7981 = vsyncpa %s7980, 1
    %7982 = vsyncpa [#allocation28], 1
    %s7983 = scalar_lea.sflag [#allocation28], 1
    %7984 = vsyncpa %s7983, 1

</llo_original>
